<compile_context>
chip_gen: v7x
topology: tpu7x:2x2x1
jax: 0.10.0
libtpu: 0.0.40
codegen_flags: <defaults>
</compile_context>

<pallas_src>
import jax
import jax.numpy as jnp
from jax import lax
from jax.experimental import pallas as pl
from jax.experimental.pallas import tpu as pltpu

EPS = 1e-5  # nn.InstanceNorm2d default eps


# ------------------------------ Pallas kernel ------------------------------ #

def _make_kernel(H, W, Cp):
    Hp, Wp = H + 2, W + 2
    NV = H * W                                # valid rows (compact layout)
    NF = H * Wp                               # conv-output rows (padded width)
    NP = ((Hp * Wp + 2 + 7) // 8) * 8         # padded-image rows (+ slack)
    inv_n = 1.0 / float(NV)

    def reflect_pad(src_ref, src_stride, pad_ref):
        """Reflection-pad an image into pad_ref (flat row-major, width Wp).

        src_ref holds the image with row stride `src_stride` (W for the
        compact input layout, Wp for the intermediate padded-width layout).
        """
        def copy_row(h, carry):
            s0 = h * src_stride
            d0 = (h + 1) * Wp
            pad_ref[pl.ds(d0 + 1, W), :] = src_ref[pl.ds(s0, W), :]
            pad_ref[pl.ds(d0, 1), :] = src_ref[pl.ds(s0 + 1, 1), :]          # left
            pad_ref[pl.ds(d0 + W + 1, 1), :] = src_ref[pl.ds(s0 + W - 2, 1), :]  # right
            return carry
        lax.fori_loop(0, H, copy_row, 0)
        # top / bottom reflected rows = copies of already-padded rows 2 / Hp-3
        pad_ref[pl.ds(0, Wp), :] = pad_ref[pl.ds(2 * Wp, Wp), :]
        pad_ref[pl.ds((Hp - 1) * Wp, Wp), :] = pad_ref[pl.ds((Hp - 3) * Wp, Wp), :]

    def conv_instnorm(src_ref, src_stride, w_ref, bias, gamma, beta,
                      pad_ref, acc_ref, relu):
        """acc_ref <- [ReLU?](InstanceNorm(Conv3x3(src))) in padded-width layout."""
        reflect_pad(src_ref, src_stride, pad_ref)

        # 3x3 conv as 9 accumulated matmuls over contiguous flat row-slices.
        acc_ref[...] = jnp.zeros((NF, Cp), jnp.float32)
        for t in range(9):
            off = (t // 3) * Wp + (t % 3)                    # ky*Wp + kx
            acc_ref[...] += jnp.dot(pad_ref[pl.ds(off, NF), :], w_ref[t],
                                    preferred_element_type=jnp.float32)
        conv = acc_ref[...]

        # Instance-norm stats over the NV valid rows only (mask the 2 junk
        # columns per image row produced by the flat formulation).
        p_idx = lax.broadcasted_iota(jnp.int32, (NF, 1), 0)
        valid = (p_idx % Wp) < W
        cm = jnp.where(valid, conv, 0.0)
        s = jnp.sum(cm, axis=0, keepdims=True)               # (1, Cp)
        ss = jnp.sum(cm * cm, axis=0, keepdims=True)         # (1, Cp)
        mean_raw = s * inv_n                                  # mean of conv
        mean = mean_raw + bias                                # mean of conv+bias
        var = ss * inv_n - mean_raw * mean_raw                # biased var
        scale = gamma * lax.rsqrt(var + EPS)
        shift = (bias - mean) * scale + beta                  # folded affine
        y = conv * scale + shift                              # == IN(conv+bias)
        if relu:
            y = jnp.maximum(y, 0.0)
        acc_ref[...] = y

    def kernel(x_ref, w1_ref, w2_ref, p_ref, out_ref, pad_ref, acc_ref):
        # Clear pad buffer (covers the slack rows read by junk-output taps).
        pad_ref[...] = jnp.zeros((NP, Cp), jnp.float32)

        b1, g1, be1 = p_ref[0:1, :], p_ref[1:2, :], p_ref[2:3, :]
        b2, g2, be2 = p_ref[3:4, :], p_ref[4:5, :], p_ref[5:6, :]

        # stage 1: relu(instance1(conv1(x)))   (input in compact H*W layout)
        conv_instnorm(x_ref, W, w1_ref, b1, g1, be1, pad_ref, acc_ref, relu=True)
        # stage 2: instance2(conv2(y1))        (y1 lives in padded-width layout)
        conv_instnorm(acc_ref, Wp, w2_ref, b2, g2, be2, pad_ref, acc_ref, relu=False)

        # residual add + compaction back to the (H*W, Cp) output layout
        def write_row(h, carry):
            out_ref[pl.ds(h * W, W), :] = (acc_ref[pl.ds(h * Wp, W), :]
                                           + x_ref[pl.ds(h * W, W), :])
            return carry
        lax.fori_loop(0, H, write_row, 0)

    return kernel, NV, NF, NP


# ------------------------------ JAX wrapper --------------------------------- #

def _prep_weight(w_oihw, Cp):
    """(Cout, Cin, 3, 3) torch layout -> (9, Cp, Cp), tap-major, patch @ W."""
    Cout, Cin, kh, kw = w_oihw.shape
    wt = jnp.transpose(w_oihw.astype(jnp.float32), (2, 3, 1, 0)).reshape(kh * kw, Cin, Cout)
    return jnp.zeros((kh * kw, Cp, Cp), jnp.float32).at[:, :Cin, :Cout].set(wt)


def _pack_params(params, C, Cp):
    rows = [params["b1"], params["g1"], params["beta1"],
            params["b2"], params["g2"], params["beta2"]]
    pk = jnp.zeros((8, Cp), jnp.float32)
    for i, r in enumerate(rows):
        pk = pk.at[i, :C].set(jnp.asarray(r, jnp.float32).reshape(-1))
    return pk


def residual_block(x_nchw, params):
    """Pallas implementation of ResidualBlock.forward (PyTorch NCHW in/out)."""
    B, C, H, W = x_nchw.shape
    Cp = ((C + 127) // 128) * 128                    # lane-dense channel pad
    kernel, NV, NF, NP = _make_kernel(H, W, Cp)

    x = jnp.transpose(x_nchw, (0, 2, 3, 1)).astype(jnp.float32).reshape(B, H * W, C)
    x = jnp.pad(x, ((0, 0), (0, 0), (0, Cp - C)))

    w1 = _prep_weight(params["w1"], Cp)
    w2 = _prep_weight(params["w2"], Cp)
    pk = _pack_params(params, C, Cp)

    grid_spec = pltpu.PrefetchScalarGridSpec(
        num_scalar_prefetch=0,
        grid=(B,),
        in_specs=[
            pl.BlockSpec((None, NV, Cp), lambda b: (b, 0, 0)),   # x (per batch)
            pl.BlockSpec((9, Cp, Cp), lambda b: (0, 0, 0)),      # w1 (resident)
            pl.BlockSpec((9, Cp, Cp), lambda b: (0, 0, 0)),      # w2 (resident)
            pl.BlockSpec((8, Cp), lambda b: (0, 0)),             # packed params
        ],
        out_specs=pl.BlockSpec((None, NV, Cp), lambda b: (b, 0, 0)),
        scratch_shapes=[
            pltpu.VMEM((NP, Cp), jnp.float32),   # reflection-padded image (flat)
            pltpu.VMEM((NF, Cp), jnp.float32),   # conv accumulator / stage output
        ],
    )

    out = pl.pallas_call(
        kernel,
        out_shape=jax.ShapeDtypeStruct((B, NV, Cp), jnp.float32),
        grid_spec=grid_spec,
        compiler_params=pltpu.CompilerParams(
            dimension_semantics=("parallel",)),     # v7x: batches across 2 TCs
    )(x, w1, w2, pk)

    out = out[:, :, :C].reshape(B, H, W, C)
    return jnp.transpose(out, (0, 3, 1, 2))


# --------------------------- pure-JAX reference ----------------------------- #

def _ref_conv(x_nhwc, w_oihw, bias):
    xp = jnp.pad(x_nhwc, ((0, 0), (1, 1), (1, 1), (0, 0)), mode="reflect")
    w_hwio = jnp.transpose(w_oihw, (2, 3, 1, 0))
    out = lax.conv_general_dilated(
        xp, w_hwio, (1, 1), "VALID",
        dimension_numbers=("NHWC", "HWIO", "NHWC"),
        precision=lax.Precision.HIGHEST)
    return out + bias.reshape(1, 1, 1, -1)


def _ref_instnorm(x, g, b):
    mean = jnp.mean(x, axis=(1, 2), keepdims=True)
    var = jnp.mean((x - mean) ** 2, axis=(1, 2), keepdims=True)
    return (x - mean) * lax.rsqrt(var + EPS) * g.reshape(1, 1, 1, -1) \
        + b.reshape(1, 1, 1, -1)


def residual_block_ref(x_nchw, params):
    x = jnp.transpose(x_nchw, (0, 2, 3, 1)).astype(jnp.float32)
    h = jnp.maximum(
        _ref_instnorm(_ref_conv(x, params["w1"], params["b1"]),
                      params["g1"], params["beta1"]), 0.0)
    h = _ref_instnorm(_ref_conv(h, params["w2"], params["b2"]),
                      params["g2"], params["beta2"])
    h = h + x
    return jnp.transpose(h, (0, 3, 1, 2))


# --------------------------------- main ------------------------------------ #

if __name__ == "__main__":
    B, C, H, W = 2, 4, 16, 16
    key = jax.random.PRNGKey(0)
    keys = jax.random.split(key, 9)

    x = jax.random.normal(keys[0], (B, C, H, W), dtype=jnp.float32)
    params = {
        "w1": 0.1 * jax.random.normal(keys[1], (C, C, 3, 3), dtype=jnp.float32),
        "b1": 0.1 * jax.random.normal(keys[2], (C,), dtype=jnp.float32),
        "g1": 1.0 + 0.1 * jax.random.normal(keys[3], (C,), dtype=jnp.float32),
        "beta1": 0.1 * jax.random.normal(keys[4], (C,), dtype=jnp.float32),
        "w2": 0.1 * jax.random.normal(keys[5], (C, C, 3, 3), dtype=jnp.float32),
        "b2": 0.1 * jax.random.normal(keys[6], (C,), dtype=jnp.float32),
        "g2": 1.0 + 0.1 * jax.random.normal(keys[7], (C,), dtype=jnp.float32),
        "beta2": 0.1 * jax.random.normal(keys[8], (C,), dtype=jnp.float32),
    }

    out = jax.block_until_ready(jax.jit(residual_block)(x, params))
    ref = jax.block_until_ready(residual_block_ref(x, params))

    assert out.shape == (B, C, H, W)
    err = float(jnp.max(jnp.abs(out - ref)))
    assert jnp.allclose(out, ref, atol=1e-3, rtol=1e-3), f"max abs err {err}"

    print("KERNEL_OK")
</pallas_src>

<mosaic_0001>
module attributes {stable_mosaic.version = 11 : i64} {
  func.func @kernel(%arg0: i32, %arg1: memref<1x256x128xf32, #tpu.memory_space<vmem>>, %arg2: memref<9x128x128xf32, #tpu.memory_space<vmem>>, %arg3: memref<9x128x128xf32, #tpu.memory_space<vmem>>, %arg4: memref<8x128xf32, #tpu.memory_space<vmem>>, %arg5: memref<1x256x128xf32, #tpu.memory_space<vmem>>, %arg6: memref<328x128xf32, #tpu.memory_space<vmem>>, %arg7: memref<288x128xf32, #tpu.memory_space<vmem>>) attributes {dimension_semantics = [#tpu.dimension_semantics<parallel>], iteration_bounds = array<i64: 2>, scalar_prefetch = 0 : i64, scratch_operands = 2 : i64, tpu.core_type = #tpu.core_type<tc>, window_params = [{transform_indices = @transform_0, window_bounds = array<i64: 1, 256, 128>}, {pipeline_mode = #tpu.pipeline_mode<synchronous>, transform_indices = @transform_1, window_bounds = array<i64: 9, 128, 128>}, {pipeline_mode = #tpu.pipeline_mode<synchronous>, transform_indices = @transform_2, window_bounds = array<i64: 9, 128, 128>}, {pipeline_mode = #tpu.pipeline_mode<synchronous>, transform_indices = @transform_3, window_bounds = array<i64: 8, 128>}, {transform_indices = @transform_4, window_bounds = array<i64: 1, 256, 128>}]} {
    %cst = arith.constant 0.000000e+00 : f32
    %0 = vector.broadcast %cst : f32 to vector<328x128xf32>
    %c0 = arith.constant 0 : index
    %c0_0 = arith.constant 0 : index
    %1 = vector.load %arg6[%c0, %c0_0] : memref<328x128xf32, #tpu.memory_space<vmem>>, vector<328x128xf32>
    tpu.vector_store %arg6[%c0, %c0_0], %0 {strides = array<i32>} : memref<328x128xf32, #tpu.memory_space<vmem>>, vector<328x128xf32>,
    %c0_1 = arith.constant 0 : index
    %c0_2 = arith.constant 0 : index
    %2 = vector.load %arg4[%c0_1, %c0_2] : memref<8x128xf32, #tpu.memory_space<vmem>>, vector<1x128xf32>
    %c1 = arith.constant 1 : index
    %c0_3 = arith.constant 0 : index
    %3 = vector.load %arg4[%c1, %c0_3] : memref<8x128xf32, #tpu.memory_space<vmem>>, vector<1x128xf32>
    %c2 = arith.constant 2 : index
    %c0_4 = arith.constant 0 : index
    %4 = vector.load %arg4[%c2, %c0_4] : memref<8x128xf32, #tpu.memory_space<vmem>>, vector<1x128xf32>
    %c3 = arith.constant 3 : index
    %c0_5 = arith.constant 0 : index
    %5 = vector.load %arg4[%c3, %c0_5] : memref<8x128xf32, #tpu.memory_space<vmem>>, vector<1x128xf32>
    %c4 = arith.constant 4 : index
    %c0_6 = arith.constant 0 : index
    %6 = vector.load %arg4[%c4, %c0_6] : memref<8x128xf32, #tpu.memory_space<vmem>>, vector<1x128xf32>
    %c5 = arith.constant 5 : index
    %c0_7 = arith.constant 0 : index
    %7 = vector.load %arg4[%c5, %c0_7] : memref<8x128xf32, #tpu.memory_space<vmem>>, vector<1x128xf32>
    %c0_i32 = arith.constant 0 : i32
    %c16_i32 = arith.constant 16 : i32
    %8 = arith.addi %c0_i32, %c16_i32 : i32
    %c1_i32 = arith.constant 1 : i32
    scf.for %arg8 = %c0_i32 to %8 step %c1_i32  : i32 {
      %c16_i32_242 = arith.constant 16 : i32
      %247 = arith.muli %arg8, %c16_i32_242 : i32
      %c1_i32_243 = arith.constant 1 : i32
      %248 = arith.addi %arg8, %c1_i32_243 : i32
      %c18_i32_244 = arith.constant 18 : i32
      %249 = arith.muli %248, %c18_i32_244 : i32
      %c0_245 = arith.constant 0 : index
      %250 = arith.index_cast %247 : i32 to index
      %c0_246 = arith.constant 0 : index
      %251 = vector.load %arg1[%c0_245, %250, %c0_246] : memref<1x256x128xf32, #tpu.memory_space<vmem>>, vector<1x16x128xf32>
      %252 = vector.shape_cast %251 : vector<1x16x128xf32> to vector<16x128xf32>
      %c1_i32_247 = arith.constant 1 : i32
      %253 = arith.addi %249, %c1_i32_247 : i32
      %254 = arith.index_cast %253 : i32 to index
      %c0_248 = arith.constant 0 : index
      %255 = vector.load %arg6[%254, %c0_248] : memref<328x128xf32, #tpu.memory_space<vmem>>, vector<16x128xf32>
      tpu.vector_store %arg6[%254, %c0_248], %252 {strides = array<i32>} : memref<328x128xf32, #tpu.memory_space<vmem>>, vector<16x128xf32>,
      %c1_i32_249 = arith.constant 1 : i32
      %256 = arith.addi %247, %c1_i32_249 : i32
      %c0_250 = arith.constant 0 : index
      %257 = arith.index_cast %256 : i32 to index
      %c0_251 = arith.constant 0 : index
      %258 = vector.load %arg1[%c0_250, %257, %c0_251] : memref<1x256x128xf32, #tpu.memory_space<vmem>>, vector<1x1x128xf32>
      %259 = vector.shape_cast %258 : vector<1x1x128xf32> to vector<1x128xf32>
      %260 = arith.index_cast %249 : i32 to index
      %c0_252 = arith.constant 0 : index
      %261 = vector.load %arg6[%260, %c0_252] : memref<328x128xf32, #tpu.memory_space<vmem>>, vector<1x128xf32>
      tpu.vector_store %arg6[%260, %c0_252], %259 {strides = array<i32>} : memref<328x128xf32, #tpu.memory_space<vmem>>, vector<1x128xf32>,
      %c16_i32_253 = arith.constant 16 : i32
      %262 = arith.addi %247, %c16_i32_253 : i32
      %c2_i32 = arith.constant 2 : i32
      %263 = arith.subi %262, %c2_i32 : i32
      %c0_254 = arith.constant 0 : index
      %264 = arith.index_cast %263 : i32 to index
      %c0_255 = arith.constant 0 : index
      %265 = vector.load %arg1[%c0_254, %264, %c0_255] : memref<1x256x128xf32, #tpu.memory_space<vmem>>, vector<1x1x128xf32>
      %266 = vector.shape_cast %265 : vector<1x1x128xf32> to vector<1x128xf32>
      %c16_i32_256 = arith.constant 16 : i32
      %267 = arith.addi %249, %c16_i32_256 : i32
      %c1_i32_257 = arith.constant 1 : i32
      %268 = arith.addi %267, %c1_i32_257 : i32
      %269 = arith.index_cast %268 : i32 to index
      %c0_258 = arith.constant 0 : index
      %270 = vector.load %arg6[%269, %c0_258] : memref<328x128xf32, #tpu.memory_space<vmem>>, vector<1x128xf32>
      tpu.vector_store %arg6[%269, %c0_258], %266 {strides = array<i32>} : memref<328x128xf32, #tpu.memory_space<vmem>>, vector<1x128xf32>,
    }
    %c16_i32_8 = arith.constant 16 : i32
    %c36 = arith.constant 36 : index
    %c0_9 = arith.constant 0 : index
    %9 = vector.load %arg6[%c36, %c0_9] : memref<328x128xf32, #tpu.memory_space<vmem>>, vector<18x128xf32>
    %c0_10 = arith.constant 0 : index
    %c0_11 = arith.constant 0 : index
    %10 = vector.load %arg6[%c0_10, %c0_11] : memref<328x128xf32, #tpu.memory_space<vmem>>, vector<18x128xf32>
    tpu.vector_store %arg6[%c0_10, %c0_11], %9 {strides = array<i32>} : memref<328x128xf32, #tpu.memory_space<vmem>>, vector<18x128xf32>,
    %c270 = arith.constant 270 : index
    %c0_12 = arith.constant 0 : index
    %11 = vector.load %arg6[%c270, %c0_12] : memref<328x128xf32, #tpu.memory_space<vmem>>, vector<18x128xf32>
    %c306 = arith.constant 306 : index
    %c0_13 = arith.constant 0 : index
    %12 = vector.load %arg6[%c306, %c0_13] : memref<328x128xf32, #tpu.memory_space<vmem>>, vector<18x128xf32>
    tpu.vector_store %arg6[%c306, %c0_13], %11 {strides = array<i32>} : memref<328x128xf32, #tpu.memory_space<vmem>>, vector<18x128xf32>,
    %cst_14 = arith.constant 0.000000e+00 : f32
    %13 = vector.broadcast %cst_14 : f32 to vector<288x128xf32>
    %c0_15 = arith.constant 0 : index
    %c0_16 = arith.constant 0 : index
    %14 = vector.load %arg7[%c0_15, %c0_16] : memref<288x128xf32, #tpu.memory_space<vmem>>, vector<288x128xf32>
    tpu.vector_store %arg7[%c0_15, %c0_16], %13 {strides = array<i32>} : memref<288x128xf32, #tpu.memory_space<vmem>>, vector<288x128xf32>,
    %c0_17 = arith.constant 0 : index
    %c0_18 = arith.constant 0 : index
    %15 = vector.load %arg7[%c0_17, %c0_18] : memref<288x128xf32, #tpu.memory_space<vmem>>, vector<288x128xf32>
    %c0_19 = arith.constant 0 : index
    %c0_20 = arith.constant 0 : index
    %16 = vector.load %arg6[%c0_19, %c0_20] : memref<328x128xf32, #tpu.memory_space<vmem>>, vector<288x128xf32>
    %c0_21 = arith.constant 0 : index
    %c0_22 = arith.constant 0 : index
    %c0_23 = arith.constant 0 : index
    %17 = vector.load %arg2[%c0_21, %c0_22, %c0_23] : memref<9x128x128xf32, #tpu.memory_space<vmem>>, vector<1x128x128xf32>
    %18 = vector.shape_cast %17 : vector<1x128x128xf32> to vector<128x128xf32>
    %cst_24 = arith.constant dense<0.000000e+00> : vector<288x128xf32>
    %19 = tpu.matmul %16, %18, %cst_24 {dimension_numbers = #tpu.dot_dimension_numbers<[1], [0], [0], [1], [0, 0, 1, 1], [], []>} : vector<288x128xf32>, vector<128x128xf32>, vector<288x128xf32> -> vector<288x128xf32>
    %20 = arith.addf %15, %19 : vector<288x128xf32>
    %c0_25 = arith.constant 0 : index
    %c0_26 = arith.constant 0 : index
    %21 = vector.load %arg7[%c0_25, %c0_26] : memref<288x128xf32, #tpu.memory_space<vmem>>, vector<288x128xf32>
    tpu.vector_store %arg7[%c0_25, %c0_26], %20 {strides = array<i32>} : memref<288x128xf32, #tpu.memory_space<vmem>>, vector<288x128xf32>,
    %c0_27 = arith.constant 0 : index
    %c0_28 = arith.constant 0 : index
    %22 = vector.load %arg7[%c0_27, %c0_28] : memref<288x128xf32, #tpu.memory_space<vmem>>, vector<288x128xf32>
    %c1_29 = arith.constant 1 : index
    %c0_30 = arith.constant 0 : index
    %23 = vector.load %arg6[%c1_29, %c0_30] : memref<328x128xf32, #tpu.memory_space<vmem>>, vector<288x128xf32>
    %c1_31 = arith.constant 1 : index
    %c0_32 = arith.constant 0 : index
    %c0_33 = arith.constant 0 : index
    %24 = vector.load %arg2[%c1_31, %c0_32, %c0_33] : memref<9x128x128xf32, #tpu.memory_space<vmem>>, vector<1x128x128xf32>
    %25 = vector.shape_cast %24 : vector<1x128x128xf32> to vector<128x128xf32>
    %cst_34 = arith.constant dense<0.000000e+00> : vector<288x128xf32>
    %26 = tpu.matmul %23, %25, %cst_34 {dimension_numbers = #tpu.dot_dimension_numbers<[1], [0], [0], [1], [0, 0, 1, 1], [], []>} : vector<288x128xf32>, vector<128x128xf32>, vector<288x128xf32> -> vector<288x128xf32>
    %27 = arith.addf %22, %26 : vector<288x128xf32>
    %c0_35 = arith.constant 0 : index
    %c0_36 = arith.constant 0 : index
    %28 = vector.load %arg7[%c0_35, %c0_36] : memref<288x128xf32, #tpu.memory_space<vmem>>, vector<288x128xf32>
    tpu.vector_store %arg7[%c0_35, %c0_36], %27 {strides = array<i32>} : memref<288x128xf32, #tpu.memory_space<vmem>>, vector<288x128xf32>,
    %c0_37 = arith.constant 0 : index
    %c0_38 = arith.constant 0 : index
    %29 = vector.load %arg7[%c0_37, %c0_38] : memref<288x128xf32, #tpu.memory_space<vmem>>, vector<288x128xf32>
    %c2_39 = arith.constant 2 : index
    %c0_40 = arith.constant 0 : index
    %30 = vector.load %arg6[%c2_39, %c0_40] : memref<328x128xf32, #tpu.memory_space<vmem>>, vector<288x128xf32>
    %c2_41 = arith.constant 2 : index
    %c0_42 = arith.constant 0 : index
    %c0_43 = arith.constant 0 : index
    %31 = vector.load %arg2[%c2_41, %c0_42, %c0_43] : memref<9x128x128xf32, #tpu.memory_space<vmem>>, vector<1x128x128xf32>
    %32 = vector.shape_cast %31 : vector<1x128x128xf32> to vector<128x128xf32>
    %cst_44 = arith.constant dense<0.000000e+00> : vector<288x128xf32>
    %33 = tpu.matmul %30, %32, %cst_44 {dimension_numbers = #tpu.dot_dimension_numbers<[1], [0], [0], [1], [0, 0, 1, 1], [], []>} : vector<288x128xf32>, vector<128x128xf32>, vector<288x128xf32> -> vector<288x128xf32>
    %34 = arith.addf %29, %33 : vector<288x128xf32>
    %c0_45 = arith.constant 0 : index
    %c0_46 = arith.constant 0 : index
    %35 = vector.load %arg7[%c0_45, %c0_46] : memref<288x128xf32, #tpu.memory_space<vmem>>, vector<288x128xf32>
    tpu.vector_store %arg7[%c0_45, %c0_46], %34 {strides = array<i32>} : memref<288x128xf32, #tpu.memory_space<vmem>>, vector<288x128xf32>,
    %c0_47 = arith.constant 0 : index
    %c0_48 = arith.constant 0 : index
    %36 = vector.load %arg7[%c0_47, %c0_48] : memref<288x128xf32, #tpu.memory_space<vmem>>, vector<288x128xf32>
    %c18 = arith.constant 18 : index
    %c0_49 = arith.constant 0 : index
    %37 = vector.load %arg6[%c18, %c0_49] : memref<328x128xf32, #tpu.memory_space<vmem>>, vector<288x128xf32>
    %c3_50 = arith.constant 3 : index
    %c0_51 = arith.constant 0 : index
    %c0_52 = arith.constant 0 : index
    %38 = vector.load %arg2[%c3_50, %c0_51, %c0_52] : memref<9x128x128xf32, #tpu.memory_space<vmem>>, vector<1x128x128xf32>
    %39 = vector.shape_cast %38 : vector<1x128x128xf32> to vector<128x128xf32>
    %cst_53 = arith.constant dense<0.000000e+00> : vector<288x128xf32>
    %40 = tpu.matmul %37, %39, %cst_53 {dimension_numbers = #tpu.dot_dimension_numbers<[1], [0], [0], [1], [0, 0, 1, 1], [], []>} : vector<288x128xf32>, vector<128x128xf32>, vector<288x128xf32> -> vector<288x128xf32>
    %41 = arith.addf %36, %40 : vector<288x128xf32>
    %c0_54 = arith.constant 0 : index
    %c0_55 = arith.constant 0 : index
    %42 = vector.load %arg7[%c0_54, %c0_55] : memref<288x128xf32, #tpu.memory_space<vmem>>, vector<288x128xf32>
    tpu.vector_store %arg7[%c0_54, %c0_55], %41 {strides = array<i32>} : memref<288x128xf32, #tpu.memory_space<vmem>>, vector<288x128xf32>,
    %c0_56 = arith.constant 0 : index
    %c0_57 = arith.constant 0 : index
    %43 = vector.load %arg7[%c0_56, %c0_57] : memref<288x128xf32, #tpu.memory_space<vmem>>, vector<288x128xf32>
    %c19 = arith.constant 19 : index
    %c0_58 = arith.constant 0 : index
    %44 = vector.load %arg6[%c19, %c0_58] : memref<328x128xf32, #tpu.memory_space<vmem>>, vector<288x128xf32>
    %c4_59 = arith.constant 4 : index
    %c0_60 = arith.constant 0 : index
    %c0_61 = arith.constant 0 : index
    %45 = vector.load %arg2[%c4_59, %c0_60, %c0_61] : memref<9x128x128xf32, #tpu.memory_space<vmem>>, vector<1x128x128xf32>
    %46 = vector.shape_cast %45 : vector<1x128x128xf32> to vector<128x128xf32>
    %cst_62 = arith.constant dense<0.000000e+00> : vector<288x128xf32>
    %47 = tpu.matmul %44, %46, %cst_62 {dimension_numbers = #tpu.dot_dimension_numbers<[1], [0], [0], [1], [0, 0, 1, 1], [], []>} : vector<288x128xf32>, vector<128x128xf32>, vector<288x128xf32> -> vector<288x128xf32>
    %48 = arith.addf %43, %47 : vector<288x128xf32>
    %c0_63 = arith.constant 0 : index
    %c0_64 = arith.constant 0 : index
    %49 = vector.load %arg7[%c0_63, %c0_64] : memref<288x128xf32, #tpu.memory_space<vmem>>, vector<288x128xf32>
    tpu.vector_store %arg7[%c0_63, %c0_64], %48 {strides = array<i32>} : memref<288x128xf32, #tpu.memory_space<vmem>>, vector<288x128xf32>,
    %c0_65 = arith.constant 0 : index
    %c0_66 = arith.constant 0 : index
    %50 = vector.load %arg7[%c0_65, %c0_66] : memref<288x128xf32, #tpu.memory_space<vmem>>, vector<288x128xf32>
    %c20 = arith.constant 20 : index
    %c0_67 = arith.constant 0 : index
    %51 = vector.load %arg6[%c20, %c0_67] : memref<328x128xf32, #tpu.memory_space<vmem>>, vector<288x128xf32>
    %c5_68 = arith.constant 5 : index
    %c0_69 = arith.constant 0 : index
    %c0_70 = arith.constant 0 : index
    %52 = vector.load %arg2[%c5_68, %c0_69, %c0_70] : memref<9x128x128xf32, #tpu.memory_space<vmem>>, vector<1x128x128xf32>
    %53 = vector.shape_cast %52 : vector<1x128x128xf32> to vector<128x128xf32>
    %cst_71 = arith.constant dense<0.000000e+00> : vector<288x128xf32>
    %54 = tpu.matmul %51, %53, %cst_71 {dimension_numbers = #tpu.dot_dimension_numbers<[1], [0], [0], [1], [0, 0, 1, 1], [], []>} : vector<288x128xf32>, vector<128x128xf32>, vector<288x128xf32> -> vector<288x128xf32>
    %55 = arith.addf %50, %54 : vector<288x128xf32>
    %c0_72 = arith.constant 0 : index
    %c0_73 = arith.constant 0 : index
    %56 = vector.load %arg7[%c0_72, %c0_73] : memref<288x128xf32, #tpu.memory_space<vmem>>, vector<288x128xf32>
    tpu.vector_store %arg7[%c0_72, %c0_73], %55 {strides = array<i32>} : memref<288x128xf32, #tpu.memory_space<vmem>>, vector<288x128xf32>,
    %c0_74 = arith.constant 0 : index
    %c0_75 = arith.constant 0 : index
    %57 = vector.load %arg7[%c0_74, %c0_75] : memref<288x128xf32, #tpu.memory_space<vmem>>, vector<288x128xf32>
    %c36_76 = arith.constant 36 : index
    %c0_77 = arith.constant 0 : index
    %58 = vector.load %arg6[%c36_76, %c0_77] : memref<328x128xf32, #tpu.memory_space<vmem>>, vector<288x128xf32>
    %c6 = arith.constant 6 : index
    %c0_78 = arith.constant 0 : index
    %c0_79 = arith.constant 0 : index
    %59 = vector.load %arg2[%c6, %c0_78, %c0_79] : memref<9x128x128xf32, #tpu.memory_space<vmem>>, vector<1x128x128xf32>
    %60 = vector.shape_cast %59 : vector<1x128x128xf32> to vector<128x128xf32>
    %cst_80 = arith.constant dense<0.000000e+00> : vector<288x128xf32>
    %61 = tpu.matmul %58, %60, %cst_80 {dimension_numbers = #tpu.dot_dimension_numbers<[1], [0], [0], [1], [0, 0, 1, 1], [], []>} : vector<288x128xf32>, vector<128x128xf32>, vector<288x128xf32> -> vector<288x128xf32>
    %62 = arith.addf %57, %61 : vector<288x128xf32>
    %c0_81 = arith.constant 0 : index
    %c0_82 = arith.constant 0 : index
    %63 = vector.load %arg7[%c0_81, %c0_82] : memref<288x128xf32, #tpu.memory_space<vmem>>, vector<288x128xf32>
    tpu.vector_store %arg7[%c0_81, %c0_82], %62 {strides = array<i32>} : memref<288x128xf32, #tpu.memory_space<vmem>>, vector<288x128xf32>,
    %c0_83 = arith.constant 0 : index
    %c0_84 = arith.constant 0 : index
    %64 = vector.load %arg7[%c0_83, %c0_84] : memref<288x128xf32, #tpu.memory_space<vmem>>, vector<288x128xf32>
    %c37 = arith.constant 37 : index
    %c0_85 = arith.constant 0 : index
    %65 = vector.load %arg6[%c37, %c0_85] : memref<328x128xf32, #tpu.memory_space<vmem>>, vector<288x128xf32>
    %c7 = arith.constant 7 : index
    %c0_86 = arith.constant 0 : index
    %c0_87 = arith.constant 0 : index
    %66 = vector.load %arg2[%c7, %c0_86, %c0_87] : memref<9x128x128xf32, #tpu.memory_space<vmem>>, vector<1x128x128xf32>
    %67 = vector.shape_cast %66 : vector<1x128x128xf32> to vector<128x128xf32>
    %cst_88 = arith.constant dense<0.000000e+00> : vector<288x128xf32>
    %68 = tpu.matmul %65, %67, %cst_88 {dimension_numbers = #tpu.dot_dimension_numbers<[1], [0], [0], [1], [0, 0, 1, 1], [], []>} : vector<288x128xf32>, vector<128x128xf32>, vector<288x128xf32> -> vector<288x128xf32>
    %69 = arith.addf %64, %68 : vector<288x128xf32>
    %c0_89 = arith.constant 0 : index
    %c0_90 = arith.constant 0 : index
    %70 = vector.load %arg7[%c0_89, %c0_90] : memref<288x128xf32, #tpu.memory_space<vmem>>, vector<288x128xf32>
    tpu.vector_store %arg7[%c0_89, %c0_90], %69 {strides = array<i32>} : memref<288x128xf32, #tpu.memory_space<vmem>>, vector<288x128xf32>,
    %c0_91 = arith.constant 0 : index
    %c0_92 = arith.constant 0 : index
    %71 = vector.load %arg7[%c0_91, %c0_92] : memref<288x128xf32, #tpu.memory_space<vmem>>, vector<288x128xf32>
    %c38 = arith.constant 38 : index
    %c0_93 = arith.constant 0 : index
    %72 = vector.load %arg6[%c38, %c0_93] : memref<328x128xf32, #tpu.memory_space<vmem>>, vector<288x128xf32>
    %c8 = arith.constant 8 : index
    %c0_94 = arith.constant 0 : index
    %c0_95 = arith.constant 0 : index
    %73 = vector.load %arg2[%c8, %c0_94, %c0_95] : memref<9x128x128xf32, #tpu.memory_space<vmem>>, vector<1x128x128xf32>
    %74 = vector.shape_cast %73 : vector<1x128x128xf32> to vector<128x128xf32>
    %cst_96 = arith.constant dense<0.000000e+00> : vector<288x128xf32>
    %75 = tpu.matmul %72, %74, %cst_96 {dimension_numbers = #tpu.dot_dimension_numbers<[1], [0], [0], [1], [0, 0, 1, 1], [], []>} : vector<288x128xf32>, vector<128x128xf32>, vector<288x128xf32> -> vector<288x128xf32>
    %76 = arith.addf %71, %75 : vector<288x128xf32>
    %c0_97 = arith.constant 0 : index
    %c0_98 = arith.constant 0 : index
    %77 = vector.load %arg7[%c0_97, %c0_98] : memref<288x128xf32, #tpu.memory_space<vmem>>, vector<288x128xf32>
    tpu.vector_store %arg7[%c0_97, %c0_98], %76 {strides = array<i32>} : memref<288x128xf32, #tpu.memory_space<vmem>>, vector<288x128xf32>,
    %c0_99 = arith.constant 0 : index
    %c0_100 = arith.constant 0 : index
    %78 = vector.load %arg7[%c0_99, %c0_100] : memref<288x128xf32, #tpu.memory_space<vmem>>, vector<288x128xf32>
    %79 = tpu.iota {dimensions = array<i32: 0>} : vector<288x1xi32>
    %c18_i32 = arith.constant 18 : i32
    %c0_i32_101 = arith.constant 0 : i32
    %80 = arith.cmpi eq, %c18_i32, %c0_i32_101 : i32
    %c1_i32_102 = arith.constant 1 : i32
    %81 = arith.select %80, %c1_i32_102, %c18_i32 : i32
    %82 = vector.broadcast %81 : i32 to vector<288x1xi32>
    %83 = arith.remsi %79, %82 : vector<288x1xi32>
    %c0_i32_103 = arith.constant 0 : i32
    %84 = vector.broadcast %c0_i32_103 : i32 to vector<288x1xi32>
    %85 = arith.cmpi ne, %83, %84 : vector<288x1xi32>
    %c0_i32_104 = arith.constant 0 : i32
    %86 = vector.broadcast %c0_i32_104 : i32 to vector<288x1xi32>
    %87 = arith.cmpi slt, %83, %86 : vector<288x1xi32>
    %c0_i32_105 = arith.constant 0 : i32
    %88 = arith.cmpi slt, %81, %c0_i32_105 : i32
    %89 = vector.broadcast %88 : i1 to vector<288x1xi1>
    %90 = vector.broadcast %89 : vector<288x1xi1> to vector<288x1xi1>
    %91 = arith.xori %87, %90 : vector<288x1xi1>
    %92 = arith.andi %91, %85 : vector<288x1xi1>
    %93 = vector.broadcast %81 : i32 to vector<288x1xi32>
    %94 = arith.addi %83, %93 : vector<288x1xi32>
    %95 = arith.select %92, %94, %83 : vector<288x1xi1>, vector<288x1xi32>
    %c16_i32_106 = arith.constant 16 : i32
    %96 = vector.broadcast %c16_i32_106 : i32 to vector<288x1xi32>
    %97 = arith.cmpi slt, %95, %96 : vector<288x1xi32>
    %cst_107 = arith.constant 0.000000e+00 : f32
    %98 = vector.shape_cast %97 : vector<288x1xi1> to vector<288x1xi1>
    %99 = vector.broadcast %98 : vector<288x1xi1> to vector<288x128xi1>
    %100 = vector.broadcast %cst_107 : f32 to vector<288x128xf32>
    %101 = arith.select %99, %78, %100 : vector<288x128xi1>, vector<288x128xf32>
    %cst_108 = arith.constant dense<0.000000e+00> : vector<128xf32>
    %102 = vector.multi_reduction <add>, %101, %cst_108 [0] : vector<288x128xf32> to vector<128xf32>
    %103 = vector.shape_cast %102 : vector<128xf32> to vector<1x128xf32>
    %104 = arith.mulf %101, %101 : vector<288x128xf32>
    %cst_109 = arith.constant dense<0.000000e+00> : vector<128xf32>
    %105 = vector.multi_reduction <add>, %104, %cst_109 [0] : vector<288x128xf32> to vector<128xf32>
    %106 = vector.shape_cast %105 : vector<128xf32> to vector<1x128xf32>
    %cst_110 = arith.constant 3.906250e-03 : f32
    %107 = vector.broadcast %cst_110 : f32 to vector<1x128xf32>
    %108 = arith.mulf %103, %107 : vector<1x128xf32>
    %109 = arith.addf %108, %2 : vector<1x128xf32>
    %cst_111 = arith.constant 3.906250e-03 : f32
    %110 = vector.broadcast %cst_111 : f32 to vector<1x128xf32>
    %111 = arith.mulf %106, %110 : vector<1x128xf32>
    %112 = arith.mulf %108, %108 : vector<1x128xf32>
    %113 = arith.subf %111, %112 : vector<1x128xf32>
    %cst_112 = arith.constant 9.99999974E-6 : f32
    %114 = vector.broadcast %cst_112 : f32 to vector<1x128xf32>
    %115 = arith.addf %113, %114 : vector<1x128xf32>
    %116 = math.rsqrt %115 : vector<1x128xf32>
    %117 = arith.mulf %3, %116 : vector<1x128xf32>
    %118 = arith.subf %2, %109 : vector<1x128xf32>
    %119 = arith.mulf %118, %117 : vector<1x128xf32>
    %120 = arith.addf %119, %4 : vector<1x128xf32>
    %121 = vector.broadcast %117 : vector<1x128xf32> to vector<288x128xf32>
    %122 = arith.mulf %78, %121 : vector<288x128xf32>
    %123 = vector.broadcast %120 : vector<1x128xf32> to vector<288x128xf32>
    %124 = arith.addf %122, %123 : vector<288x128xf32>
    %cst_113 = arith.constant 0.000000e+00 : f32
    %125 = vector.broadcast %cst_113 : f32 to vector<288x128xf32>
    %126 = arith.maximumf %124, %125 : vector<288x128xf32>
    %c0_114 = arith.constant 0 : index
    %c0_115 = arith.constant 0 : index
    %127 = vector.load %arg7[%c0_114, %c0_115] : memref<288x128xf32, #tpu.memory_space<vmem>>, vector<288x128xf32>
    tpu.vector_store %arg7[%c0_114, %c0_115], %126 {strides = array<i32>} : memref<288x128xf32, #tpu.memory_space<vmem>>, vector<288x128xf32>,
    %c0_i32_116 = arith.constant 0 : i32
    %c16_i32_117 = arith.constant 16 : i32
    %128 = arith.addi %c0_i32_116, %c16_i32_117 : i32
    %c1_i32_118 = arith.constant 1 : i32
    scf.for %arg8 = %c0_i32_116 to %128 step %c1_i32_118  : i32 {
      %c18_i32_242 = arith.constant 18 : i32
      %247 = arith.muli %arg8, %c18_i32_242 : i32
      %c1_i32_243 = arith.constant 1 : i32
      %248 = arith.addi %arg8, %c1_i32_243 : i32
      %c18_i32_244 = arith.constant 18 : i32
      %249 = arith.muli %248, %c18_i32_244 : i32
      %250 = arith.index_cast %247 : i32 to index
      %c0_245 = arith.constant 0 : index
      %251 = vector.load %arg7[%250, %c0_245] : memref<288x128xf32, #tpu.memory_space<vmem>>, vector<16x128xf32>
      %c1_i32_246 = arith.constant 1 : i32
      %252 = arith.addi %249, %c1_i32_246 : i32
      %253 = arith.index_cast %252 : i32 to index
      %c0_247 = arith.constant 0 : index
      %254 = vector.load %arg6[%253, %c0_247] : memref<328x128xf32, #tpu.memory_space<vmem>>, vector<16x128xf32>
      tpu.vector_store %arg6[%253, %c0_247], %251 {strides = array<i32>} : memref<328x128xf32, #tpu.memory_space<vmem>>, vector<16x128xf32>,
      %c1_i32_248 = arith.constant 1 : i32
      %255 = arith.addi %247, %c1_i32_248 : i32
      %256 = arith.index_cast %255 : i32 to index
      %c0_249 = arith.constant 0 : index
      %257 = vector.load %arg7[%256, %c0_249] : memref<288x128xf32, #tpu.memory_space<vmem>>, vector<1x128xf32>
      %258 = arith.index_cast %249 : i32 to index
      %c0_250 = arith.constant 0 : index
      %259 = vector.load %arg6[%258, %c0_250] : memref<328x128xf32, #tpu.memory_space<vmem>>, vector<1x128xf32>
      tpu.vector_store %arg6[%258, %c0_250], %257 {strides = array<i32>} : memref<328x128xf32, #tpu.memory_space<vmem>>, vector<1x128xf32>,
      %c16_i32_251 = arith.constant 16 : i32
      %260 = arith.addi %247, %c16_i32_251 : i32
      %c2_i32 = arith.constant 2 : i32
      %261 = arith.subi %260, %c2_i32 : i32
      %262 = arith.index_cast %261 : i32 to index
      %c0_252 = arith.constant 0 : index
      %263 = vector.load %arg7[%262, %c0_252] : memref<288x128xf32, #tpu.memory_space<vmem>>, vector<1x128xf32>
      %c16_i32_253 = arith.constant 16 : i32
      %264 = arith.addi %249, %c16_i32_253 : i32
      %c1_i32_254 = arith.constant 1 : i32
      %265 = arith.addi %264, %c1_i32_254 : i32
      %266 = arith.index_cast %265 : i32 to index
      %c0_255 = arith.constant 0 : index
      %267 = vector.load %arg6[%266, %c0_255] : memref<328x128xf32, #tpu.memory_space<vmem>>, vector<1x128xf32>
      tpu.vector_store %arg6[%266, %c0_255], %263 {strides = array<i32>} : memref<328x128xf32, #tpu.memory_space<vmem>>, vector<1x128xf32>,
    }
    %c16_i32_119 = arith.constant 16 : i32
    %c36_120 = arith.constant 36 : index
    %c0_121 = arith.constant 0 : index
    %129 = vector.load %arg6[%c36_120, %c0_121] : memref<328x128xf32, #tpu.memory_space<vmem>>, vector<18x128xf32>
    %c0_122 = arith.constant 0 : index
    %c0_123 = arith.constant 0 : index
    %130 = vector.load %arg6[%c0_122, %c0_123] : memref<328x128xf32, #tpu.memory_space<vmem>>, vector<18x128xf32>
    tpu.vector_store %arg6[%c0_122, %c0_123], %129 {strides = array<i32>} : memref<328x128xf32, #tpu.memory_space<vmem>>, vector<18x128xf32>,
    %c270_124 = arith.constant 270 : index
    %c0_125 = arith.constant 0 : index
    %131 = vector.load %arg6[%c270_124, %c0_125] : memref<328x128xf32, #tpu.memory_space<vmem>>, vector<18x128xf32>
    %c306_126 = arith.constant 306 : index
    %c0_127 = arith.constant 0 : index
    %132 = vector.load %arg6[%c306_126, %c0_127] : memref<328x128xf32, #tpu.memory_space<vmem>>, vector<18x128xf32>
    tpu.vector_store %arg6[%c306_126, %c0_127], %131 {strides = array<i32>} : memref<328x128xf32, #tpu.memory_space<vmem>>, vector<18x128xf32>,
    %cst_128 = arith.constant 0.000000e+00 : f32
    %133 = vector.broadcast %cst_128 : f32 to vector<288x128xf32>
    %c0_129 = arith.constant 0 : index
    %c0_130 = arith.constant 0 : index
    %134 = vector.load %arg7[%c0_129, %c0_130] : memref<288x128xf32, #tpu.memory_space<vmem>>, vector<288x128xf32>
    tpu.vector_store %arg7[%c0_129, %c0_130], %133 {strides = array<i32>} : memref<288x128xf32, #tpu.memory_space<vmem>>, vector<288x128xf32>,
    %c0_131 = arith.constant 0 : index
    %c0_132 = arith.constant 0 : index
    %135 = vector.load %arg7[%c0_131, %c0_132] : memref<288x128xf32, #tpu.memory_space<vmem>>, vector<288x128xf32>
    %c0_133 = arith.constant 0 : index
    %c0_134 = arith.constant 0 : index
    %136 = vector.load %arg6[%c0_133, %c0_134] : memref<328x128xf32, #tpu.memory_space<vmem>>, vector<288x128xf32>
    %c0_135 = arith.constant 0 : index
    %c0_136 = arith.constant 0 : index
    %c0_137 = arith.constant 0 : index
    %137 = vector.load %arg3[%c0_135, %c0_136, %c0_137] : memref<9x128x128xf32, #tpu.memory_space<vmem>>, vector<1x128x128xf32>
    %138 = vector.shape_cast %137 : vector<1x128x128xf32> to vector<128x128xf32>
    %cst_138 = arith.constant dense<0.000000e+00> : vector<288x128xf32>
    %139 = tpu.matmul %136, %138, %cst_138 {dimension_numbers = #tpu.dot_dimension_numbers<[1], [0], [0], [1], [0, 0, 1, 1], [], []>} : vector<288x128xf32>, vector<128x128xf32>, vector<288x128xf32> -> vector<288x128xf32>
    %140 = arith.addf %135, %139 : vector<288x128xf32>
    %c0_139 = arith.constant 0 : index
    %c0_140 = arith.constant 0 : index
    %141 = vector.load %arg7[%c0_139, %c0_140] : memref<288x128xf32, #tpu.memory_space<vmem>>, vector<288x128xf32>
    tpu.vector_store %arg7[%c0_139, %c0_140], %140 {strides = array<i32>} : memref<288x128xf32, #tpu.memory_space<vmem>>, vector<288x128xf32>,
    %c0_141 = arith.constant 0 : index
    %c0_142 = arith.constant 0 : index
    %142 = vector.load %arg7[%c0_141, %c0_142] : memref<288x128xf32, #tpu.memory_space<vmem>>, vector<288x128xf32>
    %c1_143 = arith.constant 1 : index
    %c0_144 = arith.constant 0 : index
    %143 = vector.load %arg6[%c1_143, %c0_144] : memref<328x128xf32, #tpu.memory_space<vmem>>, vector<288x128xf32>
    %c1_145 = arith.constant 1 : index
    %c0_146 = arith.constant 0 : index
    %c0_147 = arith.constant 0 : index
    %144 = vector.load %arg3[%c1_145, %c0_146, %c0_147] : memref<9x128x128xf32, #tpu.memory_space<vmem>>, vector<1x128x128xf32>
    %145 = vector.shape_cast %144 : vector<1x128x128xf32> to vector<128x128xf32>
    %cst_148 = arith.constant dense<0.000000e+00> : vector<288x128xf32>
    %146 = tpu.matmul %143, %145, %cst_148 {dimension_numbers = #tpu.dot_dimension_numbers<[1], [0], [0], [1], [0, 0, 1, 1], [], []>} : vector<288x128xf32>, vector<128x128xf32>, vector<288x128xf32> -> vector<288x128xf32>
    %147 = arith.addf %142, %146 : vector<288x128xf32>
    %c0_149 = arith.constant 0 : index
    %c0_150 = arith.constant 0 : index
    %148 = vector.load %arg7[%c0_149, %c0_150] : memref<288x128xf32, #tpu.memory_space<vmem>>, vector<288x128xf32>
    tpu.vector_store %arg7[%c0_149, %c0_150], %147 {strides = array<i32>} : memref<288x128xf32, #tpu.memory_space<vmem>>, vector<288x128xf32>,
    %c0_151 = arith.constant 0 : index
    %c0_152 = arith.constant 0 : index
    %149 = vector.load %arg7[%c0_151, %c0_152] : memref<288x128xf32, #tpu.memory_space<vmem>>, vector<288x128xf32>
    %c2_153 = arith.constant 2 : index
    %c0_154 = arith.constant 0 : index
    %150 = vector.load %arg6[%c2_153, %c0_154] : memref<328x128xf32, #tpu.memory_space<vmem>>, vector<288x128xf32>
    %c2_155 = arith.constant 2 : index
    %c0_156 = arith.constant 0 : index
    %c0_157 = arith.constant 0 : index
    %151 = vector.load %arg3[%c2_155, %c0_156, %c0_157] : memref<9x128x128xf32, #tpu.memory_space<vmem>>, vector<1x128x128xf32>
    %152 = vector.shape_cast %151 : vector<1x128x128xf32> to vector<128x128xf32>
    %cst_158 = arith.constant dense<0.000000e+00> : vector<288x128xf32>
    %153 = tpu.matmul %150, %152, %cst_158 {dimension_numbers = #tpu.dot_dimension_numbers<[1], [0], [0], [1], [0, 0, 1, 1], [], []>} : vector<288x128xf32>, vector<128x128xf32>, vector<288x128xf32> -> vector<288x128xf32>
    %154 = arith.addf %149, %153 : vector<288x128xf32>
    %c0_159 = arith.constant 0 : index
    %c0_160 = arith.constant 0 : index
    %155 = vector.load %arg7[%c0_159, %c0_160] : memref<288x128xf32, #tpu.memory_space<vmem>>, vector<288x128xf32>
    tpu.vector_store %arg7[%c0_159, %c0_160], %154 {strides = array<i32>} : memref<288x128xf32, #tpu.memory_space<vmem>>, vector<288x128xf32>,
    %c0_161 = arith.constant 0 : index
    %c0_162 = arith.constant 0 : index
    %156 = vector.load %arg7[%c0_161, %c0_162] : memref<288x128xf32, #tpu.memory_space<vmem>>, vector<288x128xf32>
    %c18_163 = arith.constant 18 : index
    %c0_164 = arith.constant 0 : index
    %157 = vector.load %arg6[%c18_163, %c0_164] : memref<328x128xf32, #tpu.memory_space<vmem>>, vector<288x128xf32>
    %c3_165 = arith.constant 3 : index
    %c0_166 = arith.constant 0 : index
    %c0_167 = arith.constant 0 : index
    %158 = vector.load %arg3[%c3_165, %c0_166, %c0_167] : memref<9x128x128xf32, #tpu.memory_space<vmem>>, vector<1x128x128xf32>
    %159 = vector.shape_cast %158 : vector<1x128x128xf32> to vector<128x128xf32>
    %cst_168 = arith.constant dense<0.000000e+00> : vector<288x128xf32>
    %160 = tpu.matmul %157, %159, %cst_168 {dimension_numbers = #tpu.dot_dimension_numbers<[1], [0], [0], [1], [0, 0, 1, 1], [], []>} : vector<288x128xf32>, vector<128x128xf32>, vector<288x128xf32> -> vector<288x128xf32>
    %161 = arith.addf %156, %160 : vector<288x128xf32>
    %c0_169 = arith.constant 0 : index
    %c0_170 = arith.constant 0 : index
    %162 = vector.load %arg7[%c0_169, %c0_170] : memref<288x128xf32, #tpu.memory_space<vmem>>, vector<288x128xf32>
    tpu.vector_store %arg7[%c0_169, %c0_170], %161 {strides = array<i32>} : memref<288x128xf32, #tpu.memory_space<vmem>>, vector<288x128xf32>,
    %c0_171 = arith.constant 0 : index
    %c0_172 = arith.constant 0 : index
    %163 = vector.load %arg7[%c0_171, %c0_172] : memref<288x128xf32, #tpu.memory_space<vmem>>, vector<288x128xf32>
    %c19_173 = arith.constant 19 : index
    %c0_174 = arith.constant 0 : index
    %164 = vector.load %arg6[%c19_173, %c0_174] : memref<328x128xf32, #tpu.memory_space<vmem>>, vector<288x128xf32>
    %c4_175 = arith.constant 4 : index
    %c0_176 = arith.constant 0 : index
    %c0_177 = arith.constant 0 : index
    %165 = vector.load %arg3[%c4_175, %c0_176, %c0_177] : memref<9x128x128xf32, #tpu.memory_space<vmem>>, vector<1x128x128xf32>
    %166 = vector.shape_cast %165 : vector<1x128x128xf32> to vector<128x128xf32>
    %cst_178 = arith.constant dense<0.000000e+00> : vector<288x128xf32>
    %167 = tpu.matmul %164, %166, %cst_178 {dimension_numbers = #tpu.dot_dimension_numbers<[1], [0], [0], [1], [0, 0, 1, 1], [], []>} : vector<288x128xf32>, vector<128x128xf32>, vector<288x128xf32> -> vector<288x128xf32>
    %168 = arith.addf %163, %167 : vector<288x128xf32>
    %c0_179 = arith.constant 0 : index
    %c0_180 = arith.constant 0 : index
    %169 = vector.load %arg7[%c0_179, %c0_180] : memref<288x128xf32, #tpu.memory_space<vmem>>, vector<288x128xf32>
    tpu.vector_store %arg7[%c0_179, %c0_180], %168 {strides = array<i32>} : memref<288x128xf32, #tpu.memory_space<vmem>>, vector<288x128xf32>,
    %c0_181 = arith.constant 0 : index
    %c0_182 = arith.constant 0 : index
    %170 = vector.load %arg7[%c0_181, %c0_182] : memref<288x128xf32, #tpu.memory_space<vmem>>, vector<288x128xf32>
    %c20_183 = arith.constant 20 : index
    %c0_184 = arith.constant 0 : index
    %171 = vector.load %arg6[%c20_183, %c0_184] : memref<328x128xf32, #tpu.memory_space<vmem>>, vector<288x128xf32>
    %c5_185 = arith.constant 5 : index
    %c0_186 = arith.constant 0 : index
    %c0_187 = arith.constant 0 : index
    %172 = vector.load %arg3[%c5_185, %c0_186, %c0_187] : memref<9x128x128xf32, #tpu.memory_space<vmem>>, vector<1x128x128xf32>
    %173 = vector.shape_cast %172 : vector<1x128x128xf32> to vector<128x128xf32>
    %cst_188 = arith.constant dense<0.000000e+00> : vector<288x128xf32>
    %174 = tpu.matmul %171, %173, %cst_188 {dimension_numbers = #tpu.dot_dimension_numbers<[1], [0], [0], [1], [0, 0, 1, 1], [], []>} : vector<288x128xf32>, vector<128x128xf32>, vector<288x128xf32> -> vector<288x128xf32>
    %175 = arith.addf %170, %174 : vector<288x128xf32>
    %c0_189 = arith.constant 0 : index
    %c0_190 = arith.constant 0 : index
    %176 = vector.load %arg7[%c0_189, %c0_190] : memref<288x128xf32, #tpu.memory_space<vmem>>, vector<288x128xf32>
    tpu.vector_store %arg7[%c0_189, %c0_190], %175 {strides = array<i32>} : memref<288x128xf32, #tpu.memory_space<vmem>>, vector<288x128xf32>,
    %c0_191 = arith.constant 0 : index
    %c0_192 = arith.constant 0 : index
    %177 = vector.load %arg7[%c0_191, %c0_192] : memref<288x128xf32, #tpu.memory_space<vmem>>, vector<288x128xf32>
    %c36_193 = arith.constant 36 : index
    %c0_194 = arith.constant 0 : index
    %178 = vector.load %arg6[%c36_193, %c0_194] : memref<328x128xf32, #tpu.memory_space<vmem>>, vector<288x128xf32>
    %c6_195 = arith.constant 6 : index
    %c0_196 = arith.constant 0 : index
    %c0_197 = arith.constant 0 : index
    %179 = vector.load %arg3[%c6_195, %c0_196, %c0_197] : memref<9x128x128xf32, #tpu.memory_space<vmem>>, vector<1x128x128xf32>
    %180 = vector.shape_cast %179 : vector<1x128x128xf32> to vector<128x128xf32>
    %cst_198 = arith.constant dense<0.000000e+00> : vector<288x128xf32>
    %181 = tpu.matmul %178, %180, %cst_198 {dimension_numbers = #tpu.dot_dimension_numbers<[1], [0], [0], [1], [0, 0, 1, 1], [], []>} : vector<288x128xf32>, vector<128x128xf32>, vector<288x128xf32> -> vector<288x128xf32>
    %182 = arith.addf %177, %181 : vector<288x128xf32>
    %c0_199 = arith.constant 0 : index
    %c0_200 = arith.constant 0 : index
    %183 = vector.load %arg7[%c0_199, %c0_200] : memref<288x128xf32, #tpu.memory_space<vmem>>, vector<288x128xf32>
    tpu.vector_store %arg7[%c0_199, %c0_200], %182 {strides = array<i32>} : memref<288x128xf32, #tpu.memory_space<vmem>>, vector<288x128xf32>,
    %c0_201 = arith.constant 0 : index
    %c0_202 = arith.constant 0 : index
    %184 = vector.load %arg7[%c0_201, %c0_202] : memref<288x128xf32, #tpu.memory_space<vmem>>, vector<288x128xf32>
    %c37_203 = arith.constant 37 : index
    %c0_204 = arith.constant 0 : index
    %185 = vector.load %arg6[%c37_203, %c0_204] : memref<328x128xf32, #tpu.memory_space<vmem>>, vector<288x128xf32>
    %c7_205 = arith.constant 7 : index
    %c0_206 = arith.constant 0 : index
    %c0_207 = arith.constant 0 : index
    %186 = vector.load %arg3[%c7_205, %c0_206, %c0_207] : memref<9x128x128xf32, #tpu.memory_space<vmem>>, vector<1x128x128xf32>
    %187 = vector.shape_cast %186 : vector<1x128x128xf32> to vector<128x128xf32>
    %cst_208 = arith.constant dense<0.000000e+00> : vector<288x128xf32>
    %188 = tpu.matmul %185, %187, %cst_208 {dimension_numbers = #tpu.dot_dimension_numbers<[1], [0], [0], [1], [0, 0, 1, 1], [], []>} : vector<288x128xf32>, vector<128x128xf32>, vector<288x128xf32> -> vector<288x128xf32>
    %189 = arith.addf %184, %188 : vector<288x128xf32>
    %c0_209 = arith.constant 0 : index
    %c0_210 = arith.constant 0 : index
    %190 = vector.load %arg7[%c0_209, %c0_210] : memref<288x128xf32, #tpu.memory_space<vmem>>, vector<288x128xf32>
    tpu.vector_store %arg7[%c0_209, %c0_210], %189 {strides = array<i32>} : memref<288x128xf32, #tpu.memory_space<vmem>>, vector<288x128xf32>,
    %c0_211 = arith.constant 0 : index
    %c0_212 = arith.constant 0 : index
    %191 = vector.load %arg7[%c0_211, %c0_212] : memref<288x128xf32, #tpu.memory_space<vmem>>, vector<288x128xf32>
    %c38_213 = arith.constant 38 : index
    %c0_214 = arith.constant 0 : index
    %192 = vector.load %arg6[%c38_213, %c0_214] : memref<328x128xf32, #tpu.memory_space<vmem>>, vector<288x128xf32>
    %c8_215 = arith.constant 8 : index
    %c0_216 = arith.constant 0 : index
    %c0_217 = arith.constant 0 : index
    %193 = vector.load %arg3[%c8_215, %c0_216, %c0_217] : memref<9x128x128xf32, #tpu.memory_space<vmem>>, vector<1x128x128xf32>
    %194 = vector.shape_cast %193 : vector<1x128x128xf32> to vector<128x128xf32>
    %cst_218 = arith.constant dense<0.000000e+00> : vector<288x128xf32>
    %195 = tpu.matmul %192, %194, %cst_218 {dimension_numbers = #tpu.dot_dimension_numbers<[1], [0], [0], [1], [0, 0, 1, 1], [], []>} : vector<288x128xf32>, vector<128x128xf32>, vector<288x128xf32> -> vector<288x128xf32>
    %196 = arith.addf %191, %195 : vector<288x128xf32>
    %c0_219 = arith.constant 0 : index
    %c0_220 = arith.constant 0 : index
    %197 = vector.load %arg7[%c0_219, %c0_220] : memref<288x128xf32, #tpu.memory_space<vmem>>, vector<288x128xf32>
    tpu.vector_store %arg7[%c0_219, %c0_220], %196 {strides = array<i32>} : memref<288x128xf32, #tpu.memory_space<vmem>>, vector<288x128xf32>,
    %c0_221 = arith.constant 0 : index
    %c0_222 = arith.constant 0 : index
    %198 = vector.load %arg7[%c0_221, %c0_222] : memref<288x128xf32, #tpu.memory_space<vmem>>, vector<288x128xf32>
    %199 = tpu.iota {dimensions = array<i32: 0>} : vector<288x1xi32>
    %c18_i32_223 = arith.constant 18 : i32
    %c0_i32_224 = arith.constant 0 : i32
    %200 = arith.cmpi eq, %c18_i32_223, %c0_i32_224 : i32
    %c1_i32_225 = arith.constant 1 : i32
    %201 = arith.select %200, %c1_i32_225, %c18_i32_223 : i32
    %202 = vector.broadcast %201 : i32 to vector<288x1xi32>
    %203 = arith.remsi %199, %202 : vector<288x1xi32>
    %c0_i32_226 = arith.constant 0 : i32
    %204 = vector.broadcast %c0_i32_226 : i32 to vector<288x1xi32>
    %205 = arith.cmpi ne, %203, %204 : vector<288x1xi32>
    %c0_i32_227 = arith.constant 0 : i32
    %206 = vector.broadcast %c0_i32_227 : i32 to vector<288x1xi32>
    %207 = arith.cmpi slt, %203, %206 : vector<288x1xi32>
    %c0_i32_228 = arith.constant 0 : i32
    %208 = arith.cmpi slt, %201, %c0_i32_228 : i32
    %209 = vector.broadcast %208 : i1 to vector<288x1xi1>
    %210 = vector.broadcast %209 : vector<288x1xi1> to vector<288x1xi1>
    %211 = arith.xori %207, %210 : vector<288x1xi1>
    %212 = arith.andi %211, %205 : vector<288x1xi1>
    %213 = vector.broadcast %201 : i32 to vector<288x1xi32>
    %214 = arith.addi %203, %213 : vector<288x1xi32>
    %215 = arith.select %212, %214, %203 : vector<288x1xi1>, vector<288x1xi32>
    %c16_i32_229 = arith.constant 16 : i32
    %216 = vector.broadcast %c16_i32_229 : i32 to vector<288x1xi32>
    %217 = arith.cmpi slt, %215, %216 : vector<288x1xi32>
    %cst_230 = arith.constant 0.000000e+00 : f32
    %218 = vector.shape_cast %217 : vector<288x1xi1> to vector<288x1xi1>
    %219 = vector.broadcast %218 : vector<288x1xi1> to vector<288x128xi1>
    %220 = vector.broadcast %cst_230 : f32 to vector<288x128xf32>
    %221 = arith.select %219, %198, %220 : vector<288x128xi1>, vector<288x128xf32>
    %cst_231 = arith.constant dense<0.000000e+00> : vector<128xf32>
    %222 = vector.multi_reduction <add>, %221, %cst_231 [0] : vector<288x128xf32> to vector<128xf32>
    %223 = vector.shape_cast %222 : vector<128xf32> to vector<1x128xf32>
    %224 = arith.mulf %221, %221 : vector<288x128xf32>
    %cst_232 = arith.constant dense<0.000000e+00> : vector<128xf32>
    %225 = vector.multi_reduction <add>, %224, %cst_232 [0] : vector<288x128xf32> to vector<128xf32>
    %226 = vector.shape_cast %225 : vector<128xf32> to vector<1x128xf32>
    %cst_233 = arith.constant 3.906250e-03 : f32
    %227 = vector.broadcast %cst_233 : f32 to vector<1x128xf32>
    %228 = arith.mulf %223, %227 : vector<1x128xf32>
    %229 = arith.addf %228, %5 : vector<1x128xf32>
    %cst_234 = arith.constant 3.906250e-03 : f32
    %230 = vector.broadcast %cst_234 : f32 to vector<1x128xf32>
    %231 = arith.mulf %226, %230 : vector<1x128xf32>
    %232 = arith.mulf %228, %228 : vector<1x128xf32>
    %233 = arith.subf %231, %232 : vector<1x128xf32>
    %cst_235 = arith.constant 9.99999974E-6 : f32
    %234 = vector.broadcast %cst_235 : f32 to vector<1x128xf32>
    %235 = arith.addf %233, %234 : vector<1x128xf32>
    %236 = math.rsqrt %235 : vector<1x128xf32>
    %237 = arith.mulf %6, %236 : vector<1x128xf32>
    %238 = arith.subf %5, %229 : vector<1x128xf32>
    %239 = arith.mulf %238, %237 : vector<1x128xf32>
    %240 = arith.addf %239, %7 : vector<1x128xf32>
    %241 = vector.broadcast %237 : vector<1x128xf32> to vector<288x128xf32>
    %242 = arith.mulf %198, %241 : vector<288x128xf32>
    %243 = vector.broadcast %240 : vector<1x128xf32> to vector<288x128xf32>
    %244 = arith.addf %242, %243 : vector<288x128xf32>
    %c0_236 = arith.constant 0 : index
    %c0_237 = arith.constant 0 : index
    %245 = vector.load %arg7[%c0_236, %c0_237] : memref<288x128xf32, #tpu.memory_space<vmem>>, vector<288x128xf32>
    tpu.vector_store %arg7[%c0_236, %c0_237], %244 {strides = array<i32>} : memref<288x128xf32, #tpu.memory_space<vmem>>, vector<288x128xf32>,
    %c0_i32_238 = arith.constant 0 : i32
    %c16_i32_239 = arith.constant 16 : i32
    %246 = arith.addi %c0_i32_238, %c16_i32_239 : i32
    %c1_i32_240 = arith.constant 1 : i32
    scf.for %arg8 = %c0_i32_238 to %246 step %c1_i32_240  : i32 {
      %c18_i32_242 = arith.constant 18 : i32
      %247 = arith.muli %arg8, %c18_i32_242 : i32
      %248 = arith.index_cast %247 : i32 to index
      %c0_243 = arith.constant 0 : index
      %249 = vector.load %arg7[%248, %c0_243] : memref<288x128xf32, #tpu.memory_space<vmem>>, vector<16x128xf32>
      %c16_i32_244 = arith.constant 16 : i32
      %250 = arith.muli %arg8, %c16_i32_244 : i32
      %c0_245 = arith.constant 0 : index
      %251 = arith.index_cast %250 : i32 to index
      %c0_246 = arith.constant 0 : index
      %252 = vector.load %arg1[%c0_245, %251, %c0_246] : memref<1x256x128xf32, #tpu.memory_space<vmem>>, vector<1x16x128xf32>
      %253 = vector.shape_cast %252 : vector<1x16x128xf32> to vector<16x128xf32>
      %254 = arith.addf %249, %253 : vector<16x128xf32>
      %c16_i32_247 = arith.constant 16 : i32
      %255 = arith.muli %arg8, %c16_i32_247 : i32
      %c0_248 = arith.constant 0 : index
      %256 = arith.index_cast %255 : i32 to index
      %c0_249 = arith.constant 0 : index
      %257 = vector.load %arg5[%c0_248, %256, %c0_249] : memref<1x256x128xf32, #tpu.memory_space<vmem>>, vector<1x16x128xf32>
      %258 = vector.shape_cast %257 : vector<1x16x128xf32> to vector<16x128xf32>
      %259 = vector.shape_cast %254 : vector<16x128xf32> to vector<1x16x128xf32>
      tpu.vector_store %arg5[%c0_248, %256, %c0_249], %259 {strides = array<i32>} : memref<1x256x128xf32, #tpu.memory_space<vmem>>, vector<1x16x128xf32>,
    }
    %c16_i32_241 = arith.constant 16 : i32
    return
  }
  func.func @transform_0(%arg0: i32) -> (i32, i32, i32) {
    %c0_i32 = arith.constant 0 : i32
    %c0_i32_0 = arith.constant 0 : i32
    %c0_i32_1 = arith.constant 0 : i32
    return %arg0, %c0_i32, %c0_i32_0 : i32, i32, i32
  }
  func.func @transform_1(%arg0: i32) -> (i32, i32, i32) {
    %c0_i32 = arith.constant 0 : i32
    %c0_i32_0 = arith.constant 0 : i32
    %c0_i32_1 = arith.constant 0 : i32
    %c0_i32_2 = arith.constant 0 : i32
    return %c0_i32, %c0_i32_0, %c0_i32_1 : i32, i32, i32
  }
  func.func @transform_2(%arg0: i32) -> (i32, i32, i32) {
    %c0_i32 = arith.constant 0 : i32
    %c0_i32_0 = arith.constant 0 : i32
    %c0_i32_1 = arith.constant 0 : i32
    %c0_i32_2 = arith.constant 0 : i32
    return %c0_i32, %c0_i32_0, %c0_i32_1 : i32, i32, i32
  }
  func.func @transform_3(%arg0: i32) -> (i32, i32) {
    %c0_i32 = arith.constant 0 : i32
    %c0_i32_0 = arith.constant 0 : i32
    %c0_i32_1 = arith.constant 0 : i32
    return %c0_i32, %c0_i32_0 : i32, i32
  }
  func.func @transform_4(%arg0: i32) -> (i32, i32, i32) {
    %c0_i32 = arith.constant 0 : i32
    %c0_i32_0 = arith.constant 0 : i32
    %c0_i32_1 = arith.constant 0 : i32
    return %arg0, %c0_i32, %c0_i32_0 : i32, i32, i32
  }
}

</mosaic_0001>

<llo_original>
// kernel: residual_block.1
$region0: #{residual_block.1}
  #allocation0 [shape = 'u32[]', space=smem, size = 0x4, offset = 0x4, fixed_abs, tag = 'smem constant byte address 0x4 - core index']
  #allocation1 [shape = 'u32[144,128]{1,0:T(1,128)}', space=vmem, size = 0x12000, scoped, tag = 'internal scratch']
  #allocation2 [shape = 'f32[328,128]{1,0:T(8,128)}', space=vmem, size = 0x29000, scoped, tag = 'scratch operand']
  #allocation3 [shape = 'f32[288,128]{1,0:T(8,128)}', space=vmem, size = 0x24000, scoped, tag = 'scratch operand']
  %s0 = inlined_call_operand.vmem [shape: f32[2,256,128], index: 0, kind: input, shape index: {}]
  %s1 = inlined_call_operand.vmem [shape: f32[9,128,128], index: 1, kind: input, shape index: {}]
  %s2 = inlined_call_operand.vmem [shape: f32[9,128,128], index: 2, kind: input, shape index: {}]
  %s3 = inlined_call_operand.vmem [shape: f32[8,128], index: 3, kind: input, shape index: {}]
  %s4 = inlined_call_operand.vmem [shape: f32[2,256,128], index: 4, kind: output, shape index: {}]
  %s5 = sld [smem:[#allocation0]]
  $region70: #{residual_block.1} parent=0
    _
  %s7 = ssub.s32 1, %s5
  %s8 = scalar_select 0, %s7, %s5
  loop: start=0, step=1, limit=4
  $region2: #{residual_block.1} parent=0 // loop_pre_header
    _
  $region3: #{residual_block.1} parent=0 // loop_header
    %s10 = sphi 0, %s14
    %p11 = scmp.ge.s32.totalorder %s10, 4
    %s20 = sphi 0, %s22
    %s23 = sphi 0, %s20
    %s24 = sphi 0, %s23
    %s40 = sphi 0, %s24
    %s44 = sphi 0, %s44
    %s46 = sphi 0, %s44
    %s47 = sphi 0, %s46
    %s61 = sphi 0, %s47
    %s65 = sphi 0, %s65
    %s67 = sphi 0, %s65
    %s68 = sphi 0, %s67
    %s82 = sphi 0, %s68
    %s86 = sphi 0, %s86
    %s88 = sphi 0, %s86
    %s89 = sphi 0, %s88
    %s103 = sphi 0, %s89
    %s109 = sphi 0, %s111
    %s112 = sphi 0, %s109
    %s113 = sphi 0, %s112
    %s129 = sphi 0, %s113
  $region4: #{residual_block.1} parent=0 // loop_header_branch
    %13 = sbr.rel (%p11) target = $region8
  $region5: #{residual_block.1} parent=0 // loop_body
    %s15 = ssub.s32 %s10, 1
    %s16 = ssub.s32 %s10, 2
    %s17 = sadd.s32 %s10, 1
    %s18 = ssub.s32 %s10, %s17
    %p19 = scmp.eq.s32.totalorder %s18, 0
    %s21 = sadd.s32 %s20, 1
    %s22 = scalar_select %p19, %s20, %s21
    %p25 = pneg %p19
    %p26 = scmp.eq.s32.totalorder %s10, 1
    %p27 = por %p25, %p26
    %p28 = scmp.ne.s32.totalorder %s20, %s23
    %p29 = scmp.eq.s32.totalorder %s10, 0
    %p30 = por %p28, %p29
    %p31 = scmp.ne.s32.totalorder %s20, %s23
    %p32 = scmp.eq.s32.totalorder %s15, 1
    %p33 = por %p31, %p32
    %p34 = scmp.ne.s32.totalorder %s23, %s24
    %p35 = scmp.eq.s32.totalorder %s15, 0
    %p36 = por %p34, %p35
    %p37 = scmp.ne.s32.totalorder %s23, %s24
    %p38 = scmp.eq.s32.totalorder %s16, 1
    %p39 = por %p37, %p38
    %p41 = scmp.ne.s32.totalorder %s24, %s40
    %p42 = scmp.eq.s32.totalorder %s16, 0
    %p43 = por %p41, %p42
    %s45 = sadd.s32 %s44, 1
    %p48 = scmp.eq.s32.totalorder %s10, 1
    %p49 = scmp.ne.s32.totalorder %s44, %s46
    %p50 = scmp.eq.s32.totalorder %s10, 0
    %p51 = por %p49, %p50
    %p52 = scmp.ne.s32.totalorder %s44, %s46
    %p53 = scmp.eq.s32.totalorder %s15, 1
    %p54 = por %p52, %p53
    %p55 = scmp.ne.s32.totalorder %s46, %s47
    %p56 = scmp.eq.s32.totalorder %s15, 0
    %p57 = por %p55, %p56
    %p58 = scmp.ne.s32.totalorder %s46, %s47
    %p59 = scmp.eq.s32.totalorder %s16, 1
    %p60 = por %p58, %p59
    %p62 = scmp.ne.s32.totalorder %s47, %s61
    %p63 = scmp.eq.s32.totalorder %s16, 0
    %p64 = por %p62, %p63
    %s66 = sadd.s32 %s65, 1
    %p69 = scmp.eq.s32.totalorder %s10, 1
    %p70 = scmp.ne.s32.totalorder %s65, %s67
    %p71 = scmp.eq.s32.totalorder %s10, 0
    %p72 = por %p70, %p71
    %p73 = scmp.ne.s32.totalorder %s65, %s67
    %p74 = scmp.eq.s32.totalorder %s15, 1
    %p75 = por %p73, %p74
    %p76 = scmp.ne.s32.totalorder %s67, %s68
    %p77 = scmp.eq.s32.totalorder %s15, 0
    %p78 = por %p76, %p77
    %p79 = scmp.ne.s32.totalorder %s67, %s68
    %p80 = scmp.eq.s32.totalorder %s16, 1
    %p81 = por %p79, %p80
    %p83 = scmp.ne.s32.totalorder %s68, %s82
    %p84 = scmp.eq.s32.totalorder %s16, 0
    %p85 = por %p83, %p84
    %s87 = sadd.s32 %s86, 1
    %p90 = scmp.eq.s32.totalorder %s10, 1
    %p91 = scmp.ne.s32.totalorder %s86, %s88
    %p92 = scmp.eq.s32.totalorder %s10, 0
    %p93 = por %p91, %p92
    %p94 = scmp.ne.s32.totalorder %s86, %s88
    %p95 = scmp.eq.s32.totalorder %s15, 1
    %p96 = por %p94, %p95
    %p97 = scmp.ne.s32.totalorder %s88, %s89
    %p98 = scmp.eq.s32.totalorder %s15, 0
    %p99 = por %p97, %p98
    %p100 = scmp.ne.s32.totalorder %s88, %s89
    %p101 = scmp.eq.s32.totalorder %s16, 1
    %p102 = por %p100, %p101
    %p104 = scmp.ne.s32.totalorder %s89, %s103
    %p105 = scmp.eq.s32.totalorder %s16, 0
    %p106 = por %p104, %p105
    %s107 = ssub.s32 %s10, %s17
    %p108 = scmp.eq.s32.totalorder %s107, 0
    %s110 = sadd.s32 %s109, 1
    %s111 = scalar_select %p108, %s109, %s110
    %p114 = pneg %p108
    %p115 = scmp.eq.s32.totalorder %s10, 1
    %p116 = por %p114, %p115
    %p117 = scmp.ne.s32.totalorder %s109, %s112
    %p118 = scmp.eq.s32.totalorder %s10, 0
    %p119 = por %p117, %p118
    %p120 = scmp.ne.s32.totalorder %s109, %s112
    %p121 = scmp.eq.s32.totalorder %s15, 1
    %p122 = por %p120, %p121
    %p123 = scmp.ne.s32.totalorder %s112, %s113
    %p124 = scmp.eq.s32.totalorder %s15, 0
    %p125 = por %p123, %p124
    %p126 = scmp.ne.s32.totalorder %s112, %s113
    %p127 = scmp.eq.s32.totalorder %s16, 1
    %p128 = por %p126, %p127
    %p130 = scmp.ne.s32.totalorder %s113, %s129
    %p131 = scmp.eq.s32.totalorder %s16, 0
    %p132 = por %p130, %p131
    %p133 = scmp.le.s32.totalorder 1, %s10
    %p134 = scmp.lt.s32.totalorder %s10, 3
    %p135 = pnand %p133, %p134
    %p136 = pneg %p135
    // Predicated region
    $region9: #{residual_block.1} parent=5 // pred_check
      _
    $region10: #{residual_block.1} parent=5 // pred_check_branch
      %138 = sbr.rel (%p135) target = $region12
    $region11: #{residual_block.1} parent=5 // pred_region
      %s139 = ssub.s32 %s10, 1
      // Predicated region
      $region13: #{residual_block.1} parent=11 // pred_check
        %p140 = pneg %p57
      $region14: #{residual_block.1} parent=11 // pred_check_branch
        %142 = sbr.rel (%p140) target = $region16
      $region15: #{residual_block.1} parent=11 // pred_region
        _
      $region16: #{residual_block.1} parent=11 // pred_fallthru
        _
      // Predicated region
      $region17: #{residual_block.1} parent=11 // pred_check
        %p143 = pneg %p78
      $region18: #{residual_block.1} parent=11 // pred_check_branch
        %145 = sbr.rel (%p143) target = $region20
      $region19: #{residual_block.1} parent=11 // pred_region
        _
      $region20: #{residual_block.1} parent=11 // pred_fallthru
        _
      // Predicated region
      $region21: #{residual_block.1} parent=11 // pred_check
        %p146 = pneg %p99
      $region22: #{residual_block.1} parent=11 // pred_check_branch
        %148 = sbr.rel (%p146) target = $region24
      $region23: #{residual_block.1} parent=11 // pred_region
        _
      $region24: #{residual_block.1} parent=11 // pred_fallthru
        _
    $region12: #{residual_block.1} parent=5 // pred_fallthru
      _
    %p149 = scmp.lt.s32.totalorder %s10, 2
    // Predicated region
    $region25: #{residual_block.1} parent=5 // pred_check
      %p150 = pneg %p149
    $region26: #{residual_block.1} parent=5 // pred_check_branch
      %152 = sbr.rel (%p150) target = $region28
    $region27: #{residual_block.1} parent=5 // pred_region
      // Predicated region
      $region29: #{residual_block.1} parent=27 // pred_check
        %p153 = pneg %p30
      $region30: #{residual_block.1} parent=27 // pred_check_branch
        %155 = sbr.rel (%p153) target = $region32
      $region31: #{residual_block.1} parent=27 // pred_region
        %p156 = scmp.lt.s32.totalorder %s10, 1
        %s157 = scalar_select %p156, %s10, 1
        %s158 = smul.addr %s157, 32
        %s159 = smul.addr %s158, 8
        %s160 = scalar_lea.vmem %s0, %s159
      $region32: #{residual_block.1} parent=27 // pred_fallthru
        _
    $region28: #{residual_block.1} parent=5 // pred_fallthru
      _
    %p161 = scmp.le.s32.totalorder 1, %s10
    %p162 = scmp.lt.s32.totalorder %s10, 3
    %p163 = pnand %p161, %p162
    %p164 = pneg %p163
    // Predicated region
    $region33: #{residual_block.1} parent=5 // pred_check
      _
    $region34: #{residual_block.1} parent=5 // pred_check_branch
      %166 = sbr.rel (%p163) target = $region36
    $region35: #{residual_block.1} parent=5 // pred_region
      %s167 = ssub.s32 %s10, 1
      %p168 = scmp.lt.s32.totalorder %s15, 1
      %s169 = scalar_select %p168, %s15, 1
      %s170 = smul.addr %s169, 32
      %s171 = smul.addr %s170, 8
      %s172 = scalar_lea.vmem %s0, %s171
      %p173 = pneg %p36
      %p174 = pneg %p33
      %p175 = pneg %p57
      %p176 = pneg %p54
      %p177 = pneg %p78
      %p178 = pneg %p75
      %p179 = pneg %p99
      %p180 = pneg %p96
      %p181 = pneg %p125
      %p182 = pneg %p122
      %p183 = scmp.lt.s32.totalorder %s15, 1
      %s184 = scalar_select %p183, %s15, 1
      %s185 = smul.addr %s184, 32
      %s186 = smul.addr %s185, 8
      %s187 = scalar_lea.vmem %s4, %s186
      %p188 = scmp.lt.s32.totalorder %s15, 1
      %s189 = scalar_select %p188, %s15, 1
      %s190 = smul.addr %s189, 32
      %s191 = smul.addr %s190, 8
      %s192 = scalar_lea.vmem %s0, %s191
      %p193 = scmp.lt.s32.totalorder %s15, 1
      %s194 = scalar_select %p193, %s15, 1
      %s195 = smul.addr %s194, 32
      %s196 = smul.addr %s195, 8
      %s197 = scalar_lea.vmem %s4, %s196
      %198 = vst [vmem:[#allocation2] sm:$0xff] 0.0
      %199 = vst [vmem:[#allocation2 + $0x8] sm:$0xff] 0.0
      %200 = vst [vmem:[#allocation2 + $0x10] sm:$0xff] 0.0
      %201 = vst [vmem:[#allocation2 + $0x18] sm:$0xff] 0.0
      %202 = vst [vmem:[#allocation2 + $0x20] sm:$0xff] 0.0
      %203 = vst [vmem:[#allocation2 + $0x28] sm:$0xff] 0.0
      %204 = vst [vmem:[#allocation2 + $0x30] sm:$0xff] 0.0
      %205 = vst [vmem:[#allocation2 + $0x38] sm:$0xff] 0.0
      %206 = vst [vmem:[#allocation2 + $0x40] sm:$0xff] 0.0
      %207 = vst [vmem:[#allocation2 + $0x48] sm:$0xff] 0.0
      %208 = vst [vmem:[#allocation2 + $0x50] sm:$0xff] 0.0
      %209 = vst [vmem:[#allocation2 + $0x58] sm:$0xff] 0.0
      %210 = vst [vmem:[#allocation2 + $0x60] sm:$0xff] 0.0
      %211 = vst [vmem:[#allocation2 + $0x68] sm:$0xff] 0.0
      %212 = vst [vmem:[#allocation2 + $0x70] sm:$0xff] 0.0
      %213 = vst [vmem:[#allocation2 + $0x78] sm:$0xff] 0.0
      %214 = vst [vmem:[#allocation2 + $0x80] sm:$0xff] 0.0
      %215 = vst [vmem:[#allocation2 + $0x88] sm:$0xff] 0.0
      %216 = vst [vmem:[#allocation2 + $0x90] sm:$0xff] 0.0
      %217 = vst [vmem:[#allocation2 + $0x98] sm:$0xff] 0.0
      %218 = vst [vmem:[#allocation2 + $0xa0] sm:$0xff] 0.0
      %219 = vst [vmem:[#allocation2 + $0xa8] sm:$0xff] 0.0
      %220 = vst [vmem:[#allocation2 + $0xb0] sm:$0xff] 0.0
      %221 = vst [vmem:[#allocation2 + $0xb8] sm:$0xff] 0.0
      %222 = vst [vmem:[#allocation2 + $0xc0] sm:$0xff] 0.0
      %223 = vst [vmem:[#allocation2 + $0xc8] sm:$0xff] 0.0
      %224 = vst [vmem:[#allocation2 + $0xd0] sm:$0xff] 0.0
      %225 = vst [vmem:[#allocation2 + $0xd8] sm:$0xff] 0.0
      %226 = vst [vmem:[#allocation2 + $0xe0] sm:$0xff] 0.0
      %227 = vst [vmem:[#allocation2 + $0xe8] sm:$0xff] 0.0
      %228 = vst [vmem:[#allocation2 + $0xf0] sm:$0xff] 0.0
      %229 = vst [vmem:[#allocation2 + $0xf8] sm:$0xff] 0.0
      %230 = vst [vmem:[#allocation2 + $0x100] sm:$0xff] 0.0
      %231 = vst [vmem:[#allocation2 + $0x108] sm:$0xff] 0.0
      %232 = vst [vmem:[#allocation2 + $0x110] sm:$0xff] 0.0
      %233 = vst [vmem:[#allocation2 + $0x118] sm:$0xff] 0.0
      %234 = vst [vmem:[#allocation2 + $0x120] sm:$0xff] 0.0
      %235 = vst [vmem:[#allocation2 + $0x128] sm:$0xff] 0.0
      %236 = vst [vmem:[#allocation2 + $0x130] sm:$0xff] 0.0
      %237 = vst [vmem:[#allocation2 + $0x138] sm:$0xff] 0.0
      %238 = vst [vmem:[#allocation2 + $0x140] sm:$0xff] 0.0
      %v239 = vld [vmem:[%s3] sm:$0x1]
      %v240 = vld [vmem:[%s3 + $0x1] sm:$0x1]
      %v241 = vld [vmem:[%s3 + $0x2] sm:$0x1]
      %v242 = vld [vmem:[%s3 + $0x3] sm:$0x1]
      %v243 = vld [vmem:[%s3 + $0x4] sm:$0x1]
      %v244 = vld [vmem:[%s3 + $0x5] sm:$0x1]
      loop: start=0, step=1, limit=16
      $region37: #{residual_block.1} parent=35 // loop_pre_header
        _
      $region38: #{residual_block.1} parent=35 // loop_header
        %s246 = sphi 0, %s250
        %p247 = scmp.ge.s32.totalorder %s246, 16
      $region39: #{residual_block.1} parent=35 // loop_header_branch
        %249 = sbr.rel (%p247) target = $region43
      $region40: #{residual_block.1} parent=35 // loop_body
        %s251 = smul.u32 %s246, 16
        %s252 = sadd.s32 %s246, 1
        %s253 = smul.u32 %s252, 18
        %s254 = scalar_lea.vmem %s192, %s251
        %v255 = vld [vmem:[%s254] sm:$0xff]
        %v256 = vld [vmem:[%s254 + $0x8] sm:$0xff]
        %s257 = sadd.s32 %s253, 1
        %s258 = scalar_lea.vmem [#allocation2], %s257
        %259 = vst [vmem:[%s258] sm:$0xff] %v255
        %260 = vst [vmem:[%s258 + $0x8] sm:$0xff] %v256
        %s261 = sadd.s32 %s251, 1
        %s262 = scalar_lea.vmem %s192, %s261
        %v263 = vld [vmem:[%s262] sm:$0x1]
        %s264 = scalar_lea.vmem [#allocation2], %s253
        %265 = vst [vmem:[%s264] sm:$0x1] %v263
        %s266 = sadd.s32 %s251, 14
        %s267 = scalar_lea.vmem %s192, %s266
        %v268 = vld [vmem:[%s267] sm:$0x1]
        %s269 = sadd.s32 %s253, 17
        %s270 = scalar_lea.vmem [#allocation2], %s269
        %271 = vst [vmem:[%s270] sm:$0x1] %v268
      $region41: #{residual_block.1} parent=35 // loop_footer
        %s250 = sadd.s32 1, %s246
      $region42: #{residual_block.1} parent=35 // loop_footer_branch
        %245 = sbr.rel target = $region38
      $region43: #{residual_block.1} parent=35 // loop_exit
        _
      %v272 = vld [vmem:[#allocation2 + $0x24] sm:$0xff]
      %v273 = vld [vmem:[#allocation2 + $0x2c] sm:$0xff]
      %v274 = vld [vmem:[#allocation2 + $0x34] sm:$0x3]
      %275 = vst [vmem:[#allocation2] sm:$0xff] %v272
      %276 = vst [vmem:[#allocation2 + $0x8] sm:$0xff] %v273
      %277 = vst [vmem:[#allocation2 + $0x10] sm:$0x3] %v274
      %v278 = vld [vmem:[#allocation2 + $0x10e] sm:$0xff]
      %v279 = vld [vmem:[#allocation2 + $0x116] sm:$0xff]
      %v280 = vld [vmem:[#allocation2 + $0x11e] sm:$0x3]
      %281 = vst [vmem:[#allocation2 + $0x132] sm:$0xff] %v278
      %282 = vst [vmem:[#allocation2 + $0x13a] sm:$0xff] %v279
      %283 = vst [vmem:[#allocation2 + $0x142] sm:$0x3] %v280
      %284 = vst [vmem:[#allocation3] sm:$0xff] 0.0
      %285 = vst [vmem:[#allocation3 + $0x8] sm:$0xff] 0.0
      %286 = vst [vmem:[#allocation3 + $0x10] sm:$0xff] 0.0
      %287 = vst [vmem:[#allocation3 + $0x18] sm:$0xff] 0.0
      %288 = vst [vmem:[#allocation3 + $0x20] sm:$0xff] 0.0
      %289 = vst [vmem:[#allocation3 + $0x28] sm:$0xff] 0.0
      %290 = vst [vmem:[#allocation3 + $0x30] sm:$0xff] 0.0
      %291 = vst [vmem:[#allocation3 + $0x38] sm:$0xff] 0.0
      %292 = vst [vmem:[#allocation3 + $0x40] sm:$0xff] 0.0
      %293 = vst [vmem:[#allocation3 + $0x48] sm:$0xff] 0.0
      %294 = vst [vmem:[#allocation3 + $0x50] sm:$0xff] 0.0
      %295 = vst [vmem:[#allocation3 + $0x58] sm:$0xff] 0.0
      %296 = vst [vmem:[#allocation3 + $0x60] sm:$0xff] 0.0
      %297 = vst [vmem:[#allocation3 + $0x68] sm:$0xff] 0.0
      %298 = vst [vmem:[#allocation3 + $0x70] sm:$0xff] 0.0
      %299 = vst [vmem:[#allocation3 + $0x78] sm:$0xff] 0.0
      %300 = vst [vmem:[#allocation3 + $0x80] sm:$0xff] 0.0
      %301 = vst [vmem:[#allocation3 + $0x88] sm:$0xff] 0.0
      %302 = vst [vmem:[#allocation3 + $0x90] sm:$0xff] 0.0
      %303 = vst [vmem:[#allocation3 + $0x98] sm:$0xff] 0.0
      %304 = vst [vmem:[#allocation3 + $0xa0] sm:$0xff] 0.0
      %305 = vst [vmem:[#allocation3 + $0xa8] sm:$0xff] 0.0
      %306 = vst [vmem:[#allocation3 + $0xb0] sm:$0xff] 0.0
      %307 = vst [vmem:[#allocation3 + $0xb8] sm:$0xff] 0.0
      %308 = vst [vmem:[#allocation3 + $0xc0] sm:$0xff] 0.0
      %309 = vst [vmem:[#allocation3 + $0xc8] sm:$0xff] 0.0
      %310 = vst [vmem:[#allocation3 + $0xd0] sm:$0xff] 0.0
      %311 = vst [vmem:[#allocation3 + $0xd8] sm:$0xff] 0.0
      %312 = vst [vmem:[#allocation3 + $0xe0] sm:$0xff] 0.0
      %313 = vst [vmem:[#allocation3 + $0xe8] sm:$0xff] 0.0
      %314 = vst [vmem:[#allocation3 + $0xf0] sm:$0xff] 0.0
      %315 = vst [vmem:[#allocation3 + $0xf8] sm:$0xff] 0.0
      %316 = vst [vmem:[#allocation3 + $0x100] sm:$0xff] 0.0
      %317 = vst [vmem:[#allocation3 + $0x108] sm:$0xff] 0.0
      %318 = vst [vmem:[#allocation3 + $0x110] sm:$0xff] 0.0
      %319 = vst [vmem:[#allocation3 + $0x118] sm:$0xff] 0.0
      %v320 = vld [vmem:[#allocation3] sm:$0xff]
      %v321 = vld [vmem:[#allocation3 + $0x8] sm:$0xff]
      %v322 = vld [vmem:[#allocation3 + $0x10] sm:$0xff]
      %v323 = vld [vmem:[#allocation3 + $0x18] sm:$0xff]
      %v324 = vld [vmem:[#allocation3 + $0x20] sm:$0xff]
      %v325 = vld [vmem:[#allocation3 + $0x28] sm:$0xff]
      %v326 = vld [vmem:[#allocation3 + $0x30] sm:$0xff]
      %v327 = vld [vmem:[#allocation3 + $0x38] sm:$0xff]
      %v328 = vld [vmem:[#allocation3 + $0x40] sm:$0xff]
      %v329 = vld [vmem:[#allocation3 + $0x48] sm:$0xff]
      %v330 = vld [vmem:[#allocation3 + $0x50] sm:$0xff]
      %v331 = vld [vmem:[#allocation3 + $0x58] sm:$0xff]
      %v332 = vld [vmem:[#allocation3 + $0x60] sm:$0xff]
      %v333 = vld [vmem:[#allocation3 + $0x68] sm:$0xff]
      %v334 = vld [vmem:[#allocation3 + $0x70] sm:$0xff]
      %v335 = vld [vmem:[#allocation3 + $0x78] sm:$0xff]
      %v336 = vld [vmem:[#allocation3 + $0x80] sm:$0xff]
      %v337 = vld [vmem:[#allocation3 + $0x88] sm:$0xff]
      %v338 = vld [vmem:[#allocation3 + $0x90] sm:$0xff]
      %v339 = vld [vmem:[#allocation3 + $0x98] sm:$0xff]
      %v340 = vld [vmem:[#allocation3 + $0xa0] sm:$0xff]
      %v341 = vld [vmem:[#allocation3 + $0xa8] sm:$0xff]
      %v342 = vld [vmem:[#allocation3 + $0xb0] sm:$0xff]
      %v343 = vld [vmem:[#allocation3 + $0xb8] sm:$0xff]
      %v344 = vld [vmem:[#allocation3 + $0xc0] sm:$0xff]
      %v345 = vld [vmem:[#allocation3 + $0xc8] sm:$0xff]
      %v346 = vld [vmem:[#allocation3 + $0xd0] sm:$0xff]
      %v347 = vld [vmem:[#allocation3 + $0xd8] sm:$0xff]
      %v348 = vld [vmem:[#allocation3 + $0xe0] sm:$0xff]
      %v349 = vld [vmem:[#allocation3 + $0xe8] sm:$0xff]
      %v350 = vld [vmem:[#allocation3 + $0xf0] sm:$0xff]
      %v351 = vld [vmem:[#allocation3 + $0xf8] sm:$0xff]
      %v352 = vld [vmem:[#allocation3 + $0x100] sm:$0xff]
      %v353 = vld [vmem:[#allocation3 + $0x108] sm:$0xff]
      %v354 = vld [vmem:[#allocation3 + $0x110] sm:$0xff]
      %v355 = vld [vmem:[#allocation3 + $0x118] sm:$0xff]
      %v356 = vld [vmem:[#allocation2] sm:$0xff]
      %v357 = vld [vmem:[#allocation2 + $0x8] sm:$0xff]
      %v358 = vld [vmem:[#allocation2 + $0x10] sm:$0xff]
      %v359 = vld [vmem:[#allocation2 + $0x18] sm:$0xff]
      %v360 = vld [vmem:[#allocation2 + $0x20] sm:$0xff]
      %v361 = vld [vmem:[#allocation2 + $0x28] sm:$0xff]
      %v362 = vld [vmem:[#allocation2 + $0x30] sm:$0xff]
      %v363 = vld [vmem:[#allocation2 + $0x38] sm:$0xff]
      %v364 = vld [vmem:[#allocation2 + $0x40] sm:$0xff]
      %v365 = vld [vmem:[#allocation2 + $0x48] sm:$0xff]
      %v366 = vld [vmem:[#allocation2 + $0x50] sm:$0xff]
      %v367 = vld [vmem:[#allocation2 + $0x58] sm:$0xff]
      %v368 = vld [vmem:[#allocation2 + $0x60] sm:$0xff]
      %v369 = vld [vmem:[#allocation2 + $0x68] sm:$0xff]
      %v370 = vld [vmem:[#allocation2 + $0x70] sm:$0xff]
      %v371 = vld [vmem:[#allocation2 + $0x78] sm:$0xff]
      %v372 = vld [vmem:[#allocation2 + $0x80] sm:$0xff]
      %v373 = vld [vmem:[#allocation2 + $0x88] sm:$0xff]
      %v374 = vld [vmem:[#allocation2 + $0x90] sm:$0xff]
      %v375 = vld [vmem:[#allocation2 + $0x98] sm:$0xff]
      %v376 = vld [vmem:[#allocation2 + $0xa0] sm:$0xff]
      %v377 = vld [vmem:[#allocation2 + $0xa8] sm:$0xff]
      %v378 = vld [vmem:[#allocation2 + $0xb0] sm:$0xff]
      %v379 = vld [vmem:[#allocation2 + $0xb8] sm:$0xff]
      %v380 = vld [vmem:[#allocation2 + $0xc0] sm:$0xff]
      %v381 = vld [vmem:[#allocation2 + $0xc8] sm:$0xff]
      %v382 = vld [vmem:[#allocation2 + $0xd0] sm:$0xff]
      %v383 = vld [vmem:[#allocation2 + $0xd8] sm:$0xff]
      %v384 = vld [vmem:[#allocation2 + $0xe0] sm:$0xff]
      %v385 = vld [vmem:[#allocation2 + $0xe8] sm:$0xff]
      %v386 = vld [vmem:[#allocation2 + $0xf0] sm:$0xff]
      %v387 = vld [vmem:[#allocation2 + $0xf8] sm:$0xff]
      %v388 = vld [vmem:[#allocation2 + $0x100] sm:$0xff]
      %v389 = vld [vmem:[#allocation2 + $0x108] sm:$0xff]
      %v390 = vld [vmem:[#allocation2 + $0x110] sm:$0xff]
      %v391 = vld [vmem:[#allocation2 + $0x118] sm:$0xff]
      %v392 = vld [vmem:[%s1] sm:$0xff]
      %v393 = vld [vmem:[%s1 + $0x8] sm:$0xff]
      %v394 = vld [vmem:[%s1 + $0x10] sm:$0xff]
      %v395 = vld [vmem:[%s1 + $0x18] sm:$0xff]
      %v396 = vld [vmem:[%s1 + $0x20] sm:$0xff]
      %v397 = vld [vmem:[%s1 + $0x28] sm:$0xff]
      %v398 = vld [vmem:[%s1 + $0x30] sm:$0xff]
      %v399 = vld [vmem:[%s1 + $0x38] sm:$0xff]
      %v400 = vld [vmem:[%s1 + $0x40] sm:$0xff]
      %v401 = vld [vmem:[%s1 + $0x48] sm:$0xff]
      %v402 = vld [vmem:[%s1 + $0x50] sm:$0xff]
      %v403 = vld [vmem:[%s1 + $0x58] sm:$0xff]
      %v404 = vld [vmem:[%s1 + $0x60] sm:$0xff]
      %v405 = vld [vmem:[%s1 + $0x68] sm:$0xff]
      %v406 = vld [vmem:[%s1 + $0x70] sm:$0xff]
      %v407 = vld [vmem:[%s1 + $0x78] sm:$0xff]
      %408 = vmatprep.subr.mxu0 0.0
      %409 = vmatpush1.msra.mxu0 %v392
      %410 = vmatprep.subr.mxu0 0.0
      %411 = vmatpush1.msra.mxu0 %v393
      %412 = vmatprep.subr.mxu0 0.0
      %413 = vmatpush1.msra.mxu0 %v394
      %414 = vmatprep.subr.mxu0 0.0
      %415 = vmatpush1.msra.mxu0 %v395
      %416 = vmatprep.subr.mxu0 0.0
      %417 = vmatpush1.msra.mxu0 %v396
      %418 = vmatprep.subr.mxu0 0.0
      %419 = vmatpush1.msra.mxu0 %v397
      %420 = vmatprep.subr.mxu0 0.0
      %421 = vmatpush1.msra.mxu0 %v398
      %422 = vmatprep.subr.mxu0 0.0
      %423 = vmatpush1.msra.mxu0 %v399
      %424 = vmatprep.subr.mxu0 0.0
      %425 = vmatpush1.msra.mxu0 %v400
      %426 = vmatprep.subr.mxu0 0.0
      %427 = vmatpush1.msra.mxu0 %v401
      %428 = vmatprep.subr.mxu0 0.0
      %429 = vmatpush1.msra.mxu0 %v402
      %430 = vmatprep.subr.mxu0 0.0
      %431 = vmatpush1.msra.mxu0 %v403
      %432 = vmatprep.subr.mxu0 0.0
      %433 = vmatpush1.msra.mxu0 %v404
      %434 = vmatprep.subr.mxu0 0.0
      %435 = vmatpush1.msra.mxu0 %v405
      %436 = vmatprep.subr.mxu0 0.0
      %437 = vmatpush1.msra.mxu0 %v406
      %438 = vmatprep.subr.mxu0 0.0
      %439 = vmatpush1.msra.mxu0 %v407
      %440 = vmatprep.subr.mxu0 0.0
      %441 = vmatpush1.msra.mxu0 0.0
      %442 = vmatprep.subr.mxu0 0.0
      %443 = vmatpush1.msra.mxu0 0.0
      %444 = vmatprep.subr.mxu0 0.0
      %445 = vmatpush1.msra.mxu0 0.0
      %446 = vmatprep.subr.mxu0 0.0
      %447 = vmatpush1.msra.mxu0 0.0
      %448 = vmatprep.subr.mxu0 0.0
      %449 = vmatpush1.msra.mxu0 0.0
      %450 = vmatprep.subr.mxu0 0.0
      %451 = vmatpush1.msra.mxu0 0.0
      %452 = vmatprep.subr.mxu0 0.0
      %453 = vmatpush1.msra.mxu0 0.0
      %454 = vmatprep.subr.mxu0 0.0
      %455 = vmatpush1.msra.mxu0 0.0
      %456 = vmatprep.subr.mxu0 0.0
      %457 = vmatpush1.msra.mxu0 0.0
      %458 = vmatprep.subr.mxu0 0.0
      %459 = vmatpush1.msra.mxu0 0.0
      %460 = vmatprep.subr.mxu0 0.0
      %461 = vmatpush1.msra.mxu0 0.0
      %462 = vmatprep.subr.mxu0 0.0
      %463 = vmatpush1.msra.mxu0 0.0
      %464 = vmatprep.subr.mxu0 0.0
      %465 = vmatpush1.msra.mxu0 0.0
      %466 = vmatprep.subr.mxu0 0.0
      %467 = vmatpush1.msra.mxu0 0.0
      %468 = vmatprep.subr.mxu0 0.0
      %469 = vmatpush1.msra.mxu0 0.0
      %470 = vmatprep.subr.mxu0 0.0
      %471 = vmatpush1.msra.mxu0 0.0
      %472 = vmatprep.mubr.f32.mxu0 0.0
      %473 = vmatmul.mubr.f32.gmra.mrb[0].mxu0 %v356
      %v474 = vpop.f32.mrb[0].mxu0
      %v475 = vadd.f32 0.0, %v474
      %v476 = vpop.f32.mrb[0].mxu0
      %477 = vmatprep.mubr.f32.mxu0 0.0
      %478 = vmatmul.mubr.f32.gmra.mrb[0].mxu0 %v357
      %v479 = vpop.f32.mrb[0].mxu0
      %v480 = vadd.f32 0.0, %v479
      %v481 = vpop.f32.mrb[0].mxu0
      %482 = vmatprep.mubr.f32.mxu0 0.0
      %483 = vmatmul.mubr.f32.gmra.mrb[0].mxu0 %v358
      %v484 = vpop.f32.mrb[0].mxu0
      %v485 = vadd.f32 0.0, %v484
      %v486 = vpop.f32.mrb[0].mxu0
      %487 = vmatprep.mubr.f32.mxu0 0.0
      %488 = vmatmul.mubr.f32.gmra.mrb[0].mxu0 %v359
      %v489 = vpop.f32.mrb[0].mxu0
      %v490 = vadd.f32 0.0, %v489
      %v491 = vpop.f32.mrb[0].mxu0
      %492 = vmatprep.mubr.f32.mxu0 0.0
      %493 = vmatmul.mubr.f32.gmra.mrb[0].mxu0 %v360
      %v494 = vpop.f32.mrb[0].mxu0
      %v495 = vadd.f32 0.0, %v494
      %v496 = vpop.f32.mrb[0].mxu0
      %497 = vmatprep.mubr.f32.mxu0 0.0
      %498 = vmatmul.mubr.f32.gmra.mrb[0].mxu0 %v361
      %v499 = vpop.f32.mrb[0].mxu0
      %v500 = vadd.f32 0.0, %v499
      %v501 = vpop.f32.mrb[0].mxu0
      %502 = vmatprep.mubr.f32.mxu0 0.0
      %503 = vmatmul.mubr.f32.gmra.mrb[0].mxu0 %v362
      %v504 = vpop.f32.mrb[0].mxu0
      %v505 = vadd.f32 0.0, %v504
      %v506 = vpop.f32.mrb[0].mxu0
      %507 = vmatprep.mubr.f32.mxu0 0.0
      %508 = vmatmul.mubr.f32.gmra.mrb[0].mxu0 %v363
      %v509 = vpop.f32.mrb[0].mxu0
      %v510 = vadd.f32 0.0, %v509
      %v511 = vpop.f32.mrb[0].mxu0
      %512 = vmatprep.mubr.f32.mxu0 0.0
      %513 = vmatmul.mubr.f32.gmra.mrb[0].mxu0 %v364
      %v514 = vpop.f32.mrb[0].mxu0
      %v515 = vadd.f32 0.0, %v514
      %v516 = vpop.f32.mrb[0].mxu0
      %517 = vmatprep.mubr.f32.mxu0 0.0
      %518 = vmatmul.mubr.f32.gmra.mrb[0].mxu0 %v365
      %v519 = vpop.f32.mrb[0].mxu0
      %v520 = vadd.f32 0.0, %v519
      %v521 = vpop.f32.mrb[0].mxu0
      %522 = vmatprep.mubr.f32.mxu0 0.0
      %523 = vmatmul.mubr.f32.gmra.mrb[0].mxu0 %v366
      %v524 = vpop.f32.mrb[0].mxu0
      %v525 = vadd.f32 0.0, %v524
      %v526 = vpop.f32.mrb[0].mxu0
      %527 = vmatprep.mubr.f32.mxu0 0.0
      %528 = vmatmul.mubr.f32.gmra.mrb[0].mxu0 %v367
      %v529 = vpop.f32.mrb[0].mxu0
      %v530 = vadd.f32 0.0, %v529
      %v531 = vpop.f32.mrb[0].mxu0
      %532 = vmatprep.mubr.f32.mxu0 0.0
      %533 = vmatmul.mubr.f32.gmra.mrb[0].mxu0 %v368
      %v534 = vpop.f32.mrb[0].mxu0
      %v535 = vadd.f32 0.0, %v534
      %v536 = vpop.f32.mrb[0].mxu0
      %537 = vmatprep.mubr.f32.mxu0 0.0
      %538 = vmatmul.mubr.f32.gmra.mrb[0].mxu0 %v369
      %v539 = vpop.f32.mrb[0].mxu0
      %v540 = vadd.f32 0.0, %v539
      %v541 = vpop.f32.mrb[0].mxu0
      %542 = vmatprep.mubr.f32.mxu0 0.0
      %543 = vmatmul.mubr.f32.gmra.mrb[0].mxu0 %v370
      %v544 = vpop.f32.mrb[0].mxu0
      %v545 = vadd.f32 0.0, %v544
      %v546 = vpop.f32.mrb[0].mxu0
      %547 = vmatprep.mubr.f32.mxu0 0.0
      %548 = vmatmul.mubr.f32.gmra.mrb[0].mxu0 %v371
      %v549 = vpop.f32.mrb[0].mxu0
      %v550 = vadd.f32 0.0, %v549
      %v551 = vpop.f32.mrb[0].mxu0
      %552 = vmatprep.mubr.f32.mxu0 0.0
      %553 = vmatmul.mubr.f32.gmra.mrb[0].mxu0 %v372
      %v554 = vpop.f32.mrb[0].mxu0
      %v555 = vadd.f32 0.0, %v554
      %v556 = vpop.f32.mrb[0].mxu0
      %557 = vmatprep.mubr.f32.mxu0 0.0
      %558 = vmatmul.mubr.f32.gmra.mrb[0].mxu0 %v373
      %v559 = vpop.f32.mrb[0].mxu0
      %v560 = vadd.f32 0.0, %v559
      %v561 = vpop.f32.mrb[0].mxu0
      %562 = vmatprep.mubr.f32.mxu0 0.0
      %563 = vmatmul.mubr.f32.gmra.mrb[0].mxu0 %v374
      %v564 = vpop.f32.mrb[0].mxu0
      %v565 = vadd.f32 0.0, %v564
      %v566 = vpop.f32.mrb[0].mxu0
      %567 = vmatprep.mubr.f32.mxu0 0.0
      %568 = vmatmul.mubr.f32.gmra.mrb[0].mxu0 %v375
      %v569 = vpop.f32.mrb[0].mxu0
      %v570 = vadd.f32 0.0, %v569
      %v571 = vpop.f32.mrb[0].mxu0
      %572 = vmatprep.mubr.f32.mxu0 0.0
      %573 = vmatmul.mubr.f32.gmra.mrb[0].mxu0 %v376
      %v574 = vpop.f32.mrb[0].mxu0
      %v575 = vadd.f32 0.0, %v574
      %v576 = vpop.f32.mrb[0].mxu0
      %577 = vmatprep.mubr.f32.mxu0 0.0
      %578 = vmatmul.mubr.f32.gmra.mrb[0].mxu0 %v377
      %v579 = vpop.f32.mrb[0].mxu0
      %v580 = vadd.f32 0.0, %v579
      %v581 = vpop.f32.mrb[0].mxu0
      %582 = vmatprep.mubr.f32.mxu0 0.0
      %583 = vmatmul.mubr.f32.gmra.mrb[0].mxu0 %v378
      %v584 = vpop.f32.mrb[0].mxu0
      %v585 = vadd.f32 0.0, %v584
      %v586 = vpop.f32.mrb[0].mxu0
      %587 = vmatprep.mubr.f32.mxu0 0.0
      %588 = vmatmul.mubr.f32.gmra.mrb[0].mxu0 %v379
      %v589 = vpop.f32.mrb[0].mxu0
      %v590 = vadd.f32 0.0, %v589
      %v591 = vpop.f32.mrb[0].mxu0
      %592 = vmatprep.mubr.f32.mxu0 0.0
      %593 = vmatmul.mubr.f32.gmra.mrb[0].mxu0 %v380
      %v594 = vpop.f32.mrb[0].mxu0
      %v595 = vadd.f32 0.0, %v594
      %v596 = vpop.f32.mrb[0].mxu0
      %597 = vmatprep.mubr.f32.mxu0 0.0
      %598 = vmatmul.mubr.f32.gmra.mrb[0].mxu0 %v381
      %v599 = vpop.f32.mrb[0].mxu0
      %v600 = vadd.f32 0.0, %v599
      %v601 = vpop.f32.mrb[0].mxu0
      %602 = vmatprep.mubr.f32.mxu0 0.0
      %603 = vmatmul.mubr.f32.gmra.mrb[0].mxu0 %v382
      %v604 = vpop.f32.mrb[0].mxu0
      %v605 = vadd.f32 0.0, %v604
      %v606 = vpop.f32.mrb[0].mxu0
      %607 = vmatprep.mubr.f32.mxu0 0.0
      %608 = vmatmul.mubr.f32.gmra.mrb[0].mxu0 %v383
      %v609 = vpop.f32.mrb[0].mxu0
      %v610 = vadd.f32 0.0, %v609
      %v611 = vpop.f32.mrb[0].mxu0
      %612 = vmatprep.mubr.f32.mxu0 0.0
      %613 = vmatmul.mubr.f32.gmra.mrb[0].mxu0 %v384
      %v614 = vpop.f32.mrb[0].mxu0
      %v615 = vadd.f32 0.0, %v614
      %v616 = vpop.f32.mrb[0].mxu0
      %617 = vmatprep.mubr.f32.mxu0 0.0
      %618 = vmatmul.mubr.f32.gmra.mrb[0].mxu0 %v385
      %v619 = vpop.f32.mrb[0].mxu0
      %v620 = vadd.f32 0.0, %v619
      %v621 = vpop.f32.mrb[0].mxu0
      %622 = vmatprep.mubr.f32.mxu0 0.0
      %623 = vmatmul.mubr.f32.gmra.mrb[0].mxu0 %v386
      %v624 = vpop.f32.mrb[0].mxu0
      %v625 = vadd.f32 0.0, %v624
      %v626 = vpop.f32.mrb[0].mxu0
      %627 = vmatprep.mubr.f32.mxu0 0.0
      %628 = vmatmul.mubr.f32.gmra.mrb[0].mxu0 %v387
      %v629 = vpop.f32.mrb[0].mxu0
      %v630 = vadd.f32 0.0, %v629
      %v631 = vpop.f32.mrb[0].mxu0
      %632 = vmatprep.mubr.f32.mxu0 0.0
      %633 = vmatmul.mubr.f32.gmra.mrb[0].mxu0 %v388
      %v634 = vpop.f32.mrb[0].mxu0
      %v635 = vadd.f32 0.0, %v634
      %v636 = vpop.f32.mrb[0].mxu0
      %637 = vmatprep.mubr.f32.mxu0 0.0
      %638 = vmatmul.mubr.f32.gmra.mrb[0].mxu0 %v389
      %v639 = vpop.f32.mrb[0].mxu0
      %v640 = vadd.f32 0.0, %v639
      %v641 = vpop.f32.mrb[0].mxu0
      %642 = vmatprep.mubr.f32.mxu0 0.0
      %643 = vmatmul.mubr.f32.gmra.mrb[0].mxu0 %v390
      %v644 = vpop.f32.mrb[0].mxu0
      %v645 = vadd.f32 0.0, %v644
      %v646 = vpop.f32.mrb[0].mxu0
      %647 = vmatprep.mubr.f32.mxu0 0.0
      %648 = vmatmul.mubr.f32.gmra.mrb[0].mxu0 %v391
      %v649 = vpop.f32.mrb[0].mxu0
      %v650 = vadd.f32 0.0, %v649
      %v651 = vpop.f32.mrb[0].mxu0
      %652 = vdwg.mxu0
      %v653 = vadd.f32 %v320, %v475
      %v654 = vadd.f32 %v321, %v480
      %v655 = vadd.f32 %v322, %v485
      %v656 = vadd.f32 %v323, %v490
      %v657 = vadd.f32 %v324, %v495
      %v658 = vadd.f32 %v325, %v500
      %v659 = vadd.f32 %v326, %v505
      %v660 = vadd.f32 %v327, %v510
      %v661 = vadd.f32 %v328, %v515
      %v662 = vadd.f32 %v329, %v520
      %v663 = vadd.f32 %v330, %v525
      %v664 = vadd.f32 %v331, %v530
      %v665 = vadd.f32 %v332, %v535
      %v666 = vadd.f32 %v333, %v540
      %v667 = vadd.f32 %v334, %v545
      %v668 = vadd.f32 %v335, %v550
      %v669 = vadd.f32 %v336, %v555
      %v670 = vadd.f32 %v337, %v560
      %v671 = vadd.f32 %v338, %v565
      %v672 = vadd.f32 %v339, %v570
      %v673 = vadd.f32 %v340, %v575
      %v674 = vadd.f32 %v341, %v580
      %v675 = vadd.f32 %v342, %v585
      %v676 = vadd.f32 %v343, %v590
      %v677 = vadd.f32 %v344, %v595
      %v678 = vadd.f32 %v345, %v600
      %v679 = vadd.f32 %v346, %v605
      %v680 = vadd.f32 %v347, %v610
      %v681 = vadd.f32 %v348, %v615
      %v682 = vadd.f32 %v349, %v620
      %v683 = vadd.f32 %v350, %v625
      %v684 = vadd.f32 %v351, %v630
      %v685 = vadd.f32 %v352, %v635
      %v686 = vadd.f32 %v353, %v640
      %v687 = vadd.f32 %v354, %v645
      %v688 = vadd.f32 %v355, %v650
      %689 = vst [vmem:[#allocation3] sm:$0xff] %v653
      %690 = vst [vmem:[#allocation3 + $0x8] sm:$0xff] %v654
      %691 = vst [vmem:[#allocation3 + $0x10] sm:$0xff] %v655
      %692 = vst [vmem:[#allocation3 + $0x18] sm:$0xff] %v656
      %693 = vst [vmem:[#allocation3 + $0x20] sm:$0xff] %v657
      %694 = vst [vmem:[#allocation3 + $0x28] sm:$0xff] %v658
      %695 = vst [vmem:[#allocation3 + $0x30] sm:$0xff] %v659
      %696 = vst [vmem:[#allocation3 + $0x38] sm:$0xff] %v660
      %697 = vst [vmem:[#allocation3 + $0x40] sm:$0xff] %v661
      %698 = vst [vmem:[#allocation3 + $0x48] sm:$0xff] %v662
      %699 = vst [vmem:[#allocation3 + $0x50] sm:$0xff] %v663
      %700 = vst [vmem:[#allocation3 + $0x58] sm:$0xff] %v664
      %701 = vst [vmem:[#allocation3 + $0x60] sm:$0xff] %v665
      %702 = vst [vmem:[#allocation3 + $0x68] sm:$0xff] %v666
      %703 = vst [vmem:[#allocation3 + $0x70] sm:$0xff] %v667
      %704 = vst [vmem:[#allocation3 + $0x78] sm:$0xff] %v668
      %705 = vst [vmem:[#allocation3 + $0x80] sm:$0xff] %v669
      %706 = vst [vmem:[#allocation3 + $0x88] sm:$0xff] %v670
      %707 = vst [vmem:[#allocation3 + $0x90] sm:$0xff] %v671
      %708 = vst [vmem:[#allocation3 + $0x98] sm:$0xff] %v672
      %709 = vst [vmem:[#allocation3 + $0xa0] sm:$0xff] %v673
      %710 = vst [vmem:[#allocation3 + $0xa8] sm:$0xff] %v674
      %711 = vst [vmem:[#allocation3 + $0xb0] sm:$0xff] %v675
      %712 = vst [vmem:[#allocation3 + $0xb8] sm:$0xff] %v676
      %713 = vst [vmem:[#allocation3 + $0xc0] sm:$0xff] %v677
      %714 = vst [vmem:[#allocation3 + $0xc8] sm:$0xff] %v678
      %715 = vst [vmem:[#allocation3 + $0xd0] sm:$0xff] %v679
      %716 = vst [vmem:[#allocation3 + $0xd8] sm:$0xff] %v680
      %717 = vst [vmem:[#allocation3 + $0xe0] sm:$0xff] %v681
      %718 = vst [vmem:[#allocation3 + $0xe8] sm:$0xff] %v682
      %719 = vst [vmem:[#allocation3 + $0xf0] sm:$0xff] %v683
      %720 = vst [vmem:[#allocation3 + $0xf8] sm:$0xff] %v684
      %721 = vst [vmem:[#allocation3 + $0x100] sm:$0xff] %v685
      %722 = vst [vmem:[#allocation3 + $0x108] sm:$0xff] %v686
      %723 = vst [vmem:[#allocation3 + $0x110] sm:$0xff] %v687
      %724 = vst [vmem:[#allocation3 + $0x118] sm:$0xff] %v688
      %v725 = vld [vmem:[#allocation3] sm:$0xff]
      %v726 = vld [vmem:[#allocation3 + $0x8] sm:$0xff]
      %v727 = vld [vmem:[#allocation3 + $0x10] sm:$0xff]
      %v728 = vld [vmem:[#allocation3 + $0x18] sm:$0xff]
      %v729 = vld [vmem:[#allocation3 + $0x20] sm:$0xff]
      %v730 = vld [vmem:[#allocation3 + $0x28] sm:$0xff]
      %v731 = vld [vmem:[#allocation3 + $0x30] sm:$0xff]
      %v732 = vld [vmem:[#allocation3 + $0x38] sm:$0xff]
      %v733 = vld [vmem:[#allocation3 + $0x40] sm:$0xff]
      %v734 = vld [vmem:[#allocation3 + $0x48] sm:$0xff]
      %v735 = vld [vmem:[#allocation3 + $0x50] sm:$0xff]
      %v736 = vld [vmem:[#allocation3 + $0x58] sm:$0xff]
      %v737 = vld [vmem:[#allocation3 + $0x60] sm:$0xff]
      %v738 = vld [vmem:[#allocation3 + $0x68] sm:$0xff]
      %v739 = vld [vmem:[#allocation3 + $0x70] sm:$0xff]
      %v740 = vld [vmem:[#allocation3 + $0x78] sm:$0xff]
      %v741 = vld [vmem:[#allocation3 + $0x80] sm:$0xff]
      %v742 = vld [vmem:[#allocation3 + $0x88] sm:$0xff]
      %v743 = vld [vmem:[#allocation3 + $0x90] sm:$0xff]
      %v744 = vld [vmem:[#allocation3 + $0x98] sm:$0xff]
      %v745 = vld [vmem:[#allocation3 + $0xa0] sm:$0xff]
      %v746 = vld [vmem:[#allocation3 + $0xa8] sm:$0xff]
      %v747 = vld [vmem:[#allocation3 + $0xb0] sm:$0xff]
      %v748 = vld [vmem:[#allocation3 + $0xb8] sm:$0xff]
      %v749 = vld [vmem:[#allocation3 + $0xc0] sm:$0xff]
      %v750 = vld [vmem:[#allocation3 + $0xc8] sm:$0xff]
      %v751 = vld [vmem:[#allocation3 + $0xd0] sm:$0xff]
      %v752 = vld [vmem:[#allocation3 + $0xd8] sm:$0xff]
      %v753 = vld [vmem:[#allocation3 + $0xe0] sm:$0xff]
      %v754 = vld [vmem:[#allocation3 + $0xe8] sm:$0xff]
      %v755 = vld [vmem:[#allocation3 + $0xf0] sm:$0xff]
      %v756 = vld [vmem:[#allocation3 + $0xf8] sm:$0xff]
      %v757 = vld [vmem:[#allocation3 + $0x100] sm:$0xff]
      %v758 = vld [vmem:[#allocation3 + $0x108] sm:$0xff]
      %v759 = vld [vmem:[#allocation3 + $0x110] sm:$0xff]
      %v760 = vld [vmem:[#allocation3 + $0x118] sm:$0xff]
      %v761 = vld [vmem:[#allocation2 + $0x1] sm:$0xff]
      %v762 = vld [vmem:[#allocation2 + $0x9] sm:$0xff]
      %v763 = vld [vmem:[#allocation2 + $0x11] sm:$0xff]
      %v764 = vld [vmem:[#allocation2 + $0x19] sm:$0xff]
      %v765 = vld [vmem:[#allocation2 + $0x21] sm:$0xff]
      %v766 = vld [vmem:[#allocation2 + $0x29] sm:$0xff]
      %v767 = vld [vmem:[#allocation2 + $0x31] sm:$0xff]
      %v768 = vld [vmem:[#allocation2 + $0x39] sm:$0xff]
      %v769 = vld [vmem:[#allocation2 + $0x41] sm:$0xff]
      %v770 = vld [vmem:[#allocation2 + $0x49] sm:$0xff]
      %v771 = vld [vmem:[#allocation2 + $0x51] sm:$0xff]
      %v772 = vld [vmem:[#allocation2 + $0x59] sm:$0xff]
      %v773 = vld [vmem:[#allocation2 + $0x61] sm:$0xff]
      %v774 = vld [vmem:[#allocation2 + $0x69] sm:$0xff]
      %v775 = vld [vmem:[#allocation2 + $0x71] sm:$0xff]
      %v776 = vld [vmem:[#allocation2 + $0x79] sm:$0xff]
      %v777 = vld [vmem:[#allocation2 + $0x81] sm:$0xff]
      %v778 = vld [vmem:[#allocation2 + $0x89] sm:$0xff]
      %v779 = vld [vmem:[#allocation2 + $0x91] sm:$0xff]
      %v780 = vld [vmem:[#allocation2 + $0x99] sm:$0xff]
      %v781 = vld [vmem:[#allocation2 + $0xa1] sm:$0xff]
      %v782 = vld [vmem:[#allocation2 + $0xa9] sm:$0xff]
      %v783 = vld [vmem:[#allocation2 + $0xb1] sm:$0xff]
      %v784 = vld [vmem:[#allocation2 + $0xb9] sm:$0xff]
      %v785 = vld [vmem:[#allocation2 + $0xc1] sm:$0xff]
      %v786 = vld [vmem:[#allocation2 + $0xc9] sm:$0xff]
      %v787 = vld [vmem:[#allocation2 + $0xd1] sm:$0xff]
      %v788 = vld [vmem:[#allocation2 + $0xd9] sm:$0xff]
      %v789 = vld [vmem:[#allocation2 + $0xe1] sm:$0xff]
      %v790 = vld [vmem:[#allocation2 + $0xe9] sm:$0xff]
      %v791 = vld [vmem:[#allocation2 + $0xf1] sm:$0xff]
      %v792 = vld [vmem:[#allocation2 + $0xf9] sm:$0xff]
      %v793 = vld [vmem:[#allocation2 + $0x101] sm:$0xff]
      %v794 = vld [vmem:[#allocation2 + $0x109] sm:$0xff]
      %v795 = vld [vmem:[#allocation2 + $0x111] sm:$0xff]
      %v796 = vld [vmem:[#allocation2 + $0x119] sm:$0xff]
      %s797 = scalar_lea.vmem %s1, 128
      %v798 = vld [vmem:[%s797] sm:$0xff]
      %v799 = vld [vmem:[%s797 + $0x8] sm:$0xff]
      %v800 = vld [vmem:[%s797 + $0x10] sm:$0xff]
      %v801 = vld [vmem:[%s797 + $0x18] sm:$0xff]
      %v802 = vld [vmem:[%s797 + $0x20] sm:$0xff]
      %v803 = vld [vmem:[%s797 + $0x28] sm:$0xff]
      %v804 = vld [vmem:[%s797 + $0x30] sm:$0xff]
      %v805 = vld [vmem:[%s797 + $0x38] sm:$0xff]
      %v806 = vld [vmem:[%s797 + $0x40] sm:$0xff]
      %v807 = vld [vmem:[%s797 + $0x48] sm:$0xff]
      %v808 = vld [vmem:[%s797 + $0x50] sm:$0xff]
      %v809 = vld [vmem:[%s797 + $0x58] sm:$0xff]
      %v810 = vld [vmem:[%s797 + $0x60] sm:$0xff]
      %v811 = vld [vmem:[%s797 + $0x68] sm:$0xff]
      %v812 = vld [vmem:[%s797 + $0x70] sm:$0xff]
      %v813 = vld [vmem:[%s797 + $0x78] sm:$0xff]
      %814 = vmatprep.subr.mxu0 0.0
      %815 = vmatpush1.msra.mxu0 %v798
      %816 = vmatprep.subr.mxu0 0.0
      %817 = vmatpush1.msra.mxu0 %v799
      %818 = vmatprep.subr.mxu0 0.0
      %819 = vmatpush1.msra.mxu0 %v800
      %820 = vmatprep.subr.mxu0 0.0
      %821 = vmatpush1.msra.mxu0 %v801
      %822 = vmatprep.subr.mxu0 0.0
      %823 = vmatpush1.msra.mxu0 %v802
      %824 = vmatprep.subr.mxu0 0.0
      %825 = vmatpush1.msra.mxu0 %v803
      %826 = vmatprep.subr.mxu0 0.0
      %827 = vmatpush1.msra.mxu0 %v804
      %828 = vmatprep.subr.mxu0 0.0
      %829 = vmatpush1.msra.mxu0 %v805
      %830 = vmatprep.subr.mxu0 0.0
      %831 = vmatpush1.msra.mxu0 %v806
      %832 = vmatprep.subr.mxu0 0.0
      %833 = vmatpush1.msra.mxu0 %v807
      %834 = vmatprep.subr.mxu0 0.0
      %835 = vmatpush1.msra.mxu0 %v808
      %836 = vmatprep.subr.mxu0 0.0
      %837 = vmatpush1.msra.mxu0 %v809
      %838 = vmatprep.subr.mxu0 0.0
      %839 = vmatpush1.msra.mxu0 %v810
      %840 = vmatprep.subr.mxu0 0.0
      %841 = vmatpush1.msra.mxu0 %v811
      %842 = vmatprep.subr.mxu0 0.0
      %843 = vmatpush1.msra.mxu0 %v812
      %844 = vmatprep.subr.mxu0 0.0
      %845 = vmatpush1.msra.mxu0 %v813
      %846 = vmatprep.subr.mxu0 0.0
      %847 = vmatpush1.msra.mxu0 0.0
      %848 = vmatprep.subr.mxu0 0.0
      %849 = vmatpush1.msra.mxu0 0.0
      %850 = vmatprep.subr.mxu0 0.0
      %851 = vmatpush1.msra.mxu0 0.0
      %852 = vmatprep.subr.mxu0 0.0
      %853 = vmatpush1.msra.mxu0 0.0
      %854 = vmatprep.subr.mxu0 0.0
      %855 = vmatpush1.msra.mxu0 0.0
      %856 = vmatprep.subr.mxu0 0.0
      %857 = vmatpush1.msra.mxu0 0.0
      %858 = vmatprep.subr.mxu0 0.0
      %859 = vmatpush1.msra.mxu0 0.0
      %860 = vmatprep.subr.mxu0 0.0
      %861 = vmatpush1.msra.mxu0 0.0
      %862 = vmatprep.subr.mxu0 0.0
      %863 = vmatpush1.msra.mxu0 0.0
      %864 = vmatprep.subr.mxu0 0.0
      %865 = vmatpush1.msra.mxu0 0.0
      %866 = vmatprep.subr.mxu0 0.0
      %867 = vmatpush1.msra.mxu0 0.0
      %868 = vmatprep.subr.mxu0 0.0
      %869 = vmatpush1.msra.mxu0 0.0
      %870 = vmatprep.subr.mxu0 0.0
      %871 = vmatpush1.msra.mxu0 0.0
      %872 = vmatprep.subr.mxu0 0.0
      %873 = vmatpush1.msra.mxu0 0.0
      %874 = vmatprep.subr.mxu0 0.0
      %875 = vmatpush1.msra.mxu0 0.0
      %876 = vmatprep.subr.mxu0 0.0
      %877 = vmatpush1.msra.mxu0 0.0
      %878 = vmatprep.mubr.f32.mxu0 0.0
      %879 = vmatmul.mubr.f32.gmra.mrb[0].mxu0 %v761
      %v880 = vpop.f32.mrb[0].mxu0
      %v881 = vadd.f32 0.0, %v880
      %v882 = vpop.f32.mrb[0].mxu0
      %883 = vmatprep.mubr.f32.mxu0 0.0
      %884 = vmatmul.mubr.f32.gmra.mrb[0].mxu0 %v762
      %v885 = vpop.f32.mrb[0].mxu0
      %v886 = vadd.f32 0.0, %v885
      %v887 = vpop.f32.mrb[0].mxu0
      %888 = vmatprep.mubr.f32.mxu0 0.0
      %889 = vmatmul.mubr.f32.gmra.mrb[0].mxu0 %v763
      %v890 = vpop.f32.mrb[0].mxu0
      %v891 = vadd.f32 0.0, %v890
      %v892 = vpop.f32.mrb[0].mxu0
      %893 = vmatprep.mubr.f32.mxu0 0.0
      %894 = vmatmul.mubr.f32.gmra.mrb[0].mxu0 %v764
      %v895 = vpop.f32.mrb[0].mxu0
      %v896 = vadd.f32 0.0, %v895
      %v897 = vpop.f32.mrb[0].mxu0
      %898 = vmatprep.mubr.f32.mxu0 0.0
      %899 = vmatmul.mubr.f32.gmra.mrb[0].mxu0 %v765
      %v900 = vpop.f32.mrb[0].mxu0
      %v901 = vadd.f32 0.0, %v900
      %v902 = vpop.f32.mrb[0].mxu0
      %903 = vmatprep.mubr.f32.mxu0 0.0
      %904 = vmatmul.mubr.f32.gmra.mrb[0].mxu0 %v766
      %v905 = vpop.f32.mrb[0].mxu0
      %v906 = vadd.f32 0.0, %v905
      %v907 = vpop.f32.mrb[0].mxu0
      %908 = vmatprep.mubr.f32.mxu0 0.0
      %909 = vmatmul.mubr.f32.gmra.mrb[0].mxu0 %v767
      %v910 = vpop.f32.mrb[0].mxu0
      %v911 = vadd.f32 0.0, %v910
      %v912 = vpop.f32.mrb[0].mxu0
      %913 = vmatprep.mubr.f32.mxu0 0.0
      %914 = vmatmul.mubr.f32.gmra.mrb[0].mxu0 %v768
      %v915 = vpop.f32.mrb[0].mxu0
      %v916 = vadd.f32 0.0, %v915
      %v917 = vpop.f32.mrb[0].mxu0
      %918 = vmatprep.mubr.f32.mxu0 0.0
      %919 = vmatmul.mubr.f32.gmra.mrb[0].mxu0 %v769
      %v920 = vpop.f32.mrb[0].mxu0
      %v921 = vadd.f32 0.0, %v920
      %v922 = vpop.f32.mrb[0].mxu0
      %923 = vmatprep.mubr.f32.mxu0 0.0
      %924 = vmatmul.mubr.f32.gmra.mrb[0].mxu0 %v770
      %v925 = vpop.f32.mrb[0].mxu0
      %v926 = vadd.f32 0.0, %v925
      %v927 = vpop.f32.mrb[0].mxu0
      %928 = vmatprep.mubr.f32.mxu0 0.0
      %929 = vmatmul.mubr.f32.gmra.mrb[0].mxu0 %v771
      %v930 = vpop.f32.mrb[0].mxu0
      %v931 = vadd.f32 0.0, %v930
      %v932 = vpop.f32.mrb[0].mxu0
      %933 = vmatprep.mubr.f32.mxu0 0.0
      %934 = vmatmul.mubr.f32.gmra.mrb[0].mxu0 %v772
      %v935 = vpop.f32.mrb[0].mxu0
      %v936 = vadd.f32 0.0, %v935
      %v937 = vpop.f32.mrb[0].mxu0
      %938 = vmatprep.mubr.f32.mxu0 0.0
      %939 = vmatmul.mubr.f32.gmra.mrb[0].mxu0 %v773
      %v940 = vpop.f32.mrb[0].mxu0
      %v941 = vadd.f32 0.0, %v940
      %v942 = vpop.f32.mrb[0].mxu0
      %943 = vmatprep.mubr.f32.mxu0 0.0
      %944 = vmatmul.mubr.f32.gmra.mrb[0].mxu0 %v774
      %v945 = vpop.f32.mrb[0].mxu0
      %v946 = vadd.f32 0.0, %v945
      %v947 = vpop.f32.mrb[0].mxu0
      %948 = vmatprep.mubr.f32.mxu0 0.0
      %949 = vmatmul.mubr.f32.gmra.mrb[0].mxu0 %v775
      %v950 = vpop.f32.mrb[0].mxu0
      %v951 = vadd.f32 0.0, %v950
      %v952 = vpop.f32.mrb[0].mxu0
      %953 = vmatprep.mubr.f32.mxu0 0.0
      %954 = vmatmul.mubr.f32.gmra.mrb[0].mxu0 %v776
      %v955 = vpop.f32.mrb[0].mxu0
      %v956 = vadd.f32 0.0, %v955
      %v957 = vpop.f32.mrb[0].mxu0
      %958 = vmatprep.mubr.f32.mxu0 0.0
      %959 = vmatmul.mubr.f32.gmra.mrb[0].mxu0 %v777
      %v960 = vpop.f32.mrb[0].mxu0
      %v961 = vadd.f32 0.0, %v960
      %v962 = vpop.f32.mrb[0].mxu0
      %963 = vmatprep.mubr.f32.mxu0 0.0
      %964 = vmatmul.mubr.f32.gmra.mrb[0].mxu0 %v778
      %v965 = vpop.f32.mrb[0].mxu0
      %v966 = vadd.f32 0.0, %v965
      %v967 = vpop.f32.mrb[0].mxu0
      %968 = vmatprep.mubr.f32.mxu0 0.0
      %969 = vmatmul.mubr.f32.gmra.mrb[0].mxu0 %v779
      %v970 = vpop.f32.mrb[0].mxu0
      %v971 = vadd.f32 0.0, %v970
      %v972 = vpop.f32.mrb[0].mxu0
      %973 = vmatprep.mubr.f32.mxu0 0.0
      %974 = vmatmul.mubr.f32.gmra.mrb[0].mxu0 %v780
      %v975 = vpop.f32.mrb[0].mxu0
      %v976 = vadd.f32 0.0, %v975
      %v977 = vpop.f32.mrb[0].mxu0
      %978 = vmatprep.mubr.f32.mxu0 0.0
      %979 = vmatmul.mubr.f32.gmra.mrb[0].mxu0 %v781
      %v980 = vpop.f32.mrb[0].mxu0
      %v981 = vadd.f32 0.0, %v980
      %v982 = vpop.f32.mrb[0].mxu0
      %983 = vmatprep.mubr.f32.mxu0 0.0
      %984 = vmatmul.mubr.f32.gmra.mrb[0].mxu0 %v782
      %v985 = vpop.f32.mrb[0].mxu0
      %v986 = vadd.f32 0.0, %v985
      %v987 = vpop.f32.mrb[0].mxu0
      %988 = vmatprep.mubr.f32.mxu0 0.0
      %989 = vmatmul.mubr.f32.gmra.mrb[0].mxu0 %v783
      %v990 = vpop.f32.mrb[0].mxu0
      %v991 = vadd.f32 0.0, %v990
      %v992 = vpop.f32.mrb[0].mxu0
      %993 = vmatprep.mubr.f32.mxu0 0.0
      %994 = vmatmul.mubr.f32.gmra.mrb[0].mxu0 %v784
      %v995 = vpop.f32.mrb[0].mxu0
      %v996 = vadd.f32 0.0, %v995
      %v997 = vpop.f32.mrb[0].mxu0
      %998 = vmatprep.mubr.f32.mxu0 0.0
      %999 = vmatmul.mubr.f32.gmra.mrb[0].mxu0 %v785
      %v1000 = vpop.f32.mrb[0].mxu0
      %v1001 = vadd.f32 0.0, %v1000
      %v1002 = vpop.f32.mrb[0].mxu0
      %1003 = vmatprep.mubr.f32.mxu0 0.0
      %1004 = vmatmul.mubr.f32.gmra.mrb[0].mxu0 %v786
      %v1005 = vpop.f32.mrb[0].mxu0
      %v1006 = vadd.f32 0.0, %v1005
      %v1007 = vpop.f32.mrb[0].mxu0
      %1008 = vmatprep.mubr.f32.mxu0 0.0
      %1009 = vmatmul.mubr.f32.gmra.mrb[0].mxu0 %v787
      %v1010 = vpop.f32.mrb[0].mxu0
      %v1011 = vadd.f32 0.0, %v1010
      %v1012 = vpop.f32.mrb[0].mxu0
      %1013 = vmatprep.mubr.f32.mxu0 0.0
      %1014 = vmatmul.mubr.f32.gmra.mrb[0].mxu0 %v788
      %v1015 = vpop.f32.mrb[0].mxu0
      %v1016 = vadd.f32 0.0, %v1015
      %v1017 = vpop.f32.mrb[0].mxu0
      %1018 = vmatprep.mubr.f32.mxu0 0.0
      %1019 = vmatmul.mubr.f32.gmra.mrb[0].mxu0 %v789
      %v1020 = vpop.f32.mrb[0].mxu0
      %v1021 = vadd.f32 0.0, %v1020
      %v1022 = vpop.f32.mrb[0].mxu0
      %1023 = vmatprep.mubr.f32.mxu0 0.0
      %1024 = vmatmul.mubr.f32.gmra.mrb[0].mxu0 %v790
      %v1025 = vpop.f32.mrb[0].mxu0
      %v1026 = vadd.f32 0.0, %v1025
      %v1027 = vpop.f32.mrb[0].mxu0
      %1028 = vmatprep.mubr.f32.mxu0 0.0
      %1029 = vmatmul.mubr.f32.gmra.mrb[0].mxu0 %v791
      %v1030 = vpop.f32.mrb[0].mxu0
      %v1031 = vadd.f32 0.0, %v1030
      %v1032 = vpop.f32.mrb[0].mxu0
      %1033 = vmatprep.mubr.f32.mxu0 0.0
      %1034 = vmatmul.mubr.f32.gmra.mrb[0].mxu0 %v792
      %v1035 = vpop.f32.mrb[0].mxu0
      %v1036 = vadd.f32 0.0, %v1035
      %v1037 = vpop.f32.mrb[0].mxu0
      %1038 = vmatprep.mubr.f32.mxu0 0.0
      %1039 = vmatmul.mubr.f32.gmra.mrb[0].mxu0 %v793
      %v1040 = vpop.f32.mrb[0].mxu0
      %v1041 = vadd.f32 0.0, %v1040
      %v1042 = vpop.f32.mrb[0].mxu0
      %1043 = vmatprep.mubr.f32.mxu0 0.0
      %1044 = vmatmul.mubr.f32.gmra.mrb[0].mxu0 %v794
      %v1045 = vpop.f32.mrb[0].mxu0
      %v1046 = vadd.f32 0.0, %v1045
      %v1047 = vpop.f32.mrb[0].mxu0
      %1048 = vmatprep.mubr.f32.mxu0 0.0
      %1049 = vmatmul.mubr.f32.gmra.mrb[0].mxu0 %v795
      %v1050 = vpop.f32.mrb[0].mxu0
      %v1051 = vadd.f32 0.0, %v1050
      %v1052 = vpop.f32.mrb[0].mxu0
      %1053 = vmatprep.mubr.f32.mxu0 0.0
      %1054 = vmatmul.mubr.f32.gmra.mrb[0].mxu0 %v796
      %v1055 = vpop.f32.mrb[0].mxu0
      %v1056 = vadd.f32 0.0, %v1055
      %v1057 = vpop.f32.mrb[0].mxu0
      %1058 = vdwg.mxu0
      %v1059 = vadd.f32 %v725, %v881
      %v1060 = vadd.f32 %v726, %v886
      %v1061 = vadd.f32 %v727, %v891
      %v1062 = vadd.f32 %v728, %v896
      %v1063 = vadd.f32 %v729, %v901
      %v1064 = vadd.f32 %v730, %v906
      %v1065 = vadd.f32 %v731, %v911
      %v1066 = vadd.f32 %v732, %v916
      %v1067 = vadd.f32 %v733, %v921
      %v1068 = vadd.f32 %v734, %v926
      %v1069 = vadd.f32 %v735, %v931
      %v1070 = vadd.f32 %v736, %v936
      %v1071 = vadd.f32 %v737, %v941
      %v1072 = vadd.f32 %v738, %v946
      %v1073 = vadd.f32 %v739, %v951
      %v1074 = vadd.f32 %v740, %v956
      %v1075 = vadd.f32 %v741, %v961
      %v1076 = vadd.f32 %v742, %v966
      %v1077 = vadd.f32 %v743, %v971
      %v1078 = vadd.f32 %v744, %v976
      %v1079 = vadd.f32 %v745, %v981
      %v1080 = vadd.f32 %v746, %v986
      %v1081 = vadd.f32 %v747, %v991
      %v1082 = vadd.f32 %v748, %v996
      %v1083 = vadd.f32 %v749, %v1001
      %v1084 = vadd.f32 %v750, %v1006
      %v1085 = vadd.f32 %v751, %v1011
      %v1086 = vadd.f32 %v752, %v1016
      %v1087 = vadd.f32 %v753, %v1021
      %v1088 = vadd.f32 %v754, %v1026
      %v1089 = vadd.f32 %v755, %v1031
      %v1090 = vadd.f32 %v756, %v1036
      %v1091 = vadd.f32 %v757, %v1041
      %v1092 = vadd.f32 %v758, %v1046
      %v1093 = vadd.f32 %v759, %v1051
      %v1094 = vadd.f32 %v760, %v1056
      %1095 = vst [vmem:[#allocation3] sm:$0xff] %v1059
      %1096 = vst [vmem:[#allocation3 + $0x8] sm:$0xff] %v1060
      %1097 = vst [vmem:[#allocation3 + $0x10] sm:$0xff] %v1061
      %1098 = vst [vmem:[#allocation3 + $0x18] sm:$0xff] %v1062
      %1099 = vst [vmem:[#allocation3 + $0x20] sm:$0xff] %v1063
      %1100 = vst [vmem:[#allocation3 + $0x28] sm:$0xff] %v1064
      %1101 = vst [vmem:[#allocation3 + $0x30] sm:$0xff] %v1065
      %1102 = vst [vmem:[#allocation3 + $0x38] sm:$0xff] %v1066
      %1103 = vst [vmem:[#allocation3 + $0x40] sm:$0xff] %v1067
      %1104 = vst [vmem:[#allocation3 + $0x48] sm:$0xff] %v1068
      %1105 = vst [vmem:[#allocation3 + $0x50] sm:$0xff] %v1069
      %1106 = vst [vmem:[#allocation3 + $0x58] sm:$0xff] %v1070
      %1107 = vst [vmem:[#allocation3 + $0x60] sm:$0xff] %v1071
      %1108 = vst [vmem:[#allocation3 + $0x68] sm:$0xff] %v1072
      %1109 = vst [vmem:[#allocation3 + $0x70] sm:$0xff] %v1073
      %1110 = vst [vmem:[#allocation3 + $0x78] sm:$0xff] %v1074
      %1111 = vst [vmem:[#allocation3 + $0x80] sm:$0xff] %v1075
      %1112 = vst [vmem:[#allocation3 + $0x88] sm:$0xff] %v1076
      %1113 = vst [vmem:[#allocation3 + $0x90] sm:$0xff] %v1077
      %1114 = vst [vmem:[#allocation3 + $0x98] sm:$0xff] %v1078
      %1115 = vst [vmem:[#allocation3 + $0xa0] sm:$0xff] %v1079
      %1116 = vst [vmem:[#allocation3 + $0xa8] sm:$0xff] %v1080
      %1117 = vst [vmem:[#allocation3 + $0xb0] sm:$0xff] %v1081
      %1118 = vst [vmem:[#allocation3 + $0xb8] sm:$0xff] %v1082
      %1119 = vst [vmem:[#allocation3 + $0xc0] sm:$0xff] %v1083
      %1120 = vst [vmem:[#allocation3 + $0xc8] sm:$0xff] %v1084
      %1121 = vst [vmem:[#allocation3 + $0xd0] sm:$0xff] %v1085
      %1122 = vst [vmem:[#allocation3 + $0xd8] sm:$0xff] %v1086
      %1123 = vst [vmem:[#allocation3 + $0xe0] sm:$0xff] %v1087
      %1124 = vst [vmem:[#allocation3 + $0xe8] sm:$0xff] %v1088
      %1125 = vst [vmem:[#allocation3 + $0xf0] sm:$0xff] %v1089
      %1126 = vst [vmem:[#allocation3 + $0xf8] sm:$0xff] %v1090
      %1127 = vst [vmem:[#allocation3 + $0x100] sm:$0xff] %v1091
      %1128 = vst [vmem:[#allocation3 + $0x108] sm:$0xff] %v1092
      %1129 = vst [vmem:[#allocation3 + $0x110] sm:$0xff] %v1093
      %1130 = vst [vmem:[#allocation3 + $0x118] sm:$0xff] %v1094
      %v1131 = vld [vmem:[#allocation3] sm:$0xff]
      %v1132 = vld [vmem:[#allocation3 + $0x8] sm:$0xff]
      %v1133 = vld [vmem:[#allocation3 + $0x10] sm:$0xff]
      %v1134 = vld [vmem:[#allocation3 + $0x18] sm:$0xff]
      %v1135 = vld [vmem:[#allocation3 + $0x20] sm:$0xff]
      %v1136 = vld [vmem:[#allocation3 + $0x28] sm:$0xff]
      %v1137 = vld [vmem:[#allocation3 + $0x30] sm:$0xff]
      %v1138 = vld [vmem:[#allocation3 + $0x38] sm:$0xff]
      %v1139 = vld [vmem:[#allocation3 + $0x40] sm:$0xff]
      %v1140 = vld [vmem:[#allocation3 + $0x48] sm:$0xff]
      %v1141 = vld [vmem:[#allocation3 + $0x50] sm:$0xff]
      %v1142 = vld [vmem:[#allocation3 + $0x58] sm:$0xff]
      %v1143 = vld [vmem:[#allocation3 + $0x60] sm:$0xff]
      %v1144 = vld [vmem:[#allocation3 + $0x68] sm:$0xff]
      %v1145 = vld [vmem:[#allocation3 + $0x70] sm:$0xff]
      %v1146 = vld [vmem:[#allocation3 + $0x78] sm:$0xff]
      %v1147 = vld [vmem:[#allocation3 + $0x80] sm:$0xff]
      %v1148 = vld [vmem:[#allocation3 + $0x88] sm:$0xff]
      %v1149 = vld [vmem:[#allocation3 + $0x90] sm:$0xff]
      %v1150 = vld [vmem:[#allocation3 + $0x98] sm:$0xff]
      %v1151 = vld [vmem:[#allocation3 + $0xa0] sm:$0xff]
      %v1152 = vld [vmem:[#allocation3 + $0xa8] sm:$0xff]
      %v1153 = vld [vmem:[#allocation3 + $0xb0] sm:$0xff]
      %v1154 = vld [vmem:[#allocation3 + $0xb8] sm:$0xff]
      %v1155 = vld [vmem:[#allocation3 + $0xc0] sm:$0xff]
      %v1156 = vld [vmem:[#allocation3 + $0xc8] sm:$0xff]
      %v1157 = vld [vmem:[#allocation3 + $0xd0] sm:$0xff]
      %v1158 = vld [vmem:[#allocation3 + $0xd8] sm:$0xff]
      %v1159 = vld [vmem:[#allocation3 + $0xe0] sm:$0xff]
      %v1160 = vld [vmem:[#allocation3 + $0xe8] sm:$0xff]
      %v1161 = vld [vmem:[#allocation3 + $0xf0] sm:$0xff]
      %v1162 = vld [vmem:[#allocation3 + $0xf8] sm:$0xff]
      %v1163 = vld [vmem:[#allocation3 + $0x100] sm:$0xff]
      %v1164 = vld [vmem:[#allocation3 + $0x108] sm:$0xff]
      %v1165 = vld [vmem:[#allocation3 + $0x110] sm:$0xff]
      %v1166 = vld [vmem:[#allocation3 + $0x118] sm:$0xff]
      %v1167 = vld [vmem:[#allocation2 + $0x2] sm:$0xff]
      %v1168 = vld [vmem:[#allocation2 + $0xa] sm:$0xff]
      %v1169 = vld [vmem:[#allocation2 + $0x12] sm:$0xff]
      %v1170 = vld [vmem:[#allocation2 + $0x1a] sm:$0xff]
      %v1171 = vld [vmem:[#allocation2 + $0x22] sm:$0xff]
      %v1172 = vld [vmem:[#allocation2 + $0x2a] sm:$0xff]
      %v1173 = vld [vmem:[#allocation2 + $0x32] sm:$0xff]
      %v1174 = vld [vmem:[#allocation2 + $0x3a] sm:$0xff]
      %v1175 = vld [vmem:[#allocation2 + $0x42] sm:$0xff]
      %v1176 = vld [vmem:[#allocation2 + $0x4a] sm:$0xff]
      %v1177 = vld [vmem:[#allocation2 + $0x52] sm:$0xff]
      %v1178 = vld [vmem:[#allocation2 + $0x5a] sm:$0xff]
      %v1179 = vld [vmem:[#allocation2 + $0x62] sm:$0xff]
      %v1180 = vld [vmem:[#allocation2 + $0x6a] sm:$0xff]
      %v1181 = vld [vmem:[#allocation2 + $0x72] sm:$0xff]
      %v1182 = vld [vmem:[#allocation2 + $0x7a] sm:$0xff]
      %v1183 = vld [vmem:[#allocation2 + $0x82] sm:$0xff]
      %v1184 = vld [vmem:[#allocation2 + $0x8a] sm:$0xff]
      %v1185 = vld [vmem:[#allocation2 + $0x92] sm:$0xff]
      %v1186 = vld [vmem:[#allocation2 + $0x9a] sm:$0xff]
      %v1187 = vld [vmem:[#allocation2 + $0xa2] sm:$0xff]
      %v1188 = vld [vmem:[#allocation2 + $0xaa] sm:$0xff]
      %v1189 = vld [vmem:[#allocation2 + $0xb2] sm:$0xff]
      %v1190 = vld [vmem:[#allocation2 + $0xba] sm:$0xff]
      %v1191 = vld [vmem:[#allocation2 + $0xc2] sm:$0xff]
      %v1192 = vld [vmem:[#allocation2 + $0xca] sm:$0xff]
      %v1193 = vld [vmem:[#allocation2 + $0xd2] sm:$0xff]
      %v1194 = vld [vmem:[#allocation2 + $0xda] sm:$0xff]
      %v1195 = vld [vmem:[#allocation2 + $0xe2] sm:$0xff]
      %v1196 = vld [vmem:[#allocation2 + $0xea] sm:$0xff]
      %v1197 = vld [vmem:[#allocation2 + $0xf2] sm:$0xff]
      %v1198 = vld [vmem:[#allocation2 + $0xfa] sm:$0xff]
      %v1199 = vld [vmem:[#allocation2 + $0x102] sm:$0xff]
      %v1200 = vld [vmem:[#allocation2 + $0x10a] sm:$0xff]
      %v1201 = vld [vmem:[#allocation2 + $0x112] sm:$0xff]
      %v1202 = vld [vmem:[#allocation2 + $0x11a] sm:$0xff]
      %s1203 = scalar_lea.vmem %s1, 256
      %v1204 = vld [vmem:[%s1203] sm:$0xff]
      %v1205 = vld [vmem:[%s1203 + $0x8] sm:$0xff]
      %v1206 = vld [vmem:[%s1203 + $0x10] sm:$0xff]
      %v1207 = vld [vmem:[%s1203 + $0x18] sm:$0xff]
      %v1208 = vld [vmem:[%s1203 + $0x20] sm:$0xff]
      %v1209 = vld [vmem:[%s1203 + $0x28] sm:$0xff]
      %v1210 = vld [vmem:[%s1203 + $0x30] sm:$0xff]
      %v1211 = vld [vmem:[%s1203 + $0x38] sm:$0xff]
      %v1212 = vld [vmem:[%s1203 + $0x40] sm:$0xff]
      %v1213 = vld [vmem:[%s1203 + $0x48] sm:$0xff]
      %v1214 = vld [vmem:[%s1203 + $0x50] sm:$0xff]
      %v1215 = vld [vmem:[%s1203 + $0x58] sm:$0xff]
      %v1216 = vld [vmem:[%s1203 + $0x60] sm:$0xff]
      %v1217 = vld [vmem:[%s1203 + $0x68] sm:$0xff]
      %v1218 = vld [vmem:[%s1203 + $0x70] sm:$0xff]
      %v1219 = vld [vmem:[%s1203 + $0x78] sm:$0xff]
      %1220 = vmatprep.subr.mxu0 0.0
      %1221 = vmatpush1.msra.mxu0 %v1204
      %1222 = vmatprep.subr.mxu0 0.0
      %1223 = vmatpush1.msra.mxu0 %v1205
      %1224 = vmatprep.subr.mxu0 0.0
      %1225 = vmatpush1.msra.mxu0 %v1206
      %1226 = vmatprep.subr.mxu0 0.0
      %1227 = vmatpush1.msra.mxu0 %v1207
      %1228 = vmatprep.subr.mxu0 0.0
      %1229 = vmatpush1.msra.mxu0 %v1208
      %1230 = vmatprep.subr.mxu0 0.0
      %1231 = vmatpush1.msra.mxu0 %v1209
      %1232 = vmatprep.subr.mxu0 0.0
      %1233 = vmatpush1.msra.mxu0 %v1210
      %1234 = vmatprep.subr.mxu0 0.0
      %1235 = vmatpush1.msra.mxu0 %v1211
      %1236 = vmatprep.subr.mxu0 0.0
      %1237 = vmatpush1.msra.mxu0 %v1212
      %1238 = vmatprep.subr.mxu0 0.0
      %1239 = vmatpush1.msra.mxu0 %v1213
      %1240 = vmatprep.subr.mxu0 0.0
      %1241 = vmatpush1.msra.mxu0 %v1214
      %1242 = vmatprep.subr.mxu0 0.0
      %1243 = vmatpush1.msra.mxu0 %v1215
      %1244 = vmatprep.subr.mxu0 0.0
      %1245 = vmatpush1.msra.mxu0 %v1216
      %1246 = vmatprep.subr.mxu0 0.0
      %1247 = vmatpush1.msra.mxu0 %v1217
      %1248 = vmatprep.subr.mxu0 0.0
      %1249 = vmatpush1.msra.mxu0 %v1218
      %1250 = vmatprep.subr.mxu0 0.0
      %1251 = vmatpush1.msra.mxu0 %v1219
      %1252 = vmatprep.subr.mxu0 0.0
      %1253 = vmatpush1.msra.mxu0 0.0
      %1254 = vmatprep.subr.mxu0 0.0
      %1255 = vmatpush1.msra.mxu0 0.0
      %1256 = vmatprep.subr.mxu0 0.0
      %1257 = vmatpush1.msra.mxu0 0.0
      %1258 = vmatprep.subr.mxu0 0.0
      %1259 = vmatpush1.msra.mxu0 0.0
      %1260 = vmatprep.subr.mxu0 0.0
      %1261 = vmatpush1.msra.mxu0 0.0
      %1262 = vmatprep.subr.mxu0 0.0
      %1263 = vmatpush1.msra.mxu0 0.0
      %1264 = vmatprep.subr.mxu0 0.0
      %1265 = vmatpush1.msra.mxu0 0.0
      %1266 = vmatprep.subr.mxu0 0.0
      %1267 = vmatpush1.msra.mxu0 0.0
      %1268 = vmatprep.subr.mxu0 0.0
      %1269 = vmatpush1.msra.mxu0 0.0
      %1270 = vmatprep.subr.mxu0 0.0
      %1271 = vmatpush1.msra.mxu0 0.0
      %1272 = vmatprep.subr.mxu0 0.0
      %1273 = vmatpush1.msra.mxu0 0.0
      %1274 = vmatprep.subr.mxu0 0.0
      %1275 = vmatpush1.msra.mxu0 0.0
      %1276 = vmatprep.subr.mxu0 0.0
      %1277 = vmatpush1.msra.mxu0 0.0
      %1278 = vmatprep.subr.mxu0 0.0
      %1279 = vmatpush1.msra.mxu0 0.0
      %1280 = vmatprep.subr.mxu0 0.0
      %1281 = vmatpush1.msra.mxu0 0.0
      %1282 = vmatprep.subr.mxu0 0.0
      %1283 = vmatpush1.msra.mxu0 0.0
      %1284 = vmatprep.mubr.f32.mxu0 0.0
      %1285 = vmatmul.mubr.f32.gmra.mrb[0].mxu0 %v1167
      %v1286 = vpop.f32.mrb[0].mxu0
      %v1287 = vadd.f32 0.0, %v1286
      %v1288 = vpop.f32.mrb[0].mxu0
      %1289 = vmatprep.mubr.f32.mxu0 0.0
      %1290 = vmatmul.mubr.f32.gmra.mrb[0].mxu0 %v1168
      %v1291 = vpop.f32.mrb[0].mxu0
      %v1292 = vadd.f32 0.0, %v1291
      %v1293 = vpop.f32.mrb[0].mxu0
      %1294 = vmatprep.mubr.f32.mxu0 0.0
      %1295 = vmatmul.mubr.f32.gmra.mrb[0].mxu0 %v1169
      %v1296 = vpop.f32.mrb[0].mxu0
      %v1297 = vadd.f32 0.0, %v1296
      %v1298 = vpop.f32.mrb[0].mxu0
      %1299 = vmatprep.mubr.f32.mxu0 0.0
      %1300 = vmatmul.mubr.f32.gmra.mrb[0].mxu0 %v1170
      %v1301 = vpop.f32.mrb[0].mxu0
      %v1302 = vadd.f32 0.0, %v1301
      %v1303 = vpop.f32.mrb[0].mxu0
      %1304 = vmatprep.mubr.f32.mxu0 0.0
      %1305 = vmatmul.mubr.f32.gmra.mrb[0].mxu0 %v1171
      %v1306 = vpop.f32.mrb[0].mxu0
      %v1307 = vadd.f32 0.0, %v1306
      %v1308 = vpop.f32.mrb[0].mxu0
      %1309 = vmatprep.mubr.f32.mxu0 0.0
      %1310 = vmatmul.mubr.f32.gmra.mrb[0].mxu0 %v1172
      %v1311 = vpop.f32.mrb[0].mxu0
      %v1312 = vadd.f32 0.0, %v1311
      %v1313 = vpop.f32.mrb[0].mxu0
      %1314 = vmatprep.mubr.f32.mxu0 0.0
      %1315 = vmatmul.mubr.f32.gmra.mrb[0].mxu0 %v1173
      %v1316 = vpop.f32.mrb[0].mxu0
      %v1317 = vadd.f32 0.0, %v1316
      %v1318 = vpop.f32.mrb[0].mxu0
      %1319 = vmatprep.mubr.f32.mxu0 0.0
      %1320 = vmatmul.mubr.f32.gmra.mrb[0].mxu0 %v1174
      %v1321 = vpop.f32.mrb[0].mxu0
      %v1322 = vadd.f32 0.0, %v1321
      %v1323 = vpop.f32.mrb[0].mxu0
      %1324 = vmatprep.mubr.f32.mxu0 0.0
      %1325 = vmatmul.mubr.f32.gmra.mrb[0].mxu0 %v1175
      %v1326 = vpop.f32.mrb[0].mxu0
      %v1327 = vadd.f32 0.0, %v1326
      %v1328 = vpop.f32.mrb[0].mxu0
      %1329 = vmatprep.mubr.f32.mxu0 0.0
      %1330 = vmatmul.mubr.f32.gmra.mrb[0].mxu0 %v1176
      %v1331 = vpop.f32.mrb[0].mxu0
      %v1332 = vadd.f32 0.0, %v1331
      %v1333 = vpop.f32.mrb[0].mxu0
      %1334 = vmatprep.mubr.f32.mxu0 0.0
      %1335 = vmatmul.mubr.f32.gmra.mrb[0].mxu0 %v1177
      %v1336 = vpop.f32.mrb[0].mxu0
      %v1337 = vadd.f32 0.0, %v1336
      %v1338 = vpop.f32.mrb[0].mxu0
      %1339 = vmatprep.mubr.f32.mxu0 0.0
      %1340 = vmatmul.mubr.f32.gmra.mrb[0].mxu0 %v1178
      %v1341 = vpop.f32.mrb[0].mxu0
      %v1342 = vadd.f32 0.0, %v1341
      %v1343 = vpop.f32.mrb[0].mxu0
      %1344 = vmatprep.mubr.f32.mxu0 0.0
      %1345 = vmatmul.mubr.f32.gmra.mrb[0].mxu0 %v1179
      %v1346 = vpop.f32.mrb[0].mxu0
      %v1347 = vadd.f32 0.0, %v1346
      %v1348 = vpop.f32.mrb[0].mxu0
      %1349 = vmatprep.mubr.f32.mxu0 0.0
      %1350 = vmatmul.mubr.f32.gmra.mrb[0].mxu0 %v1180
      %v1351 = vpop.f32.mrb[0].mxu0
      %v1352 = vadd.f32 0.0, %v1351
      %v1353 = vpop.f32.mrb[0].mxu0
      %1354 = vmatprep.mubr.f32.mxu0 0.0
      %1355 = vmatmul.mubr.f32.gmra.mrb[0].mxu0 %v1181
      %v1356 = vpop.f32.mrb[0].mxu0
      %v1357 = vadd.f32 0.0, %v1356
      %v1358 = vpop.f32.mrb[0].mxu0
      %1359 = vmatprep.mubr.f32.mxu0 0.0
      %1360 = vmatmul.mubr.f32.gmra.mrb[0].mxu0 %v1182
      %v1361 = vpop.f32.mrb[0].mxu0
      %v1362 = vadd.f32 0.0, %v1361
      %v1363 = vpop.f32.mrb[0].mxu0
      %1364 = vmatprep.mubr.f32.mxu0 0.0
      %1365 = vmatmul.mubr.f32.gmra.mrb[0].mxu0 %v1183
      %v1366 = vpop.f32.mrb[0].mxu0
      %v1367 = vadd.f32 0.0, %v1366
      %v1368 = vpop.f32.mrb[0].mxu0
      %1369 = vmatprep.mubr.f32.mxu0 0.0
      %1370 = vmatmul.mubr.f32.gmra.mrb[0].mxu0 %v1184
      %v1371 = vpop.f32.mrb[0].mxu0
      %v1372 = vadd.f32 0.0, %v1371
      %v1373 = vpop.f32.mrb[0].mxu0
      %1374 = vmatprep.mubr.f32.mxu0 0.0
      %1375 = vmatmul.mubr.f32.gmra.mrb[0].mxu0 %v1185
      %v1376 = vpop.f32.mrb[0].mxu0
      %v1377 = vadd.f32 0.0, %v1376
      %v1378 = vpop.f32.mrb[0].mxu0
      %1379 = vmatprep.mubr.f32.mxu0 0.0
      %1380 = vmatmul.mubr.f32.gmra.mrb[0].mxu0 %v1186
      %v1381 = vpop.f32.mrb[0].mxu0
      %v1382 = vadd.f32 0.0, %v1381
      %v1383 = vpop.f32.mrb[0].mxu0
      %1384 = vmatprep.mubr.f32.mxu0 0.0
      %1385 = vmatmul.mubr.f32.gmra.mrb[0].mxu0 %v1187
      %v1386 = vpop.f32.mrb[0].mxu0
      %v1387 = vadd.f32 0.0, %v1386
      %v1388 = vpop.f32.mrb[0].mxu0
      %1389 = vmatprep.mubr.f32.mxu0 0.0
      %1390 = vmatmul.mubr.f32.gmra.mrb[0].mxu0 %v1188
      %v1391 = vpop.f32.mrb[0].mxu0
      %v1392 = vadd.f32 0.0, %v1391
      %v1393 = vpop.f32.mrb[0].mxu0
      %1394 = vmatprep.mubr.f32.mxu0 0.0
      %1395 = vmatmul.mubr.f32.gmra.mrb[0].mxu0 %v1189
      %v1396 = vpop.f32.mrb[0].mxu0
      %v1397 = vadd.f32 0.0, %v1396
      %v1398 = vpop.f32.mrb[0].mxu0
      %1399 = vmatprep.mubr.f32.mxu0 0.0
      %1400 = vmatmul.mubr.f32.gmra.mrb[0].mxu0 %v1190
      %v1401 = vpop.f32.mrb[0].mxu0
      %v1402 = vadd.f32 0.0, %v1401
      %v1403 = vpop.f32.mrb[0].mxu0
      %1404 = vmatprep.mubr.f32.mxu0 0.0
      %1405 = vmatmul.mubr.f32.gmra.mrb[0].mxu0 %v1191
      %v1406 = vpop.f32.mrb[0].mxu0
      %v1407 = vadd.f32 0.0, %v1406
      %v1408 = vpop.f32.mrb[0].mxu0
      %1409 = vmatprep.mubr.f32.mxu0 0.0
      %1410 = vmatmul.mubr.f32.gmra.mrb[0].mxu0 %v1192
      %v1411 = vpop.f32.mrb[0].mxu0
      %v1412 = vadd.f32 0.0, %v1411
      %v1413 = vpop.f32.mrb[0].mxu0
      %1414 = vmatprep.mubr.f32.mxu0 0.0
      %1415 = vmatmul.mubr.f32.gmra.mrb[0].mxu0 %v1193
      %v1416 = vpop.f32.mrb[0].mxu0
      %v1417 = vadd.f32 0.0, %v1416
      %v1418 = vpop.f32.mrb[0].mxu0
      %1419 = vmatprep.mubr.f32.mxu0 0.0
      %1420 = vmatmul.mubr.f32.gmra.mrb[0].mxu0 %v1194
      %v1421 = vpop.f32.mrb[0].mxu0
      %v1422 = vadd.f32 0.0, %v1421
      %v1423 = vpop.f32.mrb[0].mxu0
      %1424 = vmatprep.mubr.f32.mxu0 0.0
      %1425 = vmatmul.mubr.f32.gmra.mrb[0].mxu0 %v1195
      %v1426 = vpop.f32.mrb[0].mxu0
      %v1427 = vadd.f32 0.0, %v1426
      %v1428 = vpop.f32.mrb[0].mxu0
      %1429 = vmatprep.mubr.f32.mxu0 0.0
      %1430 = vmatmul.mubr.f32.gmra.mrb[0].mxu0 %v1196
      %v1431 = vpop.f32.mrb[0].mxu0
      %v1432 = vadd.f32 0.0, %v1431
      %v1433 = vpop.f32.mrb[0].mxu0
      %1434 = vmatprep.mubr.f32.mxu0 0.0
      %1435 = vmatmul.mubr.f32.gmra.mrb[0].mxu0 %v1197
      %v1436 = vpop.f32.mrb[0].mxu0
      %v1437 = vadd.f32 0.0, %v1436
      %v1438 = vpop.f32.mrb[0].mxu0
      %1439 = vmatprep.mubr.f32.mxu0 0.0
      %1440 = vmatmul.mubr.f32.gmra.mrb[0].mxu0 %v1198
      %v1441 = vpop.f32.mrb[0].mxu0
      %v1442 = vadd.f32 0.0, %v1441
      %v1443 = vpop.f32.mrb[0].mxu0
      %1444 = vmatprep.mubr.f32.mxu0 0.0
      %1445 = vmatmul.mubr.f32.gmra.mrb[0].mxu0 %v1199
      %v1446 = vpop.f32.mrb[0].mxu0
      %v1447 = vadd.f32 0.0, %v1446
      %v1448 = vpop.f32.mrb[0].mxu0
      %1449 = vmatprep.mubr.f32.mxu0 0.0
      %1450 = vmatmul.mubr.f32.gmra.mrb[0].mxu0 %v1200
      %v1451 = vpop.f32.mrb[0].mxu0
      %v1452 = vadd.f32 0.0, %v1451
      %v1453 = vpop.f32.mrb[0].mxu0
      %1454 = vmatprep.mubr.f32.mxu0 0.0
      %1455 = vmatmul.mubr.f32.gmra.mrb[0].mxu0 %v1201
      %v1456 = vpop.f32.mrb[0].mxu0
      %v1457 = vadd.f32 0.0, %v1456
      %v1458 = vpop.f32.mrb[0].mxu0
      %1459 = vmatprep.mubr.f32.mxu0 0.0
      %1460 = vmatmul.mubr.f32.gmra.mrb[0].mxu0 %v1202
      %v1461 = vpop.f32.mrb[0].mxu0
      %v1462 = vadd.f32 0.0, %v1461
      %v1463 = vpop.f32.mrb[0].mxu0
      %1464 = vdwg.mxu0
      %v1465 = vadd.f32 %v1131, %v1287
      %v1466 = vadd.f32 %v1132, %v1292
      %v1467 = vadd.f32 %v1133, %v1297
      %v1468 = vadd.f32 %v1134, %v1302
      %v1469 = vadd.f32 %v1135, %v1307
      %v1470 = vadd.f32 %v1136, %v1312
      %v1471 = vadd.f32 %v1137, %v1317
      %v1472 = vadd.f32 %v1138, %v1322
      %v1473 = vadd.f32 %v1139, %v1327
      %v1474 = vadd.f32 %v1140, %v1332
      %v1475 = vadd.f32 %v1141, %v1337
      %v1476 = vadd.f32 %v1142, %v1342
      %v1477 = vadd.f32 %v1143, %v1347
      %v1478 = vadd.f32 %v1144, %v1352
      %v1479 = vadd.f32 %v1145, %v1357
      %v1480 = vadd.f32 %v1146, %v1362
      %v1481 = vadd.f32 %v1147, %v1367
      %v1482 = vadd.f32 %v1148, %v1372
      %v1483 = vadd.f32 %v1149, %v1377
      %v1484 = vadd.f32 %v1150, %v1382
      %v1485 = vadd.f32 %v1151, %v1387
      %v1486 = vadd.f32 %v1152, %v1392
      %v1487 = vadd.f32 %v1153, %v1397
      %v1488 = vadd.f32 %v1154, %v1402
      %v1489 = vadd.f32 %v1155, %v1407
      %v1490 = vadd.f32 %v1156, %v1412
      %v1491 = vadd.f32 %v1157, %v1417
      %v1492 = vadd.f32 %v1158, %v1422
      %v1493 = vadd.f32 %v1159, %v1427
      %v1494 = vadd.f32 %v1160, %v1432
      %v1495 = vadd.f32 %v1161, %v1437
      %v1496 = vadd.f32 %v1162, %v1442
      %v1497 = vadd.f32 %v1163, %v1447
      %v1498 = vadd.f32 %v1164, %v1452
      %v1499 = vadd.f32 %v1165, %v1457
      %v1500 = vadd.f32 %v1166, %v1462
      %1501 = vst [vmem:[#allocation3] sm:$0xff] %v1465
      %1502 = vst [vmem:[#allocation3 + $0x8] sm:$0xff] %v1466
      %1503 = vst [vmem:[#allocation3 + $0x10] sm:$0xff] %v1467
      %1504 = vst [vmem:[#allocation3 + $0x18] sm:$0xff] %v1468
      %1505 = vst [vmem:[#allocation3 + $0x20] sm:$0xff] %v1469
      %1506 = vst [vmem:[#allocation3 + $0x28] sm:$0xff] %v1470
      %1507 = vst [vmem:[#allocation3 + $0x30] sm:$0xff] %v1471
      %1508 = vst [vmem:[#allocation3 + $0x38] sm:$0xff] %v1472
      %1509 = vst [vmem:[#allocation3 + $0x40] sm:$0xff] %v1473
      %1510 = vst [vmem:[#allocation3 + $0x48] sm:$0xff] %v1474
      %1511 = vst [vmem:[#allocation3 + $0x50] sm:$0xff] %v1475
      %1512 = vst [vmem:[#allocation3 + $0x58] sm:$0xff] %v1476
      %1513 = vst [vmem:[#allocation3 + $0x60] sm:$0xff] %v1477
      %1514 = vst [vmem:[#allocation3 + $0x68] sm:$0xff] %v1478
      %1515 = vst [vmem:[#allocation3 + $0x70] sm:$0xff] %v1479
      %1516 = vst [vmem:[#allocation3 + $0x78] sm:$0xff] %v1480
      %1517 = vst [vmem:[#allocation3 + $0x80] sm:$0xff] %v1481
      %1518 = vst [vmem:[#allocation3 + $0x88] sm:$0xff] %v1482
      %1519 = vst [vmem:[#allocation3 + $0x90] sm:$0xff] %v1483
      %1520 = vst [vmem:[#allocation3 + $0x98] sm:$0xff] %v1484
      %1521 = vst [vmem:[#allocation3 + $0xa0] sm:$0xff] %v1485
      %1522 = vst [vmem:[#allocation3 + $0xa8] sm:$0xff] %v1486
      %1523 = vst [vmem:[#allocation3 + $0xb0] sm:$0xff] %v1487
      %1524 = vst [vmem:[#allocation3 + $0xb8] sm:$0xff] %v1488
      %1525 = vst [vmem:[#allocation3 + $0xc0] sm:$0xff] %v1489
      %1526 = vst [vmem:[#allocation3 + $0xc8] sm:$0xff] %v1490
      %1527 = vst [vmem:[#allocation3 + $0xd0] sm:$0xff] %v1491
      %1528 = vst [vmem:[#allocation3 + $0xd8] sm:$0xff] %v1492
      %1529 = vst [vmem:[#allocation3 + $0xe0] sm:$0xff] %v1493
      %1530 = vst [vmem:[#allocation3 + $0xe8] sm:$0xff] %v1494
      %1531 = vst [vmem:[#allocation3 + $0xf0] sm:$0xff] %v1495
      %1532 = vst [vmem:[#allocation3 + $0xf8] sm:$0xff] %v1496
      %1533 = vst [vmem:[#allocation3 + $0x100] sm:$0xff] %v1497
      %1534 = vst [vmem:[#allocation3 + $0x108] sm:$0xff] %v1498
      %1535 = vst [vmem:[#allocation3 + $0x110] sm:$0xff] %v1499
      %1536 = vst [vmem:[#allocation3 + $0x118] sm:$0xff] %v1500
      %v1537 = vld [vmem:[#allocation3] sm:$0xff]
      %v1538 = vld [vmem:[#allocation3 + $0x8] sm:$0xff]
      %v1539 = vld [vmem:[#allocation3 + $0x10] sm:$0xff]
      %v1540 = vld [vmem:[#allocation3 + $0x18] sm:$0xff]
      %v1541 = vld [vmem:[#allocation3 + $0x20] sm:$0xff]
      %v1542 = vld [vmem:[#allocation3 + $0x28] sm:$0xff]
      %v1543 = vld [vmem:[#allocation3 + $0x30] sm:$0xff]
      %v1544 = vld [vmem:[#allocation3 + $0x38] sm:$0xff]
      %v1545 = vld [vmem:[#allocation3 + $0x40] sm:$0xff]
      %v1546 = vld [vmem:[#allocation3 + $0x48] sm:$0xff]
      %v1547 = vld [vmem:[#allocation3 + $0x50] sm:$0xff]
      %v1548 = vld [vmem:[#allocation3 + $0x58] sm:$0xff]
      %v1549 = vld [vmem:[#allocation3 + $0x60] sm:$0xff]
      %v1550 = vld [vmem:[#allocation3 + $0x68] sm:$0xff]
      %v1551 = vld [vmem:[#allocation3 + $0x70] sm:$0xff]
      %v1552 = vld [vmem:[#allocation3 + $0x78] sm:$0xff]
      %v1553 = vld [vmem:[#allocation3 + $0x80] sm:$0xff]
      %v1554 = vld [vmem:[#allocation3 + $0x88] sm:$0xff]
      %v1555 = vld [vmem:[#allocation3 + $0x90] sm:$0xff]
      %v1556 = vld [vmem:[#allocation3 + $0x98] sm:$0xff]
      %v1557 = vld [vmem:[#allocation3 + $0xa0] sm:$0xff]
      %v1558 = vld [vmem:[#allocation3 + $0xa8] sm:$0xff]
      %v1559 = vld [vmem:[#allocation3 + $0xb0] sm:$0xff]
      %v1560 = vld [vmem:[#allocation3 + $0xb8] sm:$0xff]
      %v1561 = vld [vmem:[#allocation3 + $0xc0] sm:$0xff]
      %v1562 = vld [vmem:[#allocation3 + $0xc8] sm:$0xff]
      %v1563 = vld [vmem:[#allocation3 + $0xd0] sm:$0xff]
      %v1564 = vld [vmem:[#allocation3 + $0xd8] sm:$0xff]
      %v1565 = vld [vmem:[#allocation3 + $0xe0] sm:$0xff]
      %v1566 = vld [vmem:[#allocation3 + $0xe8] sm:$0xff]
      %v1567 = vld [vmem:[#allocation3 + $0xf0] sm:$0xff]
      %v1568 = vld [vmem:[#allocation3 + $0xf8] sm:$0xff]
      %v1569 = vld [vmem:[#allocation3 + $0x100] sm:$0xff]
      %v1570 = vld [vmem:[#allocation3 + $0x108] sm:$0xff]
      %v1571 = vld [vmem:[#allocation3 + $0x110] sm:$0xff]
      %v1572 = vld [vmem:[#allocation3 + $0x118] sm:$0xff]
      %v1573 = vld [vmem:[#allocation2 + $0x12] sm:$0xff]
      %v1574 = vld [vmem:[#allocation2 + $0x1a] sm:$0xff]
      %v1575 = vld [vmem:[#allocation2 + $0x22] sm:$0xff]
      %v1576 = vld [vmem:[#allocation2 + $0x2a] sm:$0xff]
      %v1577 = vld [vmem:[#allocation2 + $0x32] sm:$0xff]
      %v1578 = vld [vmem:[#allocation2 + $0x3a] sm:$0xff]
      %v1579 = vld [vmem:[#allocation2 + $0x42] sm:$0xff]
      %v1580 = vld [vmem:[#allocation2 + $0x4a] sm:$0xff]
      %v1581 = vld [vmem:[#allocation2 + $0x52] sm:$0xff]
      %v1582 = vld [vmem:[#allocation2 + $0x5a] sm:$0xff]
      %v1583 = vld [vmem:[#allocation2 + $0x62] sm:$0xff]
      %v1584 = vld [vmem:[#allocation2 + $0x6a] sm:$0xff]
      %v1585 = vld [vmem:[#allocation2 + $0x72] sm:$0xff]
      %v1586 = vld [vmem:[#allocation2 + $0x7a] sm:$0xff]
      %v1587 = vld [vmem:[#allocation2 + $0x82] sm:$0xff]
      %v1588 = vld [vmem:[#allocation2 + $0x8a] sm:$0xff]
      %v1589 = vld [vmem:[#allocation2 + $0x92] sm:$0xff]
      %v1590 = vld [vmem:[#allocation2 + $0x9a] sm:$0xff]
      %v1591 = vld [vmem:[#allocation2 + $0xa2] sm:$0xff]
      %v1592 = vld [vmem:[#allocation2 + $0xaa] sm:$0xff]
      %v1593 = vld [vmem:[#allocation2 + $0xb2] sm:$0xff]
      %v1594 = vld [vmem:[#allocation2 + $0xba] sm:$0xff]
      %v1595 = vld [vmem:[#allocation2 + $0xc2] sm:$0xff]
      %v1596 = vld [vmem:[#allocation2 + $0xca] sm:$0xff]
      %v1597 = vld [vmem:[#allocation2 + $0xd2] sm:$0xff]
      %v1598 = vld [vmem:[#allocation2 + $0xda] sm:$0xff]
      %v1599 = vld [vmem:[#allocation2 + $0xe2] sm:$0xff]
      %v1600 = vld [vmem:[#allocation2 + $0xea] sm:$0xff]
      %v1601 = vld [vmem:[#allocation2 + $0xf2] sm:$0xff]
      %v1602 = vld [vmem:[#allocation2 + $0xfa] sm:$0xff]
      %v1603 = vld [vmem:[#allocation2 + $0x102] sm:$0xff]
      %v1604 = vld [vmem:[#allocation2 + $0x10a] sm:$0xff]
      %v1605 = vld [vmem:[#allocation2 + $0x112] sm:$0xff]
      %v1606 = vld [vmem:[#allocation2 + $0x11a] sm:$0xff]
      %v1607 = vld [vmem:[#allocation2 + $0x122] sm:$0xff]
      %v1608 = vld [vmem:[#allocation2 + $0x12a] sm:$0xff]
      %s1609 = scalar_lea.vmem %s1, 384
      %v1610 = vld [vmem:[%s1609] sm:$0xff]
      %v1611 = vld [vmem:[%s1609 + $0x8] sm:$0xff]
      %v1612 = vld [vmem:[%s1609 + $0x10] sm:$0xff]
      %v1613 = vld [vmem:[%s1609 + $0x18] sm:$0xff]
      %v1614 = vld [vmem:[%s1609 + $0x20] sm:$0xff]
      %v1615 = vld [vmem:[%s1609 + $0x28] sm:$0xff]
      %v1616 = vld [vmem:[%s1609 + $0x30] sm:$0xff]
      %v1617 = vld [vmem:[%s1609 + $0x38] sm:$0xff]
      %v1618 = vld [vmem:[%s1609 + $0x40] sm:$0xff]
      %v1619 = vld [vmem:[%s1609 + $0x48] sm:$0xff]
      %v1620 = vld [vmem:[%s1609 + $0x50] sm:$0xff]
      %v1621 = vld [vmem:[%s1609 + $0x58] sm:$0xff]
      %v1622 = vld [vmem:[%s1609 + $0x60] sm:$0xff]
      %v1623 = vld [vmem:[%s1609 + $0x68] sm:$0xff]
      %v1624 = vld [vmem:[%s1609 + $0x70] sm:$0xff]
      %v1625 = vld [vmem:[%s1609 + $0x78] sm:$0xff]
      %1626 = vmatprep.subr.mxu0 0.0
      %1627 = vmatpush1.msra.mxu0 %v1610
      %1628 = vmatprep.subr.mxu0 0.0
      %1629 = vmatpush1.msra.mxu0 %v1611
      %1630 = vmatprep.subr.mxu0 0.0
      %1631 = vmatpush1.msra.mxu0 %v1612
      %1632 = vmatprep.subr.mxu0 0.0
      %1633 = vmatpush1.msra.mxu0 %v1613
      %1634 = vmatprep.subr.mxu0 0.0
      %1635 = vmatpush1.msra.mxu0 %v1614
      %1636 = vmatprep.subr.mxu0 0.0
      %1637 = vmatpush1.msra.mxu0 %v1615
      %1638 = vmatprep.subr.mxu0 0.0
      %1639 = vmatpush1.msra.mxu0 %v1616
      %1640 = vmatprep.subr.mxu0 0.0
      %1641 = vmatpush1.msra.mxu0 %v1617
      %1642 = vmatprep.subr.mxu0 0.0
      %1643 = vmatpush1.msra.mxu0 %v1618
      %1644 = vmatprep.subr.mxu0 0.0
      %1645 = vmatpush1.msra.mxu0 %v1619
      %1646 = vmatprep.subr.mxu0 0.0
      %1647 = vmatpush1.msra.mxu0 %v1620
      %1648 = vmatprep.subr.mxu0 0.0
      %1649 = vmatpush1.msra.mxu0 %v1621
      %1650 = vmatprep.subr.mxu0 0.0
      %1651 = vmatpush1.msra.mxu0 %v1622
      %1652 = vmatprep.subr.mxu0 0.0
      %1653 = vmatpush1.msra.mxu0 %v1623
      %1654 = vmatprep.subr.mxu0 0.0
      %1655 = vmatpush1.msra.mxu0 %v1624
      %1656 = vmatprep.subr.mxu0 0.0
      %1657 = vmatpush1.msra.mxu0 %v1625
      %1658 = vmatprep.subr.mxu0 0.0
      %1659 = vmatpush1.msra.mxu0 0.0
      %1660 = vmatprep.subr.mxu0 0.0
      %1661 = vmatpush1.msra.mxu0 0.0
      %1662 = vmatprep.subr.mxu0 0.0
      %1663 = vmatpush1.msra.mxu0 0.0
      %1664 = vmatprep.subr.mxu0 0.0
      %1665 = vmatpush1.msra.mxu0 0.0
      %1666 = vmatprep.subr.mxu0 0.0
      %1667 = vmatpush1.msra.mxu0 0.0
      %1668 = vmatprep.subr.mxu0 0.0
      %1669 = vmatpush1.msra.mxu0 0.0
      %1670 = vmatprep.subr.mxu0 0.0
      %1671 = vmatpush1.msra.mxu0 0.0
      %1672 = vmatprep.subr.mxu0 0.0
      %1673 = vmatpush1.msra.mxu0 0.0
      %1674 = vmatprep.subr.mxu0 0.0
      %1675 = vmatpush1.msra.mxu0 0.0
      %1676 = vmatprep.subr.mxu0 0.0
      %1677 = vmatpush1.msra.mxu0 0.0
      %1678 = vmatprep.subr.mxu0 0.0
      %1679 = vmatpush1.msra.mxu0 0.0
      %1680 = vmatprep.subr.mxu0 0.0
      %1681 = vmatpush1.msra.mxu0 0.0
      %1682 = vmatprep.subr.mxu0 0.0
      %1683 = vmatpush1.msra.mxu0 0.0
      %1684 = vmatprep.subr.mxu0 0.0
      %1685 = vmatpush1.msra.mxu0 0.0
      %1686 = vmatprep.subr.mxu0 0.0
      %1687 = vmatpush1.msra.mxu0 0.0
      %1688 = vmatprep.subr.mxu0 0.0
      %1689 = vmatpush1.msra.mxu0 0.0
      %1690 = vmatprep.mubr.f32.mxu0 0.0
      %1691 = vmatmul.mubr.f32.gmra.mrb[0].mxu0 %v1573
      %v1692 = vpop.f32.mrb[0].mxu0
      %v1693 = vadd.f32 0.0, %v1692
      %v1694 = vpop.f32.mrb[0].mxu0
      %1695 = vmatprep.mubr.f32.mxu0 0.0
      %1696 = vmatmul.mubr.f32.gmra.mrb[0].mxu0 %v1574
      %v1697 = vpop.f32.mrb[0].mxu0
      %v1698 = vadd.f32 0.0, %v1697
      %v1699 = vpop.f32.mrb[0].mxu0
      %1700 = vmatprep.mubr.f32.mxu0 0.0
      %1701 = vmatmul.mubr.f32.gmra.mrb[0].mxu0 %v1575
      %v1702 = vpop.f32.mrb[0].mxu0
      %v1703 = vadd.f32 0.0, %v1702
      %v1704 = vpop.f32.mrb[0].mxu0
      %1705 = vmatprep.mubr.f32.mxu0 0.0
      %1706 = vmatmul.mubr.f32.gmra.mrb[0].mxu0 %v1576
      %v1707 = vpop.f32.mrb[0].mxu0
      %v1708 = vadd.f32 0.0, %v1707
      %v1709 = vpop.f32.mrb[0].mxu0
      %1710 = vmatprep.mubr.f32.mxu0 0.0
      %1711 = vmatmul.mubr.f32.gmra.mrb[0].mxu0 %v1577
      %v1712 = vpop.f32.mrb[0].mxu0
      %v1713 = vadd.f32 0.0, %v1712
      %v1714 = vpop.f32.mrb[0].mxu0
      %1715 = vmatprep.mubr.f32.mxu0 0.0
      %1716 = vmatmul.mubr.f32.gmra.mrb[0].mxu0 %v1578
      %v1717 = vpop.f32.mrb[0].mxu0
      %v1718 = vadd.f32 0.0, %v1717
      %v1719 = vpop.f32.mrb[0].mxu0
      %1720 = vmatprep.mubr.f32.mxu0 0.0
      %1721 = vmatmul.mubr.f32.gmra.mrb[0].mxu0 %v1579
      %v1722 = vpop.f32.mrb[0].mxu0
      %v1723 = vadd.f32 0.0, %v1722
      %v1724 = vpop.f32.mrb[0].mxu0
      %1725 = vmatprep.mubr.f32.mxu0 0.0
      %1726 = vmatmul.mubr.f32.gmra.mrb[0].mxu0 %v1580
      %v1727 = vpop.f32.mrb[0].mxu0
      %v1728 = vadd.f32 0.0, %v1727
      %v1729 = vpop.f32.mrb[0].mxu0
      %1730 = vmatprep.mubr.f32.mxu0 0.0
      %1731 = vmatmul.mubr.f32.gmra.mrb[0].mxu0 %v1581
      %v1732 = vpop.f32.mrb[0].mxu0
      %v1733 = vadd.f32 0.0, %v1732
      %v1734 = vpop.f32.mrb[0].mxu0
      %1735 = vmatprep.mubr.f32.mxu0 0.0
      %1736 = vmatmul.mubr.f32.gmra.mrb[0].mxu0 %v1582
      %v1737 = vpop.f32.mrb[0].mxu0
      %v1738 = vadd.f32 0.0, %v1737
      %v1739 = vpop.f32.mrb[0].mxu0
      %1740 = vmatprep.mubr.f32.mxu0 0.0
      %1741 = vmatmul.mubr.f32.gmra.mrb[0].mxu0 %v1583
      %v1742 = vpop.f32.mrb[0].mxu0
      %v1743 = vadd.f32 0.0, %v1742
      %v1744 = vpop.f32.mrb[0].mxu0
      %1745 = vmatprep.mubr.f32.mxu0 0.0
      %1746 = vmatmul.mubr.f32.gmra.mrb[0].mxu0 %v1584
      %v1747 = vpop.f32.mrb[0].mxu0
      %v1748 = vadd.f32 0.0, %v1747
      %v1749 = vpop.f32.mrb[0].mxu0
      %1750 = vmatprep.mubr.f32.mxu0 0.0
      %1751 = vmatmul.mubr.f32.gmra.mrb[0].mxu0 %v1585
      %v1752 = vpop.f32.mrb[0].mxu0
      %v1753 = vadd.f32 0.0, %v1752
      %v1754 = vpop.f32.mrb[0].mxu0
      %1755 = vmatprep.mubr.f32.mxu0 0.0
      %1756 = vmatmul.mubr.f32.gmra.mrb[0].mxu0 %v1586
      %v1757 = vpop.f32.mrb[0].mxu0
      %v1758 = vadd.f32 0.0, %v1757
      %v1759 = vpop.f32.mrb[0].mxu0
      %1760 = vmatprep.mubr.f32.mxu0 0.0
      %1761 = vmatmul.mubr.f32.gmra.mrb[0].mxu0 %v1587
      %v1762 = vpop.f32.mrb[0].mxu0
      %v1763 = vadd.f32 0.0, %v1762
      %v1764 = vpop.f32.mrb[0].mxu0
      %1765 = vmatprep.mubr.f32.mxu0 0.0
      %1766 = vmatmul.mubr.f32.gmra.mrb[0].mxu0 %v1588
      %v1767 = vpop.f32.mrb[0].mxu0
      %v1768 = vadd.f32 0.0, %v1767
      %v1769 = vpop.f32.mrb[0].mxu0
      %1770 = vmatprep.mubr.f32.mxu0 0.0
      %1771 = vmatmul.mubr.f32.gmra.mrb[0].mxu0 %v1589
      %v1772 = vpop.f32.mrb[0].mxu0
      %v1773 = vadd.f32 0.0, %v1772
      %v1774 = vpop.f32.mrb[0].mxu0
      %1775 = vmatprep.mubr.f32.mxu0 0.0
      %1776 = vmatmul.mubr.f32.gmra.mrb[0].mxu0 %v1590
      %v1777 = vpop.f32.mrb[0].mxu0
      %v1778 = vadd.f32 0.0, %v1777
      %v1779 = vpop.f32.mrb[0].mxu0
      %1780 = vmatprep.mubr.f32.mxu0 0.0
      %1781 = vmatmul.mubr.f32.gmra.mrb[0].mxu0 %v1591
      %v1782 = vpop.f32.mrb[0].mxu0
      %v1783 = vadd.f32 0.0, %v1782
      %v1784 = vpop.f32.mrb[0].mxu0
      %1785 = vmatprep.mubr.f32.mxu0 0.0
      %1786 = vmatmul.mubr.f32.gmra.mrb[0].mxu0 %v1592
      %v1787 = vpop.f32.mrb[0].mxu0
      %v1788 = vadd.f32 0.0, %v1787
      %v1789 = vpop.f32.mrb[0].mxu0
      %1790 = vmatprep.mubr.f32.mxu0 0.0
      %1791 = vmatmul.mubr.f32.gmra.mrb[0].mxu0 %v1593
      %v1792 = vpop.f32.mrb[0].mxu0
      %v1793 = vadd.f32 0.0, %v1792
      %v1794 = vpop.f32.mrb[0].mxu0
      %1795 = vmatprep.mubr.f32.mxu0 0.0
      %1796 = vmatmul.mubr.f32.gmra.mrb[0].mxu0 %v1594
      %v1797 = vpop.f32.mrb[0].mxu0
      %v1798 = vadd.f32 0.0, %v1797
      %v1799 = vpop.f32.mrb[0].mxu0
      %1800 = vmatprep.mubr.f32.mxu0 0.0
      %1801 = vmatmul.mubr.f32.gmra.mrb[0].mxu0 %v1595
      %v1802 = vpop.f32.mrb[0].mxu0
      %v1803 = vadd.f32 0.0, %v1802
      %v1804 = vpop.f32.mrb[0].mxu0
      %1805 = vmatprep.mubr.f32.mxu0 0.0
      %1806 = vmatmul.mubr.f32.gmra.mrb[0].mxu0 %v1596
      %v1807 = vpop.f32.mrb[0].mxu0
      %v1808 = vadd.f32 0.0, %v1807
      %v1809 = vpop.f32.mrb[0].mxu0
      %1810 = vmatprep.mubr.f32.mxu0 0.0
      %1811 = vmatmul.mubr.f32.gmra.mrb[0].mxu0 %v1597
      %v1812 = vpop.f32.mrb[0].mxu0
      %v1813 = vadd.f32 0.0, %v1812
      %v1814 = vpop.f32.mrb[0].mxu0
      %1815 = vmatprep.mubr.f32.mxu0 0.0
      %1816 = vmatmul.mubr.f32.gmra.mrb[0].mxu0 %v1598
      %v1817 = vpop.f32.mrb[0].mxu0
      %v1818 = vadd.f32 0.0, %v1817
      %v1819 = vpop.f32.mrb[0].mxu0
      %1820 = vmatprep.mubr.f32.mxu0 0.0
      %1821 = vmatmul.mubr.f32.gmra.mrb[0].mxu0 %v1599
      %v1822 = vpop.f32.mrb[0].mxu0
      %v1823 = vadd.f32 0.0, %v1822
      %v1824 = vpop.f32.mrb[0].mxu0
      %1825 = vmatprep.mubr.f32.mxu0 0.0
      %1826 = vmatmul.mubr.f32.gmra.mrb[0].mxu0 %v1600
      %v1827 = vpop.f32.mrb[0].mxu0
      %v1828 = vadd.f32 0.0, %v1827
      %v1829 = vpop.f32.mrb[0].mxu0
      %1830 = vmatprep.mubr.f32.mxu0 0.0
      %1831 = vmatmul.mubr.f32.gmra.mrb[0].mxu0 %v1601
      %v1832 = vpop.f32.mrb[0].mxu0
      %v1833 = vadd.f32 0.0, %v1832
      %v1834 = vpop.f32.mrb[0].mxu0
      %1835 = vmatprep.mubr.f32.mxu0 0.0
      %1836 = vmatmul.mubr.f32.gmra.mrb[0].mxu0 %v1602
      %v1837 = vpop.f32.mrb[0].mxu0
      %v1838 = vadd.f32 0.0, %v1837
      %v1839 = vpop.f32.mrb[0].mxu0
      %1840 = vmatprep.mubr.f32.mxu0 0.0
      %1841 = vmatmul.mubr.f32.gmra.mrb[0].mxu0 %v1603
      %v1842 = vpop.f32.mrb[0].mxu0
      %v1843 = vadd.f32 0.0, %v1842
      %v1844 = vpop.f32.mrb[0].mxu0
      %1845 = vmatprep.mubr.f32.mxu0 0.0
      %1846 = vmatmul.mubr.f32.gmra.mrb[0].mxu0 %v1604
      %v1847 = vpop.f32.mrb[0].mxu0
      %v1848 = vadd.f32 0.0, %v1847
      %v1849 = vpop.f32.mrb[0].mxu0
      %1850 = vmatprep.mubr.f32.mxu0 0.0
      %1851 = vmatmul.mubr.f32.gmra.mrb[0].mxu0 %v1605
      %v1852 = vpop.f32.mrb[0].mxu0
      %v1853 = vadd.f32 0.0, %v1852
      %v1854 = vpop.f32.mrb[0].mxu0
      %1855 = vmatprep.mubr.f32.mxu0 0.0
      %1856 = vmatmul.mubr.f32.gmra.mrb[0].mxu0 %v1606
      %v1857 = vpop.f32.mrb[0].mxu0
      %v1858 = vadd.f32 0.0, %v1857
      %v1859 = vpop.f32.mrb[0].mxu0
      %1860 = vmatprep.mubr.f32.mxu0 0.0
      %1861 = vmatmul.mubr.f32.gmra.mrb[0].mxu0 %v1607
      %v1862 = vpop.f32.mrb[0].mxu0
      %v1863 = vadd.f32 0.0, %v1862
      %v1864 = vpop.f32.mrb[0].mxu0
      %1865 = vmatprep.mubr.f32.mxu0 0.0
      %1866 = vmatmul.mubr.f32.gmra.mrb[0].mxu0 %v1608
      %v1867 = vpop.f32.mrb[0].mxu0
      %v1868 = vadd.f32 0.0, %v1867
      %v1869 = vpop.f32.mrb[0].mxu0
      %1870 = vdwg.mxu0
      %v1871 = vadd.f32 %v1537, %v1693
      %v1872 = vadd.f32 %v1538, %v1698
      %v1873 = vadd.f32 %v1539, %v1703
      %v1874 = vadd.f32 %v1540, %v1708
      %v1875 = vadd.f32 %v1541, %v1713
      %v1876 = vadd.f32 %v1542, %v1718
      %v1877 = vadd.f32 %v1543, %v1723
      %v1878 = vadd.f32 %v1544, %v1728
      %v1879 = vadd.f32 %v1545, %v1733
      %v1880 = vadd.f32 %v1546, %v1738
      %v1881 = vadd.f32 %v1547, %v1743
      %v1882 = vadd.f32 %v1548, %v1748
      %v1883 = vadd.f32 %v1549, %v1753
      %v1884 = vadd.f32 %v1550, %v1758
      %v1885 = vadd.f32 %v1551, %v1763
      %v1886 = vadd.f32 %v1552, %v1768
      %v1887 = vadd.f32 %v1553, %v1773
      %v1888 = vadd.f32 %v1554, %v1778
      %v1889 = vadd.f32 %v1555, %v1783
      %v1890 = vadd.f32 %v1556, %v1788
      %v1891 = vadd.f32 %v1557, %v1793
      %v1892 = vadd.f32 %v1558, %v1798
      %v1893 = vadd.f32 %v1559, %v1803
      %v1894 = vadd.f32 %v1560, %v1808
      %v1895 = vadd.f32 %v1561, %v1813
      %v1896 = vadd.f32 %v1562, %v1818
      %v1897 = vadd.f32 %v1563, %v1823
      %v1898 = vadd.f32 %v1564, %v1828
      %v1899 = vadd.f32 %v1565, %v1833
      %v1900 = vadd.f32 %v1566, %v1838
      %v1901 = vadd.f32 %v1567, %v1843
      %v1902 = vadd.f32 %v1568, %v1848
      %v1903 = vadd.f32 %v1569, %v1853
      %v1904 = vadd.f32 %v1570, %v1858
      %v1905 = vadd.f32 %v1571, %v1863
      %v1906 = vadd.f32 %v1572, %v1868
      %1907 = vst [vmem:[#allocation3] sm:$0xff] %v1871
      %1908 = vst [vmem:[#allocation3 + $0x8] sm:$0xff] %v1872
      %1909 = vst [vmem:[#allocation3 + $0x10] sm:$0xff] %v1873
      %1910 = vst [vmem:[#allocation3 + $0x18] sm:$0xff] %v1874
      %1911 = vst [vmem:[#allocation3 + $0x20] sm:$0xff] %v1875
      %1912 = vst [vmem:[#allocation3 + $0x28] sm:$0xff] %v1876
      %1913 = vst [vmem:[#allocation3 + $0x30] sm:$0xff] %v1877
      %1914 = vst [vmem:[#allocation3 + $0x38] sm:$0xff] %v1878
      %1915 = vst [vmem:[#allocation3 + $0x40] sm:$0xff] %v1879
      %1916 = vst [vmem:[#allocation3 + $0x48] sm:$0xff] %v1880
      %1917 = vst [vmem:[#allocation3 + $0x50] sm:$0xff] %v1881
      %1918 = vst [vmem:[#allocation3 + $0x58] sm:$0xff] %v1882
      %1919 = vst [vmem:[#allocation3 + $0x60] sm:$0xff] %v1883
      %1920 = vst [vmem:[#allocation3 + $0x68] sm:$0xff] %v1884
      %1921 = vst [vmem:[#allocation3 + $0x70] sm:$0xff] %v1885
      %1922 = vst [vmem:[#allocation3 + $0x78] sm:$0xff] %v1886
      %1923 = vst [vmem:[#allocation3 + $0x80] sm:$0xff] %v1887
      %1924 = vst [vmem:[#allocation3 + $0x88] sm:$0xff] %v1888
      %1925 = vst [vmem:[#allocation3 + $0x90] sm:$0xff] %v1889
      %1926 = vst [vmem:[#allocation3 + $0x98] sm:$0xff] %v1890
      %1927 = vst [vmem:[#allocation3 + $0xa0] sm:$0xff] %v1891
      %1928 = vst [vmem:[#allocation3 + $0xa8] sm:$0xff] %v1892
      %1929 = vst [vmem:[#allocation3 + $0xb0] sm:$0xff] %v1893
      %1930 = vst [vmem:[#allocation3 + $0xb8] sm:$0xff] %v1894
      %1931 = vst [vmem:[#allocation3 + $0xc0] sm:$0xff] %v1895
      %1932 = vst [vmem:[#allocation3 + $0xc8] sm:$0xff] %v1896
      %1933 = vst [vmem:[#allocation3 + $0xd0] sm:$0xff] %v1897
      %1934 = vst [vmem:[#allocation3 + $0xd8] sm:$0xff] %v1898
      %1935 = vst [vmem:[#allocation3 + $0xe0] sm:$0xff] %v1899
      %1936 = vst [vmem:[#allocation3 + $0xe8] sm:$0xff] %v1900
      %1937 = vst [vmem:[#allocation3 + $0xf0] sm:$0xff] %v1901
      %1938 = vst [vmem:[#allocation3 + $0xf8] sm:$0xff] %v1902
      %1939 = vst [vmem:[#allocation3 + $0x100] sm:$0xff] %v1903
      %1940 = vst [vmem:[#allocation3 + $0x108] sm:$0xff] %v1904
      %1941 = vst [vmem:[#allocation3 + $0x110] sm:$0xff] %v1905
      %1942 = vst [vmem:[#allocation3 + $0x118] sm:$0xff] %v1906
      %v1943 = vld [vmem:[#allocation3] sm:$0xff]
      %v1944 = vld [vmem:[#allocation3 + $0x8] sm:$0xff]
      %v1945 = vld [vmem:[#allocation3 + $0x10] sm:$0xff]
      %v1946 = vld [vmem:[#allocation3 + $0x18] sm:$0xff]
      %v1947 = vld [vmem:[#allocation3 + $0x20] sm:$0xff]
      %v1948 = vld [vmem:[#allocation3 + $0x28] sm:$0xff]
      %v1949 = vld [vmem:[#allocation3 + $0x30] sm:$0xff]
      %v1950 = vld [vmem:[#allocation3 + $0x38] sm:$0xff]
      %v1951 = vld [vmem:[#allocation3 + $0x40] sm:$0xff]
      %v1952 = vld [vmem:[#allocation3 + $0x48] sm:$0xff]
      %v1953 = vld [vmem:[#allocation3 + $0x50] sm:$0xff]
      %v1954 = vld [vmem:[#allocation3 + $0x58] sm:$0xff]
      %v1955 = vld [vmem:[#allocation3 + $0x60] sm:$0xff]
      %v1956 = vld [vmem:[#allocation3 + $0x68] sm:$0xff]
      %v1957 = vld [vmem:[#allocation3 + $0x70] sm:$0xff]
      %v1958 = vld [vmem:[#allocation3 + $0x78] sm:$0xff]
      %v1959 = vld [vmem:[#allocation3 + $0x80] sm:$0xff]
      %v1960 = vld [vmem:[#allocation3 + $0x88] sm:$0xff]
      %v1961 = vld [vmem:[#allocation3 + $0x90] sm:$0xff]
      %v1962 = vld [vmem:[#allocation3 + $0x98] sm:$0xff]
      %v1963 = vld [vmem:[#allocation3 + $0xa0] sm:$0xff]
      %v1964 = vld [vmem:[#allocation3 + $0xa8] sm:$0xff]
      %v1965 = vld [vmem:[#allocation3 + $0xb0] sm:$0xff]
      %v1966 = vld [vmem:[#allocation3 + $0xb8] sm:$0xff]
      %v1967 = vld [vmem:[#allocation3 + $0xc0] sm:$0xff]
      %v1968 = vld [vmem:[#allocation3 + $0xc8] sm:$0xff]
      %v1969 = vld [vmem:[#allocation3 + $0xd0] sm:$0xff]
      %v1970 = vld [vmem:[#allocation3 + $0xd8] sm:$0xff]
      %v1971 = vld [vmem:[#allocation3 + $0xe0] sm:$0xff]
      %v1972 = vld [vmem:[#allocation3 + $0xe8] sm:$0xff]
      %v1973 = vld [vmem:[#allocation3 + $0xf0] sm:$0xff]
      %v1974 = vld [vmem:[#allocation3 + $0xf8] sm:$0xff]
      %v1975 = vld [vmem:[#allocation3 + $0x100] sm:$0xff]
      %v1976 = vld [vmem:[#allocation3 + $0x108] sm:$0xff]
      %v1977 = vld [vmem:[#allocation3 + $0x110] sm:$0xff]
      %v1978 = vld [vmem:[#allocation3 + $0x118] sm:$0xff]
      %v1979 = vld [vmem:[#allocation2 + $0x13] sm:$0xff]
      %v1980 = vld [vmem:[#allocation2 + $0x1b] sm:$0xff]
      %v1981 = vld [vmem:[#allocation2 + $0x23] sm:$0xff]
      %v1982 = vld [vmem:[#allocation2 + $0x2b] sm:$0xff]
      %v1983 = vld [vmem:[#allocation2 + $0x33] sm:$0xff]
      %v1984 = vld [vmem:[#allocation2 + $0x3b] sm:$0xff]
      %v1985 = vld [vmem:[#allocation2 + $0x43] sm:$0xff]
      %v1986 = vld [vmem:[#allocation2 + $0x4b] sm:$0xff]
      %v1987 = vld [vmem:[#allocation2 + $0x53] sm:$0xff]
      %v1988 = vld [vmem:[#allocation2 + $0x5b] sm:$0xff]
      %v1989 = vld [vmem:[#allocation2 + $0x63] sm:$0xff]
      %v1990 = vld [vmem:[#allocation2 + $0x6b] sm:$0xff]
      %v1991 = vld [vmem:[#allocation2 + $0x73] sm:$0xff]
      %v1992 = vld [vmem:[#allocation2 + $0x7b] sm:$0xff]
      %v1993 = vld [vmem:[#allocation2 + $0x83] sm:$0xff]
      %v1994 = vld [vmem:[#allocation2 + $0x8b] sm:$0xff]
      %v1995 = vld [vmem:[#allocation2 + $0x93] sm:$0xff]
      %v1996 = vld [vmem:[#allocation2 + $0x9b] sm:$0xff]
      %v1997 = vld [vmem:[#allocation2 + $0xa3] sm:$0xff]
      %v1998 = vld [vmem:[#allocation2 + $0xab] sm:$0xff]
      %v1999 = vld [vmem:[#allocation2 + $0xb3] sm:$0xff]
      %v2000 = vld [vmem:[#allocation2 + $0xbb] sm:$0xff]
      %v2001 = vld [vmem:[#allocation2 + $0xc3] sm:$0xff]
      %v2002 = vld [vmem:[#allocation2 + $0xcb] sm:$0xff]
      %v2003 = vld [vmem:[#allocation2 + $0xd3] sm:$0xff]
      %v2004 = vld [vmem:[#allocation2 + $0xdb] sm:$0xff]
      %v2005 = vld [vmem:[#allocation2 + $0xe3] sm:$0xff]
      %v2006 = vld [vmem:[#allocation2 + $0xeb] sm:$0xff]
      %v2007 = vld [vmem:[#allocation2 + $0xf3] sm:$0xff]
      %v2008 = vld [vmem:[#allocation2 + $0xfb] sm:$0xff]
      %v2009 = vld [vmem:[#allocation2 + $0x103] sm:$0xff]
      %v2010 = vld [vmem:[#allocation2 + $0x10b] sm:$0xff]
      %v2011 = vld [vmem:[#allocation2 + $0x113] sm:$0xff]
      %v2012 = vld [vmem:[#allocation2 + $0x11b] sm:$0xff]
      %v2013 = vld [vmem:[#allocation2 + $0x123] sm:$0xff]
      %v2014 = vld [vmem:[#allocation2 + $0x12b] sm:$0xff]
      %s2015 = scalar_lea.vmem %s1, 512
      %v2016 = vld [vmem:[%s2015] sm:$0xff]
      %v2017 = vld [vmem:[%s2015 + $0x8] sm:$0xff]
      %v2018 = vld [vmem:[%s2015 + $0x10] sm:$0xff]
      %v2019 = vld [vmem:[%s2015 + $0x18] sm:$0xff]
      %v2020 = vld [vmem:[%s2015 + $0x20] sm:$0xff]
      %v2021 = vld [vmem:[%s2015 + $0x28] sm:$0xff]
      %v2022 = vld [vmem:[%s2015 + $0x30] sm:$0xff]
      %v2023 = vld [vmem:[%s2015 + $0x38] sm:$0xff]
      %v2024 = vld [vmem:[%s2015 + $0x40] sm:$0xff]
      %v2025 = vld [vmem:[%s2015 + $0x48] sm:$0xff]
      %v2026 = vld [vmem:[%s2015 + $0x50] sm:$0xff]
      %v2027 = vld [vmem:[%s2015 + $0x58] sm:$0xff]
      %v2028 = vld [vmem:[%s2015 + $0x60] sm:$0xff]
      %v2029 = vld [vmem:[%s2015 + $0x68] sm:$0xff]
      %v2030 = vld [vmem:[%s2015 + $0x70] sm:$0xff]
      %v2031 = vld [vmem:[%s2015 + $0x78] sm:$0xff]
      %2032 = vmatprep.subr.mxu0 0.0
      %2033 = vmatpush1.msra.mxu0 %v2016
      %2034 = vmatprep.subr.mxu0 0.0
      %2035 = vmatpush1.msra.mxu0 %v2017
      %2036 = vmatprep.subr.mxu0 0.0
      %2037 = vmatpush1.msra.mxu0 %v2018
      %2038 = vmatprep.subr.mxu0 0.0
      %2039 = vmatpush1.msra.mxu0 %v2019
      %2040 = vmatprep.subr.mxu0 0.0
      %2041 = vmatpush1.msra.mxu0 %v2020
      %2042 = vmatprep.subr.mxu0 0.0
      %2043 = vmatpush1.msra.mxu0 %v2021
      %2044 = vmatprep.subr.mxu0 0.0
      %2045 = vmatpush1.msra.mxu0 %v2022
      %2046 = vmatprep.subr.mxu0 0.0
      %2047 = vmatpush1.msra.mxu0 %v2023
      %2048 = vmatprep.subr.mxu0 0.0
      %2049 = vmatpush1.msra.mxu0 %v2024
      %2050 = vmatprep.subr.mxu0 0.0
      %2051 = vmatpush1.msra.mxu0 %v2025
      %2052 = vmatprep.subr.mxu0 0.0
      %2053 = vmatpush1.msra.mxu0 %v2026
      %2054 = vmatprep.subr.mxu0 0.0
      %2055 = vmatpush1.msra.mxu0 %v2027
      %2056 = vmatprep.subr.mxu0 0.0
      %2057 = vmatpush1.msra.mxu0 %v2028
      %2058 = vmatprep.subr.mxu0 0.0
      %2059 = vmatpush1.msra.mxu0 %v2029
      %2060 = vmatprep.subr.mxu0 0.0
      %2061 = vmatpush1.msra.mxu0 %v2030
      %2062 = vmatprep.subr.mxu0 0.0
      %2063 = vmatpush1.msra.mxu0 %v2031
      %2064 = vmatprep.subr.mxu0 0.0
      %2065 = vmatpush1.msra.mxu0 0.0
      %2066 = vmatprep.subr.mxu0 0.0
      %2067 = vmatpush1.msra.mxu0 0.0
      %2068 = vmatprep.subr.mxu0 0.0
      %2069 = vmatpush1.msra.mxu0 0.0
      %2070 = vmatprep.subr.mxu0 0.0
      %2071 = vmatpush1.msra.mxu0 0.0
      %2072 = vmatprep.subr.mxu0 0.0
      %2073 = vmatpush1.msra.mxu0 0.0
      %2074 = vmatprep.subr.mxu0 0.0
      %2075 = vmatpush1.msra.mxu0 0.0
      %2076 = vmatprep.subr.mxu0 0.0
      %2077 = vmatpush1.msra.mxu0 0.0
      %2078 = vmatprep.subr.mxu0 0.0
      %2079 = vmatpush1.msra.mxu0 0.0
      %2080 = vmatprep.subr.mxu0 0.0
      %2081 = vmatpush1.msra.mxu0 0.0
      %2082 = vmatprep.subr.mxu0 0.0
      %2083 = vmatpush1.msra.mxu0 0.0
      %2084 = vmatprep.subr.mxu0 0.0
      %2085 = vmatpush1.msra.mxu0 0.0
      %2086 = vmatprep.subr.mxu0 0.0
      %2087 = vmatpush1.msra.mxu0 0.0
      %2088 = vmatprep.subr.mxu0 0.0
      %2089 = vmatpush1.msra.mxu0 0.0
      %2090 = vmatprep.subr.mxu0 0.0
      %2091 = vmatpush1.msra.mxu0 0.0
      %2092 = vmatprep.subr.mxu0 0.0
      %2093 = vmatpush1.msra.mxu0 0.0
      %2094 = vmatprep.subr.mxu0 0.0
      %2095 = vmatpush1.msra.mxu0 0.0
      %2096 = vmatprep.mubr.f32.mxu0 0.0
      %2097 = vmatmul.mubr.f32.gmra.mrb[0].mxu0 %v1979
      %v2098 = vpop.f32.mrb[0].mxu0
      %v2099 = vadd.f32 0.0, %v2098
      %v2100 = vpop.f32.mrb[0].mxu0
      %2101 = vmatprep.mubr.f32.mxu0 0.0
      %2102 = vmatmul.mubr.f32.gmra.mrb[0].mxu0 %v1980
      %v2103 = vpop.f32.mrb[0].mxu0
      %v2104 = vadd.f32 0.0, %v2103
      %v2105 = vpop.f32.mrb[0].mxu0
      %2106 = vmatprep.mubr.f32.mxu0 0.0
      %2107 = vmatmul.mubr.f32.gmra.mrb[0].mxu0 %v1981
      %v2108 = vpop.f32.mrb[0].mxu0
      %v2109 = vadd.f32 0.0, %v2108
      %v2110 = vpop.f32.mrb[0].mxu0
      %2111 = vmatprep.mubr.f32.mxu0 0.0
      %2112 = vmatmul.mubr.f32.gmra.mrb[0].mxu0 %v1982
      %v2113 = vpop.f32.mrb[0].mxu0
      %v2114 = vadd.f32 0.0, %v2113
      %v2115 = vpop.f32.mrb[0].mxu0
      %2116 = vmatprep.mubr.f32.mxu0 0.0
      %2117 = vmatmul.mubr.f32.gmra.mrb[0].mxu0 %v1983
      %v2118 = vpop.f32.mrb[0].mxu0
      %v2119 = vadd.f32 0.0, %v2118
      %v2120 = vpop.f32.mrb[0].mxu0
      %2121 = vmatprep.mubr.f32.mxu0 0.0
      %2122 = vmatmul.mubr.f32.gmra.mrb[0].mxu0 %v1984
      %v2123 = vpop.f32.mrb[0].mxu0
      %v2124 = vadd.f32 0.0, %v2123
      %v2125 = vpop.f32.mrb[0].mxu0
      %2126 = vmatprep.mubr.f32.mxu0 0.0
      %2127 = vmatmul.mubr.f32.gmra.mrb[0].mxu0 %v1985
      %v2128 = vpop.f32.mrb[0].mxu0
      %v2129 = vadd.f32 0.0, %v2128
      %v2130 = vpop.f32.mrb[0].mxu0
      %2131 = vmatprep.mubr.f32.mxu0 0.0
      %2132 = vmatmul.mubr.f32.gmra.mrb[0].mxu0 %v1986
      %v2133 = vpop.f32.mrb[0].mxu0
      %v2134 = vadd.f32 0.0, %v2133
      %v2135 = vpop.f32.mrb[0].mxu0
      %2136 = vmatprep.mubr.f32.mxu0 0.0
      %2137 = vmatmul.mubr.f32.gmra.mrb[0].mxu0 %v1987
      %v2138 = vpop.f32.mrb[0].mxu0
      %v2139 = vadd.f32 0.0, %v2138
      %v2140 = vpop.f32.mrb[0].mxu0
      %2141 = vmatprep.mubr.f32.mxu0 0.0
      %2142 = vmatmul.mubr.f32.gmra.mrb[0].mxu0 %v1988
      %v2143 = vpop.f32.mrb[0].mxu0
      %v2144 = vadd.f32 0.0, %v2143
      %v2145 = vpop.f32.mrb[0].mxu0
      %2146 = vmatprep.mubr.f32.mxu0 0.0
      %2147 = vmatmul.mubr.f32.gmra.mrb[0].mxu0 %v1989
      %v2148 = vpop.f32.mrb[0].mxu0
      %v2149 = vadd.f32 0.0, %v2148
      %v2150 = vpop.f32.mrb[0].mxu0
      %2151 = vmatprep.mubr.f32.mxu0 0.0
      %2152 = vmatmul.mubr.f32.gmra.mrb[0].mxu0 %v1990
      %v2153 = vpop.f32.mrb[0].mxu0
      %v2154 = vadd.f32 0.0, %v2153
      %v2155 = vpop.f32.mrb[0].mxu0
      %2156 = vmatprep.mubr.f32.mxu0 0.0
      %2157 = vmatmul.mubr.f32.gmra.mrb[0].mxu0 %v1991
      %v2158 = vpop.f32.mrb[0].mxu0
      %v2159 = vadd.f32 0.0, %v2158
      %v2160 = vpop.f32.mrb[0].mxu0
      %2161 = vmatprep.mubr.f32.mxu0 0.0
      %2162 = vmatmul.mubr.f32.gmra.mrb[0].mxu0 %v1992
      %v2163 = vpop.f32.mrb[0].mxu0
      %v2164 = vadd.f32 0.0, %v2163
      %v2165 = vpop.f32.mrb[0].mxu0
      %2166 = vmatprep.mubr.f32.mxu0 0.0
      %2167 = vmatmul.mubr.f32.gmra.mrb[0].mxu0 %v1993
      %v2168 = vpop.f32.mrb[0].mxu0
      %v2169 = vadd.f32 0.0, %v2168
      %v2170 = vpop.f32.mrb[0].mxu0
      %2171 = vmatprep.mubr.f32.mxu0 0.0
      %2172 = vmatmul.mubr.f32.gmra.mrb[0].mxu0 %v1994
      %v2173 = vpop.f32.mrb[0].mxu0
      %v2174 = vadd.f32 0.0, %v2173
      %v2175 = vpop.f32.mrb[0].mxu0
      %2176 = vmatprep.mubr.f32.mxu0 0.0
      %2177 = vmatmul.mubr.f32.gmra.mrb[0].mxu0 %v1995
      %v2178 = vpop.f32.mrb[0].mxu0
      %v2179 = vadd.f32 0.0, %v2178
      %v2180 = vpop.f32.mrb[0].mxu0
      %2181 = vmatprep.mubr.f32.mxu0 0.0
      %2182 = vmatmul.mubr.f32.gmra.mrb[0].mxu0 %v1996
      %v2183 = vpop.f32.mrb[0].mxu0
      %v2184 = vadd.f32 0.0, %v2183
      %v2185 = vpop.f32.mrb[0].mxu0
      %2186 = vmatprep.mubr.f32.mxu0 0.0
      %2187 = vmatmul.mubr.f32.gmra.mrb[0].mxu0 %v1997
      %v2188 = vpop.f32.mrb[0].mxu0
      %v2189 = vadd.f32 0.0, %v2188
      %v2190 = vpop.f32.mrb[0].mxu0
      %2191 = vmatprep.mubr.f32.mxu0 0.0
      %2192 = vmatmul.mubr.f32.gmra.mrb[0].mxu0 %v1998
      %v2193 = vpop.f32.mrb[0].mxu0
      %v2194 = vadd.f32 0.0, %v2193
      %v2195 = vpop.f32.mrb[0].mxu0
      %2196 = vmatprep.mubr.f32.mxu0 0.0
      %2197 = vmatmul.mubr.f32.gmra.mrb[0].mxu0 %v1999
      %v2198 = vpop.f32.mrb[0].mxu0
      %v2199 = vadd.f32 0.0, %v2198
      %v2200 = vpop.f32.mrb[0].mxu0
      %2201 = vmatprep.mubr.f32.mxu0 0.0
      %2202 = vmatmul.mubr.f32.gmra.mrb[0].mxu0 %v2000
      %v2203 = vpop.f32.mrb[0].mxu0
      %v2204 = vadd.f32 0.0, %v2203
      %v2205 = vpop.f32.mrb[0].mxu0
      %2206 = vmatprep.mubr.f32.mxu0 0.0
      %2207 = vmatmul.mubr.f32.gmra.mrb[0].mxu0 %v2001
      %v2208 = vpop.f32.mrb[0].mxu0
      %v2209 = vadd.f32 0.0, %v2208
      %v2210 = vpop.f32.mrb[0].mxu0
      %2211 = vmatprep.mubr.f32.mxu0 0.0
      %2212 = vmatmul.mubr.f32.gmra.mrb[0].mxu0 %v2002
      %v2213 = vpop.f32.mrb[0].mxu0
      %v2214 = vadd.f32 0.0, %v2213
      %v2215 = vpop.f32.mrb[0].mxu0
      %2216 = vmatprep.mubr.f32.mxu0 0.0
      %2217 = vmatmul.mubr.f32.gmra.mrb[0].mxu0 %v2003
      %v2218 = vpop.f32.mrb[0].mxu0
      %v2219 = vadd.f32 0.0, %v2218
      %v2220 = vpop.f32.mrb[0].mxu0
      %2221 = vmatprep.mubr.f32.mxu0 0.0
      %2222 = vmatmul.mubr.f32.gmra.mrb[0].mxu0 %v2004
      %v2223 = vpop.f32.mrb[0].mxu0
      %v2224 = vadd.f32 0.0, %v2223
      %v2225 = vpop.f32.mrb[0].mxu0
      %2226 = vmatprep.mubr.f32.mxu0 0.0
      %2227 = vmatmul.mubr.f32.gmra.mrb[0].mxu0 %v2005
      %v2228 = vpop.f32.mrb[0].mxu0
      %v2229 = vadd.f32 0.0, %v2228
      %v2230 = vpop.f32.mrb[0].mxu0
      %2231 = vmatprep.mubr.f32.mxu0 0.0
      %2232 = vmatmul.mubr.f32.gmra.mrb[0].mxu0 %v2006
      %v2233 = vpop.f32.mrb[0].mxu0
      %v2234 = vadd.f32 0.0, %v2233
      %v2235 = vpop.f32.mrb[0].mxu0
      %2236 = vmatprep.mubr.f32.mxu0 0.0
      %2237 = vmatmul.mubr.f32.gmra.mrb[0].mxu0 %v2007
      %v2238 = vpop.f32.mrb[0].mxu0
      %v2239 = vadd.f32 0.0, %v2238
      %v2240 = vpop.f32.mrb[0].mxu0
      %2241 = vmatprep.mubr.f32.mxu0 0.0
      %2242 = vmatmul.mubr.f32.gmra.mrb[0].mxu0 %v2008
      %v2243 = vpop.f32.mrb[0].mxu0
      %v2244 = vadd.f32 0.0, %v2243
      %v2245 = vpop.f32.mrb[0].mxu0
      %2246 = vmatprep.mubr.f32.mxu0 0.0
      %2247 = vmatmul.mubr.f32.gmra.mrb[0].mxu0 %v2009
      %v2248 = vpop.f32.mrb[0].mxu0
      %v2249 = vadd.f32 0.0, %v2248
      %v2250 = vpop.f32.mrb[0].mxu0
      %2251 = vmatprep.mubr.f32.mxu0 0.0
      %2252 = vmatmul.mubr.f32.gmra.mrb[0].mxu0 %v2010
      %v2253 = vpop.f32.mrb[0].mxu0
      %v2254 = vadd.f32 0.0, %v2253
      %v2255 = vpop.f32.mrb[0].mxu0
      %2256 = vmatprep.mubr.f32.mxu0 0.0
      %2257 = vmatmul.mubr.f32.gmra.mrb[0].mxu0 %v2011
      %v2258 = vpop.f32.mrb[0].mxu0
      %v2259 = vadd.f32 0.0, %v2258
      %v2260 = vpop.f32.mrb[0].mxu0
      %2261 = vmatprep.mubr.f32.mxu0 0.0
      %2262 = vmatmul.mubr.f32.gmra.mrb[0].mxu0 %v2012
      %v2263 = vpop.f32.mrb[0].mxu0
      %v2264 = vadd.f32 0.0, %v2263
      %v2265 = vpop.f32.mrb[0].mxu0
      %2266 = vmatprep.mubr.f32.mxu0 0.0
      %2267 = vmatmul.mubr.f32.gmra.mrb[0].mxu0 %v2013
      %v2268 = vpop.f32.mrb[0].mxu0
      %v2269 = vadd.f32 0.0, %v2268
      %v2270 = vpop.f32.mrb[0].mxu0
      %2271 = vmatprep.mubr.f32.mxu0 0.0
      %2272 = vmatmul.mubr.f32.gmra.mrb[0].mxu0 %v2014
      %v2273 = vpop.f32.mrb[0].mxu0
      %v2274 = vadd.f32 0.0, %v2273
      %v2275 = vpop.f32.mrb[0].mxu0
      %2276 = vdwg.mxu0
      %v2277 = vadd.f32 %v1943, %v2099
      %v2278 = vadd.f32 %v1944, %v2104
      %v2279 = vadd.f32 %v1945, %v2109
      %v2280 = vadd.f32 %v1946, %v2114
      %v2281 = vadd.f32 %v1947, %v2119
      %v2282 = vadd.f32 %v1948, %v2124
      %v2283 = vadd.f32 %v1949, %v2129
      %v2284 = vadd.f32 %v1950, %v2134
      %v2285 = vadd.f32 %v1951, %v2139
      %v2286 = vadd.f32 %v1952, %v2144
      %v2287 = vadd.f32 %v1953, %v2149
      %v2288 = vadd.f32 %v1954, %v2154
      %v2289 = vadd.f32 %v1955, %v2159
      %v2290 = vadd.f32 %v1956, %v2164
      %v2291 = vadd.f32 %v1957, %v2169
      %v2292 = vadd.f32 %v1958, %v2174
      %v2293 = vadd.f32 %v1959, %v2179
      %v2294 = vadd.f32 %v1960, %v2184
      %v2295 = vadd.f32 %v1961, %v2189
      %v2296 = vadd.f32 %v1962, %v2194
      %v2297 = vadd.f32 %v1963, %v2199
      %v2298 = vadd.f32 %v1964, %v2204
      %v2299 = vadd.f32 %v1965, %v2209
      %v2300 = vadd.f32 %v1966, %v2214
      %v2301 = vadd.f32 %v1967, %v2219
      %v2302 = vadd.f32 %v1968, %v2224
      %v2303 = vadd.f32 %v1969, %v2229
      %v2304 = vadd.f32 %v1970, %v2234
      %v2305 = vadd.f32 %v1971, %v2239
      %v2306 = vadd.f32 %v1972, %v2244
      %v2307 = vadd.f32 %v1973, %v2249
      %v2308 = vadd.f32 %v1974, %v2254
      %v2309 = vadd.f32 %v1975, %v2259
      %v2310 = vadd.f32 %v1976, %v2264
      %v2311 = vadd.f32 %v1977, %v2269
      %v2312 = vadd.f32 %v1978, %v2274
      %2313 = vst [vmem:[#allocation3] sm:$0xff] %v2277
      %2314 = vst [vmem:[#allocation3 + $0x8] sm:$0xff] %v2278
      %2315 = vst [vmem:[#allocation3 + $0x10] sm:$0xff] %v2279
      %2316 = vst [vmem:[#allocation3 + $0x18] sm:$0xff] %v2280
      %2317 = vst [vmem:[#allocation3 + $0x20] sm:$0xff] %v2281
      %2318 = vst [vmem:[#allocation3 + $0x28] sm:$0xff] %v2282
      %2319 = vst [vmem:[#allocation3 + $0x30] sm:$0xff] %v2283
      %2320 = vst [vmem:[#allocation3 + $0x38] sm:$0xff] %v2284
      %2321 = vst [vmem:[#allocation3 + $0x40] sm:$0xff] %v2285
      %2322 = vst [vmem:[#allocation3 + $0x48] sm:$0xff] %v2286
      %2323 = vst [vmem:[#allocation3 + $0x50] sm:$0xff] %v2287
      %2324 = vst [vmem:[#allocation3 + $0x58] sm:$0xff] %v2288
      %2325 = vst [vmem:[#allocation3 + $0x60] sm:$0xff] %v2289
      %2326 = vst [vmem:[#allocation3 + $0x68] sm:$0xff] %v2290
      %2327 = vst [vmem:[#allocation3 + $0x70] sm:$0xff] %v2291
      %2328 = vst [vmem:[#allocation3 + $0x78] sm:$0xff] %v2292
      %2329 = vst [vmem:[#allocation3 + $0x80] sm:$0xff] %v2293
      %2330 = vst [vmem:[#allocation3 + $0x88] sm:$0xff] %v2294
      %2331 = vst [vmem:[#allocation3 + $0x90] sm:$0xff] %v2295
      %2332 = vst [vmem:[#allocation3 + $0x98] sm:$0xff] %v2296
      %2333 = vst [vmem:[#allocation3 + $0xa0] sm:$0xff] %v2297
      %2334 = vst [vmem:[#allocation3 + $0xa8] sm:$0xff] %v2298
      %2335 = vst [vmem:[#allocation3 + $0xb0] sm:$0xff] %v2299
      %2336 = vst [vmem:[#allocation3 + $0xb8] sm:$0xff] %v2300
      %2337 = vst [vmem:[#allocation3 + $0xc0] sm:$0xff] %v2301
      %2338 = vst [vmem:[#allocation3 + $0xc8] sm:$0xff] %v2302
      %2339 = vst [vmem:[#allocation3 + $0xd0] sm:$0xff] %v2303
      %2340 = vst [vmem:[#allocation3 + $0xd8] sm:$0xff] %v2304
      %2341 = vst [vmem:[#allocation3 + $0xe0] sm:$0xff] %v2305
      %2342 = vst [vmem:[#allocation3 + $0xe8] sm:$0xff] %v2306
      %2343 = vst [vmem:[#allocation3 + $0xf0] sm:$0xff] %v2307
      %2344 = vst [vmem:[#allocation3 + $0xf8] sm:$0xff] %v2308
      %2345 = vst [vmem:[#allocation3 + $0x100] sm:$0xff] %v2309
      %2346 = vst [vmem:[#allocation3 + $0x108] sm:$0xff] %v2310
      %2347 = vst [vmem:[#allocation3 + $0x110] sm:$0xff] %v2311
      %2348 = vst [vmem:[#allocation3 + $0x118] sm:$0xff] %v2312
      %v2349 = vld [vmem:[#allocation3] sm:$0xff]
      %v2350 = vld [vmem:[#allocation3 + $0x8] sm:$0xff]
      %v2351 = vld [vmem:[#allocation3 + $0x10] sm:$0xff]
      %v2352 = vld [vmem:[#allocation3 + $0x18] sm:$0xff]
      %v2353 = vld [vmem:[#allocation3 + $0x20] sm:$0xff]
      %v2354 = vld [vmem:[#allocation3 + $0x28] sm:$0xff]
      %v2355 = vld [vmem:[#allocation3 + $0x30] sm:$0xff]
      %v2356 = vld [vmem:[#allocation3 + $0x38] sm:$0xff]
      %v2357 = vld [vmem:[#allocation3 + $0x40] sm:$0xff]
      %v2358 = vld [vmem:[#allocation3 + $0x48] sm:$0xff]
      %v2359 = vld [vmem:[#allocation3 + $0x50] sm:$0xff]
      %v2360 = vld [vmem:[#allocation3 + $0x58] sm:$0xff]
      %v2361 = vld [vmem:[#allocation3 + $0x60] sm:$0xff]
      %v2362 = vld [vmem:[#allocation3 + $0x68] sm:$0xff]
      %v2363 = vld [vmem:[#allocation3 + $0x70] sm:$0xff]
      %v2364 = vld [vmem:[#allocation3 + $0x78] sm:$0xff]
      %v2365 = vld [vmem:[#allocation3 + $0x80] sm:$0xff]
      %v2366 = vld [vmem:[#allocation3 + $0x88] sm:$0xff]
      %v2367 = vld [vmem:[#allocation3 + $0x90] sm:$0xff]
      %v2368 = vld [vmem:[#allocation3 + $0x98] sm:$0xff]
      %v2369 = vld [vmem:[#allocation3 + $0xa0] sm:$0xff]
      %v2370 = vld [vmem:[#allocation3 + $0xa8] sm:$0xff]
      %v2371 = vld [vmem:[#allocation3 + $0xb0] sm:$0xff]
      %v2372 = vld [vmem:[#allocation3 + $0xb8] sm:$0xff]
      %v2373 = vld [vmem:[#allocation3 + $0xc0] sm:$0xff]
      %v2374 = vld [vmem:[#allocation3 + $0xc8] sm:$0xff]
      %v2375 = vld [vmem:[#allocation3 + $0xd0] sm:$0xff]
      %v2376 = vld [vmem:[#allocation3 + $0xd8] sm:$0xff]
      %v2377 = vld [vmem:[#allocation3 + $0xe0] sm:$0xff]
      %v2378 = vld [vmem:[#allocation3 + $0xe8] sm:$0xff]
      %v2379 = vld [vmem:[#allocation3 + $0xf0] sm:$0xff]
      %v2380 = vld [vmem:[#allocation3 + $0xf8] sm:$0xff]
      %v2381 = vld [vmem:[#allocation3 + $0x100] sm:$0xff]
      %v2382 = vld [vmem:[#allocation3 + $0x108] sm:$0xff]
      %v2383 = vld [vmem:[#allocation3 + $0x110] sm:$0xff]
      %v2384 = vld [vmem:[#allocation3 + $0x118] sm:$0xff]
      %v2385 = vld [vmem:[#allocation2 + $0x14] sm:$0xff]
      %v2386 = vld [vmem:[#allocation2 + $0x1c] sm:$0xff]
      %v2387 = vld [vmem:[#allocation2 + $0x24] sm:$0xff]
      %v2388 = vld [vmem:[#allocation2 + $0x2c] sm:$0xff]
      %v2389 = vld [vmem:[#allocation2 + $0x34] sm:$0xff]
      %v2390 = vld [vmem:[#allocation2 + $0x3c] sm:$0xff]
      %v2391 = vld [vmem:[#allocation2 + $0x44] sm:$0xff]
      %v2392 = vld [vmem:[#allocation2 + $0x4c] sm:$0xff]
      %v2393 = vld [vmem:[#allocation2 + $0x54] sm:$0xff]
      %v2394 = vld [vmem:[#allocation2 + $0x5c] sm:$0xff]
      %v2395 = vld [vmem:[#allocation2 + $0x64] sm:$0xff]
      %v2396 = vld [vmem:[#allocation2 + $0x6c] sm:$0xff]
      %v2397 = vld [vmem:[#allocation2 + $0x74] sm:$0xff]
      %v2398 = vld [vmem:[#allocation2 + $0x7c] sm:$0xff]
      %v2399 = vld [vmem:[#allocation2 + $0x84] sm:$0xff]
      %v2400 = vld [vmem:[#allocation2 + $0x8c] sm:$0xff]
      %v2401 = vld [vmem:[#allocation2 + $0x94] sm:$0xff]
      %v2402 = vld [vmem:[#allocation2 + $0x9c] sm:$0xff]
      %v2403 = vld [vmem:[#allocation2 + $0xa4] sm:$0xff]
      %v2404 = vld [vmem:[#allocation2 + $0xac] sm:$0xff]
      %v2405 = vld [vmem:[#allocation2 + $0xb4] sm:$0xff]
      %v2406 = vld [vmem:[#allocation2 + $0xbc] sm:$0xff]
      %v2407 = vld [vmem:[#allocation2 + $0xc4] sm:$0xff]
      %v2408 = vld [vmem:[#allocation2 + $0xcc] sm:$0xff]
      %v2409 = vld [vmem:[#allocation2 + $0xd4] sm:$0xff]
      %v2410 = vld [vmem:[#allocation2 + $0xdc] sm:$0xff]
      %v2411 = vld [vmem:[#allocation2 + $0xe4] sm:$0xff]
      %v2412 = vld [vmem:[#allocation2 + $0xec] sm:$0xff]
      %v2413 = vld [vmem:[#allocation2 + $0xf4] sm:$0xff]
      %v2414 = vld [vmem:[#allocation2 + $0xfc] sm:$0xff]
      %v2415 = vld [vmem:[#allocation2 + $0x104] sm:$0xff]
      %v2416 = vld [vmem:[#allocation2 + $0x10c] sm:$0xff]
      %v2417 = vld [vmem:[#allocation2 + $0x114] sm:$0xff]
      %v2418 = vld [vmem:[#allocation2 + $0x11c] sm:$0xff]
      %v2419 = vld [vmem:[#allocation2 + $0x124] sm:$0xff]
      %v2420 = vld [vmem:[#allocation2 + $0x12c] sm:$0xff]
      %s2421 = scalar_lea.vmem %s1, 640
      %v2422 = vld [vmem:[%s2421] sm:$0xff]
      %v2423 = vld [vmem:[%s2421 + $0x8] sm:$0xff]
      %v2424 = vld [vmem:[%s2421 + $0x10] sm:$0xff]
      %v2425 = vld [vmem:[%s2421 + $0x18] sm:$0xff]
      %v2426 = vld [vmem:[%s2421 + $0x20] sm:$0xff]
      %v2427 = vld [vmem:[%s2421 + $0x28] sm:$0xff]
      %v2428 = vld [vmem:[%s2421 + $0x30] sm:$0xff]
      %v2429 = vld [vmem:[%s2421 + $0x38] sm:$0xff]
      %v2430 = vld [vmem:[%s2421 + $0x40] sm:$0xff]
      %v2431 = vld [vmem:[%s2421 + $0x48] sm:$0xff]
      %v2432 = vld [vmem:[%s2421 + $0x50] sm:$0xff]
      %v2433 = vld [vmem:[%s2421 + $0x58] sm:$0xff]
      %v2434 = vld [vmem:[%s2421 + $0x60] sm:$0xff]
      %v2435 = vld [vmem:[%s2421 + $0x68] sm:$0xff]
      %v2436 = vld [vmem:[%s2421 + $0x70] sm:$0xff]
      %v2437 = vld [vmem:[%s2421 + $0x78] sm:$0xff]
      %2438 = vmatprep.subr.mxu0 0.0
      %2439 = vmatpush1.msra.mxu0 %v2422
      %2440 = vmatprep.subr.mxu0 0.0
      %2441 = vmatpush1.msra.mxu0 %v2423
      %2442 = vmatprep.subr.mxu0 0.0
      %2443 = vmatpush1.msra.mxu0 %v2424
      %2444 = vmatprep.subr.mxu0 0.0
      %2445 = vmatpush1.msra.mxu0 %v2425
      %2446 = vmatprep.subr.mxu0 0.0
      %2447 = vmatpush1.msra.mxu0 %v2426
      %2448 = vmatprep.subr.mxu0 0.0
      %2449 = vmatpush1.msra.mxu0 %v2427
      %2450 = vmatprep.subr.mxu0 0.0
      %2451 = vmatpush1.msra.mxu0 %v2428
      %2452 = vmatprep.subr.mxu0 0.0
      %2453 = vmatpush1.msra.mxu0 %v2429
      %2454 = vmatprep.subr.mxu0 0.0
      %2455 = vmatpush1.msra.mxu0 %v2430
      %2456 = vmatprep.subr.mxu0 0.0
      %2457 = vmatpush1.msra.mxu0 %v2431
      %2458 = vmatprep.subr.mxu0 0.0
      %2459 = vmatpush1.msra.mxu0 %v2432
      %2460 = vmatprep.subr.mxu0 0.0
      %2461 = vmatpush1.msra.mxu0 %v2433
      %2462 = vmatprep.subr.mxu0 0.0
      %2463 = vmatpush1.msra.mxu0 %v2434
      %2464 = vmatprep.subr.mxu0 0.0
      %2465 = vmatpush1.msra.mxu0 %v2435
      %2466 = vmatprep.subr.mxu0 0.0
      %2467 = vmatpush1.msra.mxu0 %v2436
      %2468 = vmatprep.subr.mxu0 0.0
      %2469 = vmatpush1.msra.mxu0 %v2437
      %2470 = vmatprep.subr.mxu0 0.0
      %2471 = vmatpush1.msra.mxu0 0.0
      %2472 = vmatprep.subr.mxu0 0.0
      %2473 = vmatpush1.msra.mxu0 0.0
      %2474 = vmatprep.subr.mxu0 0.0
      %2475 = vmatpush1.msra.mxu0 0.0
      %2476 = vmatprep.subr.mxu0 0.0
      %2477 = vmatpush1.msra.mxu0 0.0
      %2478 = vmatprep.subr.mxu0 0.0
      %2479 = vmatpush1.msra.mxu0 0.0
      %2480 = vmatprep.subr.mxu0 0.0
      %2481 = vmatpush1.msra.mxu0 0.0
      %2482 = vmatprep.subr.mxu0 0.0
      %2483 = vmatpush1.msra.mxu0 0.0
      %2484 = vmatprep.subr.mxu0 0.0
      %2485 = vmatpush1.msra.mxu0 0.0
      %2486 = vmatprep.subr.mxu0 0.0
      %2487 = vmatpush1.msra.mxu0 0.0
      %2488 = vmatprep.subr.mxu0 0.0
      %2489 = vmatpush1.msra.mxu0 0.0
      %2490 = vmatprep.subr.mxu0 0.0
      %2491 = vmatpush1.msra.mxu0 0.0
      %2492 = vmatprep.subr.mxu0 0.0
      %2493 = vmatpush1.msra.mxu0 0.0
      %2494 = vmatprep.subr.mxu0 0.0
      %2495 = vmatpush1.msra.mxu0 0.0
      %2496 = vmatprep.subr.mxu0 0.0
      %2497 = vmatpush1.msra.mxu0 0.0
      %2498 = vmatprep.subr.mxu0 0.0
      %2499 = vmatpush1.msra.mxu0 0.0
      %2500 = vmatprep.subr.mxu0 0.0
      %2501 = vmatpush1.msra.mxu0 0.0
      %2502 = vmatprep.mubr.f32.mxu0 0.0
      %2503 = vmatmul.mubr.f32.gmra.mrb[0].mxu0 %v2385
      %v2504 = vpop.f32.mrb[0].mxu0
      %v2505 = vadd.f32 0.0, %v2504
      %v2506 = vpop.f32.mrb[0].mxu0
      %2507 = vmatprep.mubr.f32.mxu0 0.0
      %2508 = vmatmul.mubr.f32.gmra.mrb[0].mxu0 %v2386
      %v2509 = vpop.f32.mrb[0].mxu0
      %v2510 = vadd.f32 0.0, %v2509
      %v2511 = vpop.f32.mrb[0].mxu0
      %2512 = vmatprep.mubr.f32.mxu0 0.0
      %2513 = vmatmul.mubr.f32.gmra.mrb[0].mxu0 %v2387
      %v2514 = vpop.f32.mrb[0].mxu0
      %v2515 = vadd.f32 0.0, %v2514
      %v2516 = vpop.f32.mrb[0].mxu0
      %2517 = vmatprep.mubr.f32.mxu0 0.0
      %2518 = vmatmul.mubr.f32.gmra.mrb[0].mxu0 %v2388
      %v2519 = vpop.f32.mrb[0].mxu0
      %v2520 = vadd.f32 0.0, %v2519
      %v2521 = vpop.f32.mrb[0].mxu0
      %2522 = vmatprep.mubr.f32.mxu0 0.0
      %2523 = vmatmul.mubr.f32.gmra.mrb[0].mxu0 %v2389
      %v2524 = vpop.f32.mrb[0].mxu0
      %v2525 = vadd.f32 0.0, %v2524
      %v2526 = vpop.f32.mrb[0].mxu0
      %2527 = vmatprep.mubr.f32.mxu0 0.0
      %2528 = vmatmul.mubr.f32.gmra.mrb[0].mxu0 %v2390
      %v2529 = vpop.f32.mrb[0].mxu0
      %v2530 = vadd.f32 0.0, %v2529
      %v2531 = vpop.f32.mrb[0].mxu0
      %2532 = vmatprep.mubr.f32.mxu0 0.0
      %2533 = vmatmul.mubr.f32.gmra.mrb[0].mxu0 %v2391
      %v2534 = vpop.f32.mrb[0].mxu0
      %v2535 = vadd.f32 0.0, %v2534
      %v2536 = vpop.f32.mrb[0].mxu0
      %2537 = vmatprep.mubr.f32.mxu0 0.0
      %2538 = vmatmul.mubr.f32.gmra.mrb[0].mxu0 %v2392
      %v2539 = vpop.f32.mrb[0].mxu0
      %v2540 = vadd.f32 0.0, %v2539
      %v2541 = vpop.f32.mrb[0].mxu0
      %2542 = vmatprep.mubr.f32.mxu0 0.0
      %2543 = vmatmul.mubr.f32.gmra.mrb[0].mxu0 %v2393
      %v2544 = vpop.f32.mrb[0].mxu0
      %v2545 = vadd.f32 0.0, %v2544
      %v2546 = vpop.f32.mrb[0].mxu0
      %2547 = vmatprep.mubr.f32.mxu0 0.0
      %2548 = vmatmul.mubr.f32.gmra.mrb[0].mxu0 %v2394
      %v2549 = vpop.f32.mrb[0].mxu0
      %v2550 = vadd.f32 0.0, %v2549
      %v2551 = vpop.f32.mrb[0].mxu0
      %2552 = vmatprep.mubr.f32.mxu0 0.0
      %2553 = vmatmul.mubr.f32.gmra.mrb[0].mxu0 %v2395
      %v2554 = vpop.f32.mrb[0].mxu0
      %v2555 = vadd.f32 0.0, %v2554
      %v2556 = vpop.f32.mrb[0].mxu0
      %2557 = vmatprep.mubr.f32.mxu0 0.0
      %2558 = vmatmul.mubr.f32.gmra.mrb[0].mxu0 %v2396
      %v2559 = vpop.f32.mrb[0].mxu0
      %v2560 = vadd.f32 0.0, %v2559
      %v2561 = vpop.f32.mrb[0].mxu0
      %2562 = vmatprep.mubr.f32.mxu0 0.0
      %2563 = vmatmul.mubr.f32.gmra.mrb[0].mxu0 %v2397
      %v2564 = vpop.f32.mrb[0].mxu0
      %v2565 = vadd.f32 0.0, %v2564
      %v2566 = vpop.f32.mrb[0].mxu0
      %2567 = vmatprep.mubr.f32.mxu0 0.0
      %2568 = vmatmul.mubr.f32.gmra.mrb[0].mxu0 %v2398
      %v2569 = vpop.f32.mrb[0].mxu0
      %v2570 = vadd.f32 0.0, %v2569
      %v2571 = vpop.f32.mrb[0].mxu0
      %2572 = vmatprep.mubr.f32.mxu0 0.0
      %2573 = vmatmul.mubr.f32.gmra.mrb[0].mxu0 %v2399
      %v2574 = vpop.f32.mrb[0].mxu0
      %v2575 = vadd.f32 0.0, %v2574
      %v2576 = vpop.f32.mrb[0].mxu0
      %2577 = vmatprep.mubr.f32.mxu0 0.0
      %2578 = vmatmul.mubr.f32.gmra.mrb[0].mxu0 %v2400
      %v2579 = vpop.f32.mrb[0].mxu0
      %v2580 = vadd.f32 0.0, %v2579
      %v2581 = vpop.f32.mrb[0].mxu0
      %2582 = vmatprep.mubr.f32.mxu0 0.0
      %2583 = vmatmul.mubr.f32.gmra.mrb[0].mxu0 %v2401
      %v2584 = vpop.f32.mrb[0].mxu0
      %v2585 = vadd.f32 0.0, %v2584
      %v2586 = vpop.f32.mrb[0].mxu0
      %2587 = vmatprep.mubr.f32.mxu0 0.0
      %2588 = vmatmul.mubr.f32.gmra.mrb[0].mxu0 %v2402
      %v2589 = vpop.f32.mrb[0].mxu0
      %v2590 = vadd.f32 0.0, %v2589
      %v2591 = vpop.f32.mrb[0].mxu0
      %2592 = vmatprep.mubr.f32.mxu0 0.0
      %2593 = vmatmul.mubr.f32.gmra.mrb[0].mxu0 %v2403
      %v2594 = vpop.f32.mrb[0].mxu0
      %v2595 = vadd.f32 0.0, %v2594
      %v2596 = vpop.f32.mrb[0].mxu0
      %2597 = vmatprep.mubr.f32.mxu0 0.0
      %2598 = vmatmul.mubr.f32.gmra.mrb[0].mxu0 %v2404
      %v2599 = vpop.f32.mrb[0].mxu0
      %v2600 = vadd.f32 0.0, %v2599
      %v2601 = vpop.f32.mrb[0].mxu0
      %2602 = vmatprep.mubr.f32.mxu0 0.0
      %2603 = vmatmul.mubr.f32.gmra.mrb[0].mxu0 %v2405
      %v2604 = vpop.f32.mrb[0].mxu0
      %v2605 = vadd.f32 0.0, %v2604
      %v2606 = vpop.f32.mrb[0].mxu0
      %2607 = vmatprep.mubr.f32.mxu0 0.0
      %2608 = vmatmul.mubr.f32.gmra.mrb[0].mxu0 %v2406
      %v2609 = vpop.f32.mrb[0].mxu0
      %v2610 = vadd.f32 0.0, %v2609
      %v2611 = vpop.f32.mrb[0].mxu0
      %2612 = vmatprep.mubr.f32.mxu0 0.0
      %2613 = vmatmul.mubr.f32.gmra.mrb[0].mxu0 %v2407
      %v2614 = vpop.f32.mrb[0].mxu0
      %v2615 = vadd.f32 0.0, %v2614
      %v2616 = vpop.f32.mrb[0].mxu0
      %2617 = vmatprep.mubr.f32.mxu0 0.0
      %2618 = vmatmul.mubr.f32.gmra.mrb[0].mxu0 %v2408
      %v2619 = vpop.f32.mrb[0].mxu0
      %v2620 = vadd.f32 0.0, %v2619
      %v2621 = vpop.f32.mrb[0].mxu0
      %2622 = vmatprep.mubr.f32.mxu0 0.0
      %2623 = vmatmul.mubr.f32.gmra.mrb[0].mxu0 %v2409
      %v2624 = vpop.f32.mrb[0].mxu0
      %v2625 = vadd.f32 0.0, %v2624
      %v2626 = vpop.f32.mrb[0].mxu0
      %2627 = vmatprep.mubr.f32.mxu0 0.0
      %2628 = vmatmul.mubr.f32.gmra.mrb[0].mxu0 %v2410
      %v2629 = vpop.f32.mrb[0].mxu0
      %v2630 = vadd.f32 0.0, %v2629
      %v2631 = vpop.f32.mrb[0].mxu0
      %2632 = vmatprep.mubr.f32.mxu0 0.0
      %2633 = vmatmul.mubr.f32.gmra.mrb[0].mxu0 %v2411
      %v2634 = vpop.f32.mrb[0].mxu0
      %v2635 = vadd.f32 0.0, %v2634
      %v2636 = vpop.f32.mrb[0].mxu0
      %2637 = vmatprep.mubr.f32.mxu0 0.0
      %2638 = vmatmul.mubr.f32.gmra.mrb[0].mxu0 %v2412
      %v2639 = vpop.f32.mrb[0].mxu0
      %v2640 = vadd.f32 0.0, %v2639
      %v2641 = vpop.f32.mrb[0].mxu0
      %2642 = vmatprep.mubr.f32.mxu0 0.0
      %2643 = vmatmul.mubr.f32.gmra.mrb[0].mxu0 %v2413
      %v2644 = vpop.f32.mrb[0].mxu0
      %v2645 = vadd.f32 0.0, %v2644
      %v2646 = vpop.f32.mrb[0].mxu0
      %2647 = vmatprep.mubr.f32.mxu0 0.0
      %2648 = vmatmul.mubr.f32.gmra.mrb[0].mxu0 %v2414
      %v2649 = vpop.f32.mrb[0].mxu0
      %v2650 = vadd.f32 0.0, %v2649
      %v2651 = vpop.f32.mrb[0].mxu0
      %2652 = vmatprep.mubr.f32.mxu0 0.0
      %2653 = vmatmul.mubr.f32.gmra.mrb[0].mxu0 %v2415
      %v2654 = vpop.f32.mrb[0].mxu0
      %v2655 = vadd.f32 0.0, %v2654
      %v2656 = vpop.f32.mrb[0].mxu0
      %2657 = vmatprep.mubr.f32.mxu0 0.0
      %2658 = vmatmul.mubr.f32.gmra.mrb[0].mxu0 %v2416
      %v2659 = vpop.f32.mrb[0].mxu0
      %v2660 = vadd.f32 0.0, %v2659
      %v2661 = vpop.f32.mrb[0].mxu0
      %2662 = vmatprep.mubr.f32.mxu0 0.0
      %2663 = vmatmul.mubr.f32.gmra.mrb[0].mxu0 %v2417
      %v2664 = vpop.f32.mrb[0].mxu0
      %v2665 = vadd.f32 0.0, %v2664
      %v2666 = vpop.f32.mrb[0].mxu0
      %2667 = vmatprep.mubr.f32.mxu0 0.0
      %2668 = vmatmul.mubr.f32.gmra.mrb[0].mxu0 %v2418
      %v2669 = vpop.f32.mrb[0].mxu0
      %v2670 = vadd.f32 0.0, %v2669
      %v2671 = vpop.f32.mrb[0].mxu0
      %2672 = vmatprep.mubr.f32.mxu0 0.0
      %2673 = vmatmul.mubr.f32.gmra.mrb[0].mxu0 %v2419
      %v2674 = vpop.f32.mrb[0].mxu0
      %v2675 = vadd.f32 0.0, %v2674
      %v2676 = vpop.f32.mrb[0].mxu0
      %2677 = vmatprep.mubr.f32.mxu0 0.0
      %2678 = vmatmul.mubr.f32.gmra.mrb[0].mxu0 %v2420
      %v2679 = vpop.f32.mrb[0].mxu0
      %v2680 = vadd.f32 0.0, %v2679
      %v2681 = vpop.f32.mrb[0].mxu0
      %2682 = vdwg.mxu0
      %v2683 = vadd.f32 %v2349, %v2505
      %v2684 = vadd.f32 %v2350, %v2510
      %v2685 = vadd.f32 %v2351, %v2515
      %v2686 = vadd.f32 %v2352, %v2520
      %v2687 = vadd.f32 %v2353, %v2525
      %v2688 = vadd.f32 %v2354, %v2530
      %v2689 = vadd.f32 %v2355, %v2535
      %v2690 = vadd.f32 %v2356, %v2540
      %v2691 = vadd.f32 %v2357, %v2545
      %v2692 = vadd.f32 %v2358, %v2550
      %v2693 = vadd.f32 %v2359, %v2555
      %v2694 = vadd.f32 %v2360, %v2560
      %v2695 = vadd.f32 %v2361, %v2565
      %v2696 = vadd.f32 %v2362, %v2570
      %v2697 = vadd.f32 %v2363, %v2575
      %v2698 = vadd.f32 %v2364, %v2580
      %v2699 = vadd.f32 %v2365, %v2585
      %v2700 = vadd.f32 %v2366, %v2590
      %v2701 = vadd.f32 %v2367, %v2595
      %v2702 = vadd.f32 %v2368, %v2600
      %v2703 = vadd.f32 %v2369, %v2605
      %v2704 = vadd.f32 %v2370, %v2610
      %v2705 = vadd.f32 %v2371, %v2615
      %v2706 = vadd.f32 %v2372, %v2620
      %v2707 = vadd.f32 %v2373, %v2625
      %v2708 = vadd.f32 %v2374, %v2630
      %v2709 = vadd.f32 %v2375, %v2635
      %v2710 = vadd.f32 %v2376, %v2640
      %v2711 = vadd.f32 %v2377, %v2645
      %v2712 = vadd.f32 %v2378, %v2650
      %v2713 = vadd.f32 %v2379, %v2655
      %v2714 = vadd.f32 %v2380, %v2660
      %v2715 = vadd.f32 %v2381, %v2665
      %v2716 = vadd.f32 %v2382, %v2670
      %v2717 = vadd.f32 %v2383, %v2675
      %v2718 = vadd.f32 %v2384, %v2680
      %2719 = vst [vmem:[#allocation3] sm:$0xff] %v2683
      %2720 = vst [vmem:[#allocation3 + $0x8] sm:$0xff] %v2684
      %2721 = vst [vmem:[#allocation3 + $0x10] sm:$0xff] %v2685
      %2722 = vst [vmem:[#allocation3 + $0x18] sm:$0xff] %v2686
      %2723 = vst [vmem:[#allocation3 + $0x20] sm:$0xff] %v2687
      %2724 = vst [vmem:[#allocation3 + $0x28] sm:$0xff] %v2688
      %2725 = vst [vmem:[#allocation3 + $0x30] sm:$0xff] %v2689
      %2726 = vst [vmem:[#allocation3 + $0x38] sm:$0xff] %v2690
      %2727 = vst [vmem:[#allocation3 + $0x40] sm:$0xff] %v2691
      %2728 = vst [vmem:[#allocation3 + $0x48] sm:$0xff] %v2692
      %2729 = vst [vmem:[#allocation3 + $0x50] sm:$0xff] %v2693
      %2730 = vst [vmem:[#allocation3 + $0x58] sm:$0xff] %v2694
      %2731 = vst [vmem:[#allocation3 + $0x60] sm:$0xff] %v2695
      %2732 = vst [vmem:[#allocation3 + $0x68] sm:$0xff] %v2696
      %2733 = vst [vmem:[#allocation3 + $0x70] sm:$0xff] %v2697
      %2734 = vst [vmem:[#allocation3 + $0x78] sm:$0xff] %v2698
      %2735 = vst [vmem:[#allocation3 + $0x80] sm:$0xff] %v2699
      %2736 = vst [vmem:[#allocation3 + $0x88] sm:$0xff] %v2700
      %2737 = vst [vmem:[#allocation3 + $0x90] sm:$0xff] %v2701
      %2738 = vst [vmem:[#allocation3 + $0x98] sm:$0xff] %v2702
      %2739 = vst [vmem:[#allocation3 + $0xa0] sm:$0xff] %v2703
      %2740 = vst [vmem:[#allocation3 + $0xa8] sm:$0xff] %v2704
      %2741 = vst [vmem:[#allocation3 + $0xb0] sm:$0xff] %v2705
      %2742 = vst [vmem:[#allocation3 + $0xb8] sm:$0xff] %v2706
      %2743 = vst [vmem:[#allocation3 + $0xc0] sm:$0xff] %v2707
      %2744 = vst [vmem:[#allocation3 + $0xc8] sm:$0xff] %v2708
      %2745 = vst [vmem:[#allocation3 + $0xd0] sm:$0xff] %v2709
      %2746 = vst [vmem:[#allocation3 + $0xd8] sm:$0xff] %v2710
      %2747 = vst [vmem:[#allocation3 + $0xe0] sm:$0xff] %v2711
      %2748 = vst [vmem:[#allocation3 + $0xe8] sm:$0xff] %v2712
      %2749 = vst [vmem:[#allocation3 + $0xf0] sm:$0xff] %v2713
      %2750 = vst [vmem:[#allocation3 + $0xf8] sm:$0xff] %v2714
      %2751 = vst [vmem:[#allocation3 + $0x100] sm:$0xff] %v2715
      %2752 = vst [vmem:[#allocation3 + $0x108] sm:$0xff] %v2716
      %2753 = vst [vmem:[#allocation3 + $0x110] sm:$0xff] %v2717
      %2754 = vst [vmem:[#allocation3 + $0x118] sm:$0xff] %v2718
      %v2755 = vld [vmem:[#allocation3] sm:$0xff]
      %v2756 = vld [vmem:[#allocation3 + $0x8] sm:$0xff]
      %v2757 = vld [vmem:[#allocation3 + $0x10] sm:$0xff]
      %v2758 = vld [vmem:[#allocation3 + $0x18] sm:$0xff]
      %v2759 = vld [vmem:[#allocation3 + $0x20] sm:$0xff]
      %v2760 = vld [vmem:[#allocation3 + $0x28] sm:$0xff]
      %v2761 = vld [vmem:[#allocation3 + $0x30] sm:$0xff]
      %v2762 = vld [vmem:[#allocation3 + $0x38] sm:$0xff]
      %v2763 = vld [vmem:[#allocation3 + $0x40] sm:$0xff]
      %v2764 = vld [vmem:[#allocation3 + $0x48] sm:$0xff]
      %v2765 = vld [vmem:[#allocation3 + $0x50] sm:$0xff]
      %v2766 = vld [vmem:[#allocation3 + $0x58] sm:$0xff]
      %v2767 = vld [vmem:[#allocation3 + $0x60] sm:$0xff]
      %v2768 = vld [vmem:[#allocation3 + $0x68] sm:$0xff]
      %v2769 = vld [vmem:[#allocation3 + $0x70] sm:$0xff]
      %v2770 = vld [vmem:[#allocation3 + $0x78] sm:$0xff]
      %v2771 = vld [vmem:[#allocation3 + $0x80] sm:$0xff]
      %v2772 = vld [vmem:[#allocation3 + $0x88] sm:$0xff]
      %v2773 = vld [vmem:[#allocation3 + $0x90] sm:$0xff]
      %v2774 = vld [vmem:[#allocation3 + $0x98] sm:$0xff]
      %v2775 = vld [vmem:[#allocation3 + $0xa0] sm:$0xff]
      %v2776 = vld [vmem:[#allocation3 + $0xa8] sm:$0xff]
      %v2777 = vld [vmem:[#allocation3 + $0xb0] sm:$0xff]
      %v2778 = vld [vmem:[#allocation3 + $0xb8] sm:$0xff]
      %v2779 = vld [vmem:[#allocation3 + $0xc0] sm:$0xff]
      %v2780 = vld [vmem:[#allocation3 + $0xc8] sm:$0xff]
      %v2781 = vld [vmem:[#allocation3 + $0xd0] sm:$0xff]
      %v2782 = vld [vmem:[#allocation3 + $0xd8] sm:$0xff]
      %v2783 = vld [vmem:[#allocation3 + $0xe0] sm:$0xff]
      %v2784 = vld [vmem:[#allocation3 + $0xe8] sm:$0xff]
      %v2785 = vld [vmem:[#allocation3 + $0xf0] sm:$0xff]
      %v2786 = vld [vmem:[#allocation3 + $0xf8] sm:$0xff]
      %v2787 = vld [vmem:[#allocation3 + $0x100] sm:$0xff]
      %v2788 = vld [vmem:[#allocation3 + $0x108] sm:$0xff]
      %v2789 = vld [vmem:[#allocation3 + $0x110] sm:$0xff]
      %v2790 = vld [vmem:[#allocation3 + $0x118] sm:$0xff]
      %v2791 = vld [vmem:[#allocation2 + $0x24] sm:$0xff]
      %v2792 = vld [vmem:[#allocation2 + $0x2c] sm:$0xff]
      %v2793 = vld [vmem:[#allocation2 + $0x34] sm:$0xff]
      %v2794 = vld [vmem:[#allocation2 + $0x3c] sm:$0xff]
      %v2795 = vld [vmem:[#allocation2 + $0x44] sm:$0xff]
      %v2796 = vld [vmem:[#allocation2 + $0x4c] sm:$0xff]
      %v2797 = vld [vmem:[#allocation2 + $0x54] sm:$0xff]
      %v2798 = vld [vmem:[#allocation2 + $0x5c] sm:$0xff]
      %v2799 = vld [vmem:[#allocation2 + $0x64] sm:$0xff]
      %v2800 = vld [vmem:[#allocation2 + $0x6c] sm:$0xff]
      %v2801 = vld [vmem:[#allocation2 + $0x74] sm:$0xff]
      %v2802 = vld [vmem:[#allocation2 + $0x7c] sm:$0xff]
      %v2803 = vld [vmem:[#allocation2 + $0x84] sm:$0xff]
      %v2804 = vld [vmem:[#allocation2 + $0x8c] sm:$0xff]
      %v2805 = vld [vmem:[#allocation2 + $0x94] sm:$0xff]
      %v2806 = vld [vmem:[#allocation2 + $0x9c] sm:$0xff]
      %v2807 = vld [vmem:[#allocation2 + $0xa4] sm:$0xff]
      %v2808 = vld [vmem:[#allocation2 + $0xac] sm:$0xff]
      %v2809 = vld [vmem:[#allocation2 + $0xb4] sm:$0xff]
      %v2810 = vld [vmem:[#allocation2 + $0xbc] sm:$0xff]
      %v2811 = vld [vmem:[#allocation2 + $0xc4] sm:$0xff]
      %v2812 = vld [vmem:[#allocation2 + $0xcc] sm:$0xff]
      %v2813 = vld [vmem:[#allocation2 + $0xd4] sm:$0xff]
      %v2814 = vld [vmem:[#allocation2 + $0xdc] sm:$0xff]
      %v2815 = vld [vmem:[#allocation2 + $0xe4] sm:$0xff]
      %v2816 = vld [vmem:[#allocation2 + $0xec] sm:$0xff]
      %v2817 = vld [vmem:[#allocation2 + $0xf4] sm:$0xff]
      %v2818 = vld [vmem:[#allocation2 + $0xfc] sm:$0xff]
      %v2819 = vld [vmem:[#allocation2 + $0x104] sm:$0xff]
      %v2820 = vld [vmem:[#allocation2 + $0x10c] sm:$0xff]
      %v2821 = vld [vmem:[#allocation2 + $0x114] sm:$0xff]
      %v2822 = vld [vmem:[#allocation2 + $0x11c] sm:$0xff]
      %v2823 = vld [vmem:[#allocation2 + $0x124] sm:$0xff]
      %v2824 = vld [vmem:[#allocation2 + $0x12c] sm:$0xff]
      %v2825 = vld [vmem:[#allocation2 + $0x134] sm:$0xff]
      %v2826 = vld [vmem:[#allocation2 + $0x13c] sm:$0xff]
      %s2827 = scalar_lea.vmem %s1, 768
      %v2828 = vld [vmem:[%s2827] sm:$0xff]
      %v2829 = vld [vmem:[%s2827 + $0x8] sm:$0xff]
      %v2830 = vld [vmem:[%s2827 + $0x10] sm:$0xff]
      %v2831 = vld [vmem:[%s2827 + $0x18] sm:$0xff]
      %v2832 = vld [vmem:[%s2827 + $0x20] sm:$0xff]
      %v2833 = vld [vmem:[%s2827 + $0x28] sm:$0xff]
      %v2834 = vld [vmem:[%s2827 + $0x30] sm:$0xff]
      %v2835 = vld [vmem:[%s2827 + $0x38] sm:$0xff]
      %v2836 = vld [vmem:[%s2827 + $0x40] sm:$0xff]
      %v2837 = vld [vmem:[%s2827 + $0x48] sm:$0xff]
      %v2838 = vld [vmem:[%s2827 + $0x50] sm:$0xff]
      %v2839 = vld [vmem:[%s2827 + $0x58] sm:$0xff]
      %v2840 = vld [vmem:[%s2827 + $0x60] sm:$0xff]
      %v2841 = vld [vmem:[%s2827 + $0x68] sm:$0xff]
      %v2842 = vld [vmem:[%s2827 + $0x70] sm:$0xff]
      %v2843 = vld [vmem:[%s2827 + $0x78] sm:$0xff]
      %2844 = vmatprep.subr.mxu0 0.0
      %2845 = vmatpush1.msra.mxu0 %v2828
      %2846 = vmatprep.subr.mxu0 0.0
      %2847 = vmatpush1.msra.mxu0 %v2829
      %2848 = vmatprep.subr.mxu0 0.0
      %2849 = vmatpush1.msra.mxu0 %v2830
      %2850 = vmatprep.subr.mxu0 0.0
      %2851 = vmatpush1.msra.mxu0 %v2831
      %2852 = vmatprep.subr.mxu0 0.0
      %2853 = vmatpush1.msra.mxu0 %v2832
      %2854 = vmatprep.subr.mxu0 0.0
      %2855 = vmatpush1.msra.mxu0 %v2833
      %2856 = vmatprep.subr.mxu0 0.0
      %2857 = vmatpush1.msra.mxu0 %v2834
      %2858 = vmatprep.subr.mxu0 0.0
      %2859 = vmatpush1.msra.mxu0 %v2835
      %2860 = vmatprep.subr.mxu0 0.0
      %2861 = vmatpush1.msra.mxu0 %v2836
      %2862 = vmatprep.subr.mxu0 0.0
      %2863 = vmatpush1.msra.mxu0 %v2837
      %2864 = vmatprep.subr.mxu0 0.0
      %2865 = vmatpush1.msra.mxu0 %v2838
      %2866 = vmatprep.subr.mxu0 0.0
      %2867 = vmatpush1.msra.mxu0 %v2839
      %2868 = vmatprep.subr.mxu0 0.0
      %2869 = vmatpush1.msra.mxu0 %v2840
      %2870 = vmatprep.subr.mxu0 0.0
      %2871 = vmatpush1.msra.mxu0 %v2841
      %2872 = vmatprep.subr.mxu0 0.0
      %2873 = vmatpush1.msra.mxu0 %v2842
      %2874 = vmatprep.subr.mxu0 0.0
      %2875 = vmatpush1.msra.mxu0 %v2843
      %2876 = vmatprep.subr.mxu0 0.0
      %2877 = vmatpush1.msra.mxu0 0.0
      %2878 = vmatprep.subr.mxu0 0.0
      %2879 = vmatpush1.msra.mxu0 0.0
      %2880 = vmatprep.subr.mxu0 0.0
      %2881 = vmatpush1.msra.mxu0 0.0
      %2882 = vmatprep.subr.mxu0 0.0
      %2883 = vmatpush1.msra.mxu0 0.0
      %2884 = vmatprep.subr.mxu0 0.0
      %2885 = vmatpush1.msra.mxu0 0.0
      %2886 = vmatprep.subr.mxu0 0.0
      %2887 = vmatpush1.msra.mxu0 0.0
      %2888 = vmatprep.subr.mxu0 0.0
      %2889 = vmatpush1.msra.mxu0 0.0
      %2890 = vmatprep.subr.mxu0 0.0
      %2891 = vmatpush1.msra.mxu0 0.0
      %2892 = vmatprep.subr.mxu0 0.0
      %2893 = vmatpush1.msra.mxu0 0.0
      %2894 = vmatprep.subr.mxu0 0.0
      %2895 = vmatpush1.msra.mxu0 0.0
      %2896 = vmatprep.subr.mxu0 0.0
      %2897 = vmatpush1.msra.mxu0 0.0
      %2898 = vmatprep.subr.mxu0 0.0
      %2899 = vmatpush1.msra.mxu0 0.0
      %2900 = vmatprep.subr.mxu0 0.0
      %2901 = vmatpush1.msra.mxu0 0.0
      %2902 = vmatprep.subr.mxu0 0.0
      %2903 = vmatpush1.msra.mxu0 0.0
      %2904 = vmatprep.subr.mxu0 0.0
      %2905 = vmatpush1.msra.mxu0 0.0
      %2906 = vmatprep.subr.mxu0 0.0
      %2907 = vmatpush1.msra.mxu0 0.0
      %2908 = vmatprep.mubr.f32.mxu0 0.0
      %2909 = vmatmul.mubr.f32.gmra.mrb[0].mxu0 %v2791
      %v2910 = vpop.f32.mrb[0].mxu0
      %v2911 = vadd.f32 0.0, %v2910
      %v2912 = vpop.f32.mrb[0].mxu0
      %2913 = vmatprep.mubr.f32.mxu0 0.0
      %2914 = vmatmul.mubr.f32.gmra.mrb[0].mxu0 %v2792
      %v2915 = vpop.f32.mrb[0].mxu0
      %v2916 = vadd.f32 0.0, %v2915
      %v2917 = vpop.f32.mrb[0].mxu0
      %2918 = vmatprep.mubr.f32.mxu0 0.0
      %2919 = vmatmul.mubr.f32.gmra.mrb[0].mxu0 %v2793
      %v2920 = vpop.f32.mrb[0].mxu0
      %v2921 = vadd.f32 0.0, %v2920
      %v2922 = vpop.f32.mrb[0].mxu0
      %2923 = vmatprep.mubr.f32.mxu0 0.0
      %2924 = vmatmul.mubr.f32.gmra.mrb[0].mxu0 %v2794
      %v2925 = vpop.f32.mrb[0].mxu0
      %v2926 = vadd.f32 0.0, %v2925
      %v2927 = vpop.f32.mrb[0].mxu0
      %2928 = vmatprep.mubr.f32.mxu0 0.0
      %2929 = vmatmul.mubr.f32.gmra.mrb[0].mxu0 %v2795
      %v2930 = vpop.f32.mrb[0].mxu0
      %v2931 = vadd.f32 0.0, %v2930
      %v2932 = vpop.f32.mrb[0].mxu0
      %2933 = vmatprep.mubr.f32.mxu0 0.0
      %2934 = vmatmul.mubr.f32.gmra.mrb[0].mxu0 %v2796
      %v2935 = vpop.f32.mrb[0].mxu0
      %v2936 = vadd.f32 0.0, %v2935
      %v2937 = vpop.f32.mrb[0].mxu0
      %2938 = vmatprep.mubr.f32.mxu0 0.0
      %2939 = vmatmul.mubr.f32.gmra.mrb[0].mxu0 %v2797
      %v2940 = vpop.f32.mrb[0].mxu0
      %v2941 = vadd.f32 0.0, %v2940
      %v2942 = vpop.f32.mrb[0].mxu0
      %2943 = vmatprep.mubr.f32.mxu0 0.0
      %2944 = vmatmul.mubr.f32.gmra.mrb[0].mxu0 %v2798
      %v2945 = vpop.f32.mrb[0].mxu0
      %v2946 = vadd.f32 0.0, %v2945
      %v2947 = vpop.f32.mrb[0].mxu0
      %2948 = vmatprep.mubr.f32.mxu0 0.0
      %2949 = vmatmul.mubr.f32.gmra.mrb[0].mxu0 %v2799
      %v2950 = vpop.f32.mrb[0].mxu0
      %v2951 = vadd.f32 0.0, %v2950
      %v2952 = vpop.f32.mrb[0].mxu0
      %2953 = vmatprep.mubr.f32.mxu0 0.0
      %2954 = vmatmul.mubr.f32.gmra.mrb[0].mxu0 %v2800
      %v2955 = vpop.f32.mrb[0].mxu0
      %v2956 = vadd.f32 0.0, %v2955
      %v2957 = vpop.f32.mrb[0].mxu0
      %2958 = vmatprep.mubr.f32.mxu0 0.0
      %2959 = vmatmul.mubr.f32.gmra.mrb[0].mxu0 %v2801
      %v2960 = vpop.f32.mrb[0].mxu0
      %v2961 = vadd.f32 0.0, %v2960
      %v2962 = vpop.f32.mrb[0].mxu0
      %2963 = vmatprep.mubr.f32.mxu0 0.0
      %2964 = vmatmul.mubr.f32.gmra.mrb[0].mxu0 %v2802
      %v2965 = vpop.f32.mrb[0].mxu0
      %v2966 = vadd.f32 0.0, %v2965
      %v2967 = vpop.f32.mrb[0].mxu0
      %2968 = vmatprep.mubr.f32.mxu0 0.0
      %2969 = vmatmul.mubr.f32.gmra.mrb[0].mxu0 %v2803
      %v2970 = vpop.f32.mrb[0].mxu0
      %v2971 = vadd.f32 0.0, %v2970
      %v2972 = vpop.f32.mrb[0].mxu0
      %2973 = vmatprep.mubr.f32.mxu0 0.0
      %2974 = vmatmul.mubr.f32.gmra.mrb[0].mxu0 %v2804
      %v2975 = vpop.f32.mrb[0].mxu0
      %v2976 = vadd.f32 0.0, %v2975
      %v2977 = vpop.f32.mrb[0].mxu0
      %2978 = vmatprep.mubr.f32.mxu0 0.0
      %2979 = vmatmul.mubr.f32.gmra.mrb[0].mxu0 %v2805
      %v2980 = vpop.f32.mrb[0].mxu0
      %v2981 = vadd.f32 0.0, %v2980
      %v2982 = vpop.f32.mrb[0].mxu0
      %2983 = vmatprep.mubr.f32.mxu0 0.0
      %2984 = vmatmul.mubr.f32.gmra.mrb[0].mxu0 %v2806
      %v2985 = vpop.f32.mrb[0].mxu0
      %v2986 = vadd.f32 0.0, %v2985
      %v2987 = vpop.f32.mrb[0].mxu0
      %2988 = vmatprep.mubr.f32.mxu0 0.0
      %2989 = vmatmul.mubr.f32.gmra.mrb[0].mxu0 %v2807
      %v2990 = vpop.f32.mrb[0].mxu0
      %v2991 = vadd.f32 0.0, %v2990
      %v2992 = vpop.f32.mrb[0].mxu0
      %2993 = vmatprep.mubr.f32.mxu0 0.0
      %2994 = vmatmul.mubr.f32.gmra.mrb[0].mxu0 %v2808
      %v2995 = vpop.f32.mrb[0].mxu0
      %v2996 = vadd.f32 0.0, %v2995
      %v2997 = vpop.f32.mrb[0].mxu0
      %2998 = vmatprep.mubr.f32.mxu0 0.0
      %2999 = vmatmul.mubr.f32.gmra.mrb[0].mxu0 %v2809
      %v3000 = vpop.f32.mrb[0].mxu0
      %v3001 = vadd.f32 0.0, %v3000
      %v3002 = vpop.f32.mrb[0].mxu0
      %3003 = vmatprep.mubr.f32.mxu0 0.0
      %3004 = vmatmul.mubr.f32.gmra.mrb[0].mxu0 %v2810
      %v3005 = vpop.f32.mrb[0].mxu0
      %v3006 = vadd.f32 0.0, %v3005
      %v3007 = vpop.f32.mrb[0].mxu0
      %3008 = vmatprep.mubr.f32.mxu0 0.0
      %3009 = vmatmul.mubr.f32.gmra.mrb[0].mxu0 %v2811
      %v3010 = vpop.f32.mrb[0].mxu0
      %v3011 = vadd.f32 0.0, %v3010
      %v3012 = vpop.f32.mrb[0].mxu0
      %3013 = vmatprep.mubr.f32.mxu0 0.0
      %3014 = vmatmul.mubr.f32.gmra.mrb[0].mxu0 %v2812
      %v3015 = vpop.f32.mrb[0].mxu0
      %v3016 = vadd.f32 0.0, %v3015
      %v3017 = vpop.f32.mrb[0].mxu0
      %3018 = vmatprep.mubr.f32.mxu0 0.0
      %3019 = vmatmul.mubr.f32.gmra.mrb[0].mxu0 %v2813
      %v3020 = vpop.f32.mrb[0].mxu0
      %v3021 = vadd.f32 0.0, %v3020
      %v3022 = vpop.f32.mrb[0].mxu0
      %3023 = vmatprep.mubr.f32.mxu0 0.0
      %3024 = vmatmul.mubr.f32.gmra.mrb[0].mxu0 %v2814
      %v3025 = vpop.f32.mrb[0].mxu0
      %v3026 = vadd.f32 0.0, %v3025
      %v3027 = vpop.f32.mrb[0].mxu0
      %3028 = vmatprep.mubr.f32.mxu0 0.0
      %3029 = vmatmul.mubr.f32.gmra.mrb[0].mxu0 %v2815
      %v3030 = vpop.f32.mrb[0].mxu0
      %v3031 = vadd.f32 0.0, %v3030
      %v3032 = vpop.f32.mrb[0].mxu0
      %3033 = vmatprep.mubr.f32.mxu0 0.0
      %3034 = vmatmul.mubr.f32.gmra.mrb[0].mxu0 %v2816
      %v3035 = vpop.f32.mrb[0].mxu0
      %v3036 = vadd.f32 0.0, %v3035
      %v3037 = vpop.f32.mrb[0].mxu0
      %3038 = vmatprep.mubr.f32.mxu0 0.0
      %3039 = vmatmul.mubr.f32.gmra.mrb[0].mxu0 %v2817
      %v3040 = vpop.f32.mrb[0].mxu0
      %v3041 = vadd.f32 0.0, %v3040
      %v3042 = vpop.f32.mrb[0].mxu0
      %3043 = vmatprep.mubr.f32.mxu0 0.0
      %3044 = vmatmul.mubr.f32.gmra.mrb[0].mxu0 %v2818
      %v3045 = vpop.f32.mrb[0].mxu0
      %v3046 = vadd.f32 0.0, %v3045
      %v3047 = vpop.f32.mrb[0].mxu0
      %3048 = vmatprep.mubr.f32.mxu0 0.0
      %3049 = vmatmul.mubr.f32.gmra.mrb[0].mxu0 %v2819
      %v3050 = vpop.f32.mrb[0].mxu0
      %v3051 = vadd.f32 0.0, %v3050
      %v3052 = vpop.f32.mrb[0].mxu0
      %3053 = vmatprep.mubr.f32.mxu0 0.0
      %3054 = vmatmul.mubr.f32.gmra.mrb[0].mxu0 %v2820
      %v3055 = vpop.f32.mrb[0].mxu0
      %v3056 = vadd.f32 0.0, %v3055
      %v3057 = vpop.f32.mrb[0].mxu0
      %3058 = vmatprep.mubr.f32.mxu0 0.0
      %3059 = vmatmul.mubr.f32.gmra.mrb[0].mxu0 %v2821
      %v3060 = vpop.f32.mrb[0].mxu0
      %v3061 = vadd.f32 0.0, %v3060
      %v3062 = vpop.f32.mrb[0].mxu0
      %3063 = vmatprep.mubr.f32.mxu0 0.0
      %3064 = vmatmul.mubr.f32.gmra.mrb[0].mxu0 %v2822
      %v3065 = vpop.f32.mrb[0].mxu0
      %v3066 = vadd.f32 0.0, %v3065
      %v3067 = vpop.f32.mrb[0].mxu0
      %3068 = vmatprep.mubr.f32.mxu0 0.0
      %3069 = vmatmul.mubr.f32.gmra.mrb[0].mxu0 %v2823
      %v3070 = vpop.f32.mrb[0].mxu0
      %v3071 = vadd.f32 0.0, %v3070
      %v3072 = vpop.f32.mrb[0].mxu0
      %3073 = vmatprep.mubr.f32.mxu0 0.0
      %3074 = vmatmul.mubr.f32.gmra.mrb[0].mxu0 %v2824
      %v3075 = vpop.f32.mrb[0].mxu0
      %v3076 = vadd.f32 0.0, %v3075
      %v3077 = vpop.f32.mrb[0].mxu0
      %3078 = vmatprep.mubr.f32.mxu0 0.0
      %3079 = vmatmul.mubr.f32.gmra.mrb[0].mxu0 %v2825
      %v3080 = vpop.f32.mrb[0].mxu0
      %v3081 = vadd.f32 0.0, %v3080
      %v3082 = vpop.f32.mrb[0].mxu0
      %3083 = vmatprep.mubr.f32.mxu0 0.0
      %3084 = vmatmul.mubr.f32.gmra.mrb[0].mxu0 %v2826
      %v3085 = vpop.f32.mrb[0].mxu0
      %v3086 = vadd.f32 0.0, %v3085
      %v3087 = vpop.f32.mrb[0].mxu0
      %3088 = vdwg.mxu0
      %v3089 = vadd.f32 %v2755, %v2911
      %v3090 = vadd.f32 %v2756, %v2916
      %v3091 = vadd.f32 %v2757, %v2921
      %v3092 = vadd.f32 %v2758, %v2926
      %v3093 = vadd.f32 %v2759, %v2931
      %v3094 = vadd.f32 %v2760, %v2936
      %v3095 = vadd.f32 %v2761, %v2941
      %v3096 = vadd.f32 %v2762, %v2946
      %v3097 = vadd.f32 %v2763, %v2951
      %v3098 = vadd.f32 %v2764, %v2956
      %v3099 = vadd.f32 %v2765, %v2961
      %v3100 = vadd.f32 %v2766, %v2966
      %v3101 = vadd.f32 %v2767, %v2971
      %v3102 = vadd.f32 %v2768, %v2976
      %v3103 = vadd.f32 %v2769, %v2981
      %v3104 = vadd.f32 %v2770, %v2986
      %v3105 = vadd.f32 %v2771, %v2991
      %v3106 = vadd.f32 %v2772, %v2996
      %v3107 = vadd.f32 %v2773, %v3001
      %v3108 = vadd.f32 %v2774, %v3006
      %v3109 = vadd.f32 %v2775, %v3011
      %v3110 = vadd.f32 %v2776, %v3016
      %v3111 = vadd.f32 %v2777, %v3021
      %v3112 = vadd.f32 %v2778, %v3026
      %v3113 = vadd.f32 %v2779, %v3031
      %v3114 = vadd.f32 %v2780, %v3036
      %v3115 = vadd.f32 %v2781, %v3041
      %v3116 = vadd.f32 %v2782, %v3046
      %v3117 = vadd.f32 %v2783, %v3051
      %v3118 = vadd.f32 %v2784, %v3056
      %v3119 = vadd.f32 %v2785, %v3061
      %v3120 = vadd.f32 %v2786, %v3066
      %v3121 = vadd.f32 %v2787, %v3071
      %v3122 = vadd.f32 %v2788, %v3076
      %v3123 = vadd.f32 %v2789, %v3081
      %v3124 = vadd.f32 %v2790, %v3086
      %3125 = vst [vmem:[#allocation3] sm:$0xff] %v3089
      %3126 = vst [vmem:[#allocation3 + $0x8] sm:$0xff] %v3090
      %3127 = vst [vmem:[#allocation3 + $0x10] sm:$0xff] %v3091
      %3128 = vst [vmem:[#allocation3 + $0x18] sm:$0xff] %v3092
      %3129 = vst [vmem:[#allocation3 + $0x20] sm:$0xff] %v3093
      %3130 = vst [vmem:[#allocation3 + $0x28] sm:$0xff] %v3094
      %3131 = vst [vmem:[#allocation3 + $0x30] sm:$0xff] %v3095
      %3132 = vst [vmem:[#allocation3 + $0x38] sm:$0xff] %v3096
      %3133 = vst [vmem:[#allocation3 + $0x40] sm:$0xff] %v3097
      %3134 = vst [vmem:[#allocation3 + $0x48] sm:$0xff] %v3098
      %3135 = vst [vmem:[#allocation3 + $0x50] sm:$0xff] %v3099
      %3136 = vst [vmem:[#allocation3 + $0x58] sm:$0xff] %v3100
      %3137 = vst [vmem:[#allocation3 + $0x60] sm:$0xff] %v3101
      %3138 = vst [vmem:[#allocation3 + $0x68] sm:$0xff] %v3102
      %3139 = vst [vmem:[#allocation3 + $0x70] sm:$0xff] %v3103
      %3140 = vst [vmem:[#allocation3 + $0x78] sm:$0xff] %v3104
      %3141 = vst [vmem:[#allocation3 + $0x80] sm:$0xff] %v3105
      %3142 = vst [vmem:[#allocation3 + $0x88] sm:$0xff] %v3106
      %3143 = vst [vmem:[#allocation3 + $0x90] sm:$0xff] %v3107
      %3144 = vst [vmem:[#allocation3 + $0x98] sm:$0xff] %v3108
      %3145 = vst [vmem:[#allocation3 + $0xa0] sm:$0xff] %v3109
      %3146 = vst [vmem:[#allocation3 + $0xa8] sm:$0xff] %v3110
      %3147 = vst [vmem:[#allocation3 + $0xb0] sm:$0xff] %v3111
      %3148 = vst [vmem:[#allocation3 + $0xb8] sm:$0xff] %v3112
      %3149 = vst [vmem:[#allocation3 + $0xc0] sm:$0xff] %v3113
      %3150 = vst [vmem:[#allocation3 + $0xc8] sm:$0xff] %v3114
      %3151 = vst [vmem:[#allocation3 + $0xd0] sm:$0xff] %v3115
      %3152 = vst [vmem:[#allocation3 + $0xd8] sm:$0xff] %v3116
      %3153 = vst [vmem:[#allocation3 + $0xe0] sm:$0xff] %v3117
      %3154 = vst [vmem:[#allocation3 + $0xe8] sm:$0xff] %v3118
      %3155 = vst [vmem:[#allocation3 + $0xf0] sm:$0xff] %v3119
      %3156 = vst [vmem:[#allocation3 + $0xf8] sm:$0xff] %v3120
      %3157 = vst [vmem:[#allocation3 + $0x100] sm:$0xff] %v3121
      %3158 = vst [vmem:[#allocation3 + $0x108] sm:$0xff] %v3122
      %3159 = vst [vmem:[#allocation3 + $0x110] sm:$0xff] %v3123
      %3160 = vst [vmem:[#allocation3 + $0x118] sm:$0xff] %v3124
      %v3161 = vld [vmem:[#allocation3] sm:$0xff]
      %v3162 = vld [vmem:[#allocation3 + $0x8] sm:$0xff]
      %v3163 = vld [vmem:[#allocation3 + $0x10] sm:$0xff]
      %v3164 = vld [vmem:[#allocation3 + $0x18] sm:$0xff]
      %v3165 = vld [vmem:[#allocation3 + $0x20] sm:$0xff]
      %v3166 = vld [vmem:[#allocation3 + $0x28] sm:$0xff]
      %v3167 = vld [vmem:[#allocation3 + $0x30] sm:$0xff]
      %v3168 = vld [vmem:[#allocation3 + $0x38] sm:$0xff]
      %v3169 = vld [vmem:[#allocation3 + $0x40] sm:$0xff]
      %v3170 = vld [vmem:[#allocation3 + $0x48] sm:$0xff]
      %v3171 = vld [vmem:[#allocation3 + $0x50] sm:$0xff]
      %v3172 = vld [vmem:[#allocation3 + $0x58] sm:$0xff]
      %v3173 = vld [vmem:[#allocation3 + $0x60] sm:$0xff]
      %v3174 = vld [vmem:[#allocation3 + $0x68] sm:$0xff]
      %v3175 = vld [vmem:[#allocation3 + $0x70] sm:$0xff]
      %v3176 = vld [vmem:[#allocation3 + $0x78] sm:$0xff]
      %v3177 = vld [vmem:[#allocation3 + $0x80] sm:$0xff]
      %v3178 = vld [vmem:[#allocation3 + $0x88] sm:$0xff]
      %v3179 = vld [vmem:[#allocation3 + $0x90] sm:$0xff]
      %v3180 = vld [vmem:[#allocation3 + $0x98] sm:$0xff]
      %v3181 = vld [vmem:[#allocation3 + $0xa0] sm:$0xff]
      %v3182 = vld [vmem:[#allocation3 + $0xa8] sm:$0xff]
      %v3183 = vld [vmem:[#allocation3 + $0xb0] sm:$0xff]
      %v3184 = vld [vmem:[#allocation3 + $0xb8] sm:$0xff]
      %v3185 = vld [vmem:[#allocation3 + $0xc0] sm:$0xff]
      %v3186 = vld [vmem:[#allocation3 + $0xc8] sm:$0xff]
      %v3187 = vld [vmem:[#allocation3 + $0xd0] sm:$0xff]
      %v3188 = vld [vmem:[#allocation3 + $0xd8] sm:$0xff]
      %v3189 = vld [vmem:[#allocation3 + $0xe0] sm:$0xff]
      %v3190 = vld [vmem:[#allocation3 + $0xe8] sm:$0xff]
      %v3191 = vld [vmem:[#allocation3 + $0xf0] sm:$0xff]
      %v3192 = vld [vmem:[#allocation3 + $0xf8] sm:$0xff]
      %v3193 = vld [vmem:[#allocation3 + $0x100] sm:$0xff]
      %v3194 = vld [vmem:[#allocation3 + $0x108] sm:$0xff]
      %v3195 = vld [vmem:[#allocation3 + $0x110] sm:$0xff]
      %v3196 = vld [vmem:[#allocation3 + $0x118] sm:$0xff]
      %v3197 = vld [vmem:[#allocation2 + $0x25] sm:$0xff]
      %v3198 = vld [vmem:[#allocation2 + $0x2d] sm:$0xff]
      %v3199 = vld [vmem:[#allocation2 + $0x35] sm:$0xff]
      %v3200 = vld [vmem:[#allocation2 + $0x3d] sm:$0xff]
      %v3201 = vld [vmem:[#allocation2 + $0x45] sm:$0xff]
      %v3202 = vld [vmem:[#allocation2 + $0x4d] sm:$0xff]
      %v3203 = vld [vmem:[#allocation2 + $0x55] sm:$0xff]
      %v3204 = vld [vmem:[#allocation2 + $0x5d] sm:$0xff]
      %v3205 = vld [vmem:[#allocation2 + $0x65] sm:$0xff]
      %v3206 = vld [vmem:[#allocation2 + $0x6d] sm:$0xff]
      %v3207 = vld [vmem:[#allocation2 + $0x75] sm:$0xff]
      %v3208 = vld [vmem:[#allocation2 + $0x7d] sm:$0xff]
      %v3209 = vld [vmem:[#allocation2 + $0x85] sm:$0xff]
      %v3210 = vld [vmem:[#allocation2 + $0x8d] sm:$0xff]
      %v3211 = vld [vmem:[#allocation2 + $0x95] sm:$0xff]
      %v3212 = vld [vmem:[#allocation2 + $0x9d] sm:$0xff]
      %v3213 = vld [vmem:[#allocation2 + $0xa5] sm:$0xff]
      %v3214 = vld [vmem:[#allocation2 + $0xad] sm:$0xff]
      %v3215 = vld [vmem:[#allocation2 + $0xb5] sm:$0xff]
      %v3216 = vld [vmem:[#allocation2 + $0xbd] sm:$0xff]
      %v3217 = vld [vmem:[#allocation2 + $0xc5] sm:$0xff]
      %v3218 = vld [vmem:[#allocation2 + $0xcd] sm:$0xff]
      %v3219 = vld [vmem:[#allocation2 + $0xd5] sm:$0xff]
      %v3220 = vld [vmem:[#allocation2 + $0xdd] sm:$0xff]
      %v3221 = vld [vmem:[#allocation2 + $0xe5] sm:$0xff]
      %v3222 = vld [vmem:[#allocation2 + $0xed] sm:$0xff]
      %v3223 = vld [vmem:[#allocation2 + $0xf5] sm:$0xff]
      %v3224 = vld [vmem:[#allocation2 + $0xfd] sm:$0xff]
      %v3225 = vld [vmem:[#allocation2 + $0x105] sm:$0xff]
      %v3226 = vld [vmem:[#allocation2 + $0x10d] sm:$0xff]
      %v3227 = vld [vmem:[#allocation2 + $0x115] sm:$0xff]
      %v3228 = vld [vmem:[#allocation2 + $0x11d] sm:$0xff]
      %v3229 = vld [vmem:[#allocation2 + $0x125] sm:$0xff]
      %v3230 = vld [vmem:[#allocation2 + $0x12d] sm:$0xff]
      %v3231 = vld [vmem:[#allocation2 + $0x135] sm:$0xff]
      %v3232 = vld [vmem:[#allocation2 + $0x13d] sm:$0xff]
      %s3233 = scalar_lea.vmem %s1, 896
      %v3234 = vld [vmem:[%s3233] sm:$0xff]
      %v3235 = vld [vmem:[%s3233 + $0x8] sm:$0xff]
      %v3236 = vld [vmem:[%s3233 + $0x10] sm:$0xff]
      %v3237 = vld [vmem:[%s3233 + $0x18] sm:$0xff]
      %v3238 = vld [vmem:[%s3233 + $0x20] sm:$0xff]
      %v3239 = vld [vmem:[%s3233 + $0x28] sm:$0xff]
      %v3240 = vld [vmem:[%s3233 + $0x30] sm:$0xff]
      %v3241 = vld [vmem:[%s3233 + $0x38] sm:$0xff]
      %v3242 = vld [vmem:[%s3233 + $0x40] sm:$0xff]
      %v3243 = vld [vmem:[%s3233 + $0x48] sm:$0xff]
      %v3244 = vld [vmem:[%s3233 + $0x50] sm:$0xff]
      %v3245 = vld [vmem:[%s3233 + $0x58] sm:$0xff]
      %v3246 = vld [vmem:[%s3233 + $0x60] sm:$0xff]
      %v3247 = vld [vmem:[%s3233 + $0x68] sm:$0xff]
      %v3248 = vld [vmem:[%s3233 + $0x70] sm:$0xff]
      %v3249 = vld [vmem:[%s3233 + $0x78] sm:$0xff]
      %3250 = vmatprep.subr.mxu0 0.0
      %3251 = vmatpush1.msra.mxu0 %v3234
      %3252 = vmatprep.subr.mxu0 0.0
      %3253 = vmatpush1.msra.mxu0 %v3235
      %3254 = vmatprep.subr.mxu0 0.0
      %3255 = vmatpush1.msra.mxu0 %v3236
      %3256 = vmatprep.subr.mxu0 0.0
      %3257 = vmatpush1.msra.mxu0 %v3237
      %3258 = vmatprep.subr.mxu0 0.0
      %3259 = vmatpush1.msra.mxu0 %v3238
      %3260 = vmatprep.subr.mxu0 0.0
      %3261 = vmatpush1.msra.mxu0 %v3239
      %3262 = vmatprep.subr.mxu0 0.0
      %3263 = vmatpush1.msra.mxu0 %v3240
      %3264 = vmatprep.subr.mxu0 0.0
      %3265 = vmatpush1.msra.mxu0 %v3241
      %3266 = vmatprep.subr.mxu0 0.0
      %3267 = vmatpush1.msra.mxu0 %v3242
      %3268 = vmatprep.subr.mxu0 0.0
      %3269 = vmatpush1.msra.mxu0 %v3243
      %3270 = vmatprep.subr.mxu0 0.0
      %3271 = vmatpush1.msra.mxu0 %v3244
      %3272 = vmatprep.subr.mxu0 0.0
      %3273 = vmatpush1.msra.mxu0 %v3245
      %3274 = vmatprep.subr.mxu0 0.0
      %3275 = vmatpush1.msra.mxu0 %v3246
      %3276 = vmatprep.subr.mxu0 0.0
      %3277 = vmatpush1.msra.mxu0 %v3247
      %3278 = vmatprep.subr.mxu0 0.0
      %3279 = vmatpush1.msra.mxu0 %v3248
      %3280 = vmatprep.subr.mxu0 0.0
      %3281 = vmatpush1.msra.mxu0 %v3249
      %3282 = vmatprep.subr.mxu0 0.0
      %3283 = vmatpush1.msra.mxu0 0.0
      %3284 = vmatprep.subr.mxu0 0.0
      %3285 = vmatpush1.msra.mxu0 0.0
      %3286 = vmatprep.subr.mxu0 0.0
      %3287 = vmatpush1.msra.mxu0 0.0
      %3288 = vmatprep.subr.mxu0 0.0
      %3289 = vmatpush1.msra.mxu0 0.0
      %3290 = vmatprep.subr.mxu0 0.0
      %3291 = vmatpush1.msra.mxu0 0.0
      %3292 = vmatprep.subr.mxu0 0.0
      %3293 = vmatpush1.msra.mxu0 0.0
      %3294 = vmatprep.subr.mxu0 0.0
      %3295 = vmatpush1.msra.mxu0 0.0
      %3296 = vmatprep.subr.mxu0 0.0
      %3297 = vmatpush1.msra.mxu0 0.0
      %3298 = vmatprep.subr.mxu0 0.0
      %3299 = vmatpush1.msra.mxu0 0.0
      %3300 = vmatprep.subr.mxu0 0.0
      %3301 = vmatpush1.msra.mxu0 0.0
      %3302 = vmatprep.subr.mxu0 0.0
      %3303 = vmatpush1.msra.mxu0 0.0
      %3304 = vmatprep.subr.mxu0 0.0
      %3305 = vmatpush1.msra.mxu0 0.0
      %3306 = vmatprep.subr.mxu0 0.0
      %3307 = vmatpush1.msra.mxu0 0.0
      %3308 = vmatprep.subr.mxu0 0.0
      %3309 = vmatpush1.msra.mxu0 0.0
      %3310 = vmatprep.subr.mxu0 0.0
      %3311 = vmatpush1.msra.mxu0 0.0
      %3312 = vmatprep.subr.mxu0 0.0
      %3313 = vmatpush1.msra.mxu0 0.0
      %3314 = vmatprep.mubr.f32.mxu0 0.0
      %3315 = vmatmul.mubr.f32.gmra.mrb[0].mxu0 %v3197
      %v3316 = vpop.f32.mrb[0].mxu0
      %v3317 = vadd.f32 0.0, %v3316
      %v3318 = vpop.f32.mrb[0].mxu0
      %3319 = vmatprep.mubr.f32.mxu0 0.0
      %3320 = vmatmul.mubr.f32.gmra.mrb[0].mxu0 %v3198
      %v3321 = vpop.f32.mrb[0].mxu0
      %v3322 = vadd.f32 0.0, %v3321
      %v3323 = vpop.f32.mrb[0].mxu0
      %3324 = vmatprep.mubr.f32.mxu0 0.0
      %3325 = vmatmul.mubr.f32.gmra.mrb[0].mxu0 %v3199
      %v3326 = vpop.f32.mrb[0].mxu0
      %v3327 = vadd.f32 0.0, %v3326
      %v3328 = vpop.f32.mrb[0].mxu0
      %3329 = vmatprep.mubr.f32.mxu0 0.0
      %3330 = vmatmul.mubr.f32.gmra.mrb[0].mxu0 %v3200
      %v3331 = vpop.f32.mrb[0].mxu0
      %v3332 = vadd.f32 0.0, %v3331
      %v3333 = vpop.f32.mrb[0].mxu0
      %3334 = vmatprep.mubr.f32.mxu0 0.0
      %3335 = vmatmul.mubr.f32.gmra.mrb[0].mxu0 %v3201
      %v3336 = vpop.f32.mrb[0].mxu0
      %v3337 = vadd.f32 0.0, %v3336
      %v3338 = vpop.f32.mrb[0].mxu0
      %3339 = vmatprep.mubr.f32.mxu0 0.0
      %3340 = vmatmul.mubr.f32.gmra.mrb[0].mxu0 %v3202
      %v3341 = vpop.f32.mrb[0].mxu0
      %v3342 = vadd.f32 0.0, %v3341
      %v3343 = vpop.f32.mrb[0].mxu0
      %3344 = vmatprep.mubr.f32.mxu0 0.0
      %3345 = vmatmul.mubr.f32.gmra.mrb[0].mxu0 %v3203
      %v3346 = vpop.f32.mrb[0].mxu0
      %v3347 = vadd.f32 0.0, %v3346
      %v3348 = vpop.f32.mrb[0].mxu0
      %3349 = vmatprep.mubr.f32.mxu0 0.0
      %3350 = vmatmul.mubr.f32.gmra.mrb[0].mxu0 %v3204
      %v3351 = vpop.f32.mrb[0].mxu0
      %v3352 = vadd.f32 0.0, %v3351
      %v3353 = vpop.f32.mrb[0].mxu0
      %3354 = vmatprep.mubr.f32.mxu0 0.0
      %3355 = vmatmul.mubr.f32.gmra.mrb[0].mxu0 %v3205
      %v3356 = vpop.f32.mrb[0].mxu0
      %v3357 = vadd.f32 0.0, %v3356
      %v3358 = vpop.f32.mrb[0].mxu0
      %3359 = vmatprep.mubr.f32.mxu0 0.0
      %3360 = vmatmul.mubr.f32.gmra.mrb[0].mxu0 %v3206
      %v3361 = vpop.f32.mrb[0].mxu0
      %v3362 = vadd.f32 0.0, %v3361
      %v3363 = vpop.f32.mrb[0].mxu0
      %3364 = vmatprep.mubr.f32.mxu0 0.0
      %3365 = vmatmul.mubr.f32.gmra.mrb[0].mxu0 %v3207
      %v3366 = vpop.f32.mrb[0].mxu0
      %v3367 = vadd.f32 0.0, %v3366
      %v3368 = vpop.f32.mrb[0].mxu0
      %3369 = vmatprep.mubr.f32.mxu0 0.0
      %3370 = vmatmul.mubr.f32.gmra.mrb[0].mxu0 %v3208
      %v3371 = vpop.f32.mrb[0].mxu0
      %v3372 = vadd.f32 0.0, %v3371
      %v3373 = vpop.f32.mrb[0].mxu0
      %3374 = vmatprep.mubr.f32.mxu0 0.0
      %3375 = vmatmul.mubr.f32.gmra.mrb[0].mxu0 %v3209
      %v3376 = vpop.f32.mrb[0].mxu0
      %v3377 = vadd.f32 0.0, %v3376
      %v3378 = vpop.f32.mrb[0].mxu0
      %3379 = vmatprep.mubr.f32.mxu0 0.0
      %3380 = vmatmul.mubr.f32.gmra.mrb[0].mxu0 %v3210
      %v3381 = vpop.f32.mrb[0].mxu0
      %v3382 = vadd.f32 0.0, %v3381
      %v3383 = vpop.f32.mrb[0].mxu0
      %3384 = vmatprep.mubr.f32.mxu0 0.0
      %3385 = vmatmul.mubr.f32.gmra.mrb[0].mxu0 %v3211
      %v3386 = vpop.f32.mrb[0].mxu0
      %v3387 = vadd.f32 0.0, %v3386
      %v3388 = vpop.f32.mrb[0].mxu0
      %3389 = vmatprep.mubr.f32.mxu0 0.0
      %3390 = vmatmul.mubr.f32.gmra.mrb[0].mxu0 %v3212
      %v3391 = vpop.f32.mrb[0].mxu0
      %v3392 = vadd.f32 0.0, %v3391
      %v3393 = vpop.f32.mrb[0].mxu0
      %3394 = vmatprep.mubr.f32.mxu0 0.0
      %3395 = vmatmul.mubr.f32.gmra.mrb[0].mxu0 %v3213
      %v3396 = vpop.f32.mrb[0].mxu0
      %v3397 = vadd.f32 0.0, %v3396
      %v3398 = vpop.f32.mrb[0].mxu0
      %3399 = vmatprep.mubr.f32.mxu0 0.0
      %3400 = vmatmul.mubr.f32.gmra.mrb[0].mxu0 %v3214
      %v3401 = vpop.f32.mrb[0].mxu0
      %v3402 = vadd.f32 0.0, %v3401
      %v3403 = vpop.f32.mrb[0].mxu0
      %3404 = vmatprep.mubr.f32.mxu0 0.0
      %3405 = vmatmul.mubr.f32.gmra.mrb[0].mxu0 %v3215
      %v3406 = vpop.f32.mrb[0].mxu0
      %v3407 = vadd.f32 0.0, %v3406
      %v3408 = vpop.f32.mrb[0].mxu0
      %3409 = vmatprep.mubr.f32.mxu0 0.0
      %3410 = vmatmul.mubr.f32.gmra.mrb[0].mxu0 %v3216
      %v3411 = vpop.f32.mrb[0].mxu0
      %v3412 = vadd.f32 0.0, %v3411
      %v3413 = vpop.f32.mrb[0].mxu0
      %3414 = vmatprep.mubr.f32.mxu0 0.0
      %3415 = vmatmul.mubr.f32.gmra.mrb[0].mxu0 %v3217
      %v3416 = vpop.f32.mrb[0].mxu0
      %v3417 = vadd.f32 0.0, %v3416
      %v3418 = vpop.f32.mrb[0].mxu0
      %3419 = vmatprep.mubr.f32.mxu0 0.0
      %3420 = vmatmul.mubr.f32.gmra.mrb[0].mxu0 %v3218
      %v3421 = vpop.f32.mrb[0].mxu0
      %v3422 = vadd.f32 0.0, %v3421
      %v3423 = vpop.f32.mrb[0].mxu0
      %3424 = vmatprep.mubr.f32.mxu0 0.0
      %3425 = vmatmul.mubr.f32.gmra.mrb[0].mxu0 %v3219
      %v3426 = vpop.f32.mrb[0].mxu0
      %v3427 = vadd.f32 0.0, %v3426
      %v3428 = vpop.f32.mrb[0].mxu0
      %3429 = vmatprep.mubr.f32.mxu0 0.0
      %3430 = vmatmul.mubr.f32.gmra.mrb[0].mxu0 %v3220
      %v3431 = vpop.f32.mrb[0].mxu0
      %v3432 = vadd.f32 0.0, %v3431
      %v3433 = vpop.f32.mrb[0].mxu0
      %3434 = vmatprep.mubr.f32.mxu0 0.0
      %3435 = vmatmul.mubr.f32.gmra.mrb[0].mxu0 %v3221
      %v3436 = vpop.f32.mrb[0].mxu0
      %v3437 = vadd.f32 0.0, %v3436
      %v3438 = vpop.f32.mrb[0].mxu0
      %3439 = vmatprep.mubr.f32.mxu0 0.0
      %3440 = vmatmul.mubr.f32.gmra.mrb[0].mxu0 %v3222
      %v3441 = vpop.f32.mrb[0].mxu0
      %v3442 = vadd.f32 0.0, %v3441
      %v3443 = vpop.f32.mrb[0].mxu0
      %3444 = vmatprep.mubr.f32.mxu0 0.0
      %3445 = vmatmul.mubr.f32.gmra.mrb[0].mxu0 %v3223
      %v3446 = vpop.f32.mrb[0].mxu0
      %v3447 = vadd.f32 0.0, %v3446
      %v3448 = vpop.f32.mrb[0].mxu0
      %3449 = vmatprep.mubr.f32.mxu0 0.0
      %3450 = vmatmul.mubr.f32.gmra.mrb[0].mxu0 %v3224
      %v3451 = vpop.f32.mrb[0].mxu0
      %v3452 = vadd.f32 0.0, %v3451
      %v3453 = vpop.f32.mrb[0].mxu0
      %3454 = vmatprep.mubr.f32.mxu0 0.0
      %3455 = vmatmul.mubr.f32.gmra.mrb[0].mxu0 %v3225
      %v3456 = vpop.f32.mrb[0].mxu0
      %v3457 = vadd.f32 0.0, %v3456
      %v3458 = vpop.f32.mrb[0].mxu0
      %3459 = vmatprep.mubr.f32.mxu0 0.0
      %3460 = vmatmul.mubr.f32.gmra.mrb[0].mxu0 %v3226
      %v3461 = vpop.f32.mrb[0].mxu0
      %v3462 = vadd.f32 0.0, %v3461
      %v3463 = vpop.f32.mrb[0].mxu0
      %3464 = vmatprep.mubr.f32.mxu0 0.0
      %3465 = vmatmul.mubr.f32.gmra.mrb[0].mxu0 %v3227
      %v3466 = vpop.f32.mrb[0].mxu0
      %v3467 = vadd.f32 0.0, %v3466
      %v3468 = vpop.f32.mrb[0].mxu0
      %3469 = vmatprep.mubr.f32.mxu0 0.0
      %3470 = vmatmul.mubr.f32.gmra.mrb[0].mxu0 %v3228
      %v3471 = vpop.f32.mrb[0].mxu0
      %v3472 = vadd.f32 0.0, %v3471
      %v3473 = vpop.f32.mrb[0].mxu0
      %3474 = vmatprep.mubr.f32.mxu0 0.0
      %3475 = vmatmul.mubr.f32.gmra.mrb[0].mxu0 %v3229
      %v3476 = vpop.f32.mrb[0].mxu0
      %v3477 = vadd.f32 0.0, %v3476
      %v3478 = vpop.f32.mrb[0].mxu0
      %3479 = vmatprep.mubr.f32.mxu0 0.0
      %3480 = vmatmul.mubr.f32.gmra.mrb[0].mxu0 %v3230
      %v3481 = vpop.f32.mrb[0].mxu0
      %v3482 = vadd.f32 0.0, %v3481
      %v3483 = vpop.f32.mrb[0].mxu0
      %3484 = vmatprep.mubr.f32.mxu0 0.0
      %3485 = vmatmul.mubr.f32.gmra.mrb[0].mxu0 %v3231
      %v3486 = vpop.f32.mrb[0].mxu0
      %v3487 = vadd.f32 0.0, %v3486
      %v3488 = vpop.f32.mrb[0].mxu0
      %3489 = vmatprep.mubr.f32.mxu0 0.0
      %3490 = vmatmul.mubr.f32.gmra.mrb[0].mxu0 %v3232
      %v3491 = vpop.f32.mrb[0].mxu0
      %v3492 = vadd.f32 0.0, %v3491
      %v3493 = vpop.f32.mrb[0].mxu0
      %3494 = vdwg.mxu0
      %v3495 = vadd.f32 %v3161, %v3317
      %v3496 = vadd.f32 %v3162, %v3322
      %v3497 = vadd.f32 %v3163, %v3327
      %v3498 = vadd.f32 %v3164, %v3332
      %v3499 = vadd.f32 %v3165, %v3337
      %v3500 = vadd.f32 %v3166, %v3342
      %v3501 = vadd.f32 %v3167, %v3347
      %v3502 = vadd.f32 %v3168, %v3352
      %v3503 = vadd.f32 %v3169, %v3357
      %v3504 = vadd.f32 %v3170, %v3362
      %v3505 = vadd.f32 %v3171, %v3367
      %v3506 = vadd.f32 %v3172, %v3372
      %v3507 = vadd.f32 %v3173, %v3377
      %v3508 = vadd.f32 %v3174, %v3382
      %v3509 = vadd.f32 %v3175, %v3387
      %v3510 = vadd.f32 %v3176, %v3392
      %v3511 = vadd.f32 %v3177, %v3397
      %v3512 = vadd.f32 %v3178, %v3402
      %v3513 = vadd.f32 %v3179, %v3407
      %v3514 = vadd.f32 %v3180, %v3412
      %v3515 = vadd.f32 %v3181, %v3417
      %v3516 = vadd.f32 %v3182, %v3422
      %v3517 = vadd.f32 %v3183, %v3427
      %v3518 = vadd.f32 %v3184, %v3432
      %v3519 = vadd.f32 %v3185, %v3437
      %v3520 = vadd.f32 %v3186, %v3442
      %v3521 = vadd.f32 %v3187, %v3447
      %v3522 = vadd.f32 %v3188, %v3452
      %v3523 = vadd.f32 %v3189, %v3457
      %v3524 = vadd.f32 %v3190, %v3462
      %v3525 = vadd.f32 %v3191, %v3467
      %v3526 = vadd.f32 %v3192, %v3472
      %v3527 = vadd.f32 %v3193, %v3477
      %v3528 = vadd.f32 %v3194, %v3482
      %v3529 = vadd.f32 %v3195, %v3487
      %v3530 = vadd.f32 %v3196, %v3492
      %3531 = vst [vmem:[#allocation3] sm:$0xff] %v3495
      %3532 = vst [vmem:[#allocation3 + $0x8] sm:$0xff] %v3496
      %3533 = vst [vmem:[#allocation3 + $0x10] sm:$0xff] %v3497
      %3534 = vst [vmem:[#allocation3 + $0x18] sm:$0xff] %v3498
      %3535 = vst [vmem:[#allocation3 + $0x20] sm:$0xff] %v3499
      %3536 = vst [vmem:[#allocation3 + $0x28] sm:$0xff] %v3500
      %3537 = vst [vmem:[#allocation3 + $0x30] sm:$0xff] %v3501
      %3538 = vst [vmem:[#allocation3 + $0x38] sm:$0xff] %v3502
      %3539 = vst [vmem:[#allocation3 + $0x40] sm:$0xff] %v3503
      %3540 = vst [vmem:[#allocation3 + $0x48] sm:$0xff] %v3504
      %3541 = vst [vmem:[#allocation3 + $0x50] sm:$0xff] %v3505
      %3542 = vst [vmem:[#allocation3 + $0x58] sm:$0xff] %v3506
      %3543 = vst [vmem:[#allocation3 + $0x60] sm:$0xff] %v3507
      %3544 = vst [vmem:[#allocation3 + $0x68] sm:$0xff] %v3508
      %3545 = vst [vmem:[#allocation3 + $0x70] sm:$0xff] %v3509
      %3546 = vst [vmem:[#allocation3 + $0x78] sm:$0xff] %v3510
      %3547 = vst [vmem:[#allocation3 + $0x80] sm:$0xff] %v3511
      %3548 = vst [vmem:[#allocation3 + $0x88] sm:$0xff] %v3512
      %3549 = vst [vmem:[#allocation3 + $0x90] sm:$0xff] %v3513
      %3550 = vst [vmem:[#allocation3 + $0x98] sm:$0xff] %v3514
      %3551 = vst [vmem:[#allocation3 + $0xa0] sm:$0xff] %v3515
      %3552 = vst [vmem:[#allocation3 + $0xa8] sm:$0xff] %v3516
      %3553 = vst [vmem:[#allocation3 + $0xb0] sm:$0xff] %v3517
      %3554 = vst [vmem:[#allocation3 + $0xb8] sm:$0xff] %v3518
      %3555 = vst [vmem:[#allocation3 + $0xc0] sm:$0xff] %v3519
      %3556 = vst [vmem:[#allocation3 + $0xc8] sm:$0xff] %v3520
      %3557 = vst [vmem:[#allocation3 + $0xd0] sm:$0xff] %v3521
      %3558 = vst [vmem:[#allocation3 + $0xd8] sm:$0xff] %v3522
      %3559 = vst [vmem:[#allocation3 + $0xe0] sm:$0xff] %v3523
      %3560 = vst [vmem:[#allocation3 + $0xe8] sm:$0xff] %v3524
      %3561 = vst [vmem:[#allocation3 + $0xf0] sm:$0xff] %v3525
      %3562 = vst [vmem:[#allocation3 + $0xf8] sm:$0xff] %v3526
      %3563 = vst [vmem:[#allocation3 + $0x100] sm:$0xff] %v3527
      %3564 = vst [vmem:[#allocation3 + $0x108] sm:$0xff] %v3528
      %3565 = vst [vmem:[#allocation3 + $0x110] sm:$0xff] %v3529
      %3566 = vst [vmem:[#allocation3 + $0x118] sm:$0xff] %v3530
      %v3567 = vld [vmem:[#allocation3] sm:$0xff]
      %v3568 = vld [vmem:[#allocation3 + $0x8] sm:$0xff]
      %v3569 = vld [vmem:[#allocation3 + $0x10] sm:$0xff]
      %v3570 = vld [vmem:[#allocation3 + $0x18] sm:$0xff]
      %v3571 = vld [vmem:[#allocation3 + $0x20] sm:$0xff]
      %v3572 = vld [vmem:[#allocation3 + $0x28] sm:$0xff]
      %v3573 = vld [vmem:[#allocation3 + $0x30] sm:$0xff]
      %v3574 = vld [vmem:[#allocation3 + $0x38] sm:$0xff]
      %v3575 = vld [vmem:[#allocation3 + $0x40] sm:$0xff]
      %v3576 = vld [vmem:[#allocation3 + $0x48] sm:$0xff]
      %v3577 = vld [vmem:[#allocation3 + $0x50] sm:$0xff]
      %v3578 = vld [vmem:[#allocation3 + $0x58] sm:$0xff]
      %v3579 = vld [vmem:[#allocation3 + $0x60] sm:$0xff]
      %v3580 = vld [vmem:[#allocation3 + $0x68] sm:$0xff]
      %v3581 = vld [vmem:[#allocation3 + $0x70] sm:$0xff]
      %v3582 = vld [vmem:[#allocation3 + $0x78] sm:$0xff]
      %v3583 = vld [vmem:[#allocation3 + $0x80] sm:$0xff]
      %v3584 = vld [vmem:[#allocation3 + $0x88] sm:$0xff]
      %v3585 = vld [vmem:[#allocation3 + $0x90] sm:$0xff]
      %v3586 = vld [vmem:[#allocation3 + $0x98] sm:$0xff]
      %v3587 = vld [vmem:[#allocation3 + $0xa0] sm:$0xff]
      %v3588 = vld [vmem:[#allocation3 + $0xa8] sm:$0xff]
      %v3589 = vld [vmem:[#allocation3 + $0xb0] sm:$0xff]
      %v3590 = vld [vmem:[#allocation3 + $0xb8] sm:$0xff]
      %v3591 = vld [vmem:[#allocation3 + $0xc0] sm:$0xff]
      %v3592 = vld [vmem:[#allocation3 + $0xc8] sm:$0xff]
      %v3593 = vld [vmem:[#allocation3 + $0xd0] sm:$0xff]
      %v3594 = vld [vmem:[#allocation3 + $0xd8] sm:$0xff]
      %v3595 = vld [vmem:[#allocation3 + $0xe0] sm:$0xff]
      %v3596 = vld [vmem:[#allocation3 + $0xe8] sm:$0xff]
      %v3597 = vld [vmem:[#allocation3 + $0xf0] sm:$0xff]
      %v3598 = vld [vmem:[#allocation3 + $0xf8] sm:$0xff]
      %v3599 = vld [vmem:[#allocation3 + $0x100] sm:$0xff]
      %v3600 = vld [vmem:[#allocation3 + $0x108] sm:$0xff]
      %v3601 = vld [vmem:[#allocation3 + $0x110] sm:$0xff]
      %v3602 = vld [vmem:[#allocation3 + $0x118] sm:$0xff]
      %v3603 = vld [vmem:[#allocation2 + $0x26] sm:$0xff]
      %v3604 = vld [vmem:[#allocation2 + $0x2e] sm:$0xff]
      %v3605 = vld [vmem:[#allocation2 + $0x36] sm:$0xff]
      %v3606 = vld [vmem:[#allocation2 + $0x3e] sm:$0xff]
      %v3607 = vld [vmem:[#allocation2 + $0x46] sm:$0xff]
      %v3608 = vld [vmem:[#allocation2 + $0x4e] sm:$0xff]
      %v3609 = vld [vmem:[#allocation2 + $0x56] sm:$0xff]
      %v3610 = vld [vmem:[#allocation2 + $0x5e] sm:$0xff]
      %v3611 = vld [vmem:[#allocation2 + $0x66] sm:$0xff]
      %v3612 = vld [vmem:[#allocation2 + $0x6e] sm:$0xff]
      %v3613 = vld [vmem:[#allocation2 + $0x76] sm:$0xff]
      %v3614 = vld [vmem:[#allocation2 + $0x7e] sm:$0xff]
      %v3615 = vld [vmem:[#allocation2 + $0x86] sm:$0xff]
      %v3616 = vld [vmem:[#allocation2 + $0x8e] sm:$0xff]
      %v3617 = vld [vmem:[#allocation2 + $0x96] sm:$0xff]
      %v3618 = vld [vmem:[#allocation2 + $0x9e] sm:$0xff]
      %v3619 = vld [vmem:[#allocation2 + $0xa6] sm:$0xff]
      %v3620 = vld [vmem:[#allocation2 + $0xae] sm:$0xff]
      %v3621 = vld [vmem:[#allocation2 + $0xb6] sm:$0xff]
      %v3622 = vld [vmem:[#allocation2 + $0xbe] sm:$0xff]
      %v3623 = vld [vmem:[#allocation2 + $0xc6] sm:$0xff]
      %v3624 = vld [vmem:[#allocation2 + $0xce] sm:$0xff]
      %v3625 = vld [vmem:[#allocation2 + $0xd6] sm:$0xff]
      %v3626 = vld [vmem:[#allocation2 + $0xde] sm:$0xff]
      %v3627 = vld [vmem:[#allocation2 + $0xe6] sm:$0xff]
      %v3628 = vld [vmem:[#allocation2 + $0xee] sm:$0xff]
      %v3629 = vld [vmem:[#allocation2 + $0xf6] sm:$0xff]
      %v3630 = vld [vmem:[#allocation2 + $0xfe] sm:$0xff]
      %v3631 = vld [vmem:[#allocation2 + $0x106] sm:$0xff]
      %v3632 = vld [vmem:[#allocation2 + $0x10e] sm:$0xff]
      %v3633 = vld [vmem:[#allocation2 + $0x116] sm:$0xff]
      %v3634 = vld [vmem:[#allocation2 + $0x11e] sm:$0xff]
      %v3635 = vld [vmem:[#allocation2 + $0x126] sm:$0xff]
      %v3636 = vld [vmem:[#allocation2 + $0x12e] sm:$0xff]
      %v3637 = vld [vmem:[#allocation2 + $0x136] sm:$0xff]
      %v3638 = vld [vmem:[#allocation2 + $0x13e] sm:$0xff]
      %s3639 = scalar_lea.vmem %s1, 1024
      %v3640 = vld [vmem:[%s3639] sm:$0xff]
      %v3641 = vld [vmem:[%s3639 + $0x8] sm:$0xff]
      %v3642 = vld [vmem:[%s3639 + $0x10] sm:$0xff]
      %v3643 = vld [vmem:[%s3639 + $0x18] sm:$0xff]
      %v3644 = vld [vmem:[%s3639 + $0x20] sm:$0xff]
      %v3645 = vld [vmem:[%s3639 + $0x28] sm:$0xff]
      %v3646 = vld [vmem:[%s3639 + $0x30] sm:$0xff]
      %v3647 = vld [vmem:[%s3639 + $0x38] sm:$0xff]
      %v3648 = vld [vmem:[%s3639 + $0x40] sm:$0xff]
      %v3649 = vld [vmem:[%s3639 + $0x48] sm:$0xff]
      %v3650 = vld [vmem:[%s3639 + $0x50] sm:$0xff]
      %v3651 = vld [vmem:[%s3639 + $0x58] sm:$0xff]
      %v3652 = vld [vmem:[%s3639 + $0x60] sm:$0xff]
      %v3653 = vld [vmem:[%s3639 + $0x68] sm:$0xff]
      %v3654 = vld [vmem:[%s3639 + $0x70] sm:$0xff]
      %v3655 = vld [vmem:[%s3639 + $0x78] sm:$0xff]
      %3656 = vmatprep.subr.mxu0 0.0
      %3657 = vmatpush1.msra.mxu0 %v3640
      %3658 = vmatprep.subr.mxu0 0.0
      %3659 = vmatpush1.msra.mxu0 %v3641
      %3660 = vmatprep.subr.mxu0 0.0
      %3661 = vmatpush1.msra.mxu0 %v3642
      %3662 = vmatprep.subr.mxu0 0.0
      %3663 = vmatpush1.msra.mxu0 %v3643
      %3664 = vmatprep.subr.mxu0 0.0
      %3665 = vmatpush1.msra.mxu0 %v3644
      %3666 = vmatprep.subr.mxu0 0.0
      %3667 = vmatpush1.msra.mxu0 %v3645
      %3668 = vmatprep.subr.mxu0 0.0
      %3669 = vmatpush1.msra.mxu0 %v3646
      %3670 = vmatprep.subr.mxu0 0.0
      %3671 = vmatpush1.msra.mxu0 %v3647
      %3672 = vmatprep.subr.mxu0 0.0
      %3673 = vmatpush1.msra.mxu0 %v3648
      %3674 = vmatprep.subr.mxu0 0.0
      %3675 = vmatpush1.msra.mxu0 %v3649
      %3676 = vmatprep.subr.mxu0 0.0
      %3677 = vmatpush1.msra.mxu0 %v3650
      %3678 = vmatprep.subr.mxu0 0.0
      %3679 = vmatpush1.msra.mxu0 %v3651
      %3680 = vmatprep.subr.mxu0 0.0
      %3681 = vmatpush1.msra.mxu0 %v3652
      %3682 = vmatprep.subr.mxu0 0.0
      %3683 = vmatpush1.msra.mxu0 %v3653
      %3684 = vmatprep.subr.mxu0 0.0
      %3685 = vmatpush1.msra.mxu0 %v3654
      %3686 = vmatprep.subr.mxu0 0.0
      %3687 = vmatpush1.msra.mxu0 %v3655
      %3688 = vmatprep.subr.mxu0 0.0
      %3689 = vmatpush1.msra.mxu0 0.0
      %3690 = vmatprep.subr.mxu0 0.0
      %3691 = vmatpush1.msra.mxu0 0.0
      %3692 = vmatprep.subr.mxu0 0.0
      %3693 = vmatpush1.msra.mxu0 0.0
      %3694 = vmatprep.subr.mxu0 0.0
      %3695 = vmatpush1.msra.mxu0 0.0
      %3696 = vmatprep.subr.mxu0 0.0
      %3697 = vmatpush1.msra.mxu0 0.0
      %3698 = vmatprep.subr.mxu0 0.0
      %3699 = vmatpush1.msra.mxu0 0.0
      %3700 = vmatprep.subr.mxu0 0.0
      %3701 = vmatpush1.msra.mxu0 0.0
      %3702 = vmatprep.subr.mxu0 0.0
      %3703 = vmatpush1.msra.mxu0 0.0
      %3704 = vmatprep.subr.mxu0 0.0
      %3705 = vmatpush1.msra.mxu0 0.0
      %3706 = vmatprep.subr.mxu0 0.0
      %3707 = vmatpush1.msra.mxu0 0.0
      %3708 = vmatprep.subr.mxu0 0.0
      %3709 = vmatpush1.msra.mxu0 0.0
      %3710 = vmatprep.subr.mxu0 0.0
      %3711 = vmatpush1.msra.mxu0 0.0
      %3712 = vmatprep.subr.mxu0 0.0
      %3713 = vmatpush1.msra.mxu0 0.0
      %3714 = vmatprep.subr.mxu0 0.0
      %3715 = vmatpush1.msra.mxu0 0.0
      %3716 = vmatprep.subr.mxu0 0.0
      %3717 = vmatpush1.msra.mxu0 0.0
      %3718 = vmatprep.subr.mxu0 0.0
      %3719 = vmatpush1.msra.mxu0 0.0
      %3720 = vmatprep.mubr.f32.mxu0 0.0
      %3721 = vmatmul.mubr.f32.gmra.mrb[0].mxu0 %v3603
      %v3722 = vpop.f32.mrb[0].mxu0
      %v3723 = vadd.f32 0.0, %v3722
      %v3724 = vpop.f32.mrb[0].mxu0
      %3725 = vmatprep.mubr.f32.mxu0 0.0
      %3726 = vmatmul.mubr.f32.gmra.mrb[0].mxu0 %v3604
      %v3727 = vpop.f32.mrb[0].mxu0
      %v3728 = vadd.f32 0.0, %v3727
      %v3729 = vpop.f32.mrb[0].mxu0
      %3730 = vmatprep.mubr.f32.mxu0 0.0
      %3731 = vmatmul.mubr.f32.gmra.mrb[0].mxu0 %v3605
      %v3732 = vpop.f32.mrb[0].mxu0
      %v3733 = vadd.f32 0.0, %v3732
      %v3734 = vpop.f32.mrb[0].mxu0
      %3735 = vmatprep.mubr.f32.mxu0 0.0
      %3736 = vmatmul.mubr.f32.gmra.mrb[0].mxu0 %v3606
      %v3737 = vpop.f32.mrb[0].mxu0
      %v3738 = vadd.f32 0.0, %v3737
      %v3739 = vpop.f32.mrb[0].mxu0
      %3740 = vmatprep.mubr.f32.mxu0 0.0
      %3741 = vmatmul.mubr.f32.gmra.mrb[0].mxu0 %v3607
      %v3742 = vpop.f32.mrb[0].mxu0
      %v3743 = vadd.f32 0.0, %v3742
      %v3744 = vpop.f32.mrb[0].mxu0
      %3745 = vmatprep.mubr.f32.mxu0 0.0
      %3746 = vmatmul.mubr.f32.gmra.mrb[0].mxu0 %v3608
      %v3747 = vpop.f32.mrb[0].mxu0
      %v3748 = vadd.f32 0.0, %v3747
      %v3749 = vpop.f32.mrb[0].mxu0
      %3750 = vmatprep.mubr.f32.mxu0 0.0
      %3751 = vmatmul.mubr.f32.gmra.mrb[0].mxu0 %v3609
      %v3752 = vpop.f32.mrb[0].mxu0
      %v3753 = vadd.f32 0.0, %v3752
      %v3754 = vpop.f32.mrb[0].mxu0
      %3755 = vmatprep.mubr.f32.mxu0 0.0
      %3756 = vmatmul.mubr.f32.gmra.mrb[0].mxu0 %v3610
      %v3757 = vpop.f32.mrb[0].mxu0
      %v3758 = vadd.f32 0.0, %v3757
      %v3759 = vpop.f32.mrb[0].mxu0
      %3760 = vmatprep.mubr.f32.mxu0 0.0
      %3761 = vmatmul.mubr.f32.gmra.mrb[0].mxu0 %v3611
      %v3762 = vpop.f32.mrb[0].mxu0
      %v3763 = vadd.f32 0.0, %v3762
      %v3764 = vpop.f32.mrb[0].mxu0
      %3765 = vmatprep.mubr.f32.mxu0 0.0
      %3766 = vmatmul.mubr.f32.gmra.mrb[0].mxu0 %v3612
      %v3767 = vpop.f32.mrb[0].mxu0
      %v3768 = vadd.f32 0.0, %v3767
      %v3769 = vpop.f32.mrb[0].mxu0
      %3770 = vmatprep.mubr.f32.mxu0 0.0
      %3771 = vmatmul.mubr.f32.gmra.mrb[0].mxu0 %v3613
      %v3772 = vpop.f32.mrb[0].mxu0
      %v3773 = vadd.f32 0.0, %v3772
      %v3774 = vpop.f32.mrb[0].mxu0
      %3775 = vmatprep.mubr.f32.mxu0 0.0
      %3776 = vmatmul.mubr.f32.gmra.mrb[0].mxu0 %v3614
      %v3777 = vpop.f32.mrb[0].mxu0
      %v3778 = vadd.f32 0.0, %v3777
      %v3779 = vpop.f32.mrb[0].mxu0
      %3780 = vmatprep.mubr.f32.mxu0 0.0
      %3781 = vmatmul.mubr.f32.gmra.mrb[0].mxu0 %v3615
      %v3782 = vpop.f32.mrb[0].mxu0
      %v3783 = vadd.f32 0.0, %v3782
      %v3784 = vpop.f32.mrb[0].mxu0
      %3785 = vmatprep.mubr.f32.mxu0 0.0
      %3786 = vmatmul.mubr.f32.gmra.mrb[0].mxu0 %v3616
      %v3787 = vpop.f32.mrb[0].mxu0
      %v3788 = vadd.f32 0.0, %v3787
      %v3789 = vpop.f32.mrb[0].mxu0
      %3790 = vmatprep.mubr.f32.mxu0 0.0
      %3791 = vmatmul.mubr.f32.gmra.mrb[0].mxu0 %v3617
      %v3792 = vpop.f32.mrb[0].mxu0
      %v3793 = vadd.f32 0.0, %v3792
      %v3794 = vpop.f32.mrb[0].mxu0
      %3795 = vmatprep.mubr.f32.mxu0 0.0
      %3796 = vmatmul.mubr.f32.gmra.mrb[0].mxu0 %v3618
      %v3797 = vpop.f32.mrb[0].mxu0
      %v3798 = vadd.f32 0.0, %v3797
      %v3799 = vpop.f32.mrb[0].mxu0
      %3800 = vmatprep.mubr.f32.mxu0 0.0
      %3801 = vmatmul.mubr.f32.gmra.mrb[0].mxu0 %v3619
      %v3802 = vpop.f32.mrb[0].mxu0
      %v3803 = vadd.f32 0.0, %v3802
      %v3804 = vpop.f32.mrb[0].mxu0
      %3805 = vmatprep.mubr.f32.mxu0 0.0
      %3806 = vmatmul.mubr.f32.gmra.mrb[0].mxu0 %v3620
      %v3807 = vpop.f32.mrb[0].mxu0
      %v3808 = vadd.f32 0.0, %v3807
      %v3809 = vpop.f32.mrb[0].mxu0
      %3810 = vmatprep.mubr.f32.mxu0 0.0
      %3811 = vmatmul.mubr.f32.gmra.mrb[0].mxu0 %v3621
      %v3812 = vpop.f32.mrb[0].mxu0
      %v3813 = vadd.f32 0.0, %v3812
      %v3814 = vpop.f32.mrb[0].mxu0
      %3815 = vmatprep.mubr.f32.mxu0 0.0
      %3816 = vmatmul.mubr.f32.gmra.mrb[0].mxu0 %v3622
      %v3817 = vpop.f32.mrb[0].mxu0
      %v3818 = vadd.f32 0.0, %v3817
      %v3819 = vpop.f32.mrb[0].mxu0
      %3820 = vmatprep.mubr.f32.mxu0 0.0
      %3821 = vmatmul.mubr.f32.gmra.mrb[0].mxu0 %v3623
      %v3822 = vpop.f32.mrb[0].mxu0
      %v3823 = vadd.f32 0.0, %v3822
      %v3824 = vpop.f32.mrb[0].mxu0
      %3825 = vmatprep.mubr.f32.mxu0 0.0
      %3826 = vmatmul.mubr.f32.gmra.mrb[0].mxu0 %v3624
      %v3827 = vpop.f32.mrb[0].mxu0
      %v3828 = vadd.f32 0.0, %v3827
      %v3829 = vpop.f32.mrb[0].mxu0
      %3830 = vmatprep.mubr.f32.mxu0 0.0
      %3831 = vmatmul.mubr.f32.gmra.mrb[0].mxu0 %v3625
      %v3832 = vpop.f32.mrb[0].mxu0
      %v3833 = vadd.f32 0.0, %v3832
      %v3834 = vpop.f32.mrb[0].mxu0
      %3835 = vmatprep.mubr.f32.mxu0 0.0
      %3836 = vmatmul.mubr.f32.gmra.mrb[0].mxu0 %v3626
      %v3837 = vpop.f32.mrb[0].mxu0
      %v3838 = vadd.f32 0.0, %v3837
      %v3839 = vpop.f32.mrb[0].mxu0
      %3840 = vmatprep.mubr.f32.mxu0 0.0
      %3841 = vmatmul.mubr.f32.gmra.mrb[0].mxu0 %v3627
      %v3842 = vpop.f32.mrb[0].mxu0
      %v3843 = vadd.f32 0.0, %v3842
      %v3844 = vpop.f32.mrb[0].mxu0
      %3845 = vmatprep.mubr.f32.mxu0 0.0
      %3846 = vmatmul.mubr.f32.gmra.mrb[0].mxu0 %v3628
      %v3847 = vpop.f32.mrb[0].mxu0
      %v3848 = vadd.f32 0.0, %v3847
      %v3849 = vpop.f32.mrb[0].mxu0
      %3850 = vmatprep.mubr.f32.mxu0 0.0
      %3851 = vmatmul.mubr.f32.gmra.mrb[0].mxu0 %v3629
      %v3852 = vpop.f32.mrb[0].mxu0
      %v3853 = vadd.f32 0.0, %v3852
      %v3854 = vpop.f32.mrb[0].mxu0
      %3855 = vmatprep.mubr.f32.mxu0 0.0
      %3856 = vmatmul.mubr.f32.gmra.mrb[0].mxu0 %v3630
      %v3857 = vpop.f32.mrb[0].mxu0
      %v3858 = vadd.f32 0.0, %v3857
      %v3859 = vpop.f32.mrb[0].mxu0
      %3860 = vmatprep.mubr.f32.mxu0 0.0
      %3861 = vmatmul.mubr.f32.gmra.mrb[0].mxu0 %v3631
      %v3862 = vpop.f32.mrb[0].mxu0
      %v3863 = vadd.f32 0.0, %v3862
      %v3864 = vpop.f32.mrb[0].mxu0
      %3865 = vmatprep.mubr.f32.mxu0 0.0
      %3866 = vmatmul.mubr.f32.gmra.mrb[0].mxu0 %v3632
      %v3867 = vpop.f32.mrb[0].mxu0
      %v3868 = vadd.f32 0.0, %v3867
      %v3869 = vpop.f32.mrb[0].mxu0
      %3870 = vmatprep.mubr.f32.mxu0 0.0
      %3871 = vmatmul.mubr.f32.gmra.mrb[0].mxu0 %v3633
      %v3872 = vpop.f32.mrb[0].mxu0
      %v3873 = vadd.f32 0.0, %v3872
      %v3874 = vpop.f32.mrb[0].mxu0
      %3875 = vmatprep.mubr.f32.mxu0 0.0
      %3876 = vmatmul.mubr.f32.gmra.mrb[0].mxu0 %v3634
      %v3877 = vpop.f32.mrb[0].mxu0
      %v3878 = vadd.f32 0.0, %v3877
      %v3879 = vpop.f32.mrb[0].mxu0
      %3880 = vmatprep.mubr.f32.mxu0 0.0
      %3881 = vmatmul.mubr.f32.gmra.mrb[0].mxu0 %v3635
      %v3882 = vpop.f32.mrb[0].mxu0
      %v3883 = vadd.f32 0.0, %v3882
      %v3884 = vpop.f32.mrb[0].mxu0
      %3885 = vmatprep.mubr.f32.mxu0 0.0
      %3886 = vmatmul.mubr.f32.gmra.mrb[0].mxu0 %v3636
      %v3887 = vpop.f32.mrb[0].mxu0
      %v3888 = vadd.f32 0.0, %v3887
      %v3889 = vpop.f32.mrb[0].mxu0
      %3890 = vmatprep.mubr.f32.mxu0 0.0
      %3891 = vmatmul.mubr.f32.gmra.mrb[0].mxu0 %v3637
      %v3892 = vpop.f32.mrb[0].mxu0
      %v3893 = vadd.f32 0.0, %v3892
      %v3894 = vpop.f32.mrb[0].mxu0
      %3895 = vmatprep.mubr.f32.mxu0 0.0
      %3896 = vmatmul.mubr.f32.gmra.mrb[0].mxu0 %v3638
      %v3897 = vpop.f32.mrb[0].mxu0
      %v3898 = vadd.f32 0.0, %v3897
      %v3899 = vpop.f32.mrb[0].mxu0
      %3900 = vdwg.mxu0
      %v3901 = vadd.f32 %v3567, %v3723
      %v3902 = vadd.f32 %v3568, %v3728
      %v3903 = vadd.f32 %v3569, %v3733
      %v3904 = vadd.f32 %v3570, %v3738
      %v3905 = vadd.f32 %v3571, %v3743
      %v3906 = vadd.f32 %v3572, %v3748
      %v3907 = vadd.f32 %v3573, %v3753
      %v3908 = vadd.f32 %v3574, %v3758
      %v3909 = vadd.f32 %v3575, %v3763
      %v3910 = vadd.f32 %v3576, %v3768
      %v3911 = vadd.f32 %v3577, %v3773
      %v3912 = vadd.f32 %v3578, %v3778
      %v3913 = vadd.f32 %v3579, %v3783
      %v3914 = vadd.f32 %v3580, %v3788
      %v3915 = vadd.f32 %v3581, %v3793
      %v3916 = vadd.f32 %v3582, %v3798
      %v3917 = vadd.f32 %v3583, %v3803
      %v3918 = vadd.f32 %v3584, %v3808
      %v3919 = vadd.f32 %v3585, %v3813
      %v3920 = vadd.f32 %v3586, %v3818
      %v3921 = vadd.f32 %v3587, %v3823
      %v3922 = vadd.f32 %v3588, %v3828
      %v3923 = vadd.f32 %v3589, %v3833
      %v3924 = vadd.f32 %v3590, %v3838
      %v3925 = vadd.f32 %v3591, %v3843
      %v3926 = vadd.f32 %v3592, %v3848
      %v3927 = vadd.f32 %v3593, %v3853
      %v3928 = vadd.f32 %v3594, %v3858
      %v3929 = vadd.f32 %v3595, %v3863
      %v3930 = vadd.f32 %v3596, %v3868
      %v3931 = vadd.f32 %v3597, %v3873
      %v3932 = vadd.f32 %v3598, %v3878
      %v3933 = vadd.f32 %v3599, %v3883
      %v3934 = vadd.f32 %v3600, %v3888
      %v3935 = vadd.f32 %v3601, %v3893
      %v3936 = vadd.f32 %v3602, %v3898
      %3937 = vst [vmem:[#allocation3] sm:$0xff] %v3901
      %3938 = vst [vmem:[#allocation3 + $0x8] sm:$0xff] %v3902
      %3939 = vst [vmem:[#allocation3 + $0x10] sm:$0xff] %v3903
      %3940 = vst [vmem:[#allocation3 + $0x18] sm:$0xff] %v3904
      %3941 = vst [vmem:[#allocation3 + $0x20] sm:$0xff] %v3905
      %3942 = vst [vmem:[#allocation3 + $0x28] sm:$0xff] %v3906
      %3943 = vst [vmem:[#allocation3 + $0x30] sm:$0xff] %v3907
      %3944 = vst [vmem:[#allocation3 + $0x38] sm:$0xff] %v3908
      %3945 = vst [vmem:[#allocation3 + $0x40] sm:$0xff] %v3909
      %3946 = vst [vmem:[#allocation3 + $0x48] sm:$0xff] %v3910
      %3947 = vst [vmem:[#allocation3 + $0x50] sm:$0xff] %v3911
      %3948 = vst [vmem:[#allocation3 + $0x58] sm:$0xff] %v3912
      %3949 = vst [vmem:[#allocation3 + $0x60] sm:$0xff] %v3913
      %3950 = vst [vmem:[#allocation3 + $0x68] sm:$0xff] %v3914
      %3951 = vst [vmem:[#allocation3 + $0x70] sm:$0xff] %v3915
      %3952 = vst [vmem:[#allocation3 + $0x78] sm:$0xff] %v3916
      %3953 = vst [vmem:[#allocation3 + $0x80] sm:$0xff] %v3917
      %3954 = vst [vmem:[#allocation3 + $0x88] sm:$0xff] %v3918
      %3955 = vst [vmem:[#allocation3 + $0x90] sm:$0xff] %v3919
      %3956 = vst [vmem:[#allocation3 + $0x98] sm:$0xff] %v3920
      %3957 = vst [vmem:[#allocation3 + $0xa0] sm:$0xff] %v3921
      %3958 = vst [vmem:[#allocation3 + $0xa8] sm:$0xff] %v3922
      %3959 = vst [vmem:[#allocation3 + $0xb0] sm:$0xff] %v3923
      %3960 = vst [vmem:[#allocation3 + $0xb8] sm:$0xff] %v3924
      %3961 = vst [vmem:[#allocation3 + $0xc0] sm:$0xff] %v3925
      %3962 = vst [vmem:[#allocation3 + $0xc8] sm:$0xff] %v3926
      %3963 = vst [vmem:[#allocation3 + $0xd0] sm:$0xff] %v3927
      %3964 = vst [vmem:[#allocation3 + $0xd8] sm:$0xff] %v3928
      %3965 = vst [vmem:[#allocation3 + $0xe0] sm:$0xff] %v3929
      %3966 = vst [vmem:[#allocation3 + $0xe8] sm:$0xff] %v3930
      %3967 = vst [vmem:[#allocation3 + $0xf0] sm:$0xff] %v3931
      %3968 = vst [vmem:[#allocation3 + $0xf8] sm:$0xff] %v3932
      %3969 = vst [vmem:[#allocation3 + $0x100] sm:$0xff] %v3933
      %3970 = vst [vmem:[#allocation3 + $0x108] sm:$0xff] %v3934
      %3971 = vst [vmem:[#allocation3 + $0x110] sm:$0xff] %v3935
      %3972 = vst [vmem:[#allocation3 + $0x118] sm:$0xff] %v3936
      %v3973 = vld [vmem:[#allocation3] sm:$0xff]
      %v3974 = vld [vmem:[#allocation3 + $0x8] sm:$0xff]
      %v3975 = vld [vmem:[#allocation3 + $0x10] sm:$0xff]
      %v3976 = vld [vmem:[#allocation3 + $0x18] sm:$0xff]
      %v3977 = vld [vmem:[#allocation3 + $0x20] sm:$0xff]
      %v3978 = vld [vmem:[#allocation3 + $0x28] sm:$0xff]
      %v3979 = vld [vmem:[#allocation3 + $0x30] sm:$0xff]
      %v3980 = vld [vmem:[#allocation3 + $0x38] sm:$0xff]
      %v3981 = vld [vmem:[#allocation3 + $0x40] sm:$0xff]
      %v3982 = vld [vmem:[#allocation3 + $0x48] sm:$0xff]
      %v3983 = vld [vmem:[#allocation3 + $0x50] sm:$0xff]
      %v3984 = vld [vmem:[#allocation3 + $0x58] sm:$0xff]
      %v3985 = vld [vmem:[#allocation3 + $0x60] sm:$0xff]
      %v3986 = vld [vmem:[#allocation3 + $0x68] sm:$0xff]
      %v3987 = vld [vmem:[#allocation3 + $0x70] sm:$0xff]
      %v3988 = vld [vmem:[#allocation3 + $0x78] sm:$0xff]
      %v3989 = vld [vmem:[#allocation3 + $0x80] sm:$0xff]
      %v3990 = vld [vmem:[#allocation3 + $0x88] sm:$0xff]
      %v3991 = vld [vmem:[#allocation3 + $0x90] sm:$0xff]
      %v3992 = vld [vmem:[#allocation3 + $0x98] sm:$0xff]
      %v3993 = vld [vmem:[#allocation3 + $0xa0] sm:$0xff]
      %v3994 = vld [vmem:[#allocation3 + $0xa8] sm:$0xff]
      %v3995 = vld [vmem:[#allocation3 + $0xb0] sm:$0xff]
      %v3996 = vld [vmem:[#allocation3 + $0xb8] sm:$0xff]
      %v3997 = vld [vmem:[#allocation3 + $0xc0] sm:$0xff]
      %v3998 = vld [vmem:[#allocation3 + $0xc8] sm:$0xff]
      %v3999 = vld [vmem:[#allocation3 + $0xd0] sm:$0xff]
      %v4000 = vld [vmem:[#allocation3 + $0xd8] sm:$0xff]
      %v4001 = vld [vmem:[#allocation3 + $0xe0] sm:$0xff]
      %v4002 = vld [vmem:[#allocation3 + $0xe8] sm:$0xff]
      %v4003 = vld [vmem:[#allocation3 + $0xf0] sm:$0xff]
      %v4004 = vld [vmem:[#allocation3 + $0xf8] sm:$0xff]
      %v4005 = vld [vmem:[#allocation3 + $0x100] sm:$0xff]
      %v4006 = vld [vmem:[#allocation3 + $0x108] sm:$0xff]
      %v4007 = vld [vmem:[#allocation3 + $0x110] sm:$0xff]
      %v4008 = vld [vmem:[#allocation3 + $0x118] sm:$0xff]
      %v4009 = vlaneseq
      %v4010 = vshrl.u32 %v4009, 7
      %v4011 = vadd.s32 %v4010, 8
      %v4012 = vadd.s32 %v4010, 16
      %v4013 = vadd.s32 %v4010, 24
      %v4014 = vadd.s32 %v4010, 32
      %v4015 = vadd.s32 %v4010, 40
      %v4016 = vadd.s32 %v4010, 48
      %v4017 = vadd.s32 %v4010, 56
      %v4018 = vadd.s32 %v4010, 64
      %v4019 = vadd.s32 %v4010, 72
      %v4020 = vadd.s32 %v4010, 80
      %v4021 = vadd.s32 %v4010, 88
      %v4022 = vadd.s32 %v4010, 96
      %v4023 = vadd.s32 %v4010, 104
      %v4024 = vadd.s32 %v4010, 112
      %v4025 = vadd.s32 %v4010, 120
      %v4026 = vadd.s32 %v4010, 128
      %v4027 = vadd.s32 %v4010, 136
      %v4028 = vadd.s32 %v4010, 144
      %v4029 = vadd.s32 %v4010, 152
      %v4030 = vadd.s32 %v4010, 160
      %v4031 = vadd.s32 %v4010, 168
      %v4032 = vadd.s32 %v4010, 176
      %v4033 = vadd.s32 %v4010, 184
      %v4034 = vadd.s32 %v4010, 192
      %v4035 = vadd.s32 %v4010, 200
      %v4036 = vadd.s32 %v4010, 208
      %v4037 = vadd.s32 %v4010, 216
      %v4038 = vadd.s32 %v4010, 224
      %v4039 = vadd.s32 %v4010, 232
      %v4040 = vadd.s32 %v4010, 240
      %v4041 = vadd.s32 %v4010, 248
      %v4042 = vadd.s32 %v4010, 256
      %v4043 = vadd.s32 %v4010, 264
      %v4044 = vadd.s32 %v4010, 272
      %v4045 = vadd.s32 %v4010, 280
      %vm4046 = vcmp.lt.s32.totalorder %v4010, 0
      %v4047 = vsub.s32 0, %v4010
      %v4048 = vsel %vm4046, %v4047, %v4010
      %v4049 = vmul.u32.u64.compose %v4048, 3817748708
      %v4050 = vextract.low.u32 %v4049
      %v4051 = vextract.high.u32 %v4049
      %v4052 = vshrl.u32 %v4051, 4
      %v4053 = vmul.u32 %v4052, 18
      %v4054 = vsub.s32 %v4048, %v4053
      %v4055 = vsub.s32 0, %v4054
      %v4056 = vsel %vm4046, %v4055, %v4054
      %vm4057 = vcmp.lt.s32.totalorder %v4011, 0
      %v4058 = vsub.s32 0, %v4011
      %v4059 = vsel %vm4057, %v4058, %v4011
      %v4060 = vmul.u32.u64.compose %v4059, 3817748708
      %v4061 = vextract.low.u32 %v4060
      %v4062 = vextract.high.u32 %v4060
      %v4063 = vshrl.u32 %v4062, 4
      %v4064 = vmul.u32 %v4063, 18
      %v4065 = vsub.s32 %v4059, %v4064
      %v4066 = vsub.s32 0, %v4065
      %v4067 = vsel %vm4057, %v4066, %v4065
      %vm4068 = vcmp.lt.s32.totalorder %v4012, 0
      %v4069 = vsub.s32 0, %v4012
      %v4070 = vsel %vm4068, %v4069, %v4012
      %v4071 = vmul.u32.u64.compose %v4070, 3817748708
      %v4072 = vextract.low.u32 %v4071
      %v4073 = vextract.high.u32 %v4071
      %v4074 = vshrl.u32 %v4073, 4
      %v4075 = vmul.u32 %v4074, 18
      %v4076 = vsub.s32 %v4070, %v4075
      %v4077 = vsub.s32 0, %v4076
      %v4078 = vsel %vm4068, %v4077, %v4076
      %vm4079 = vcmp.lt.s32.totalorder %v4013, 0
      %v4080 = vsub.s32 0, %v4013
      %v4081 = vsel %vm4079, %v4080, %v4013
      %v4082 = vmul.u32.u64.compose %v4081, 3817748708
      %v4083 = vextract.low.u32 %v4082
      %v4084 = vextract.high.u32 %v4082
      %v4085 = vshrl.u32 %v4084, 4
      %v4086 = vmul.u32 %v4085, 18
      %v4087 = vsub.s32 %v4081, %v4086
      %v4088 = vsub.s32 0, %v4087
      %v4089 = vsel %vm4079, %v4088, %v4087
      %vm4090 = vcmp.lt.s32.totalorder %v4014, 0
      %v4091 = vsub.s32 0, %v4014
      %v4092 = vsel %vm4090, %v4091, %v4014
      %v4093 = vmul.u32.u64.compose %v4092, 3817748708
      %v4094 = vextract.low.u32 %v4093
      %v4095 = vextract.high.u32 %v4093
      %v4096 = vshrl.u32 %v4095, 4
      %v4097 = vmul.u32 %v4096, 18
      %v4098 = vsub.s32 %v4092, %v4097
      %v4099 = vsub.s32 0, %v4098
      %v4100 = vsel %vm4090, %v4099, %v4098
      %vm4101 = vcmp.lt.s32.totalorder %v4015, 0
      %v4102 = vsub.s32 0, %v4015
      %v4103 = vsel %vm4101, %v4102, %v4015
      %v4104 = vmul.u32.u64.compose %v4103, 3817748708
      %v4105 = vextract.low.u32 %v4104
      %v4106 = vextract.high.u32 %v4104
      %v4107 = vshrl.u32 %v4106, 4
      %v4108 = vmul.u32 %v4107, 18
      %v4109 = vsub.s32 %v4103, %v4108
      %v4110 = vsub.s32 0, %v4109
      %v4111 = vsel %vm4101, %v4110, %v4109
      %vm4112 = vcmp.lt.s32.totalorder %v4016, 0
      %v4113 = vsub.s32 0, %v4016
      %v4114 = vsel %vm4112, %v4113, %v4016
      %v4115 = vmul.u32.u64.compose %v4114, 3817748708
      %v4116 = vextract.low.u32 %v4115
      %v4117 = vextract.high.u32 %v4115
      %v4118 = vshrl.u32 %v4117, 4
      %v4119 = vmul.u32 %v4118, 18
      %v4120 = vsub.s32 %v4114, %v4119
      %v4121 = vsub.s32 0, %v4120
      %v4122 = vsel %vm4112, %v4121, %v4120
      %vm4123 = vcmp.lt.s32.totalorder %v4017, 0
      %v4124 = vsub.s32 0, %v4017
      %v4125 = vsel %vm4123, %v4124, %v4017
      %v4126 = vmul.u32.u64.compose %v4125, 3817748708
      %v4127 = vextract.low.u32 %v4126
      %v4128 = vextract.high.u32 %v4126
      %v4129 = vshrl.u32 %v4128, 4
      %v4130 = vmul.u32 %v4129, 18
      %v4131 = vsub.s32 %v4125, %v4130
      %v4132 = vsub.s32 0, %v4131
      %v4133 = vsel %vm4123, %v4132, %v4131
      %vm4134 = vcmp.lt.s32.totalorder %v4018, 0
      %v4135 = vsub.s32 0, %v4018
      %v4136 = vsel %vm4134, %v4135, %v4018
      %v4137 = vmul.u32.u64.compose %v4136, 3817748708
      %v4138 = vextract.low.u32 %v4137
      %v4139 = vextract.high.u32 %v4137
      %v4140 = vshrl.u32 %v4139, 4
      %v4141 = vmul.u32 %v4140, 18
      %v4142 = vsub.s32 %v4136, %v4141
      %v4143 = vsub.s32 0, %v4142
      %v4144 = vsel %vm4134, %v4143, %v4142
      %vm4145 = vcmp.lt.s32.totalorder %v4019, 0
      %v4146 = vsub.s32 0, %v4019
      %v4147 = vsel %vm4145, %v4146, %v4019
      %v4148 = vmul.u32.u64.compose %v4147, 3817748708
      %v4149 = vextract.low.u32 %v4148
      %v4150 = vextract.high.u32 %v4148
      %v4151 = vshrl.u32 %v4150, 4
      %v4152 = vmul.u32 %v4151, 18
      %v4153 = vsub.s32 %v4147, %v4152
      %v4154 = vsub.s32 0, %v4153
      %v4155 = vsel %vm4145, %v4154, %v4153
      %vm4156 = vcmp.lt.s32.totalorder %v4020, 0
      %v4157 = vsub.s32 0, %v4020
      %v4158 = vsel %vm4156, %v4157, %v4020
      %v4159 = vmul.u32.u64.compose %v4158, 3817748708
      %v4160 = vextract.low.u32 %v4159
      %v4161 = vextract.high.u32 %v4159
      %v4162 = vshrl.u32 %v4161, 4
      %v4163 = vmul.u32 %v4162, 18
      %v4164 = vsub.s32 %v4158, %v4163
      %v4165 = vsub.s32 0, %v4164
      %v4166 = vsel %vm4156, %v4165, %v4164
      %vm4167 = vcmp.lt.s32.totalorder %v4021, 0
      %v4168 = vsub.s32 0, %v4021
      %v4169 = vsel %vm4167, %v4168, %v4021
      %v4170 = vmul.u32.u64.compose %v4169, 3817748708
      %v4171 = vextract.low.u32 %v4170
      %v4172 = vextract.high.u32 %v4170
      %v4173 = vshrl.u32 %v4172, 4
      %v4174 = vmul.u32 %v4173, 18
      %v4175 = vsub.s32 %v4169, %v4174
      %v4176 = vsub.s32 0, %v4175
      %v4177 = vsel %vm4167, %v4176, %v4175
      %vm4178 = vcmp.lt.s32.totalorder %v4022, 0
      %v4179 = vsub.s32 0, %v4022
      %v4180 = vsel %vm4178, %v4179, %v4022
      %v4181 = vmul.u32.u64.compose %v4180, 3817748708
      %v4182 = vextract.low.u32 %v4181
      %v4183 = vextract.high.u32 %v4181
      %v4184 = vshrl.u32 %v4183, 4
      %v4185 = vmul.u32 %v4184, 18
      %v4186 = vsub.s32 %v4180, %v4185
      %v4187 = vsub.s32 0, %v4186
      %v4188 = vsel %vm4178, %v4187, %v4186
      %vm4189 = vcmp.lt.s32.totalorder %v4023, 0
      %v4190 = vsub.s32 0, %v4023
      %v4191 = vsel %vm4189, %v4190, %v4023
      %v4192 = vmul.u32.u64.compose %v4191, 3817748708
      %v4193 = vextract.low.u32 %v4192
      %v4194 = vextract.high.u32 %v4192
      %v4195 = vshrl.u32 %v4194, 4
      %v4196 = vmul.u32 %v4195, 18
      %v4197 = vsub.s32 %v4191, %v4196
      %v4198 = vsub.s32 0, %v4197
      %v4199 = vsel %vm4189, %v4198, %v4197
      %vm4200 = vcmp.lt.s32.totalorder %v4024, 0
      %v4201 = vsub.s32 0, %v4024
      %v4202 = vsel %vm4200, %v4201, %v4024
      %v4203 = vmul.u32.u64.compose %v4202, 3817748708
      %v4204 = vextract.low.u32 %v4203
      %v4205 = vextract.high.u32 %v4203
      %v4206 = vshrl.u32 %v4205, 4
      %v4207 = vmul.u32 %v4206, 18
      %v4208 = vsub.s32 %v4202, %v4207
      %v4209 = vsub.s32 0, %v4208
      %v4210 = vsel %vm4200, %v4209, %v4208
      %vm4211 = vcmp.lt.s32.totalorder %v4025, 0
      %v4212 = vsub.s32 0, %v4025
      %v4213 = vsel %vm4211, %v4212, %v4025
      %v4214 = vmul.u32.u64.compose %v4213, 3817748708
      %v4215 = vextract.low.u32 %v4214
      %v4216 = vextract.high.u32 %v4214
      %v4217 = vshrl.u32 %v4216, 4
      %v4218 = vmul.u32 %v4217, 18
      %v4219 = vsub.s32 %v4213, %v4218
      %v4220 = vsub.s32 0, %v4219
      %v4221 = vsel %vm4211, %v4220, %v4219
      %vm4222 = vcmp.lt.s32.totalorder %v4026, 0
      %v4223 = vsub.s32 0, %v4026
      %v4224 = vsel %vm4222, %v4223, %v4026
      %v4225 = vmul.u32.u64.compose %v4224, 3817748708
      %v4226 = vextract.low.u32 %v4225
      %v4227 = vextract.high.u32 %v4225
      %v4228 = vshrl.u32 %v4227, 4
      %v4229 = vmul.u32 %v4228, 18
      %v4230 = vsub.s32 %v4224, %v4229
      %v4231 = vsub.s32 0, %v4230
      %v4232 = vsel %vm4222, %v4231, %v4230
      %vm4233 = vcmp.lt.s32.totalorder %v4027, 0
      %v4234 = vsub.s32 0, %v4027
      %v4235 = vsel %vm4233, %v4234, %v4027
      %v4236 = vmul.u32.u64.compose %v4235, 3817748708
      %v4237 = vextract.low.u32 %v4236
      %v4238 = vextract.high.u32 %v4236
      %v4239 = vshrl.u32 %v4238, 4
      %v4240 = vmul.u32 %v4239, 18
      %v4241 = vsub.s32 %v4235, %v4240
      %v4242 = vsub.s32 0, %v4241
      %v4243 = vsel %vm4233, %v4242, %v4241
      %vm4244 = vcmp.lt.s32.totalorder %v4028, 0
      %v4245 = vsub.s32 0, %v4028
      %v4246 = vsel %vm4244, %v4245, %v4028
      %v4247 = vmul.u32.u64.compose %v4246, 3817748708
      %v4248 = vextract.low.u32 %v4247
      %v4249 = vextract.high.u32 %v4247
      %v4250 = vshrl.u32 %v4249, 4
      %v4251 = vmul.u32 %v4250, 18
      %v4252 = vsub.s32 %v4246, %v4251
      %v4253 = vsub.s32 0, %v4252
      %v4254 = vsel %vm4244, %v4253, %v4252
      %vm4255 = vcmp.lt.s32.totalorder %v4029, 0
      %v4256 = vsub.s32 0, %v4029
      %v4257 = vsel %vm4255, %v4256, %v4029
      %v4258 = vmul.u32.u64.compose %v4257, 3817748708
      %v4259 = vextract.low.u32 %v4258
      %v4260 = vextract.high.u32 %v4258
      %v4261 = vshrl.u32 %v4260, 4
      %v4262 = vmul.u32 %v4261, 18
      %v4263 = vsub.s32 %v4257, %v4262
      %v4264 = vsub.s32 0, %v4263
      %v4265 = vsel %vm4255, %v4264, %v4263
      %vm4266 = vcmp.lt.s32.totalorder %v4030, 0
      %v4267 = vsub.s32 0, %v4030
      %v4268 = vsel %vm4266, %v4267, %v4030
      %v4269 = vmul.u32.u64.compose %v4268, 3817748708
      %v4270 = vextract.low.u32 %v4269
      %v4271 = vextract.high.u32 %v4269
      %v4272 = vshrl.u32 %v4271, 4
      %v4273 = vmul.u32 %v4272, 18
      %v4274 = vsub.s32 %v4268, %v4273
      %v4275 = vsub.s32 0, %v4274
      %v4276 = vsel %vm4266, %v4275, %v4274
      %vm4277 = vcmp.lt.s32.totalorder %v4031, 0
      %v4278 = vsub.s32 0, %v4031
      %v4279 = vsel %vm4277, %v4278, %v4031
      %v4280 = vmul.u32.u64.compose %v4279, 3817748708
      %v4281 = vextract.low.u32 %v4280
      %v4282 = vextract.high.u32 %v4280
      %v4283 = vshrl.u32 %v4282, 4
      %v4284 = vmul.u32 %v4283, 18
      %v4285 = vsub.s32 %v4279, %v4284
      %v4286 = vsub.s32 0, %v4285
      %v4287 = vsel %vm4277, %v4286, %v4285
      %vm4288 = vcmp.lt.s32.totalorder %v4032, 0
      %v4289 = vsub.s32 0, %v4032
      %v4290 = vsel %vm4288, %v4289, %v4032
      %v4291 = vmul.u32.u64.compose %v4290, 3817748708
      %v4292 = vextract.low.u32 %v4291
      %v4293 = vextract.high.u32 %v4291
      %v4294 = vshrl.u32 %v4293, 4
      %v4295 = vmul.u32 %v4294, 18
      %v4296 = vsub.s32 %v4290, %v4295
      %v4297 = vsub.s32 0, %v4296
      %v4298 = vsel %vm4288, %v4297, %v4296
      %vm4299 = vcmp.lt.s32.totalorder %v4033, 0
      %v4300 = vsub.s32 0, %v4033
      %v4301 = vsel %vm4299, %v4300, %v4033
      %v4302 = vmul.u32.u64.compose %v4301, 3817748708
      %v4303 = vextract.low.u32 %v4302
      %v4304 = vextract.high.u32 %v4302
      %v4305 = vshrl.u32 %v4304, 4
      %v4306 = vmul.u32 %v4305, 18
      %v4307 = vsub.s32 %v4301, %v4306
      %v4308 = vsub.s32 0, %v4307
      %v4309 = vsel %vm4299, %v4308, %v4307
      %vm4310 = vcmp.lt.s32.totalorder %v4034, 0
      %v4311 = vsub.s32 0, %v4034
      %v4312 = vsel %vm4310, %v4311, %v4034
      %v4313 = vmul.u32.u64.compose %v4312, 3817748708
      %v4314 = vextract.low.u32 %v4313
      %v4315 = vextract.high.u32 %v4313
      %v4316 = vshrl.u32 %v4315, 4
      %v4317 = vmul.u32 %v4316, 18
      %v4318 = vsub.s32 %v4312, %v4317
      %v4319 = vsub.s32 0, %v4318
      %v4320 = vsel %vm4310, %v4319, %v4318
      %vm4321 = vcmp.lt.s32.totalorder %v4035, 0
      %v4322 = vsub.s32 0, %v4035
      %v4323 = vsel %vm4321, %v4322, %v4035
      %v4324 = vmul.u32.u64.compose %v4323, 3817748708
      %v4325 = vextract.low.u32 %v4324
      %v4326 = vextract.high.u32 %v4324
      %v4327 = vshrl.u32 %v4326, 4
      %v4328 = vmul.u32 %v4327, 18
      %v4329 = vsub.s32 %v4323, %v4328
      %v4330 = vsub.s32 0, %v4329
      %v4331 = vsel %vm4321, %v4330, %v4329
      %vm4332 = vcmp.lt.s32.totalorder %v4036, 0
      %v4333 = vsub.s32 0, %v4036
      %v4334 = vsel %vm4332, %v4333, %v4036
      %v4335 = vmul.u32.u64.compose %v4334, 3817748708
      %v4336 = vextract.low.u32 %v4335
      %v4337 = vextract.high.u32 %v4335
      %v4338 = vshrl.u32 %v4337, 4
      %v4339 = vmul.u32 %v4338, 18
      %v4340 = vsub.s32 %v4334, %v4339
      %v4341 = vsub.s32 0, %v4340
      %v4342 = vsel %vm4332, %v4341, %v4340
      %vm4343 = vcmp.lt.s32.totalorder %v4037, 0
      %v4344 = vsub.s32 0, %v4037
      %v4345 = vsel %vm4343, %v4344, %v4037
      %v4346 = vmul.u32.u64.compose %v4345, 3817748708
      %v4347 = vextract.low.u32 %v4346
      %v4348 = vextract.high.u32 %v4346
      %v4349 = vshrl.u32 %v4348, 4
      %v4350 = vmul.u32 %v4349, 18
      %v4351 = vsub.s32 %v4345, %v4350
      %v4352 = vsub.s32 0, %v4351
      %v4353 = vsel %vm4343, %v4352, %v4351
      %vm4354 = vcmp.lt.s32.totalorder %v4038, 0
      %v4355 = vsub.s32 0, %v4038
      %v4356 = vsel %vm4354, %v4355, %v4038
      %v4357 = vmul.u32.u64.compose %v4356, 3817748708
      %v4358 = vextract.low.u32 %v4357
      %v4359 = vextract.high.u32 %v4357
      %v4360 = vshrl.u32 %v4359, 4
      %v4361 = vmul.u32 %v4360, 18
      %v4362 = vsub.s32 %v4356, %v4361
      %v4363 = vsub.s32 0, %v4362
      %v4364 = vsel %vm4354, %v4363, %v4362
      %vm4365 = vcmp.lt.s32.totalorder %v4039, 0
      %v4366 = vsub.s32 0, %v4039
      %v4367 = vsel %vm4365, %v4366, %v4039
      %v4368 = vmul.u32.u64.compose %v4367, 3817748708
      %v4369 = vextract.low.u32 %v4368
      %v4370 = vextract.high.u32 %v4368
      %v4371 = vshrl.u32 %v4370, 4
      %v4372 = vmul.u32 %v4371, 18
      %v4373 = vsub.s32 %v4367, %v4372
      %v4374 = vsub.s32 0, %v4373
      %v4375 = vsel %vm4365, %v4374, %v4373
      %vm4376 = vcmp.lt.s32.totalorder %v4040, 0
      %v4377 = vsub.s32 0, %v4040
      %v4378 = vsel %vm4376, %v4377, %v4040
      %v4379 = vmul.u32.u64.compose %v4378, 3817748708
      %v4380 = vextract.low.u32 %v4379
      %v4381 = vextract.high.u32 %v4379
      %v4382 = vshrl.u32 %v4381, 4
      %v4383 = vmul.u32 %v4382, 18
      %v4384 = vsub.s32 %v4378, %v4383
      %v4385 = vsub.s32 0, %v4384
      %v4386 = vsel %vm4376, %v4385, %v4384
      %vm4387 = vcmp.lt.s32.totalorder %v4041, 0
      %v4388 = vsub.s32 0, %v4041
      %v4389 = vsel %vm4387, %v4388, %v4041
      %v4390 = vmul.u32.u64.compose %v4389, 3817748708
      %v4391 = vextract.low.u32 %v4390
      %v4392 = vextract.high.u32 %v4390
      %v4393 = vshrl.u32 %v4392, 4
      %v4394 = vmul.u32 %v4393, 18
      %v4395 = vsub.s32 %v4389, %v4394
      %v4396 = vsub.s32 0, %v4395
      %v4397 = vsel %vm4387, %v4396, %v4395
      %vm4398 = vcmp.lt.s32.totalorder %v4042, 0
      %v4399 = vsub.s32 0, %v4042
      %v4400 = vsel %vm4398, %v4399, %v4042
      %v4401 = vmul.u32.u64.compose %v4400, 3817748708
      %v4402 = vextract.low.u32 %v4401
      %v4403 = vextract.high.u32 %v4401
      %v4404 = vshrl.u32 %v4403, 4
      %v4405 = vmul.u32 %v4404, 18
      %v4406 = vsub.s32 %v4400, %v4405
      %v4407 = vsub.s32 0, %v4406
      %v4408 = vsel %vm4398, %v4407, %v4406
      %vm4409 = vcmp.lt.s32.totalorder %v4043, 0
      %v4410 = vsub.s32 0, %v4043
      %v4411 = vsel %vm4409, %v4410, %v4043
      %v4412 = vmul.u32.u64.compose %v4411, 3817748708
      %v4413 = vextract.low.u32 %v4412
      %v4414 = vextract.high.u32 %v4412
      %v4415 = vshrl.u32 %v4414, 4
      %v4416 = vmul.u32 %v4415, 18
      %v4417 = vsub.s32 %v4411, %v4416
      %v4418 = vsub.s32 0, %v4417
      %v4419 = vsel %vm4409, %v4418, %v4417
      %vm4420 = vcmp.lt.s32.totalorder %v4044, 0
      %v4421 = vsub.s32 0, %v4044
      %v4422 = vsel %vm4420, %v4421, %v4044
      %v4423 = vmul.u32.u64.compose %v4422, 3817748708
      %v4424 = vextract.low.u32 %v4423
      %v4425 = vextract.high.u32 %v4423
      %v4426 = vshrl.u32 %v4425, 4
      %v4427 = vmul.u32 %v4426, 18
      %v4428 = vsub.s32 %v4422, %v4427
      %v4429 = vsub.s32 0, %v4428
      %v4430 = vsel %vm4420, %v4429, %v4428
      %vm4431 = vcmp.lt.s32.totalorder %v4045, 0
      %v4432 = vsub.s32 0, %v4045
      %v4433 = vsel %vm4431, %v4432, %v4045
      %v4434 = vmul.u32.u64.compose %v4433, 3817748708
      %v4435 = vextract.low.u32 %v4434
      %v4436 = vextract.high.u32 %v4434
      %v4437 = vshrl.u32 %v4436, 4
      %v4438 = vmul.u32 %v4437, 18
      %v4439 = vsub.s32 %v4433, %v4438
      %v4440 = vsub.s32 0, %v4439
      %v4441 = vsel %vm4431, %v4440, %v4439
      %vm4442 = vcmp.ne.s32.totalorder %v4056, 0
      %vm4443 = vcmp.ne.s32.totalorder %v4067, 0
      %vm4444 = vcmp.ne.s32.totalorder %v4078, 0
      %vm4445 = vcmp.ne.s32.totalorder %v4089, 0
      %vm4446 = vcmp.ne.s32.totalorder %v4100, 0
      %vm4447 = vcmp.ne.s32.totalorder %v4111, 0
      %vm4448 = vcmp.ne.s32.totalorder %v4122, 0
      %vm4449 = vcmp.ne.s32.totalorder %v4133, 0
      %vm4450 = vcmp.ne.s32.totalorder %v4144, 0
      %vm4451 = vcmp.ne.s32.totalorder %v4155, 0
      %vm4452 = vcmp.ne.s32.totalorder %v4166, 0
      %vm4453 = vcmp.ne.s32.totalorder %v4177, 0
      %vm4454 = vcmp.ne.s32.totalorder %v4188, 0
      %vm4455 = vcmp.ne.s32.totalorder %v4199, 0
      %vm4456 = vcmp.ne.s32.totalorder %v4210, 0
      %vm4457 = vcmp.ne.s32.totalorder %v4221, 0
      %vm4458 = vcmp.ne.s32.totalorder %v4232, 0
      %vm4459 = vcmp.ne.s32.totalorder %v4243, 0
      %vm4460 = vcmp.ne.s32.totalorder %v4254, 0
      %vm4461 = vcmp.ne.s32.totalorder %v4265, 0
      %vm4462 = vcmp.ne.s32.totalorder %v4276, 0
      %vm4463 = vcmp.ne.s32.totalorder %v4287, 0
      %vm4464 = vcmp.ne.s32.totalorder %v4298, 0
      %vm4465 = vcmp.ne.s32.totalorder %v4309, 0
      %vm4466 = vcmp.ne.s32.totalorder %v4320, 0
      %vm4467 = vcmp.ne.s32.totalorder %v4331, 0
      %vm4468 = vcmp.ne.s32.totalorder %v4342, 0
      %vm4469 = vcmp.ne.s32.totalorder %v4353, 0
      %vm4470 = vcmp.ne.s32.totalorder %v4364, 0
      %vm4471 = vcmp.ne.s32.totalorder %v4375, 0
      %vm4472 = vcmp.ne.s32.totalorder %v4386, 0
      %vm4473 = vcmp.ne.s32.totalorder %v4397, 0
      %vm4474 = vcmp.ne.s32.totalorder %v4408, 0
      %vm4475 = vcmp.ne.s32.totalorder %v4419, 0
      %vm4476 = vcmp.ne.s32.totalorder %v4430, 0
      %vm4477 = vcmp.ne.s32.totalorder %v4441, 0
      %vm4478 = vcmp.lt.s32.totalorder %v4056, 0
      %vm4479 = vcmp.lt.s32.totalorder %v4067, 0
      %vm4480 = vcmp.lt.s32.totalorder %v4078, 0
      %vm4481 = vcmp.lt.s32.totalorder %v4089, 0
      %vm4482 = vcmp.lt.s32.totalorder %v4100, 0
      %vm4483 = vcmp.lt.s32.totalorder %v4111, 0
      %vm4484 = vcmp.lt.s32.totalorder %v4122, 0
      %vm4485 = vcmp.lt.s32.totalorder %v4133, 0
      %vm4486 = vcmp.lt.s32.totalorder %v4144, 0
      %vm4487 = vcmp.lt.s32.totalorder %v4155, 0
      %vm4488 = vcmp.lt.s32.totalorder %v4166, 0
      %vm4489 = vcmp.lt.s32.totalorder %v4177, 0
      %vm4490 = vcmp.lt.s32.totalorder %v4188, 0
      %vm4491 = vcmp.lt.s32.totalorder %v4199, 0
      %vm4492 = vcmp.lt.s32.totalorder %v4210, 0
      %vm4493 = vcmp.lt.s32.totalorder %v4221, 0
      %vm4494 = vcmp.lt.s32.totalorder %v4232, 0
      %vm4495 = vcmp.lt.s32.totalorder %v4243, 0
      %vm4496 = vcmp.lt.s32.totalorder %v4254, 0
      %vm4497 = vcmp.lt.s32.totalorder %v4265, 0
      %vm4498 = vcmp.lt.s32.totalorder %v4276, 0
      %vm4499 = vcmp.lt.s32.totalorder %v4287, 0
      %vm4500 = vcmp.lt.s32.totalorder %v4298, 0
      %vm4501 = vcmp.lt.s32.totalorder %v4309, 0
      %vm4502 = vcmp.lt.s32.totalorder %v4320, 0
      %vm4503 = vcmp.lt.s32.totalorder %v4331, 0
      %vm4504 = vcmp.lt.s32.totalorder %v4342, 0
      %vm4505 = vcmp.lt.s32.totalorder %v4353, 0
      %vm4506 = vcmp.lt.s32.totalorder %v4364, 0
      %vm4507 = vcmp.lt.s32.totalorder %v4375, 0
      %vm4508 = vcmp.lt.s32.totalorder %v4386, 0
      %vm4509 = vcmp.lt.s32.totalorder %v4397, 0
      %vm4510 = vcmp.lt.s32.totalorder %v4408, 0
      %vm4511 = vcmp.lt.s32.totalorder %v4419, 0
      %vm4512 = vcmp.lt.s32.totalorder %v4430, 0
      %vm4513 = vcmp.lt.s32.totalorder %v4441, 0
      %vm4514 = vmand %vm4478, %vm4442
      %vm4515 = vmand %vm4479, %vm4443
      %vm4516 = vmand %vm4480, %vm4444
      %vm4517 = vmand %vm4481, %vm4445
      %vm4518 = vmand %vm4482, %vm4446
      %vm4519 = vmand %vm4483, %vm4447
      %vm4520 = vmand %vm4484, %vm4448
      %vm4521 = vmand %vm4485, %vm4449
      %vm4522 = vmand %vm4486, %vm4450
      %vm4523 = vmand %vm4487, %vm4451
      %vm4524 = vmand %vm4488, %vm4452
      %vm4525 = vmand %vm4489, %vm4453
      %vm4526 = vmand %vm4490, %vm4454
      %vm4527 = vmand %vm4491, %vm4455
      %vm4528 = vmand %vm4492, %vm4456
      %vm4529 = vmand %vm4493, %vm4457
      %vm4530 = vmand %vm4494, %vm4458
      %vm4531 = vmand %vm4495, %vm4459
      %vm4532 = vmand %vm4496, %vm4460
      %vm4533 = vmand %vm4497, %vm4461
      %vm4534 = vmand %vm4498, %vm4462
      %vm4535 = vmand %vm4499, %vm4463
      %vm4536 = vmand %vm4500, %vm4464
      %vm4537 = vmand %vm4501, %vm4465
      %vm4538 = vmand %vm4502, %vm4466
      %vm4539 = vmand %vm4503, %vm4467
      %vm4540 = vmand %vm4504, %vm4468
      %vm4541 = vmand %vm4505, %vm4469
      %vm4542 = vmand %vm4506, %vm4470
      %vm4543 = vmand %vm4507, %vm4471
      %vm4544 = vmand %vm4508, %vm4472
      %vm4545 = vmand %vm4509, %vm4473
      %vm4546 = vmand %vm4510, %vm4474
      %vm4547 = vmand %vm4511, %vm4475
      %vm4548 = vmand %vm4512, %vm4476
      %vm4549 = vmand %vm4513, %vm4477
      %v4550 = vadd.s32 %v4056, 18
      %v4551 = vadd.s32 %v4067, 18
      %v4552 = vadd.s32 %v4078, 18
      %v4553 = vadd.s32 %v4089, 18
      %v4554 = vadd.s32 %v4100, 18
      %v4555 = vadd.s32 %v4111, 18
      %v4556 = vadd.s32 %v4122, 18
      %v4557 = vadd.s32 %v4133, 18
      %v4558 = vadd.s32 %v4144, 18
      %v4559 = vadd.s32 %v4155, 18
      %v4560 = vadd.s32 %v4166, 18
      %v4561 = vadd.s32 %v4177, 18
      %v4562 = vadd.s32 %v4188, 18
      %v4563 = vadd.s32 %v4199, 18
      %v4564 = vadd.s32 %v4210, 18
      %v4565 = vadd.s32 %v4221, 18
      %v4566 = vadd.s32 %v4232, 18
      %v4567 = vadd.s32 %v4243, 18
      %v4568 = vadd.s32 %v4254, 18
      %v4569 = vadd.s32 %v4265, 18
      %v4570 = vadd.s32 %v4276, 18
      %v4571 = vadd.s32 %v4287, 18
      %v4572 = vadd.s32 %v4298, 18
      %v4573 = vadd.s32 %v4309, 18
      %v4574 = vadd.s32 %v4320, 18
      %v4575 = vadd.s32 %v4331, 18
      %v4576 = vadd.s32 %v4342, 18
      %v4577 = vadd.s32 %v4353, 18
      %v4578 = vadd.s32 %v4364, 18
      %v4579 = vadd.s32 %v4375, 18
      %v4580 = vadd.s32 %v4386, 18
      %v4581 = vadd.s32 %v4397, 18
      %v4582 = vadd.s32 %v4408, 18
      %v4583 = vadd.s32 %v4419, 18
      %v4584 = vadd.s32 %v4430, 18
      %v4585 = vadd.s32 %v4441, 18
      %v4586 = vsel %vm4514, %v4550, %v4056
      %v4587 = vsel %vm4515, %v4551, %v4067
      %v4588 = vsel %vm4516, %v4552, %v4078
      %v4589 = vsel %vm4517, %v4553, %v4089
      %v4590 = vsel %vm4518, %v4554, %v4100
      %v4591 = vsel %vm4519, %v4555, %v4111
      %v4592 = vsel %vm4520, %v4556, %v4122
      %v4593 = vsel %vm4521, %v4557, %v4133
      %v4594 = vsel %vm4522, %v4558, %v4144
      %v4595 = vsel %vm4523, %v4559, %v4155
      %v4596 = vsel %vm4524, %v4560, %v4166
      %v4597 = vsel %vm4525, %v4561, %v4177
      %v4598 = vsel %vm4526, %v4562, %v4188
      %v4599 = vsel %vm4527, %v4563, %v4199
      %v4600 = vsel %vm4528, %v4564, %v4210
      %v4601 = vsel %vm4529, %v4565, %v4221
      %v4602 = vsel %vm4530, %v4566, %v4232
      %v4603 = vsel %vm4531, %v4567, %v4243
      %v4604 = vsel %vm4532, %v4568, %v4254
      %v4605 = vsel %vm4533, %v4569, %v4265
      %v4606 = vsel %vm4534, %v4570, %v4276
      %v4607 = vsel %vm4535, %v4571, %v4287
      %v4608 = vsel %vm4536, %v4572, %v4298
      %v4609 = vsel %vm4537, %v4573, %v4309
      %v4610 = vsel %vm4538, %v4574, %v4320
      %v4611 = vsel %vm4539, %v4575, %v4331
      %v4612 = vsel %vm4540, %v4576, %v4342
      %v4613 = vsel %vm4541, %v4577, %v4353
      %v4614 = vsel %vm4542, %v4578, %v4364
      %v4615 = vsel %vm4543, %v4579, %v4375
      %v4616 = vsel %vm4544, %v4580, %v4386
      %v4617 = vsel %vm4545, %v4581, %v4397
      %v4618 = vsel %vm4546, %v4582, %v4408
      %v4619 = vsel %vm4547, %v4583, %v4419
      %v4620 = vsel %vm4548, %v4584, %v4430
      %v4621 = vsel %vm4549, %v4585, %v4441
      %vm4622 = vcmp.lt.s32.totalorder %v4586, 16
      %vm4623 = vcmp.lt.s32.totalorder %v4587, 16
      %vm4624 = vcmp.lt.s32.totalorder %v4588, 16
      %vm4625 = vcmp.lt.s32.totalorder %v4589, 16
      %vm4626 = vcmp.lt.s32.totalorder %v4590, 16
      %vm4627 = vcmp.lt.s32.totalorder %v4591, 16
      %vm4628 = vcmp.lt.s32.totalorder %v4592, 16
      %vm4629 = vcmp.lt.s32.totalorder %v4593, 16
      %vm4630 = vcmp.lt.s32.totalorder %v4594, 16
      %vm4631 = vcmp.lt.s32.totalorder %v4595, 16
      %vm4632 = vcmp.lt.s32.totalorder %v4596, 16
      %vm4633 = vcmp.lt.s32.totalorder %v4597, 16
      %vm4634 = vcmp.lt.s32.totalorder %v4598, 16
      %vm4635 = vcmp.lt.s32.totalorder %v4599, 16
      %vm4636 = vcmp.lt.s32.totalorder %v4600, 16
      %vm4637 = vcmp.lt.s32.totalorder %v4601, 16
      %vm4638 = vcmp.lt.s32.totalorder %v4602, 16
      %vm4639 = vcmp.lt.s32.totalorder %v4603, 16
      %vm4640 = vcmp.lt.s32.totalorder %v4604, 16
      %vm4641 = vcmp.lt.s32.totalorder %v4605, 16
      %vm4642 = vcmp.lt.s32.totalorder %v4606, 16
      %vm4643 = vcmp.lt.s32.totalorder %v4607, 16
      %vm4644 = vcmp.lt.s32.totalorder %v4608, 16
      %vm4645 = vcmp.lt.s32.totalorder %v4609, 16
      %vm4646 = vcmp.lt.s32.totalorder %v4610, 16
      %vm4647 = vcmp.lt.s32.totalorder %v4611, 16
      %vm4648 = vcmp.lt.s32.totalorder %v4612, 16
      %vm4649 = vcmp.lt.s32.totalorder %v4613, 16
      %vm4650 = vcmp.lt.s32.totalorder %v4614, 16
      %vm4651 = vcmp.lt.s32.totalorder %v4615, 16
      %vm4652 = vcmp.lt.s32.totalorder %v4616, 16
      %vm4653 = vcmp.lt.s32.totalorder %v4617, 16
      %vm4654 = vcmp.lt.s32.totalorder %v4618, 16
      %vm4655 = vcmp.lt.s32.totalorder %v4619, 16
      %vm4656 = vcmp.lt.s32.totalorder %v4620, 16
      %vm4657 = vcmp.lt.s32.totalorder %v4621, 16
      %v4658 = vsel %vm4622, 1, 0
      %v4659 = vsel %vm4623, 1, 0
      %v4660 = vsel %vm4624, 1, 0
      %v4661 = vsel %vm4625, 1, 0
      %v4662 = vsel %vm4626, 1, 0
      %v4663 = vsel %vm4627, 1, 0
      %v4664 = vsel %vm4628, 1, 0
      %v4665 = vsel %vm4629, 1, 0
      %v4666 = vsel %vm4630, 1, 0
      %v4667 = vsel %vm4631, 1, 0
      %v4668 = vsel %vm4632, 1, 0
      %v4669 = vsel %vm4633, 1, 0
      %v4670 = vsel %vm4634, 1, 0
      %v4671 = vsel %vm4635, 1, 0
      %v4672 = vsel %vm4636, 1, 0
      %v4673 = vsel %vm4637, 1, 0
      %v4674 = vsel %vm4638, 1, 0
      %v4675 = vsel %vm4639, 1, 0
      %v4676 = vsel %vm4640, 1, 0
      %v4677 = vsel %vm4641, 1, 0
      %v4678 = vsel %vm4642, 1, 0
      %v4679 = vsel %vm4643, 1, 0
      %v4680 = vsel %vm4644, 1, 0
      %v4681 = vsel %vm4645, 1, 0
      %v4682 = vsel %vm4646, 1, 0
      %v4683 = vsel %vm4647, 1, 0
      %v4684 = vsel %vm4648, 1, 0
      %v4685 = vsel %vm4649, 1, 0
      %v4686 = vsel %vm4650, 1, 0
      %v4687 = vsel %vm4651, 1, 0
      %v4688 = vsel %vm4652, 1, 0
      %v4689 = vsel %vm4653, 1, 0
      %v4690 = vsel %vm4654, 1, 0
      %v4691 = vsel %vm4655, 1, 0
      %v4692 = vsel %vm4656, 1, 0
      %v4693 = vsel %vm4657, 1, 0
      %vm4694 = vcmp.eq.s32.totalorder %v4658, 1
      %vm4695 = vcmp.eq.s32.totalorder %v4659, 1
      %vm4696 = vcmp.eq.s32.totalorder %v4660, 1
      %vm4697 = vcmp.eq.s32.totalorder %v4661, 1
      %vm4698 = vcmp.eq.s32.totalorder %v4662, 1
      %vm4699 = vcmp.eq.s32.totalorder %v4663, 1
      %vm4700 = vcmp.eq.s32.totalorder %v4664, 1
      %vm4701 = vcmp.eq.s32.totalorder %v4665, 1
      %vm4702 = vcmp.eq.s32.totalorder %v4666, 1
      %vm4703 = vcmp.eq.s32.totalorder %v4667, 1
      %vm4704 = vcmp.eq.s32.totalorder %v4668, 1
      %vm4705 = vcmp.eq.s32.totalorder %v4669, 1
      %vm4706 = vcmp.eq.s32.totalorder %v4670, 1
      %vm4707 = vcmp.eq.s32.totalorder %v4671, 1
      %vm4708 = vcmp.eq.s32.totalorder %v4672, 1
      %vm4709 = vcmp.eq.s32.totalorder %v4673, 1
      %vm4710 = vcmp.eq.s32.totalorder %v4674, 1
      %vm4711 = vcmp.eq.s32.totalorder %v4675, 1
      %vm4712 = vcmp.eq.s32.totalorder %v4676, 1
      %vm4713 = vcmp.eq.s32.totalorder %v4677, 1
      %vm4714 = vcmp.eq.s32.totalorder %v4678, 1
      %vm4715 = vcmp.eq.s32.totalorder %v4679, 1
      %vm4716 = vcmp.eq.s32.totalorder %v4680, 1
      %vm4717 = vcmp.eq.s32.totalorder %v4681, 1
      %vm4718 = vcmp.eq.s32.totalorder %v4682, 1
      %vm4719 = vcmp.eq.s32.totalorder %v4683, 1
      %vm4720 = vcmp.eq.s32.totalorder %v4684, 1
      %vm4721 = vcmp.eq.s32.totalorder %v4685, 1
      %vm4722 = vcmp.eq.s32.totalorder %v4686, 1
      %vm4723 = vcmp.eq.s32.totalorder %v4687, 1
      %vm4724 = vcmp.eq.s32.totalorder %v4688, 1
      %vm4725 = vcmp.eq.s32.totalorder %v4689, 1
      %vm4726 = vcmp.eq.s32.totalorder %v4690, 1
      %vm4727 = vcmp.eq.s32.totalorder %v4691, 1
      %vm4728 = vcmp.eq.s32.totalorder %v4692, 1
      %vm4729 = vcmp.eq.s32.totalorder %v4693, 1
      %v4730 = vsel %vm4694, %v3973, 0.0
      %v4731 = vsel %vm4695, %v3974, 0.0
      %v4732 = vsel %vm4696, %v3975, 0.0
      %v4733 = vsel %vm4697, %v3976, 0.0
      %v4734 = vsel %vm4698, %v3977, 0.0
      %v4735 = vsel %vm4699, %v3978, 0.0
      %v4736 = vsel %vm4700, %v3979, 0.0
      %v4737 = vsel %vm4701, %v3980, 0.0
      %v4738 = vsel %vm4702, %v3981, 0.0
      %v4739 = vsel %vm4703, %v3982, 0.0
      %v4740 = vsel %vm4704, %v3983, 0.0
      %v4741 = vsel %vm4705, %v3984, 0.0
      %v4742 = vsel %vm4706, %v3985, 0.0
      %v4743 = vsel %vm4707, %v3986, 0.0
      %v4744 = vsel %vm4708, %v3987, 0.0
      %v4745 = vsel %vm4709, %v3988, 0.0
      %v4746 = vsel %vm4710, %v3989, 0.0
      %v4747 = vsel %vm4711, %v3990, 0.0
      %v4748 = vsel %vm4712, %v3991, 0.0
      %v4749 = vsel %vm4713, %v3992, 0.0
      %v4750 = vsel %vm4714, %v3993, 0.0
      %v4751 = vsel %vm4715, %v3994, 0.0
      %v4752 = vsel %vm4716, %v3995, 0.0
      %v4753 = vsel %vm4717, %v3996, 0.0
      %v4754 = vsel %vm4718, %v3997, 0.0
      %v4755 = vsel %vm4719, %v3998, 0.0
      %v4756 = vsel %vm4720, %v3999, 0.0
      %v4757 = vsel %vm4721, %v4000, 0.0
      %v4758 = vsel %vm4722, %v4001, 0.0
      %v4759 = vsel %vm4723, %v4002, 0.0
      %v4760 = vsel %vm4724, %v4003, 0.0
      %v4761 = vsel %vm4725, %v4004, 0.0
      %v4762 = vsel %vm4726, %v4005, 0.0
      %v4763 = vsel %vm4727, %v4006, 0.0
      %v4764 = vsel %vm4728, %v4007, 0.0
      %v4765 = vsel %vm4729, %v4008, 0.0
      %v4766 = vadd.f32 %v4730, %v4731
      %v4767 = vadd.f32 %v4766, %v4732
      %v4768 = vadd.f32 %v4767, %v4733
      %v4769 = vadd.f32 %v4768, %v4734
      %v4770 = vadd.f32 %v4769, %v4735
      %v4771 = vadd.f32 %v4770, %v4736
      %v4772 = vadd.f32 %v4771, %v4737
      %v4773 = vadd.f32 %v4772, %v4738
      %v4774 = vadd.f32 %v4773, %v4739
      %v4775 = vadd.f32 %v4774, %v4740
      %v4776 = vadd.f32 %v4775, %v4741
      %v4777 = vadd.f32 %v4776, %v4742
      %v4778 = vadd.f32 %v4777, %v4743
      %v4779 = vadd.f32 %v4778, %v4744
      %v4780 = vadd.f32 %v4779, %v4745
      %v4781 = vadd.f32 %v4780, %v4746
      %v4782 = vadd.f32 %v4781, %v4747
      %v4783 = vadd.f32 %v4782, %v4748
      %v4784 = vadd.f32 %v4783, %v4749
      %v4785 = vadd.f32 %v4784, %v4750
      %v4786 = vadd.f32 %v4785, %v4751
      %v4787 = vadd.f32 %v4786, %v4752
      %v4788 = vadd.f32 %v4787, %v4753
      %v4789 = vadd.f32 %v4788, %v4754
      %v4790 = vadd.f32 %v4789, %v4755
      %v4791 = vadd.f32 %v4790, %v4756
      %v4792 = vadd.f32 %v4791, %v4757
      %v4793 = vadd.f32 %v4792, %v4758
      %v4794 = vadd.f32 %v4793, %v4759
      %v4795 = vadd.f32 %v4794, %v4760
      %v4796 = vadd.f32 %v4795, %v4761
      %v4797 = vadd.f32 %v4796, %v4762
      %v4798 = vadd.f32 %v4797, %v4763
      %v4799 = vadd.f32 %v4798, %v4764
      %v4800 = vadd.f32 %v4799, %v4765
      %v4801 = vrot.slane %v4800, 4
      %v4802 = vadd.f32 %v4800, %v4801
      %v4803 = vrot.slane %v4802, 2
      %v4804 = vadd.f32 %v4802, %v4803
      %v4805 = vrot.slane %v4804, 1
      %v4806 = vadd.f32 %v4804, %v4805
      %v4807 = vmul.f32 %v4730, %v4730
      %v4808 = vmul.f32 %v4731, %v4731
      %v4809 = vmul.f32 %v4732, %v4732
      %v4810 = vmul.f32 %v4733, %v4733
      %v4811 = vmul.f32 %v4734, %v4734
      %v4812 = vmul.f32 %v4735, %v4735
      %v4813 = vmul.f32 %v4736, %v4736
      %v4814 = vmul.f32 %v4737, %v4737
      %v4815 = vmul.f32 %v4738, %v4738
      %v4816 = vmul.f32 %v4739, %v4739
      %v4817 = vmul.f32 %v4740, %v4740
      %v4818 = vmul.f32 %v4741, %v4741
      %v4819 = vmul.f32 %v4742, %v4742
      %v4820 = vmul.f32 %v4743, %v4743
      %v4821 = vmul.f32 %v4744, %v4744
      %v4822 = vmul.f32 %v4745, %v4745
      %v4823 = vmul.f32 %v4746, %v4746
      %v4824 = vmul.f32 %v4747, %v4747
      %v4825 = vmul.f32 %v4748, %v4748
      %v4826 = vmul.f32 %v4749, %v4749
      %v4827 = vmul.f32 %v4750, %v4750
      %v4828 = vmul.f32 %v4751, %v4751
      %v4829 = vmul.f32 %v4752, %v4752
      %v4830 = vmul.f32 %v4753, %v4753
      %v4831 = vmul.f32 %v4754, %v4754
      %v4832 = vmul.f32 %v4755, %v4755
      %v4833 = vmul.f32 %v4756, %v4756
      %v4834 = vmul.f32 %v4757, %v4757
      %v4835 = vmul.f32 %v4758, %v4758
      %v4836 = vmul.f32 %v4759, %v4759
      %v4837 = vmul.f32 %v4760, %v4760
      %v4838 = vmul.f32 %v4761, %v4761
      %v4839 = vmul.f32 %v4762, %v4762
      %v4840 = vmul.f32 %v4763, %v4763
      %v4841 = vmul.f32 %v4764, %v4764
      %v4842 = vmul.f32 %v4765, %v4765
      %v4843 = vadd.f32 %v4807, %v4808
      %v4844 = vadd.f32 %v4843, %v4809
      %v4845 = vadd.f32 %v4844, %v4810
      %v4846 = vadd.f32 %v4845, %v4811
      %v4847 = vadd.f32 %v4846, %v4812
      %v4848 = vadd.f32 %v4847, %v4813
      %v4849 = vadd.f32 %v4848, %v4814
      %v4850 = vadd.f32 %v4849, %v4815
      %v4851 = vadd.f32 %v4850, %v4816
      %v4852 = vadd.f32 %v4851, %v4817
      %v4853 = vadd.f32 %v4852, %v4818
      %v4854 = vadd.f32 %v4853, %v4819
      %v4855 = vadd.f32 %v4854, %v4820
      %v4856 = vadd.f32 %v4855, %v4821
      %v4857 = vadd.f32 %v4856, %v4822
      %v4858 = vadd.f32 %v4857, %v4823
      %v4859 = vadd.f32 %v4858, %v4824
      %v4860 = vadd.f32 %v4859, %v4825
      %v4861 = vadd.f32 %v4860, %v4826
      %v4862 = vadd.f32 %v4861, %v4827
      %v4863 = vadd.f32 %v4862, %v4828
      %v4864 = vadd.f32 %v4863, %v4829
      %v4865 = vadd.f32 %v4864, %v4830
      %v4866 = vadd.f32 %v4865, %v4831
      %v4867 = vadd.f32 %v4866, %v4832
      %v4868 = vadd.f32 %v4867, %v4833
      %v4869 = vadd.f32 %v4868, %v4834
      %v4870 = vadd.f32 %v4869, %v4835
      %v4871 = vadd.f32 %v4870, %v4836
      %v4872 = vadd.f32 %v4871, %v4837
      %v4873 = vadd.f32 %v4872, %v4838
      %v4874 = vadd.f32 %v4873, %v4839
      %v4875 = vadd.f32 %v4874, %v4840
      %v4876 = vadd.f32 %v4875, %v4841
      %v4877 = vadd.f32 %v4876, %v4842
      %v4878 = vrot.slane %v4877, 4
      %v4879 = vadd.f32 %v4877, %v4878
      %v4880 = vrot.slane %v4879, 2
      %v4881 = vadd.f32 %v4879, %v4880
      %v4882 = vrot.slane %v4881, 1
      %v4883 = vadd.f32 %v4881, %v4882
      %v4884 = vmul.f32 %v4806, 0.00390625
      %v4885 = vadd.f32 %v4884, %v239
      %v4886 = vmul.f32 %v4883, 0.00390625
      %v4887 = vmul.f32 %v4884, %v4884
      %v4888 = vsub.f32 %v4886, %v4887
      %v4889 = vadd.f32 %v4888, 1e-05
      %v4890 = vrsqrt.pop %v4889
      %v4891 = vmul.f32 %v240, %v4890
      %v4892 = vsub.f32 %v239, %v4885
      %v4893 = vmul.f32 %v4892, %v4891
      %v4894 = vadd.f32 %v4893, %v241
      %v4895 = vlaneseq
      %v4896 = vshrl.u32 %v4895, 7
      %v4897 = vsub.s32 0, %v4896
      %v4898 = vrot.slane %v4891, %v4897
      %v4899 = vmul.f32 %v3973, %v4898
      %v4900 = vmul.f32 %v3974, %v4898
      %v4901 = vmul.f32 %v3975, %v4898
      %v4902 = vmul.f32 %v3976, %v4898
      %v4903 = vmul.f32 %v3977, %v4898
      %v4904 = vmul.f32 %v3978, %v4898
      %v4905 = vmul.f32 %v3979, %v4898
      %v4906 = vmul.f32 %v3980, %v4898
      %v4907 = vmul.f32 %v3981, %v4898
      %v4908 = vmul.f32 %v3982, %v4898
      %v4909 = vmul.f32 %v3983, %v4898
      %v4910 = vmul.f32 %v3984, %v4898
      %v4911 = vmul.f32 %v3985, %v4898
      %v4912 = vmul.f32 %v3986, %v4898
      %v4913 = vmul.f32 %v3987, %v4898
      %v4914 = vmul.f32 %v3988, %v4898
      %v4915 = vmul.f32 %v3989, %v4898
      %v4916 = vmul.f32 %v3990, %v4898
      %v4917 = vmul.f32 %v3991, %v4898
      %v4918 = vmul.f32 %v3992, %v4898
      %v4919 = vmul.f32 %v3993, %v4898
      %v4920 = vmul.f32 %v3994, %v4898
      %v4921 = vmul.f32 %v3995, %v4898
      %v4922 = vmul.f32 %v3996, %v4898
      %v4923 = vmul.f32 %v3997, %v4898
      %v4924 = vmul.f32 %v3998, %v4898
      %v4925 = vmul.f32 %v3999, %v4898
      %v4926 = vmul.f32 %v4000, %v4898
      %v4927 = vmul.f32 %v4001, %v4898
      %v4928 = vmul.f32 %v4002, %v4898
      %v4929 = vmul.f32 %v4003, %v4898
      %v4930 = vmul.f32 %v4004, %v4898
      %v4931 = vmul.f32 %v4005, %v4898
      %v4932 = vmul.f32 %v4006, %v4898
      %v4933 = vmul.f32 %v4007, %v4898
      %v4934 = vmul.f32 %v4008, %v4898
      %v4935 = vlaneseq
      %v4936 = vshrl.u32 %v4935, 7
      %v4937 = vsub.s32 0, %v4936
      %v4938 = vrot.slane %v4894, %v4937
      %v4939 = vadd.f32 %v4899, %v4938
      %v4940 = vadd.f32 %v4900, %v4938
      %v4941 = vadd.f32 %v4901, %v4938
      %v4942 = vadd.f32 %v4902, %v4938
      %v4943 = vadd.f32 %v4903, %v4938
      %v4944 = vadd.f32 %v4904, %v4938
      %v4945 = vadd.f32 %v4905, %v4938
      %v4946 = vadd.f32 %v4906, %v4938
      %v4947 = vadd.f32 %v4907, %v4938
      %v4948 = vadd.f32 %v4908, %v4938
      %v4949 = vadd.f32 %v4909, %v4938
      %v4950 = vadd.f32 %v4910, %v4938
      %v4951 = vadd.f32 %v4911, %v4938
      %v4952 = vadd.f32 %v4912, %v4938
      %v4953 = vadd.f32 %v4913, %v4938
      %v4954 = vadd.f32 %v4914, %v4938
      %v4955 = vadd.f32 %v4915, %v4938
      %v4956 = vadd.f32 %v4916, %v4938
      %v4957 = vadd.f32 %v4917, %v4938
      %v4958 = vadd.f32 %v4918, %v4938
      %v4959 = vadd.f32 %v4919, %v4938
      %v4960 = vadd.f32 %v4920, %v4938
      %v4961 = vadd.f32 %v4921, %v4938
      %v4962 = vadd.f32 %v4922, %v4938
      %v4963 = vadd.f32 %v4923, %v4938
      %v4964 = vadd.f32 %v4924, %v4938
      %v4965 = vadd.f32 %v4925, %v4938
      %v4966 = vadd.f32 %v4926, %v4938
      %v4967 = vadd.f32 %v4927, %v4938
      %v4968 = vadd.f32 %v4928, %v4938
      %v4969 = vadd.f32 %v4929, %v4938
      %v4970 = vadd.f32 %v4930, %v4938
      %v4971 = vadd.f32 %v4931, %v4938
      %v4972 = vadd.f32 %v4932, %v4938
      %v4973 = vadd.f32 %v4933, %v4938
      %v4974 = vadd.f32 %v4934, %v4938
      %v4975 = vmax.f32 %v4939, 0.0
      %v4976 = vmax.f32 %v4940, 0.0
      %v4977 = vmax.f32 %v4941, 0.0
      %v4978 = vmax.f32 %v4942, 0.0
      %v4979 = vmax.f32 %v4943, 0.0
      %v4980 = vmax.f32 %v4944, 0.0
      %v4981 = vmax.f32 %v4945, 0.0
      %v4982 = vmax.f32 %v4946, 0.0
      %v4983 = vmax.f32 %v4947, 0.0
      %v4984 = vmax.f32 %v4948, 0.0
      %v4985 = vmax.f32 %v4949, 0.0
      %v4986 = vmax.f32 %v4950, 0.0
      %v4987 = vmax.f32 %v4951, 0.0
      %v4988 = vmax.f32 %v4952, 0.0
      %v4989 = vmax.f32 %v4953, 0.0
      %v4990 = vmax.f32 %v4954, 0.0
      %v4991 = vmax.f32 %v4955, 0.0
      %v4992 = vmax.f32 %v4956, 0.0
      %v4993 = vmax.f32 %v4957, 0.0
      %v4994 = vmax.f32 %v4958, 0.0
      %v4995 = vmax.f32 %v4959, 0.0
      %v4996 = vmax.f32 %v4960, 0.0
      %v4997 = vmax.f32 %v4961, 0.0
      %v4998 = vmax.f32 %v4962, 0.0
      %v4999 = vmax.f32 %v4963, 0.0
      %v5000 = vmax.f32 %v4964, 0.0
      %v5001 = vmax.f32 %v4965, 0.0
      %v5002 = vmax.f32 %v4966, 0.0
      %v5003 = vmax.f32 %v4967, 0.0
      %v5004 = vmax.f32 %v4968, 0.0
      %v5005 = vmax.f32 %v4969, 0.0
      %v5006 = vmax.f32 %v4970, 0.0
      %v5007 = vmax.f32 %v4971, 0.0
      %v5008 = vmax.f32 %v4972, 0.0
      %v5009 = vmax.f32 %v4973, 0.0
      %v5010 = vmax.f32 %v4974, 0.0
      %5011 = vst [vmem:[#allocation3] sm:$0xff] %v4975
      %5012 = vst [vmem:[#allocation3 + $0x8] sm:$0xff] %v4976
      %5013 = vst [vmem:[#allocation3 + $0x10] sm:$0xff] %v4977
      %5014 = vst [vmem:[#allocation3 + $0x18] sm:$0xff] %v4978
      %5015 = vst [vmem:[#allocation3 + $0x20] sm:$0xff] %v4979
      %5016 = vst [vmem:[#allocation3 + $0x28] sm:$0xff] %v4980
      %5017 = vst [vmem:[#allocation3 + $0x30] sm:$0xff] %v4981
      %5018 = vst [vmem:[#allocation3 + $0x38] sm:$0xff] %v4982
      %5019 = vst [vmem:[#allocation3 + $0x40] sm:$0xff] %v4983
      %5020 = vst [vmem:[#allocation3 + $0x48] sm:$0xff] %v4984
      %5021 = vst [vmem:[#allocation3 + $0x50] sm:$0xff] %v4985
      %5022 = vst [vmem:[#allocation3 + $0x58] sm:$0xff] %v4986
      %5023 = vst [vmem:[#allocation3 + $0x60] sm:$0xff] %v4987
      %5024 = vst [vmem:[#allocation3 + $0x68] sm:$0xff] %v4988
      %5025 = vst [vmem:[#allocation3 + $0x70] sm:$0xff] %v4989
      %5026 = vst [vmem:[#allocation3 + $0x78] sm:$0xff] %v4990
      %5027 = vst [vmem:[#allocation3 + $0x80] sm:$0xff] %v4991
      %5028 = vst [vmem:[#allocation3 + $0x88] sm:$0xff] %v4992
      %5029 = vst [vmem:[#allocation3 + $0x90] sm:$0xff] %v4993
      %5030 = vst [vmem:[#allocation3 + $0x98] sm:$0xff] %v4994
      %5031 = vst [vmem:[#allocation3 + $0xa0] sm:$0xff] %v4995
      %5032 = vst [vmem:[#allocation3 + $0xa8] sm:$0xff] %v4996
      %5033 = vst [vmem:[#allocation3 + $0xb0] sm:$0xff] %v4997
      %5034 = vst [vmem:[#allocation3 + $0xb8] sm:$0xff] %v4998
      %5035 = vst [vmem:[#allocation3 + $0xc0] sm:$0xff] %v4999
      %5036 = vst [vmem:[#allocation3 + $0xc8] sm:$0xff] %v5000
      %5037 = vst [vmem:[#allocation3 + $0xd0] sm:$0xff] %v5001
      %5038 = vst [vmem:[#allocation3 + $0xd8] sm:$0xff] %v5002
      %5039 = vst [vmem:[#allocation3 + $0xe0] sm:$0xff] %v5003
      %5040 = vst [vmem:[#allocation3 + $0xe8] sm:$0xff] %v5004
      %5041 = vst [vmem:[#allocation3 + $0xf0] sm:$0xff] %v5005
      %5042 = vst [vmem:[#allocation3 + $0xf8] sm:$0xff] %v5006
      %5043 = vst [vmem:[#allocation3 + $0x100] sm:$0xff] %v5007
      %5044 = vst [vmem:[#allocation3 + $0x108] sm:$0xff] %v5008
      %5045 = vst [vmem:[#allocation3 + $0x110] sm:$0xff] %v5009
      %5046 = vst [vmem:[#allocation3 + $0x118] sm:$0xff] %v5010
      loop: start=0, step=1, limit=16
      $region44: #{residual_block.1} parent=35 // loop_pre_header
        _
      $region45: #{residual_block.1} parent=35 // loop_header
        %s5048 = sphi 0, %s5052
        %p5049 = scmp.ge.s32.totalorder %s5048, 16
      $region46: #{residual_block.1} parent=35 // loop_header_branch
        %5051 = sbr.rel (%p5049) target = $region50
      $region47: #{residual_block.1} parent=35 // loop_body
        %s5053 = smul.u32 %s5048, 18
        %s5054 = sadd.s32 %s5048, 1
        %s5055 = smul.u32 %s5054, 18
        %s5056 = scalar_lea.vmem [#allocation3], %s5053
        %v5057 = vld [vmem:[%s5056] sm:$0xff]
        %v5058 = vld [vmem:[%s5056 + $0x8] sm:$0xff]
        %s5059 = sadd.s32 %s5055, 1
        %s5060 = scalar_lea.vmem [#allocation2], %s5059
        %5061 = vst [vmem:[%s5060] sm:$0xff] %v5057
        %5062 = vst [vmem:[%s5060 + $0x8] sm:$0xff] %v5058
        %s5063 = sadd.s32 %s5053, 1
        %s5064 = scalar_lea.vmem [#allocation3], %s5063
        %v5065 = vld [vmem:[%s5064] sm:$0x1]
        %s5066 = scalar_lea.vmem [#allocation2], %s5055
        %5067 = vst [vmem:[%s5066] sm:$0x1] %v5065
        %s5068 = sadd.s32 %s5053, 14
        %s5069 = scalar_lea.vmem [#allocation3], %s5068
        %v5070 = vld [vmem:[%s5069] sm:$0x1]
        %s5071 = sadd.s32 %s5055, 17
        %s5072 = scalar_lea.vmem [#allocation2], %s5071
        %5073 = vst [vmem:[%s5072] sm:$0x1] %v5070
      $region48: #{residual_block.1} parent=35 // loop_footer
        %s5052 = sadd.s32 1, %s5048
      $region49: #{residual_block.1} parent=35 // loop_footer_branch
        %5047 = sbr.rel target = $region45
      $region50: #{residual_block.1} parent=35 // loop_exit
        _
      %v5074 = vld [vmem:[#allocation2 + $0x24] sm:$0xff]
      %v5075 = vld [vmem:[#allocation2 + $0x2c] sm:$0xff]
      %v5076 = vld [vmem:[#allocation2 + $0x34] sm:$0x3]
      %5077 = vst [vmem:[#allocation2] sm:$0xff] %v5074
      %5078 = vst [vmem:[#allocation2 + $0x8] sm:$0xff] %v5075
      %5079 = vst [vmem:[#allocation2 + $0x10] sm:$0x3] %v5076
      %v5080 = vld [vmem:[#allocation2 + $0x10e] sm:$0xff]
      %v5081 = vld [vmem:[#allocation2 + $0x116] sm:$0xff]
      %v5082 = vld [vmem:[#allocation2 + $0x11e] sm:$0x3]
      %5083 = vst [vmem:[#allocation2 + $0x132] sm:$0xff] %v5080
      %5084 = vst [vmem:[#allocation2 + $0x13a] sm:$0xff] %v5081
      %5085 = vst [vmem:[#allocation2 + $0x142] sm:$0x3] %v5082
      %5086 = vst [vmem:[#allocation3] sm:$0xff] 0.0
      %5087 = vst [vmem:[#allocation3 + $0x8] sm:$0xff] 0.0
      %5088 = vst [vmem:[#allocation3 + $0x10] sm:$0xff] 0.0
      %5089 = vst [vmem:[#allocation3 + $0x18] sm:$0xff] 0.0
      %5090 = vst [vmem:[#allocation3 + $0x20] sm:$0xff] 0.0
      %5091 = vst [vmem:[#allocation3 + $0x28] sm:$0xff] 0.0
      %5092 = vst [vmem:[#allocation3 + $0x30] sm:$0xff] 0.0
      %5093 = vst [vmem:[#allocation3 + $0x38] sm:$0xff] 0.0
      %5094 = vst [vmem:[#allocation3 + $0x40] sm:$0xff] 0.0
      %5095 = vst [vmem:[#allocation3 + $0x48] sm:$0xff] 0.0
      %5096 = vst [vmem:[#allocation3 + $0x50] sm:$0xff] 0.0
      %5097 = vst [vmem:[#allocation3 + $0x58] sm:$0xff] 0.0
      %5098 = vst [vmem:[#allocation3 + $0x60] sm:$0xff] 0.0
      %5099 = vst [vmem:[#allocation3 + $0x68] sm:$0xff] 0.0
      %5100 = vst [vmem:[#allocation3 + $0x70] sm:$0xff] 0.0
      %5101 = vst [vmem:[#allocation3 + $0x78] sm:$0xff] 0.0
      %5102 = vst [vmem:[#allocation3 + $0x80] sm:$0xff] 0.0
      %5103 = vst [vmem:[#allocation3 + $0x88] sm:$0xff] 0.0
      %5104 = vst [vmem:[#allocation3 + $0x90] sm:$0xff] 0.0
      %5105 = vst [vmem:[#allocation3 + $0x98] sm:$0xff] 0.0
      %5106 = vst [vmem:[#allocation3 + $0xa0] sm:$0xff] 0.0
      %5107 = vst [vmem:[#allocation3 + $0xa8] sm:$0xff] 0.0
      %5108 = vst [vmem:[#allocation3 + $0xb0] sm:$0xff] 0.0
      %5109 = vst [vmem:[#allocation3 + $0xb8] sm:$0xff] 0.0
      %5110 = vst [vmem:[#allocation3 + $0xc0] sm:$0xff] 0.0
      %5111 = vst [vmem:[#allocation3 + $0xc8] sm:$0xff] 0.0
      %5112 = vst [vmem:[#allocation3 + $0xd0] sm:$0xff] 0.0
      %5113 = vst [vmem:[#allocation3 + $0xd8] sm:$0xff] 0.0
      %5114 = vst [vmem:[#allocation3 + $0xe0] sm:$0xff] 0.0
      %5115 = vst [vmem:[#allocation3 + $0xe8] sm:$0xff] 0.0
      %5116 = vst [vmem:[#allocation3 + $0xf0] sm:$0xff] 0.0
      %5117 = vst [vmem:[#allocation3 + $0xf8] sm:$0xff] 0.0
      %5118 = vst [vmem:[#allocation3 + $0x100] sm:$0xff] 0.0
      %5119 = vst [vmem:[#allocation3 + $0x108] sm:$0xff] 0.0
      %5120 = vst [vmem:[#allocation3 + $0x110] sm:$0xff] 0.0
      %5121 = vst [vmem:[#allocation3 + $0x118] sm:$0xff] 0.0
      %v5122 = vld [vmem:[#allocation3] sm:$0xff]
      %v5123 = vld [vmem:[#allocation3 + $0x8] sm:$0xff]
      %v5124 = vld [vmem:[#allocation3 + $0x10] sm:$0xff]
      %v5125 = vld [vmem:[#allocation3 + $0x18] sm:$0xff]
      %v5126 = vld [vmem:[#allocation3 + $0x20] sm:$0xff]
      %v5127 = vld [vmem:[#allocation3 + $0x28] sm:$0xff]
      %v5128 = vld [vmem:[#allocation3 + $0x30] sm:$0xff]
      %v5129 = vld [vmem:[#allocation3 + $0x38] sm:$0xff]
      %v5130 = vld [vmem:[#allocation3 + $0x40] sm:$0xff]
      %v5131 = vld [vmem:[#allocation3 + $0x48] sm:$0xff]
      %v5132 = vld [vmem:[#allocation3 + $0x50] sm:$0xff]
      %v5133 = vld [vmem:[#allocation3 + $0x58] sm:$0xff]
      %v5134 = vld [vmem:[#allocation3 + $0x60] sm:$0xff]
      %v5135 = vld [vmem:[#allocation3 + $0x68] sm:$0xff]
      %v5136 = vld [vmem:[#allocation3 + $0x70] sm:$0xff]
      %v5137 = vld [vmem:[#allocation3 + $0x78] sm:$0xff]
      %v5138 = vld [vmem:[#allocation3 + $0x80] sm:$0xff]
      %v5139 = vld [vmem:[#allocation3 + $0x88] sm:$0xff]
      %v5140 = vld [vmem:[#allocation3 + $0x90] sm:$0xff]
      %v5141 = vld [vmem:[#allocation3 + $0x98] sm:$0xff]
      %v5142 = vld [vmem:[#allocation3 + $0xa0] sm:$0xff]
      %v5143 = vld [vmem:[#allocation3 + $0xa8] sm:$0xff]
      %v5144 = vld [vmem:[#allocation3 + $0xb0] sm:$0xff]
      %v5145 = vld [vmem:[#allocation3 + $0xb8] sm:$0xff]
      %v5146 = vld [vmem:[#allocation3 + $0xc0] sm:$0xff]
      %v5147 = vld [vmem:[#allocation3 + $0xc8] sm:$0xff]
      %v5148 = vld [vmem:[#allocation3 + $0xd0] sm:$0xff]
      %v5149 = vld [vmem:[#allocation3 + $0xd8] sm:$0xff]
      %v5150 = vld [vmem:[#allocation3 + $0xe0] sm:$0xff]
      %v5151 = vld [vmem:[#allocation3 + $0xe8] sm:$0xff]
      %v5152 = vld [vmem:[#allocation3 + $0xf0] sm:$0xff]
      %v5153 = vld [vmem:[#allocation3 + $0xf8] sm:$0xff]
      %v5154 = vld [vmem:[#allocation3 + $0x100] sm:$0xff]
      %v5155 = vld [vmem:[#allocation3 + $0x108] sm:$0xff]
      %v5156 = vld [vmem:[#allocation3 + $0x110] sm:$0xff]
      %v5157 = vld [vmem:[#allocation3 + $0x118] sm:$0xff]
      %v5158 = vld [vmem:[#allocation2] sm:$0xff]
      %v5159 = vld [vmem:[#allocation2 + $0x8] sm:$0xff]
      %v5160 = vld [vmem:[#allocation2 + $0x10] sm:$0xff]
      %v5161 = vld [vmem:[#allocation2 + $0x18] sm:$0xff]
      %v5162 = vld [vmem:[#allocation2 + $0x20] sm:$0xff]
      %v5163 = vld [vmem:[#allocation2 + $0x28] sm:$0xff]
      %v5164 = vld [vmem:[#allocation2 + $0x30] sm:$0xff]
      %v5165 = vld [vmem:[#allocation2 + $0x38] sm:$0xff]
      %v5166 = vld [vmem:[#allocation2 + $0x40] sm:$0xff]
      %v5167 = vld [vmem:[#allocation2 + $0x48] sm:$0xff]
      %v5168 = vld [vmem:[#allocation2 + $0x50] sm:$0xff]
      %v5169 = vld [vmem:[#allocation2 + $0x58] sm:$0xff]
      %v5170 = vld [vmem:[#allocation2 + $0x60] sm:$0xff]
      %v5171 = vld [vmem:[#allocation2 + $0x68] sm:$0xff]
      %v5172 = vld [vmem:[#allocation2 + $0x70] sm:$0xff]
      %v5173 = vld [vmem:[#allocation2 + $0x78] sm:$0xff]
      %v5174 = vld [vmem:[#allocation2 + $0x80] sm:$0xff]
      %v5175 = vld [vmem:[#allocation2 + $0x88] sm:$0xff]
      %v5176 = vld [vmem:[#allocation2 + $0x90] sm:$0xff]
      %v5177 = vld [vmem:[#allocation2 + $0x98] sm:$0xff]
      %v5178 = vld [vmem:[#allocation2 + $0xa0] sm:$0xff]
      %v5179 = vld [vmem:[#allocation2 + $0xa8] sm:$0xff]
      %v5180 = vld [vmem:[#allocation2 + $0xb0] sm:$0xff]
      %v5181 = vld [vmem:[#allocation2 + $0xb8] sm:$0xff]
      %v5182 = vld [vmem:[#allocation2 + $0xc0] sm:$0xff]
      %v5183 = vld [vmem:[#allocation2 + $0xc8] sm:$0xff]
      %v5184 = vld [vmem:[#allocation2 + $0xd0] sm:$0xff]
      %v5185 = vld [vmem:[#allocation2 + $0xd8] sm:$0xff]
      %v5186 = vld [vmem:[#allocation2 + $0xe0] sm:$0xff]
      %v5187 = vld [vmem:[#allocation2 + $0xe8] sm:$0xff]
      %v5188 = vld [vmem:[#allocation2 + $0xf0] sm:$0xff]
      %v5189 = vld [vmem:[#allocation2 + $0xf8] sm:$0xff]
      %v5190 = vld [vmem:[#allocation2 + $0x100] sm:$0xff]
      %v5191 = vld [vmem:[#allocation2 + $0x108] sm:$0xff]
      %v5192 = vld [vmem:[#allocation2 + $0x110] sm:$0xff]
      %v5193 = vld [vmem:[#allocation2 + $0x118] sm:$0xff]
      %v5194 = vld [vmem:[%s2] sm:$0xff]
      %v5195 = vld [vmem:[%s2 + $0x8] sm:$0xff]
      %v5196 = vld [vmem:[%s2 + $0x10] sm:$0xff]
      %v5197 = vld [vmem:[%s2 + $0x18] sm:$0xff]
      %v5198 = vld [vmem:[%s2 + $0x20] sm:$0xff]
      %v5199 = vld [vmem:[%s2 + $0x28] sm:$0xff]
      %v5200 = vld [vmem:[%s2 + $0x30] sm:$0xff]
      %v5201 = vld [vmem:[%s2 + $0x38] sm:$0xff]
      %v5202 = vld [vmem:[%s2 + $0x40] sm:$0xff]
      %v5203 = vld [vmem:[%s2 + $0x48] sm:$0xff]
      %v5204 = vld [vmem:[%s2 + $0x50] sm:$0xff]
      %v5205 = vld [vmem:[%s2 + $0x58] sm:$0xff]
      %v5206 = vld [vmem:[%s2 + $0x60] sm:$0xff]
      %v5207 = vld [vmem:[%s2 + $0x68] sm:$0xff]
      %v5208 = vld [vmem:[%s2 + $0x70] sm:$0xff]
      %v5209 = vld [vmem:[%s2 + $0x78] sm:$0xff]
      %5210 = vmatprep.subr.mxu0 0.0
      %5211 = vmatpush1.msra.mxu0 %v5194
      %5212 = vmatprep.subr.mxu0 0.0
      %5213 = vmatpush1.msra.mxu0 %v5195
      %5214 = vmatprep.subr.mxu0 0.0
      %5215 = vmatpush1.msra.mxu0 %v5196
      %5216 = vmatprep.subr.mxu0 0.0
      %5217 = vmatpush1.msra.mxu0 %v5197
      %5218 = vmatprep.subr.mxu0 0.0
      %5219 = vmatpush1.msra.mxu0 %v5198
      %5220 = vmatprep.subr.mxu0 0.0
      %5221 = vmatpush1.msra.mxu0 %v5199
      %5222 = vmatprep.subr.mxu0 0.0
      %5223 = vmatpush1.msra.mxu0 %v5200
      %5224 = vmatprep.subr.mxu0 0.0
      %5225 = vmatpush1.msra.mxu0 %v5201
      %5226 = vmatprep.subr.mxu0 0.0
      %5227 = vmatpush1.msra.mxu0 %v5202
      %5228 = vmatprep.subr.mxu0 0.0
      %5229 = vmatpush1.msra.mxu0 %v5203
      %5230 = vmatprep.subr.mxu0 0.0
      %5231 = vmatpush1.msra.mxu0 %v5204
      %5232 = vmatprep.subr.mxu0 0.0
      %5233 = vmatpush1.msra.mxu0 %v5205
      %5234 = vmatprep.subr.mxu0 0.0
      %5235 = vmatpush1.msra.mxu0 %v5206
      %5236 = vmatprep.subr.mxu0 0.0
      %5237 = vmatpush1.msra.mxu0 %v5207
      %5238 = vmatprep.subr.mxu0 0.0
      %5239 = vmatpush1.msra.mxu0 %v5208
      %5240 = vmatprep.subr.mxu0 0.0
      %5241 = vmatpush1.msra.mxu0 %v5209
      %5242 = vmatprep.subr.mxu0 0.0
      %5243 = vmatpush1.msra.mxu0 0.0
      %5244 = vmatprep.subr.mxu0 0.0
      %5245 = vmatpush1.msra.mxu0 0.0
      %5246 = vmatprep.subr.mxu0 0.0
      %5247 = vmatpush1.msra.mxu0 0.0
      %5248 = vmatprep.subr.mxu0 0.0
      %5249 = vmatpush1.msra.mxu0 0.0
      %5250 = vmatprep.subr.mxu0 0.0
      %5251 = vmatpush1.msra.mxu0 0.0
      %5252 = vmatprep.subr.mxu0 0.0
      %5253 = vmatpush1.msra.mxu0 0.0
      %5254 = vmatprep.subr.mxu0 0.0
      %5255 = vmatpush1.msra.mxu0 0.0
      %5256 = vmatprep.subr.mxu0 0.0
      %5257 = vmatpush1.msra.mxu0 0.0
      %5258 = vmatprep.subr.mxu0 0.0
      %5259 = vmatpush1.msra.mxu0 0.0
      %5260 = vmatprep.subr.mxu0 0.0
      %5261 = vmatpush1.msra.mxu0 0.0
      %5262 = vmatprep.subr.mxu0 0.0
      %5263 = vmatpush1.msra.mxu0 0.0
      %5264 = vmatprep.subr.mxu0 0.0
      %5265 = vmatpush1.msra.mxu0 0.0
      %5266 = vmatprep.subr.mxu0 0.0
      %5267 = vmatpush1.msra.mxu0 0.0
      %5268 = vmatprep.subr.mxu0 0.0
      %5269 = vmatpush1.msra.mxu0 0.0
      %5270 = vmatprep.subr.mxu0 0.0
      %5271 = vmatpush1.msra.mxu0 0.0
      %5272 = vmatprep.subr.mxu0 0.0
      %5273 = vmatpush1.msra.mxu0 0.0
      %5274 = vmatprep.mubr.f32.mxu0 0.0
      %5275 = vmatmul.mubr.f32.gmra.mrb[0].mxu0 %v5158
      %v5276 = vpop.f32.mrb[0].mxu0
      %v5277 = vadd.f32 0.0, %v5276
      %v5278 = vpop.f32.mrb[0].mxu0
      %5279 = vmatprep.mubr.f32.mxu0 0.0
      %5280 = vmatmul.mubr.f32.gmra.mrb[0].mxu0 %v5159
      %v5281 = vpop.f32.mrb[0].mxu0
      %v5282 = vadd.f32 0.0, %v5281
      %v5283 = vpop.f32.mrb[0].mxu0
      %5284 = vmatprep.mubr.f32.mxu0 0.0
      %5285 = vmatmul.mubr.f32.gmra.mrb[0].mxu0 %v5160
      %v5286 = vpop.f32.mrb[0].mxu0
      %v5287 = vadd.f32 0.0, %v5286
      %v5288 = vpop.f32.mrb[0].mxu0
      %5289 = vmatprep.mubr.f32.mxu0 0.0
      %5290 = vmatmul.mubr.f32.gmra.mrb[0].mxu0 %v5161
      %v5291 = vpop.f32.mrb[0].mxu0
      %v5292 = vadd.f32 0.0, %v5291
      %v5293 = vpop.f32.mrb[0].mxu0
      %5294 = vmatprep.mubr.f32.mxu0 0.0
      %5295 = vmatmul.mubr.f32.gmra.mrb[0].mxu0 %v5162
      %v5296 = vpop.f32.mrb[0].mxu0
      %v5297 = vadd.f32 0.0, %v5296
      %v5298 = vpop.f32.mrb[0].mxu0
      %5299 = vmatprep.mubr.f32.mxu0 0.0
      %5300 = vmatmul.mubr.f32.gmra.mrb[0].mxu0 %v5163
      %v5301 = vpop.f32.mrb[0].mxu0
      %v5302 = vadd.f32 0.0, %v5301
      %v5303 = vpop.f32.mrb[0].mxu0
      %5304 = vmatprep.mubr.f32.mxu0 0.0
      %5305 = vmatmul.mubr.f32.gmra.mrb[0].mxu0 %v5164
      %v5306 = vpop.f32.mrb[0].mxu0
      %v5307 = vadd.f32 0.0, %v5306
      %v5308 = vpop.f32.mrb[0].mxu0
      %5309 = vmatprep.mubr.f32.mxu0 0.0
      %5310 = vmatmul.mubr.f32.gmra.mrb[0].mxu0 %v5165
      %v5311 = vpop.f32.mrb[0].mxu0
      %v5312 = vadd.f32 0.0, %v5311
      %v5313 = vpop.f32.mrb[0].mxu0
      %5314 = vmatprep.mubr.f32.mxu0 0.0
      %5315 = vmatmul.mubr.f32.gmra.mrb[0].mxu0 %v5166
      %v5316 = vpop.f32.mrb[0].mxu0
      %v5317 = vadd.f32 0.0, %v5316
      %v5318 = vpop.f32.mrb[0].mxu0
      %5319 = vmatprep.mubr.f32.mxu0 0.0
      %5320 = vmatmul.mubr.f32.gmra.mrb[0].mxu0 %v5167
      %v5321 = vpop.f32.mrb[0].mxu0
      %v5322 = vadd.f32 0.0, %v5321
      %v5323 = vpop.f32.mrb[0].mxu0
      %5324 = vmatprep.mubr.f32.mxu0 0.0
      %5325 = vmatmul.mubr.f32.gmra.mrb[0].mxu0 %v5168
      %v5326 = vpop.f32.mrb[0].mxu0
      %v5327 = vadd.f32 0.0, %v5326
      %v5328 = vpop.f32.mrb[0].mxu0
      %5329 = vmatprep.mubr.f32.mxu0 0.0
      %5330 = vmatmul.mubr.f32.gmra.mrb[0].mxu0 %v5169
      %v5331 = vpop.f32.mrb[0].mxu0
      %v5332 = vadd.f32 0.0, %v5331
      %v5333 = vpop.f32.mrb[0].mxu0
      %5334 = vmatprep.mubr.f32.mxu0 0.0
      %5335 = vmatmul.mubr.f32.gmra.mrb[0].mxu0 %v5170
      %v5336 = vpop.f32.mrb[0].mxu0
      %v5337 = vadd.f32 0.0, %v5336
      %v5338 = vpop.f32.mrb[0].mxu0
      %5339 = vmatprep.mubr.f32.mxu0 0.0
      %5340 = vmatmul.mubr.f32.gmra.mrb[0].mxu0 %v5171
      %v5341 = vpop.f32.mrb[0].mxu0
      %v5342 = vadd.f32 0.0, %v5341
      %v5343 = vpop.f32.mrb[0].mxu0
      %5344 = vmatprep.mubr.f32.mxu0 0.0
      %5345 = vmatmul.mubr.f32.gmra.mrb[0].mxu0 %v5172
      %v5346 = vpop.f32.mrb[0].mxu0
      %v5347 = vadd.f32 0.0, %v5346
      %v5348 = vpop.f32.mrb[0].mxu0
      %5349 = vmatprep.mubr.f32.mxu0 0.0
      %5350 = vmatmul.mubr.f32.gmra.mrb[0].mxu0 %v5173
      %v5351 = vpop.f32.mrb[0].mxu0
      %v5352 = vadd.f32 0.0, %v5351
      %v5353 = vpop.f32.mrb[0].mxu0
      %5354 = vmatprep.mubr.f32.mxu0 0.0
      %5355 = vmatmul.mubr.f32.gmra.mrb[0].mxu0 %v5174
      %v5356 = vpop.f32.mrb[0].mxu0
      %v5357 = vadd.f32 0.0, %v5356
      %v5358 = vpop.f32.mrb[0].mxu0
      %5359 = vmatprep.mubr.f32.mxu0 0.0
      %5360 = vmatmul.mubr.f32.gmra.mrb[0].mxu0 %v5175
      %v5361 = vpop.f32.mrb[0].mxu0
      %v5362 = vadd.f32 0.0, %v5361
      %v5363 = vpop.f32.mrb[0].mxu0
      %5364 = vmatprep.mubr.f32.mxu0 0.0
      %5365 = vmatmul.mubr.f32.gmra.mrb[0].mxu0 %v5176
      %v5366 = vpop.f32.mrb[0].mxu0
      %v5367 = vadd.f32 0.0, %v5366
      %v5368 = vpop.f32.mrb[0].mxu0
      %5369 = vmatprep.mubr.f32.mxu0 0.0
      %5370 = vmatmul.mubr.f32.gmra.mrb[0].mxu0 %v5177
      %v5371 = vpop.f32.mrb[0].mxu0
      %v5372 = vadd.f32 0.0, %v5371
      %v5373 = vpop.f32.mrb[0].mxu0
      %5374 = vmatprep.mubr.f32.mxu0 0.0
      %5375 = vmatmul.mubr.f32.gmra.mrb[0].mxu0 %v5178
      %v5376 = vpop.f32.mrb[0].mxu0
      %v5377 = vadd.f32 0.0, %v5376
      %v5378 = vpop.f32.mrb[0].mxu0
      %5379 = vmatprep.mubr.f32.mxu0 0.0
      %5380 = vmatmul.mubr.f32.gmra.mrb[0].mxu0 %v5179
      %v5381 = vpop.f32.mrb[0].mxu0
      %v5382 = vadd.f32 0.0, %v5381
      %v5383 = vpop.f32.mrb[0].mxu0
      %5384 = vmatprep.mubr.f32.mxu0 0.0
      %5385 = vmatmul.mubr.f32.gmra.mrb[0].mxu0 %v5180
      %v5386 = vpop.f32.mrb[0].mxu0
      %v5387 = vadd.f32 0.0, %v5386
      %v5388 = vpop.f32.mrb[0].mxu0
      %5389 = vmatprep.mubr.f32.mxu0 0.0
      %5390 = vmatmul.mubr.f32.gmra.mrb[0].mxu0 %v5181
      %v5391 = vpop.f32.mrb[0].mxu0
      %v5392 = vadd.f32 0.0, %v5391
      %v5393 = vpop.f32.mrb[0].mxu0
      %5394 = vmatprep.mubr.f32.mxu0 0.0
      %5395 = vmatmul.mubr.f32.gmra.mrb[0].mxu0 %v5182
      %v5396 = vpop.f32.mrb[0].mxu0
      %v5397 = vadd.f32 0.0, %v5396
      %v5398 = vpop.f32.mrb[0].mxu0
      %5399 = vmatprep.mubr.f32.mxu0 0.0
      %5400 = vmatmul.mubr.f32.gmra.mrb[0].mxu0 %v5183
      %v5401 = vpop.f32.mrb[0].mxu0
      %v5402 = vadd.f32 0.0, %v5401
      %v5403 = vpop.f32.mrb[0].mxu0
      %5404 = vmatprep.mubr.f32.mxu0 0.0
      %5405 = vmatmul.mubr.f32.gmra.mrb[0].mxu0 %v5184
      %v5406 = vpop.f32.mrb[0].mxu0
      %v5407 = vadd.f32 0.0, %v5406
      %v5408 = vpop.f32.mrb[0].mxu0
      %5409 = vmatprep.mubr.f32.mxu0 0.0
      %5410 = vmatmul.mubr.f32.gmra.mrb[0].mxu0 %v5185
      %v5411 = vpop.f32.mrb[0].mxu0
      %v5412 = vadd.f32 0.0, %v5411
      %v5413 = vpop.f32.mrb[0].mxu0
      %5414 = vmatprep.mubr.f32.mxu0 0.0
      %5415 = vmatmul.mubr.f32.gmra.mrb[0].mxu0 %v5186
      %v5416 = vpop.f32.mrb[0].mxu0
      %v5417 = vadd.f32 0.0, %v5416
      %v5418 = vpop.f32.mrb[0].mxu0
      %5419 = vmatprep.mubr.f32.mxu0 0.0
      %5420 = vmatmul.mubr.f32.gmra.mrb[0].mxu0 %v5187
      %v5421 = vpop.f32.mrb[0].mxu0
      %v5422 = vadd.f32 0.0, %v5421
      %v5423 = vpop.f32.mrb[0].mxu0
      %5424 = vmatprep.mubr.f32.mxu0 0.0
      %5425 = vmatmul.mubr.f32.gmra.mrb[0].mxu0 %v5188
      %v5426 = vpop.f32.mrb[0].mxu0
      %v5427 = vadd.f32 0.0, %v5426
      %v5428 = vpop.f32.mrb[0].mxu0
      %5429 = vmatprep.mubr.f32.mxu0 0.0
      %5430 = vmatmul.mubr.f32.gmra.mrb[0].mxu0 %v5189
      %v5431 = vpop.f32.mrb[0].mxu0
      %v5432 = vadd.f32 0.0, %v5431
      %v5433 = vpop.f32.mrb[0].mxu0
      %5434 = vmatprep.mubr.f32.mxu0 0.0
      %5435 = vmatmul.mubr.f32.gmra.mrb[0].mxu0 %v5190
      %v5436 = vpop.f32.mrb[0].mxu0
      %v5437 = vadd.f32 0.0, %v5436
      %v5438 = vpop.f32.mrb[0].mxu0
      %5439 = vmatprep.mubr.f32.mxu0 0.0
      %5440 = vmatmul.mubr.f32.gmra.mrb[0].mxu0 %v5191
      %v5441 = vpop.f32.mrb[0].mxu0
      %v5442 = vadd.f32 0.0, %v5441
      %v5443 = vpop.f32.mrb[0].mxu0
      %5444 = vmatprep.mubr.f32.mxu0 0.0
      %5445 = vmatmul.mubr.f32.gmra.mrb[0].mxu0 %v5192
      %v5446 = vpop.f32.mrb[0].mxu0
      %v5447 = vadd.f32 0.0, %v5446
      %v5448 = vpop.f32.mrb[0].mxu0
      %5449 = vmatprep.mubr.f32.mxu0 0.0
      %5450 = vmatmul.mubr.f32.gmra.mrb[0].mxu0 %v5193
      %v5451 = vpop.f32.mrb[0].mxu0
      %v5452 = vadd.f32 0.0, %v5451
      %v5453 = vpop.f32.mrb[0].mxu0
      %5454 = vdwg.mxu0
      %v5455 = vadd.f32 %v5122, %v5277
      %v5456 = vadd.f32 %v5123, %v5282
      %v5457 = vadd.f32 %v5124, %v5287
      %v5458 = vadd.f32 %v5125, %v5292
      %v5459 = vadd.f32 %v5126, %v5297
      %v5460 = vadd.f32 %v5127, %v5302
      %v5461 = vadd.f32 %v5128, %v5307
      %v5462 = vadd.f32 %v5129, %v5312
      %v5463 = vadd.f32 %v5130, %v5317
      %v5464 = vadd.f32 %v5131, %v5322
      %v5465 = vadd.f32 %v5132, %v5327
      %v5466 = vadd.f32 %v5133, %v5332
      %v5467 = vadd.f32 %v5134, %v5337
      %v5468 = vadd.f32 %v5135, %v5342
      %v5469 = vadd.f32 %v5136, %v5347
      %v5470 = vadd.f32 %v5137, %v5352
      %v5471 = vadd.f32 %v5138, %v5357
      %v5472 = vadd.f32 %v5139, %v5362
      %v5473 = vadd.f32 %v5140, %v5367
      %v5474 = vadd.f32 %v5141, %v5372
      %v5475 = vadd.f32 %v5142, %v5377
      %v5476 = vadd.f32 %v5143, %v5382
      %v5477 = vadd.f32 %v5144, %v5387
      %v5478 = vadd.f32 %v5145, %v5392
      %v5479 = vadd.f32 %v5146, %v5397
      %v5480 = vadd.f32 %v5147, %v5402
      %v5481 = vadd.f32 %v5148, %v5407
      %v5482 = vadd.f32 %v5149, %v5412
      %v5483 = vadd.f32 %v5150, %v5417
      %v5484 = vadd.f32 %v5151, %v5422
      %v5485 = vadd.f32 %v5152, %v5427
      %v5486 = vadd.f32 %v5153, %v5432
      %v5487 = vadd.f32 %v5154, %v5437
      %v5488 = vadd.f32 %v5155, %v5442
      %v5489 = vadd.f32 %v5156, %v5447
      %v5490 = vadd.f32 %v5157, %v5452
      %5491 = vst [vmem:[#allocation3] sm:$0xff] %v5455
      %5492 = vst [vmem:[#allocation3 + $0x8] sm:$0xff] %v5456
      %5493 = vst [vmem:[#allocation3 + $0x10] sm:$0xff] %v5457
      %5494 = vst [vmem:[#allocation3 + $0x18] sm:$0xff] %v5458
      %5495 = vst [vmem:[#allocation3 + $0x20] sm:$0xff] %v5459
      %5496 = vst [vmem:[#allocation3 + $0x28] sm:$0xff] %v5460
      %5497 = vst [vmem:[#allocation3 + $0x30] sm:$0xff] %v5461
      %5498 = vst [vmem:[#allocation3 + $0x38] sm:$0xff] %v5462
      %5499 = vst [vmem:[#allocation3 + $0x40] sm:$0xff] %v5463
      %5500 = vst [vmem:[#allocation3 + $0x48] sm:$0xff] %v5464
      %5501 = vst [vmem:[#allocation3 + $0x50] sm:$0xff] %v5465
      %5502 = vst [vmem:[#allocation3 + $0x58] sm:$0xff] %v5466
      %5503 = vst [vmem:[#allocation3 + $0x60] sm:$0xff] %v5467
      %5504 = vst [vmem:[#allocation3 + $0x68] sm:$0xff] %v5468
      %5505 = vst [vmem:[#allocation3 + $0x70] sm:$0xff] %v5469
      %5506 = vst [vmem:[#allocation3 + $0x78] sm:$0xff] %v5470
      %5507 = vst [vmem:[#allocation3 + $0x80] sm:$0xff] %v5471
      %5508 = vst [vmem:[#allocation3 + $0x88] sm:$0xff] %v5472
      %5509 = vst [vmem:[#allocation3 + $0x90] sm:$0xff] %v5473
      %5510 = vst [vmem:[#allocation3 + $0x98] sm:$0xff] %v5474
      %5511 = vst [vmem:[#allocation3 + $0xa0] sm:$0xff] %v5475
      %5512 = vst [vmem:[#allocation3 + $0xa8] sm:$0xff] %v5476
      %5513 = vst [vmem:[#allocation3 + $0xb0] sm:$0xff] %v5477
      %5514 = vst [vmem:[#allocation3 + $0xb8] sm:$0xff] %v5478
      %5515 = vst [vmem:[#allocation3 + $0xc0] sm:$0xff] %v5479
      %5516 = vst [vmem:[#allocation3 + $0xc8] sm:$0xff] %v5480
      %5517 = vst [vmem:[#allocation3 + $0xd0] sm:$0xff] %v5481
      %5518 = vst [vmem:[#allocation3 + $0xd8] sm:$0xff] %v5482
      %5519 = vst [vmem:[#allocation3 + $0xe0] sm:$0xff] %v5483
      %5520 = vst [vmem:[#allocation3 + $0xe8] sm:$0xff] %v5484
      %5521 = vst [vmem:[#allocation3 + $0xf0] sm:$0xff] %v5485
      %5522 = vst [vmem:[#allocation3 + $0xf8] sm:$0xff] %v5486
      %5523 = vst [vmem:[#allocation3 + $0x100] sm:$0xff] %v5487
      %5524 = vst [vmem:[#allocation3 + $0x108] sm:$0xff] %v5488
      %5525 = vst [vmem:[#allocation3 + $0x110] sm:$0xff] %v5489
      %5526 = vst [vmem:[#allocation3 + $0x118] sm:$0xff] %v5490
      %v5527 = vld [vmem:[#allocation3] sm:$0xff]
      %v5528 = vld [vmem:[#allocation3 + $0x8] sm:$0xff]
      %v5529 = vld [vmem:[#allocation3 + $0x10] sm:$0xff]
      %v5530 = vld [vmem:[#allocation3 + $0x18] sm:$0xff]
      %v5531 = vld [vmem:[#allocation3 + $0x20] sm:$0xff]
      %v5532 = vld [vmem:[#allocation3 + $0x28] sm:$0xff]
      %v5533 = vld [vmem:[#allocation3 + $0x30] sm:$0xff]
      %v5534 = vld [vmem:[#allocation3 + $0x38] sm:$0xff]
      %v5535 = vld [vmem:[#allocation3 + $0x40] sm:$0xff]
      %v5536 = vld [vmem:[#allocation3 + $0x48] sm:$0xff]
      %v5537 = vld [vmem:[#allocation3 + $0x50] sm:$0xff]
      %v5538 = vld [vmem:[#allocation3 + $0x58] sm:$0xff]
      %v5539 = vld [vmem:[#allocation3 + $0x60] sm:$0xff]
      %v5540 = vld [vmem:[#allocation3 + $0x68] sm:$0xff]
      %v5541 = vld [vmem:[#allocation3 + $0x70] sm:$0xff]
      %v5542 = vld [vmem:[#allocation3 + $0x78] sm:$0xff]
      %v5543 = vld [vmem:[#allocation3 + $0x80] sm:$0xff]
      %v5544 = vld [vmem:[#allocation3 + $0x88] sm:$0xff]
      %v5545 = vld [vmem:[#allocation3 + $0x90] sm:$0xff]
      %v5546 = vld [vmem:[#allocation3 + $0x98] sm:$0xff]
      %v5547 = vld [vmem:[#allocation3 + $0xa0] sm:$0xff]
      %v5548 = vld [vmem:[#allocation3 + $0xa8] sm:$0xff]
      %v5549 = vld [vmem:[#allocation3 + $0xb0] sm:$0xff]
      %v5550 = vld [vmem:[#allocation3 + $0xb8] sm:$0xff]
      %v5551 = vld [vmem:[#allocation3 + $0xc0] sm:$0xff]
      %v5552 = vld [vmem:[#allocation3 + $0xc8] sm:$0xff]
      %v5553 = vld [vmem:[#allocation3 + $0xd0] sm:$0xff]
      %v5554 = vld [vmem:[#allocation3 + $0xd8] sm:$0xff]
      %v5555 = vld [vmem:[#allocation3 + $0xe0] sm:$0xff]
      %v5556 = vld [vmem:[#allocation3 + $0xe8] sm:$0xff]
      %v5557 = vld [vmem:[#allocation3 + $0xf0] sm:$0xff]
      %v5558 = vld [vmem:[#allocation3 + $0xf8] sm:$0xff]
      %v5559 = vld [vmem:[#allocation3 + $0x100] sm:$0xff]
      %v5560 = vld [vmem:[#allocation3 + $0x108] sm:$0xff]
      %v5561 = vld [vmem:[#allocation3 + $0x110] sm:$0xff]
      %v5562 = vld [vmem:[#allocation3 + $0x118] sm:$0xff]
      %v5563 = vld [vmem:[#allocation2 + $0x1] sm:$0xff]
      %v5564 = vld [vmem:[#allocation2 + $0x9] sm:$0xff]
      %v5565 = vld [vmem:[#allocation2 + $0x11] sm:$0xff]
      %v5566 = vld [vmem:[#allocation2 + $0x19] sm:$0xff]
      %v5567 = vld [vmem:[#allocation2 + $0x21] sm:$0xff]
      %v5568 = vld [vmem:[#allocation2 + $0x29] sm:$0xff]
      %v5569 = vld [vmem:[#allocation2 + $0x31] sm:$0xff]
      %v5570 = vld [vmem:[#allocation2 + $0x39] sm:$0xff]
      %v5571 = vld [vmem:[#allocation2 + $0x41] sm:$0xff]
      %v5572 = vld [vmem:[#allocation2 + $0x49] sm:$0xff]
      %v5573 = vld [vmem:[#allocation2 + $0x51] sm:$0xff]
      %v5574 = vld [vmem:[#allocation2 + $0x59] sm:$0xff]
      %v5575 = vld [vmem:[#allocation2 + $0x61] sm:$0xff]
      %v5576 = vld [vmem:[#allocation2 + $0x69] sm:$0xff]
      %v5577 = vld [vmem:[#allocation2 + $0x71] sm:$0xff]
      %v5578 = vld [vmem:[#allocation2 + $0x79] sm:$0xff]
      %v5579 = vld [vmem:[#allocation2 + $0x81] sm:$0xff]
      %v5580 = vld [vmem:[#allocation2 + $0x89] sm:$0xff]
      %v5581 = vld [vmem:[#allocation2 + $0x91] sm:$0xff]
      %v5582 = vld [vmem:[#allocation2 + $0x99] sm:$0xff]
      %v5583 = vld [vmem:[#allocation2 + $0xa1] sm:$0xff]
      %v5584 = vld [vmem:[#allocation2 + $0xa9] sm:$0xff]
      %v5585 = vld [vmem:[#allocation2 + $0xb1] sm:$0xff]
      %v5586 = vld [vmem:[#allocation2 + $0xb9] sm:$0xff]
      %v5587 = vld [vmem:[#allocation2 + $0xc1] sm:$0xff]
      %v5588 = vld [vmem:[#allocation2 + $0xc9] sm:$0xff]
      %v5589 = vld [vmem:[#allocation2 + $0xd1] sm:$0xff]
      %v5590 = vld [vmem:[#allocation2 + $0xd9] sm:$0xff]
      %v5591 = vld [vmem:[#allocation2 + $0xe1] sm:$0xff]
      %v5592 = vld [vmem:[#allocation2 + $0xe9] sm:$0xff]
      %v5593 = vld [vmem:[#allocation2 + $0xf1] sm:$0xff]
      %v5594 = vld [vmem:[#allocation2 + $0xf9] sm:$0xff]
      %v5595 = vld [vmem:[#allocation2 + $0x101] sm:$0xff]
      %v5596 = vld [vmem:[#allocation2 + $0x109] sm:$0xff]
      %v5597 = vld [vmem:[#allocation2 + $0x111] sm:$0xff]
      %v5598 = vld [vmem:[#allocation2 + $0x119] sm:$0xff]
      %s5599 = scalar_lea.vmem %s2, 128
      %v5600 = vld [vmem:[%s5599] sm:$0xff]
      %v5601 = vld [vmem:[%s5599 + $0x8] sm:$0xff]
      %v5602 = vld [vmem:[%s5599 + $0x10] sm:$0xff]
      %v5603 = vld [vmem:[%s5599 + $0x18] sm:$0xff]
      %v5604 = vld [vmem:[%s5599 + $0x20] sm:$0xff]
      %v5605 = vld [vmem:[%s5599 + $0x28] sm:$0xff]
      %v5606 = vld [vmem:[%s5599 + $0x30] sm:$0xff]
      %v5607 = vld [vmem:[%s5599 + $0x38] sm:$0xff]
      %v5608 = vld [vmem:[%s5599 + $0x40] sm:$0xff]
      %v5609 = vld [vmem:[%s5599 + $0x48] sm:$0xff]
      %v5610 = vld [vmem:[%s5599 + $0x50] sm:$0xff]
      %v5611 = vld [vmem:[%s5599 + $0x58] sm:$0xff]
      %v5612 = vld [vmem:[%s5599 + $0x60] sm:$0xff]
      %v5613 = vld [vmem:[%s5599 + $0x68] sm:$0xff]
      %v5614 = vld [vmem:[%s5599 + $0x70] sm:$0xff]
      %v5615 = vld [vmem:[%s5599 + $0x78] sm:$0xff]
      %5616 = vmatprep.subr.mxu0 0.0
      %5617 = vmatpush1.msra.mxu0 %v5600
      %5618 = vmatprep.subr.mxu0 0.0
      %5619 = vmatpush1.msra.mxu0 %v5601
      %5620 = vmatprep.subr.mxu0 0.0
      %5621 = vmatpush1.msra.mxu0 %v5602
      %5622 = vmatprep.subr.mxu0 0.0
      %5623 = vmatpush1.msra.mxu0 %v5603
      %5624 = vmatprep.subr.mxu0 0.0
      %5625 = vmatpush1.msra.mxu0 %v5604
      %5626 = vmatprep.subr.mxu0 0.0
      %5627 = vmatpush1.msra.mxu0 %v5605
      %5628 = vmatprep.subr.mxu0 0.0
      %5629 = vmatpush1.msra.mxu0 %v5606
      %5630 = vmatprep.subr.mxu0 0.0
      %5631 = vmatpush1.msra.mxu0 %v5607
      %5632 = vmatprep.subr.mxu0 0.0
      %5633 = vmatpush1.msra.mxu0 %v5608
      %5634 = vmatprep.subr.mxu0 0.0
      %5635 = vmatpush1.msra.mxu0 %v5609
      %5636 = vmatprep.subr.mxu0 0.0
      %5637 = vmatpush1.msra.mxu0 %v5610
      %5638 = vmatprep.subr.mxu0 0.0
      %5639 = vmatpush1.msra.mxu0 %v5611
      %5640 = vmatprep.subr.mxu0 0.0
      %5641 = vmatpush1.msra.mxu0 %v5612
      %5642 = vmatprep.subr.mxu0 0.0
      %5643 = vmatpush1.msra.mxu0 %v5613
      %5644 = vmatprep.subr.mxu0 0.0
      %5645 = vmatpush1.msra.mxu0 %v5614
      %5646 = vmatprep.subr.mxu0 0.0
      %5647 = vmatpush1.msra.mxu0 %v5615
      %5648 = vmatprep.subr.mxu0 0.0
      %5649 = vmatpush1.msra.mxu0 0.0
      %5650 = vmatprep.subr.mxu0 0.0
      %5651 = vmatpush1.msra.mxu0 0.0
      %5652 = vmatprep.subr.mxu0 0.0
      %5653 = vmatpush1.msra.mxu0 0.0
      %5654 = vmatprep.subr.mxu0 0.0
      %5655 = vmatpush1.msra.mxu0 0.0
      %5656 = vmatprep.subr.mxu0 0.0
      %5657 = vmatpush1.msra.mxu0 0.0
      %5658 = vmatprep.subr.mxu0 0.0
      %5659 = vmatpush1.msra.mxu0 0.0
      %5660 = vmatprep.subr.mxu0 0.0
      %5661 = vmatpush1.msra.mxu0 0.0
      %5662 = vmatprep.subr.mxu0 0.0
      %5663 = vmatpush1.msra.mxu0 0.0
      %5664 = vmatprep.subr.mxu0 0.0
      %5665 = vmatpush1.msra.mxu0 0.0
      %5666 = vmatprep.subr.mxu0 0.0
      %5667 = vmatpush1.msra.mxu0 0.0
      %5668 = vmatprep.subr.mxu0 0.0
      %5669 = vmatpush1.msra.mxu0 0.0
      %5670 = vmatprep.subr.mxu0 0.0
      %5671 = vmatpush1.msra.mxu0 0.0
      %5672 = vmatprep.subr.mxu0 0.0
      %5673 = vmatpush1.msra.mxu0 0.0
      %5674 = vmatprep.subr.mxu0 0.0
      %5675 = vmatpush1.msra.mxu0 0.0
      %5676 = vmatprep.subr.mxu0 0.0
      %5677 = vmatpush1.msra.mxu0 0.0
      %5678 = vmatprep.subr.mxu0 0.0
      %5679 = vmatpush1.msra.mxu0 0.0
      %5680 = vmatprep.mubr.f32.mxu0 0.0
      %5681 = vmatmul.mubr.f32.gmra.mrb[0].mxu0 %v5563
      %v5682 = vpop.f32.mrb[0].mxu0
      %v5683 = vadd.f32 0.0, %v5682
      %v5684 = vpop.f32.mrb[0].mxu0
      %5685 = vmatprep.mubr.f32.mxu0 0.0
      %5686 = vmatmul.mubr.f32.gmra.mrb[0].mxu0 %v5564
      %v5687 = vpop.f32.mrb[0].mxu0
      %v5688 = vadd.f32 0.0, %v5687
      %v5689 = vpop.f32.mrb[0].mxu0
      %5690 = vmatprep.mubr.f32.mxu0 0.0
      %5691 = vmatmul.mubr.f32.gmra.mrb[0].mxu0 %v5565
      %v5692 = vpop.f32.mrb[0].mxu0
      %v5693 = vadd.f32 0.0, %v5692
      %v5694 = vpop.f32.mrb[0].mxu0
      %5695 = vmatprep.mubr.f32.mxu0 0.0
      %5696 = vmatmul.mubr.f32.gmra.mrb[0].mxu0 %v5566
      %v5697 = vpop.f32.mrb[0].mxu0
      %v5698 = vadd.f32 0.0, %v5697
      %v5699 = vpop.f32.mrb[0].mxu0
      %5700 = vmatprep.mubr.f32.mxu0 0.0
      %5701 = vmatmul.mubr.f32.gmra.mrb[0].mxu0 %v5567
      %v5702 = vpop.f32.mrb[0].mxu0
      %v5703 = vadd.f32 0.0, %v5702
      %v5704 = vpop.f32.mrb[0].mxu0
      %5705 = vmatprep.mubr.f32.mxu0 0.0
      %5706 = vmatmul.mubr.f32.gmra.mrb[0].mxu0 %v5568
      %v5707 = vpop.f32.mrb[0].mxu0
      %v5708 = vadd.f32 0.0, %v5707
      %v5709 = vpop.f32.mrb[0].mxu0
      %5710 = vmatprep.mubr.f32.mxu0 0.0
      %5711 = vmatmul.mubr.f32.gmra.mrb[0].mxu0 %v5569
      %v5712 = vpop.f32.mrb[0].mxu0
      %v5713 = vadd.f32 0.0, %v5712
      %v5714 = vpop.f32.mrb[0].mxu0
      %5715 = vmatprep.mubr.f32.mxu0 0.0
      %5716 = vmatmul.mubr.f32.gmra.mrb[0].mxu0 %v5570
      %v5717 = vpop.f32.mrb[0].mxu0
      %v5718 = vadd.f32 0.0, %v5717
      %v5719 = vpop.f32.mrb[0].mxu0
      %5720 = vmatprep.mubr.f32.mxu0 0.0
      %5721 = vmatmul.mubr.f32.gmra.mrb[0].mxu0 %v5571
      %v5722 = vpop.f32.mrb[0].mxu0
      %v5723 = vadd.f32 0.0, %v5722
      %v5724 = vpop.f32.mrb[0].mxu0
      %5725 = vmatprep.mubr.f32.mxu0 0.0
      %5726 = vmatmul.mubr.f32.gmra.mrb[0].mxu0 %v5572
      %v5727 = vpop.f32.mrb[0].mxu0
      %v5728 = vadd.f32 0.0, %v5727
      %v5729 = vpop.f32.mrb[0].mxu0
      %5730 = vmatprep.mubr.f32.mxu0 0.0
      %5731 = vmatmul.mubr.f32.gmra.mrb[0].mxu0 %v5573
      %v5732 = vpop.f32.mrb[0].mxu0
      %v5733 = vadd.f32 0.0, %v5732
      %v5734 = vpop.f32.mrb[0].mxu0
      %5735 = vmatprep.mubr.f32.mxu0 0.0
      %5736 = vmatmul.mubr.f32.gmra.mrb[0].mxu0 %v5574
      %v5737 = vpop.f32.mrb[0].mxu0
      %v5738 = vadd.f32 0.0, %v5737
      %v5739 = vpop.f32.mrb[0].mxu0
      %5740 = vmatprep.mubr.f32.mxu0 0.0
      %5741 = vmatmul.mubr.f32.gmra.mrb[0].mxu0 %v5575
      %v5742 = vpop.f32.mrb[0].mxu0
      %v5743 = vadd.f32 0.0, %v5742
      %v5744 = vpop.f32.mrb[0].mxu0
      %5745 = vmatprep.mubr.f32.mxu0 0.0
      %5746 = vmatmul.mubr.f32.gmra.mrb[0].mxu0 %v5576
      %v5747 = vpop.f32.mrb[0].mxu0
      %v5748 = vadd.f32 0.0, %v5747
      %v5749 = vpop.f32.mrb[0].mxu0
      %5750 = vmatprep.mubr.f32.mxu0 0.0
      %5751 = vmatmul.mubr.f32.gmra.mrb[0].mxu0 %v5577
      %v5752 = vpop.f32.mrb[0].mxu0
      %v5753 = vadd.f32 0.0, %v5752
      %v5754 = vpop.f32.mrb[0].mxu0
      %5755 = vmatprep.mubr.f32.mxu0 0.0
      %5756 = vmatmul.mubr.f32.gmra.mrb[0].mxu0 %v5578
      %v5757 = vpop.f32.mrb[0].mxu0
      %v5758 = vadd.f32 0.0, %v5757
      %v5759 = vpop.f32.mrb[0].mxu0
      %5760 = vmatprep.mubr.f32.mxu0 0.0
      %5761 = vmatmul.mubr.f32.gmra.mrb[0].mxu0 %v5579
      %v5762 = vpop.f32.mrb[0].mxu0
      %v5763 = vadd.f32 0.0, %v5762
      %v5764 = vpop.f32.mrb[0].mxu0
      %5765 = vmatprep.mubr.f32.mxu0 0.0
      %5766 = vmatmul.mubr.f32.gmra.mrb[0].mxu0 %v5580
      %v5767 = vpop.f32.mrb[0].mxu0
      %v5768 = vadd.f32 0.0, %v5767
      %v5769 = vpop.f32.mrb[0].mxu0
      %5770 = vmatprep.mubr.f32.mxu0 0.0
      %5771 = vmatmul.mubr.f32.gmra.mrb[0].mxu0 %v5581
      %v5772 = vpop.f32.mrb[0].mxu0
      %v5773 = vadd.f32 0.0, %v5772
      %v5774 = vpop.f32.mrb[0].mxu0
      %5775 = vmatprep.mubr.f32.mxu0 0.0
      %5776 = vmatmul.mubr.f32.gmra.mrb[0].mxu0 %v5582
      %v5777 = vpop.f32.mrb[0].mxu0
      %v5778 = vadd.f32 0.0, %v5777
      %v5779 = vpop.f32.mrb[0].mxu0
      %5780 = vmatprep.mubr.f32.mxu0 0.0
      %5781 = vmatmul.mubr.f32.gmra.mrb[0].mxu0 %v5583
      %v5782 = vpop.f32.mrb[0].mxu0
      %v5783 = vadd.f32 0.0, %v5782
      %v5784 = vpop.f32.mrb[0].mxu0
      %5785 = vmatprep.mubr.f32.mxu0 0.0
      %5786 = vmatmul.mubr.f32.gmra.mrb[0].mxu0 %v5584
      %v5787 = vpop.f32.mrb[0].mxu0
      %v5788 = vadd.f32 0.0, %v5787
      %v5789 = vpop.f32.mrb[0].mxu0
      %5790 = vmatprep.mubr.f32.mxu0 0.0
      %5791 = vmatmul.mubr.f32.gmra.mrb[0].mxu0 %v5585
      %v5792 = vpop.f32.mrb[0].mxu0
      %v5793 = vadd.f32 0.0, %v5792
      %v5794 = vpop.f32.mrb[0].mxu0
      %5795 = vmatprep.mubr.f32.mxu0 0.0
      %5796 = vmatmul.mubr.f32.gmra.mrb[0].mxu0 %v5586
      %v5797 = vpop.f32.mrb[0].mxu0
      %v5798 = vadd.f32 0.0, %v5797
      %v5799 = vpop.f32.mrb[0].mxu0
      %5800 = vmatprep.mubr.f32.mxu0 0.0
      %5801 = vmatmul.mubr.f32.gmra.mrb[0].mxu0 %v5587
      %v5802 = vpop.f32.mrb[0].mxu0
      %v5803 = vadd.f32 0.0, %v5802
      %v5804 = vpop.f32.mrb[0].mxu0
      %5805 = vmatprep.mubr.f32.mxu0 0.0
      %5806 = vmatmul.mubr.f32.gmra.mrb[0].mxu0 %v5588
      %v5807 = vpop.f32.mrb[0].mxu0
      %v5808 = vadd.f32 0.0, %v5807
      %v5809 = vpop.f32.mrb[0].mxu0
      %5810 = vmatprep.mubr.f32.mxu0 0.0
      %5811 = vmatmul.mubr.f32.gmra.mrb[0].mxu0 %v5589
      %v5812 = vpop.f32.mrb[0].mxu0
      %v5813 = vadd.f32 0.0, %v5812
      %v5814 = vpop.f32.mrb[0].mxu0
      %5815 = vmatprep.mubr.f32.mxu0 0.0
      %5816 = vmatmul.mubr.f32.gmra.mrb[0].mxu0 %v5590
      %v5817 = vpop.f32.mrb[0].mxu0
      %v5818 = vadd.f32 0.0, %v5817
      %v5819 = vpop.f32.mrb[0].mxu0
      %5820 = vmatprep.mubr.f32.mxu0 0.0
      %5821 = vmatmul.mubr.f32.gmra.mrb[0].mxu0 %v5591
      %v5822 = vpop.f32.mrb[0].mxu0
      %v5823 = vadd.f32 0.0, %v5822
      %v5824 = vpop.f32.mrb[0].mxu0
      %5825 = vmatprep.mubr.f32.mxu0 0.0
      %5826 = vmatmul.mubr.f32.gmra.mrb[0].mxu0 %v5592
      %v5827 = vpop.f32.mrb[0].mxu0
      %v5828 = vadd.f32 0.0, %v5827
      %v5829 = vpop.f32.mrb[0].mxu0
      %5830 = vmatprep.mubr.f32.mxu0 0.0
      %5831 = vmatmul.mubr.f32.gmra.mrb[0].mxu0 %v5593
      %v5832 = vpop.f32.mrb[0].mxu0
      %v5833 = vadd.f32 0.0, %v5832
      %v5834 = vpop.f32.mrb[0].mxu0
      %5835 = vmatprep.mubr.f32.mxu0 0.0
      %5836 = vmatmul.mubr.f32.gmra.mrb[0].mxu0 %v5594
      %v5837 = vpop.f32.mrb[0].mxu0
      %v5838 = vadd.f32 0.0, %v5837
      %v5839 = vpop.f32.mrb[0].mxu0
      %5840 = vmatprep.mubr.f32.mxu0 0.0
      %5841 = vmatmul.mubr.f32.gmra.mrb[0].mxu0 %v5595
      %v5842 = vpop.f32.mrb[0].mxu0
      %v5843 = vadd.f32 0.0, %v5842
      %v5844 = vpop.f32.mrb[0].mxu0
      %5845 = vmatprep.mubr.f32.mxu0 0.0
      %5846 = vmatmul.mubr.f32.gmra.mrb[0].mxu0 %v5596
      %v5847 = vpop.f32.mrb[0].mxu0
      %v5848 = vadd.f32 0.0, %v5847
      %v5849 = vpop.f32.mrb[0].mxu0
      %5850 = vmatprep.mubr.f32.mxu0 0.0
      %5851 = vmatmul.mubr.f32.gmra.mrb[0].mxu0 %v5597
      %v5852 = vpop.f32.mrb[0].mxu0
      %v5853 = vadd.f32 0.0, %v5852
      %v5854 = vpop.f32.mrb[0].mxu0
      %5855 = vmatprep.mubr.f32.mxu0 0.0
      %5856 = vmatmul.mubr.f32.gmra.mrb[0].mxu0 %v5598
      %v5857 = vpop.f32.mrb[0].mxu0
      %v5858 = vadd.f32 0.0, %v5857
      %v5859 = vpop.f32.mrb[0].mxu0
      %5860 = vdwg.mxu0
      %v5861 = vadd.f32 %v5527, %v5683
      %v5862 = vadd.f32 %v5528, %v5688
      %v5863 = vadd.f32 %v5529, %v5693
      %v5864 = vadd.f32 %v5530, %v5698
      %v5865 = vadd.f32 %v5531, %v5703
      %v5866 = vadd.f32 %v5532, %v5708
      %v5867 = vadd.f32 %v5533, %v5713
      %v5868 = vadd.f32 %v5534, %v5718
      %v5869 = vadd.f32 %v5535, %v5723
      %v5870 = vadd.f32 %v5536, %v5728
      %v5871 = vadd.f32 %v5537, %v5733
      %v5872 = vadd.f32 %v5538, %v5738
      %v5873 = vadd.f32 %v5539, %v5743
      %v5874 = vadd.f32 %v5540, %v5748
      %v5875 = vadd.f32 %v5541, %v5753
      %v5876 = vadd.f32 %v5542, %v5758
      %v5877 = vadd.f32 %v5543, %v5763
      %v5878 = vadd.f32 %v5544, %v5768
      %v5879 = vadd.f32 %v5545, %v5773
      %v5880 = vadd.f32 %v5546, %v5778
      %v5881 = vadd.f32 %v5547, %v5783
      %v5882 = vadd.f32 %v5548, %v5788
      %v5883 = vadd.f32 %v5549, %v5793
      %v5884 = vadd.f32 %v5550, %v5798
      %v5885 = vadd.f32 %v5551, %v5803
      %v5886 = vadd.f32 %v5552, %v5808
      %v5887 = vadd.f32 %v5553, %v5813
      %v5888 = vadd.f32 %v5554, %v5818
      %v5889 = vadd.f32 %v5555, %v5823
      %v5890 = vadd.f32 %v5556, %v5828
      %v5891 = vadd.f32 %v5557, %v5833
      %v5892 = vadd.f32 %v5558, %v5838
      %v5893 = vadd.f32 %v5559, %v5843
      %v5894 = vadd.f32 %v5560, %v5848
      %v5895 = vadd.f32 %v5561, %v5853
      %v5896 = vadd.f32 %v5562, %v5858
      %5897 = vst [vmem:[#allocation3] sm:$0xff] %v5861
      %5898 = vst [vmem:[#allocation3 + $0x8] sm:$0xff] %v5862
      %5899 = vst [vmem:[#allocation3 + $0x10] sm:$0xff] %v5863
      %5900 = vst [vmem:[#allocation3 + $0x18] sm:$0xff] %v5864
      %5901 = vst [vmem:[#allocation3 + $0x20] sm:$0xff] %v5865
      %5902 = vst [vmem:[#allocation3 + $0x28] sm:$0xff] %v5866
      %5903 = vst [vmem:[#allocation3 + $0x30] sm:$0xff] %v5867
      %5904 = vst [vmem:[#allocation3 + $0x38] sm:$0xff] %v5868
      %5905 = vst [vmem:[#allocation3 + $0x40] sm:$0xff] %v5869
      %5906 = vst [vmem:[#allocation3 + $0x48] sm:$0xff] %v5870
      %5907 = vst [vmem:[#allocation3 + $0x50] sm:$0xff] %v5871
      %5908 = vst [vmem:[#allocation3 + $0x58] sm:$0xff] %v5872
      %5909 = vst [vmem:[#allocation3 + $0x60] sm:$0xff] %v5873
      %5910 = vst [vmem:[#allocation3 + $0x68] sm:$0xff] %v5874
      %5911 = vst [vmem:[#allocation3 + $0x70] sm:$0xff] %v5875
      %5912 = vst [vmem:[#allocation3 + $0x78] sm:$0xff] %v5876
      %5913 = vst [vmem:[#allocation3 + $0x80] sm:$0xff] %v5877
      %5914 = vst [vmem:[#allocation3 + $0x88] sm:$0xff] %v5878
      %5915 = vst [vmem:[#allocation3 + $0x90] sm:$0xff] %v5879
      %5916 = vst [vmem:[#allocation3 + $0x98] sm:$0xff] %v5880
      %5917 = vst [vmem:[#allocation3 + $0xa0] sm:$0xff] %v5881
      %5918 = vst [vmem:[#allocation3 + $0xa8] sm:$0xff] %v5882
      %5919 = vst [vmem:[#allocation3 + $0xb0] sm:$0xff] %v5883
      %5920 = vst [vmem:[#allocation3 + $0xb8] sm:$0xff] %v5884
      %5921 = vst [vmem:[#allocation3 + $0xc0] sm:$0xff] %v5885
      %5922 = vst [vmem:[#allocation3 + $0xc8] sm:$0xff] %v5886
      %5923 = vst [vmem:[#allocation3 + $0xd0] sm:$0xff] %v5887
      %5924 = vst [vmem:[#allocation3 + $0xd8] sm:$0xff] %v5888
      %5925 = vst [vmem:[#allocation3 + $0xe0] sm:$0xff] %v5889
      %5926 = vst [vmem:[#allocation3 + $0xe8] sm:$0xff] %v5890
      %5927 = vst [vmem:[#allocation3 + $0xf0] sm:$0xff] %v5891
      %5928 = vst [vmem:[#allocation3 + $0xf8] sm:$0xff] %v5892
      %5929 = vst [vmem:[#allocation3 + $0x100] sm:$0xff] %v5893
      %5930 = vst [vmem:[#allocation3 + $0x108] sm:$0xff] %v5894
      %5931 = vst [vmem:[#allocation3 + $0x110] sm:$0xff] %v5895
      %5932 = vst [vmem:[#allocation3 + $0x118] sm:$0xff] %v5896
      %v5933 = vld [vmem:[#allocation3] sm:$0xff]
      %v5934 = vld [vmem:[#allocation3 + $0x8] sm:$0xff]
      %v5935 = vld [vmem:[#allocation3 + $0x10] sm:$0xff]
      %v5936 = vld [vmem:[#allocation3 + $0x18] sm:$0xff]
      %v5937 = vld [vmem:[#allocation3 + $0x20] sm:$0xff]
      %v5938 = vld [vmem:[#allocation3 + $0x28] sm:$0xff]
      %v5939 = vld [vmem:[#allocation3 + $0x30] sm:$0xff]
      %v5940 = vld [vmem:[#allocation3 + $0x38] sm:$0xff]
      %v5941 = vld [vmem:[#allocation3 + $0x40] sm:$0xff]
      %v5942 = vld [vmem:[#allocation3 + $0x48] sm:$0xff]
      %v5943 = vld [vmem:[#allocation3 + $0x50] sm:$0xff]
      %v5944 = vld [vmem:[#allocation3 + $0x58] sm:$0xff]
      %v5945 = vld [vmem:[#allocation3 + $0x60] sm:$0xff]
      %v5946 = vld [vmem:[#allocation3 + $0x68] sm:$0xff]
      %v5947 = vld [vmem:[#allocation3 + $0x70] sm:$0xff]
      %v5948 = vld [vmem:[#allocation3 + $0x78] sm:$0xff]
      %v5949 = vld [vmem:[#allocation3 + $0x80] sm:$0xff]
      %v5950 = vld [vmem:[#allocation3 + $0x88] sm:$0xff]
      %v5951 = vld [vmem:[#allocation3 + $0x90] sm:$0xff]
      %v5952 = vld [vmem:[#allocation3 + $0x98] sm:$0xff]
      %v5953 = vld [vmem:[#allocation3 + $0xa0] sm:$0xff]
      %v5954 = vld [vmem:[#allocation3 + $0xa8] sm:$0xff]
      %v5955 = vld [vmem:[#allocation3 + $0xb0] sm:$0xff]
      %v5956 = vld [vmem:[#allocation3 + $0xb8] sm:$0xff]
      %v5957 = vld [vmem:[#allocation3 + $0xc0] sm:$0xff]
      %v5958 = vld [vmem:[#allocation3 + $0xc8] sm:$0xff]
      %v5959 = vld [vmem:[#allocation3 + $0xd0] sm:$0xff]
      %v5960 = vld [vmem:[#allocation3 + $0xd8] sm:$0xff]
      %v5961 = vld [vmem:[#allocation3 + $0xe0] sm:$0xff]
      %v5962 = vld [vmem:[#allocation3 + $0xe8] sm:$0xff]
      %v5963 = vld [vmem:[#allocation3 + $0xf0] sm:$0xff]
      %v5964 = vld [vmem:[#allocation3 + $0xf8] sm:$0xff]
      %v5965 = vld [vmem:[#allocation3 + $0x100] sm:$0xff]
      %v5966 = vld [vmem:[#allocation3 + $0x108] sm:$0xff]
      %v5967 = vld [vmem:[#allocation3 + $0x110] sm:$0xff]
      %v5968 = vld [vmem:[#allocation3 + $0x118] sm:$0xff]
      %v5969 = vld [vmem:[#allocation2 + $0x2] sm:$0xff]
      %v5970 = vld [vmem:[#allocation2 + $0xa] sm:$0xff]
      %v5971 = vld [vmem:[#allocation2 + $0x12] sm:$0xff]
      %v5972 = vld [vmem:[#allocation2 + $0x1a] sm:$0xff]
      %v5973 = vld [vmem:[#allocation2 + $0x22] sm:$0xff]
      %v5974 = vld [vmem:[#allocation2 + $0x2a] sm:$0xff]
      %v5975 = vld [vmem:[#allocation2 + $0x32] sm:$0xff]
      %v5976 = vld [vmem:[#allocation2 + $0x3a] sm:$0xff]
      %v5977 = vld [vmem:[#allocation2 + $0x42] sm:$0xff]
      %v5978 = vld [vmem:[#allocation2 + $0x4a] sm:$0xff]
      %v5979 = vld [vmem:[#allocation2 + $0x52] sm:$0xff]
      %v5980 = vld [vmem:[#allocation2 + $0x5a] sm:$0xff]
      %v5981 = vld [vmem:[#allocation2 + $0x62] sm:$0xff]
      %v5982 = vld [vmem:[#allocation2 + $0x6a] sm:$0xff]
      %v5983 = vld [vmem:[#allocation2 + $0x72] sm:$0xff]
      %v5984 = vld [vmem:[#allocation2 + $0x7a] sm:$0xff]
      %v5985 = vld [vmem:[#allocation2 + $0x82] sm:$0xff]
      %v5986 = vld [vmem:[#allocation2 + $0x8a] sm:$0xff]
      %v5987 = vld [vmem:[#allocation2 + $0x92] sm:$0xff]
      %v5988 = vld [vmem:[#allocation2 + $0x9a] sm:$0xff]
      %v5989 = vld [vmem:[#allocation2 + $0xa2] sm:$0xff]
      %v5990 = vld [vmem:[#allocation2 + $0xaa] sm:$0xff]
      %v5991 = vld [vmem:[#allocation2 + $0xb2] sm:$0xff]
      %v5992 = vld [vmem:[#allocation2 + $0xba] sm:$0xff]
      %v5993 = vld [vmem:[#allocation2 + $0xc2] sm:$0xff]
      %v5994 = vld [vmem:[#allocation2 + $0xca] sm:$0xff]
      %v5995 = vld [vmem:[#allocation2 + $0xd2] sm:$0xff]
      %v5996 = vld [vmem:[#allocation2 + $0xda] sm:$0xff]
      %v5997 = vld [vmem:[#allocation2 + $0xe2] sm:$0xff]
      %v5998 = vld [vmem:[#allocation2 + $0xea] sm:$0xff]
      %v5999 = vld [vmem:[#allocation2 + $0xf2] sm:$0xff]
      %v6000 = vld [vmem:[#allocation2 + $0xfa] sm:$0xff]
      %v6001 = vld [vmem:[#allocation2 + $0x102] sm:$0xff]
      %v6002 = vld [vmem:[#allocation2 + $0x10a] sm:$0xff]
      %v6003 = vld [vmem:[#allocation2 + $0x112] sm:$0xff]
      %v6004 = vld [vmem:[#allocation2 + $0x11a] sm:$0xff]
      %s6005 = scalar_lea.vmem %s2, 256
      %v6006 = vld [vmem:[%s6005] sm:$0xff]
      %v6007 = vld [vmem:[%s6005 + $0x8] sm:$0xff]
      %v6008 = vld [vmem:[%s6005 + $0x10] sm:$0xff]
      %v6009 = vld [vmem:[%s6005 + $0x18] sm:$0xff]
      %v6010 = vld [vmem:[%s6005 + $0x20] sm:$0xff]
      %v6011 = vld [vmem:[%s6005 + $0x28] sm:$0xff]
      %v6012 = vld [vmem:[%s6005 + $0x30] sm:$0xff]
      %v6013 = vld [vmem:[%s6005 + $0x38] sm:$0xff]
      %v6014 = vld [vmem:[%s6005 + $0x40] sm:$0xff]
      %v6015 = vld [vmem:[%s6005 + $0x48] sm:$0xff]
      %v6016 = vld [vmem:[%s6005 + $0x50] sm:$0xff]
      %v6017 = vld [vmem:[%s6005 + $0x58] sm:$0xff]
      %v6018 = vld [vmem:[%s6005 + $0x60] sm:$0xff]
      %v6019 = vld [vmem:[%s6005 + $0x68] sm:$0xff]
      %v6020 = vld [vmem:[%s6005 + $0x70] sm:$0xff]
      %v6021 = vld [vmem:[%s6005 + $0x78] sm:$0xff]
      %6022 = vmatprep.subr.mxu0 0.0
      %6023 = vmatpush1.msra.mxu0 %v6006
      %6024 = vmatprep.subr.mxu0 0.0
      %6025 = vmatpush1.msra.mxu0 %v6007
      %6026 = vmatprep.subr.mxu0 0.0
      %6027 = vmatpush1.msra.mxu0 %v6008
      %6028 = vmatprep.subr.mxu0 0.0
      %6029 = vmatpush1.msra.mxu0 %v6009
      %6030 = vmatprep.subr.mxu0 0.0
      %6031 = vmatpush1.msra.mxu0 %v6010
      %6032 = vmatprep.subr.mxu0 0.0
      %6033 = vmatpush1.msra.mxu0 %v6011
      %6034 = vmatprep.subr.mxu0 0.0
      %6035 = vmatpush1.msra.mxu0 %v6012
      %6036 = vmatprep.subr.mxu0 0.0
      %6037 = vmatpush1.msra.mxu0 %v6013
      %6038 = vmatprep.subr.mxu0 0.0
      %6039 = vmatpush1.msra.mxu0 %v6014
      %6040 = vmatprep.subr.mxu0 0.0
      %6041 = vmatpush1.msra.mxu0 %v6015
      %6042 = vmatprep.subr.mxu0 0.0
      %6043 = vmatpush1.msra.mxu0 %v6016
      %6044 = vmatprep.subr.mxu0 0.0
      %6045 = vmatpush1.msra.mxu0 %v6017
      %6046 = vmatprep.subr.mxu0 0.0
      %6047 = vmatpush1.msra.mxu0 %v6018
      %6048 = vmatprep.subr.mxu0 0.0
      %6049 = vmatpush1.msra.mxu0 %v6019
      %6050 = vmatprep.subr.mxu0 0.0
      %6051 = vmatpush1.msra.mxu0 %v6020
      %6052 = vmatprep.subr.mxu0 0.0
      %6053 = vmatpush1.msra.mxu0 %v6021
      %6054 = vmatprep.subr.mxu0 0.0
      %6055 = vmatpush1.msra.mxu0 0.0
      %6056 = vmatprep.subr.mxu0 0.0
      %6057 = vmatpush1.msra.mxu0 0.0
      %6058 = vmatprep.subr.mxu0 0.0
      %6059 = vmatpush1.msra.mxu0 0.0
      %6060 = vmatprep.subr.mxu0 0.0
      %6061 = vmatpush1.msra.mxu0 0.0
      %6062 = vmatprep.subr.mxu0 0.0
      %6063 = vmatpush1.msra.mxu0 0.0
      %6064 = vmatprep.subr.mxu0 0.0
      %6065 = vmatpush1.msra.mxu0 0.0
      %6066 = vmatprep.subr.mxu0 0.0
      %6067 = vmatpush1.msra.mxu0 0.0
      %6068 = vmatprep.subr.mxu0 0.0
      %6069 = vmatpush1.msra.mxu0 0.0
      %6070 = vmatprep.subr.mxu0 0.0
      %6071 = vmatpush1.msra.mxu0 0.0
      %6072 = vmatprep.subr.mxu0 0.0
      %6073 = vmatpush1.msra.mxu0 0.0
      %6074 = vmatprep.subr.mxu0 0.0
      %6075 = vmatpush1.msra.mxu0 0.0
      %6076 = vmatprep.subr.mxu0 0.0
      %6077 = vmatpush1.msra.mxu0 0.0
      %6078 = vmatprep.subr.mxu0 0.0
      %6079 = vmatpush1.msra.mxu0 0.0
      %6080 = vmatprep.subr.mxu0 0.0
      %6081 = vmatpush1.msra.mxu0 0.0
      %6082 = vmatprep.subr.mxu0 0.0
      %6083 = vmatpush1.msra.mxu0 0.0
      %6084 = vmatprep.subr.mxu0 0.0
      %6085 = vmatpush1.msra.mxu0 0.0
      %6086 = vmatprep.mubr.f32.mxu0 0.0
      %6087 = vmatmul.mubr.f32.gmra.mrb[0].mxu0 %v5969
      %v6088 = vpop.f32.mrb[0].mxu0
      %v6089 = vadd.f32 0.0, %v6088
      %v6090 = vpop.f32.mrb[0].mxu0
      %6091 = vmatprep.mubr.f32.mxu0 0.0
      %6092 = vmatmul.mubr.f32.gmra.mrb[0].mxu0 %v5970
      %v6093 = vpop.f32.mrb[0].mxu0
      %v6094 = vadd.f32 0.0, %v6093
      %v6095 = vpop.f32.mrb[0].mxu0
      %6096 = vmatprep.mubr.f32.mxu0 0.0
      %6097 = vmatmul.mubr.f32.gmra.mrb[0].mxu0 %v5971
      %v6098 = vpop.f32.mrb[0].mxu0
      %v6099 = vadd.f32 0.0, %v6098
      %v6100 = vpop.f32.mrb[0].mxu0
      %6101 = vmatprep.mubr.f32.mxu0 0.0
      %6102 = vmatmul.mubr.f32.gmra.mrb[0].mxu0 %v5972
      %v6103 = vpop.f32.mrb[0].mxu0
      %v6104 = vadd.f32 0.0, %v6103
      %v6105 = vpop.f32.mrb[0].mxu0
      %6106 = vmatprep.mubr.f32.mxu0 0.0
      %6107 = vmatmul.mubr.f32.gmra.mrb[0].mxu0 %v5973
      %v6108 = vpop.f32.mrb[0].mxu0
      %v6109 = vadd.f32 0.0, %v6108
      %v6110 = vpop.f32.mrb[0].mxu0
      %6111 = vmatprep.mubr.f32.mxu0 0.0
      %6112 = vmatmul.mubr.f32.gmra.mrb[0].mxu0 %v5974
      %v6113 = vpop.f32.mrb[0].mxu0
      %v6114 = vadd.f32 0.0, %v6113
      %v6115 = vpop.f32.mrb[0].mxu0
      %6116 = vmatprep.mubr.f32.mxu0 0.0
      %6117 = vmatmul.mubr.f32.gmra.mrb[0].mxu0 %v5975
      %v6118 = vpop.f32.mrb[0].mxu0
      %v6119 = vadd.f32 0.0, %v6118
      %v6120 = vpop.f32.mrb[0].mxu0
      %6121 = vmatprep.mubr.f32.mxu0 0.0
      %6122 = vmatmul.mubr.f32.gmra.mrb[0].mxu0 %v5976
      %v6123 = vpop.f32.mrb[0].mxu0
      %v6124 = vadd.f32 0.0, %v6123
      %v6125 = vpop.f32.mrb[0].mxu0
      %6126 = vmatprep.mubr.f32.mxu0 0.0
      %6127 = vmatmul.mubr.f32.gmra.mrb[0].mxu0 %v5977
      %v6128 = vpop.f32.mrb[0].mxu0
      %v6129 = vadd.f32 0.0, %v6128
      %v6130 = vpop.f32.mrb[0].mxu0
      %6131 = vmatprep.mubr.f32.mxu0 0.0
      %6132 = vmatmul.mubr.f32.gmra.mrb[0].mxu0 %v5978
      %v6133 = vpop.f32.mrb[0].mxu0
      %v6134 = vadd.f32 0.0, %v6133
      %v6135 = vpop.f32.mrb[0].mxu0
      %6136 = vmatprep.mubr.f32.mxu0 0.0
      %6137 = vmatmul.mubr.f32.gmra.mrb[0].mxu0 %v5979
      %v6138 = vpop.f32.mrb[0].mxu0
      %v6139 = vadd.f32 0.0, %v6138
      %v6140 = vpop.f32.mrb[0].mxu0
      %6141 = vmatprep.mubr.f32.mxu0 0.0
      %6142 = vmatmul.mubr.f32.gmra.mrb[0].mxu0 %v5980
      %v6143 = vpop.f32.mrb[0].mxu0
      %v6144 = vadd.f32 0.0, %v6143
      %v6145 = vpop.f32.mrb[0].mxu0
      %6146 = vmatprep.mubr.f32.mxu0 0.0
      %6147 = vmatmul.mubr.f32.gmra.mrb[0].mxu0 %v5981
      %v6148 = vpop.f32.mrb[0].mxu0
      %v6149 = vadd.f32 0.0, %v6148
      %v6150 = vpop.f32.mrb[0].mxu0
      %6151 = vmatprep.mubr.f32.mxu0 0.0
      %6152 = vmatmul.mubr.f32.gmra.mrb[0].mxu0 %v5982
      %v6153 = vpop.f32.mrb[0].mxu0
      %v6154 = vadd.f32 0.0, %v6153
      %v6155 = vpop.f32.mrb[0].mxu0
      %6156 = vmatprep.mubr.f32.mxu0 0.0
      %6157 = vmatmul.mubr.f32.gmra.mrb[0].mxu0 %v5983
      %v6158 = vpop.f32.mrb[0].mxu0
      %v6159 = vadd.f32 0.0, %v6158
      %v6160 = vpop.f32.mrb[0].mxu0
      %6161 = vmatprep.mubr.f32.mxu0 0.0
      %6162 = vmatmul.mubr.f32.gmra.mrb[0].mxu0 %v5984
      %v6163 = vpop.f32.mrb[0].mxu0
      %v6164 = vadd.f32 0.0, %v6163
      %v6165 = vpop.f32.mrb[0].mxu0
      %6166 = vmatprep.mubr.f32.mxu0 0.0
      %6167 = vmatmul.mubr.f32.gmra.mrb[0].mxu0 %v5985
      %v6168 = vpop.f32.mrb[0].mxu0
      %v6169 = vadd.f32 0.0, %v6168
      %v6170 = vpop.f32.mrb[0].mxu0
      %6171 = vmatprep.mubr.f32.mxu0 0.0
      %6172 = vmatmul.mubr.f32.gmra.mrb[0].mxu0 %v5986
      %v6173 = vpop.f32.mrb[0].mxu0
      %v6174 = vadd.f32 0.0, %v6173
      %v6175 = vpop.f32.mrb[0].mxu0
      %6176 = vmatprep.mubr.f32.mxu0 0.0
      %6177 = vmatmul.mubr.f32.gmra.mrb[0].mxu0 %v5987
      %v6178 = vpop.f32.mrb[0].mxu0
      %v6179 = vadd.f32 0.0, %v6178
      %v6180 = vpop.f32.mrb[0].mxu0
      %6181 = vmatprep.mubr.f32.mxu0 0.0
      %6182 = vmatmul.mubr.f32.gmra.mrb[0].mxu0 %v5988
      %v6183 = vpop.f32.mrb[0].mxu0
      %v6184 = vadd.f32 0.0, %v6183
      %v6185 = vpop.f32.mrb[0].mxu0
      %6186 = vmatprep.mubr.f32.mxu0 0.0
      %6187 = vmatmul.mubr.f32.gmra.mrb[0].mxu0 %v5989
      %v6188 = vpop.f32.mrb[0].mxu0
      %v6189 = vadd.f32 0.0, %v6188
      %v6190 = vpop.f32.mrb[0].mxu0
      %6191 = vmatprep.mubr.f32.mxu0 0.0
      %6192 = vmatmul.mubr.f32.gmra.mrb[0].mxu0 %v5990
      %v6193 = vpop.f32.mrb[0].mxu0
      %v6194 = vadd.f32 0.0, %v6193
      %v6195 = vpop.f32.mrb[0].mxu0
      %6196 = vmatprep.mubr.f32.mxu0 0.0
      %6197 = vmatmul.mubr.f32.gmra.mrb[0].mxu0 %v5991
      %v6198 = vpop.f32.mrb[0].mxu0
      %v6199 = vadd.f32 0.0, %v6198
      %v6200 = vpop.f32.mrb[0].mxu0
      %6201 = vmatprep.mubr.f32.mxu0 0.0
      %6202 = vmatmul.mubr.f32.gmra.mrb[0].mxu0 %v5992
      %v6203 = vpop.f32.mrb[0].mxu0
      %v6204 = vadd.f32 0.0, %v6203
      %v6205 = vpop.f32.mrb[0].mxu0
      %6206 = vmatprep.mubr.f32.mxu0 0.0
      %6207 = vmatmul.mubr.f32.gmra.mrb[0].mxu0 %v5993
      %v6208 = vpop.f32.mrb[0].mxu0
      %v6209 = vadd.f32 0.0, %v6208
      %v6210 = vpop.f32.mrb[0].mxu0
      %6211 = vmatprep.mubr.f32.mxu0 0.0
      %6212 = vmatmul.mubr.f32.gmra.mrb[0].mxu0 %v5994
      %v6213 = vpop.f32.mrb[0].mxu0
      %v6214 = vadd.f32 0.0, %v6213
      %v6215 = vpop.f32.mrb[0].mxu0
      %6216 = vmatprep.mubr.f32.mxu0 0.0
      %6217 = vmatmul.mubr.f32.gmra.mrb[0].mxu0 %v5995
      %v6218 = vpop.f32.mrb[0].mxu0
      %v6219 = vadd.f32 0.0, %v6218
      %v6220 = vpop.f32.mrb[0].mxu0
      %6221 = vmatprep.mubr.f32.mxu0 0.0
      %6222 = vmatmul.mubr.f32.gmra.mrb[0].mxu0 %v5996
      %v6223 = vpop.f32.mrb[0].mxu0
      %v6224 = vadd.f32 0.0, %v6223
      %v6225 = vpop.f32.mrb[0].mxu0
      %6226 = vmatprep.mubr.f32.mxu0 0.0
      %6227 = vmatmul.mubr.f32.gmra.mrb[0].mxu0 %v5997
      %v6228 = vpop.f32.mrb[0].mxu0
      %v6229 = vadd.f32 0.0, %v6228
      %v6230 = vpop.f32.mrb[0].mxu0
      %6231 = vmatprep.mubr.f32.mxu0 0.0
      %6232 = vmatmul.mubr.f32.gmra.mrb[0].mxu0 %v5998
      %v6233 = vpop.f32.mrb[0].mxu0
      %v6234 = vadd.f32 0.0, %v6233
      %v6235 = vpop.f32.mrb[0].mxu0
      %6236 = vmatprep.mubr.f32.mxu0 0.0
      %6237 = vmatmul.mubr.f32.gmra.mrb[0].mxu0 %v5999
      %v6238 = vpop.f32.mrb[0].mxu0
      %v6239 = vadd.f32 0.0, %v6238
      %v6240 = vpop.f32.mrb[0].mxu0
      %6241 = vmatprep.mubr.f32.mxu0 0.0
      %6242 = vmatmul.mubr.f32.gmra.mrb[0].mxu0 %v6000
      %v6243 = vpop.f32.mrb[0].mxu0
      %v6244 = vadd.f32 0.0, %v6243
      %v6245 = vpop.f32.mrb[0].mxu0
      %6246 = vmatprep.mubr.f32.mxu0 0.0
      %6247 = vmatmul.mubr.f32.gmra.mrb[0].mxu0 %v6001
      %v6248 = vpop.f32.mrb[0].mxu0
      %v6249 = vadd.f32 0.0, %v6248
      %v6250 = vpop.f32.mrb[0].mxu0
      %6251 = vmatprep.mubr.f32.mxu0 0.0
      %6252 = vmatmul.mubr.f32.gmra.mrb[0].mxu0 %v6002
      %v6253 = vpop.f32.mrb[0].mxu0
      %v6254 = vadd.f32 0.0, %v6253
      %v6255 = vpop.f32.mrb[0].mxu0
      %6256 = vmatprep.mubr.f32.mxu0 0.0
      %6257 = vmatmul.mubr.f32.gmra.mrb[0].mxu0 %v6003
      %v6258 = vpop.f32.mrb[0].mxu0
      %v6259 = vadd.f32 0.0, %v6258
      %v6260 = vpop.f32.mrb[0].mxu0
      %6261 = vmatprep.mubr.f32.mxu0 0.0
      %6262 = vmatmul.mubr.f32.gmra.mrb[0].mxu0 %v6004
      %v6263 = vpop.f32.mrb[0].mxu0
      %v6264 = vadd.f32 0.0, %v6263
      %v6265 = vpop.f32.mrb[0].mxu0
      %6266 = vdwg.mxu0
      %v6267 = vadd.f32 %v5933, %v6089
      %v6268 = vadd.f32 %v5934, %v6094
      %v6269 = vadd.f32 %v5935, %v6099
      %v6270 = vadd.f32 %v5936, %v6104
      %v6271 = vadd.f32 %v5937, %v6109
      %v6272 = vadd.f32 %v5938, %v6114
      %v6273 = vadd.f32 %v5939, %v6119
      %v6274 = vadd.f32 %v5940, %v6124
      %v6275 = vadd.f32 %v5941, %v6129
      %v6276 = vadd.f32 %v5942, %v6134
      %v6277 = vadd.f32 %v5943, %v6139
      %v6278 = vadd.f32 %v5944, %v6144
      %v6279 = vadd.f32 %v5945, %v6149
      %v6280 = vadd.f32 %v5946, %v6154
      %v6281 = vadd.f32 %v5947, %v6159
      %v6282 = vadd.f32 %v5948, %v6164
      %v6283 = vadd.f32 %v5949, %v6169
      %v6284 = vadd.f32 %v5950, %v6174
      %v6285 = vadd.f32 %v5951, %v6179
      %v6286 = vadd.f32 %v5952, %v6184
      %v6287 = vadd.f32 %v5953, %v6189
      %v6288 = vadd.f32 %v5954, %v6194
      %v6289 = vadd.f32 %v5955, %v6199
      %v6290 = vadd.f32 %v5956, %v6204
      %v6291 = vadd.f32 %v5957, %v6209
      %v6292 = vadd.f32 %v5958, %v6214
      %v6293 = vadd.f32 %v5959, %v6219
      %v6294 = vadd.f32 %v5960, %v6224
      %v6295 = vadd.f32 %v5961, %v6229
      %v6296 = vadd.f32 %v5962, %v6234
      %v6297 = vadd.f32 %v5963, %v6239
      %v6298 = vadd.f32 %v5964, %v6244
      %v6299 = vadd.f32 %v5965, %v6249
      %v6300 = vadd.f32 %v5966, %v6254
      %v6301 = vadd.f32 %v5967, %v6259
      %v6302 = vadd.f32 %v5968, %v6264
      %6303 = vst [vmem:[#allocation3] sm:$0xff] %v6267
      %6304 = vst [vmem:[#allocation3 + $0x8] sm:$0xff] %v6268
      %6305 = vst [vmem:[#allocation3 + $0x10] sm:$0xff] %v6269
      %6306 = vst [vmem:[#allocation3 + $0x18] sm:$0xff] %v6270
      %6307 = vst [vmem:[#allocation3 + $0x20] sm:$0xff] %v6271
      %6308 = vst [vmem:[#allocation3 + $0x28] sm:$0xff] %v6272
      %6309 = vst [vmem:[#allocation3 + $0x30] sm:$0xff] %v6273
      %6310 = vst [vmem:[#allocation3 + $0x38] sm:$0xff] %v6274
      %6311 = vst [vmem:[#allocation3 + $0x40] sm:$0xff] %v6275
      %6312 = vst [vmem:[#allocation3 + $0x48] sm:$0xff] %v6276
      %6313 = vst [vmem:[#allocation3 + $0x50] sm:$0xff] %v6277
      %6314 = vst [vmem:[#allocation3 + $0x58] sm:$0xff] %v6278
      %6315 = vst [vmem:[#allocation3 + $0x60] sm:$0xff] %v6279
      %6316 = vst [vmem:[#allocation3 + $0x68] sm:$0xff] %v6280
      %6317 = vst [vmem:[#allocation3 + $0x70] sm:$0xff] %v6281
      %6318 = vst [vmem:[#allocation3 + $0x78] sm:$0xff] %v6282
      %6319 = vst [vmem:[#allocation3 + $0x80] sm:$0xff] %v6283
      %6320 = vst [vmem:[#allocation3 + $0x88] sm:$0xff] %v6284
      %6321 = vst [vmem:[#allocation3 + $0x90] sm:$0xff] %v6285
      %6322 = vst [vmem:[#allocation3 + $0x98] sm:$0xff] %v6286
      %6323 = vst [vmem:[#allocation3 + $0xa0] sm:$0xff] %v6287
      %6324 = vst [vmem:[#allocation3 + $0xa8] sm:$0xff] %v6288
      %6325 = vst [vmem:[#allocation3 + $0xb0] sm:$0xff] %v6289
      %6326 = vst [vmem:[#allocation3 + $0xb8] sm:$0xff] %v6290
      %6327 = vst [vmem:[#allocation3 + $0xc0] sm:$0xff] %v6291
      %6328 = vst [vmem:[#allocation3 + $0xc8] sm:$0xff] %v6292
      %6329 = vst [vmem:[#allocation3 + $0xd0] sm:$0xff] %v6293
      %6330 = vst [vmem:[#allocation3 + $0xd8] sm:$0xff] %v6294
      %6331 = vst [vmem:[#allocation3 + $0xe0] sm:$0xff] %v6295
      %6332 = vst [vmem:[#allocation3 + $0xe8] sm:$0xff] %v6296
      %6333 = vst [vmem:[#allocation3 + $0xf0] sm:$0xff] %v6297
      %6334 = vst [vmem:[#allocation3 + $0xf8] sm:$0xff] %v6298
      %6335 = vst [vmem:[#allocation3 + $0x100] sm:$0xff] %v6299
      %6336 = vst [vmem:[#allocation3 + $0x108] sm:$0xff] %v6300
      %6337 = vst [vmem:[#allocation3 + $0x110] sm:$0xff] %v6301
      %6338 = vst [vmem:[#allocation3 + $0x118] sm:$0xff] %v6302
      %v6339 = vld [vmem:[#allocation3] sm:$0xff]
      %v6340 = vld [vmem:[#allocation3 + $0x8] sm:$0xff]
      %v6341 = vld [vmem:[#allocation3 + $0x10] sm:$0xff]
      %v6342 = vld [vmem:[#allocation3 + $0x18] sm:$0xff]
      %v6343 = vld [vmem:[#allocation3 + $0x20] sm:$0xff]
      %v6344 = vld [vmem:[#allocation3 + $0x28] sm:$0xff]
      %v6345 = vld [vmem:[#allocation3 + $0x30] sm:$0xff]
      %v6346 = vld [vmem:[#allocation3 + $0x38] sm:$0xff]
      %v6347 = vld [vmem:[#allocation3 + $0x40] sm:$0xff]
      %v6348 = vld [vmem:[#allocation3 + $0x48] sm:$0xff]
      %v6349 = vld [vmem:[#allocation3 + $0x50] sm:$0xff]
      %v6350 = vld [vmem:[#allocation3 + $0x58] sm:$0xff]
      %v6351 = vld [vmem:[#allocation3 + $0x60] sm:$0xff]
      %v6352 = vld [vmem:[#allocation3 + $0x68] sm:$0xff]
      %v6353 = vld [vmem:[#allocation3 + $0x70] sm:$0xff]
      %v6354 = vld [vmem:[#allocation3 + $0x78] sm:$0xff]
      %v6355 = vld [vmem:[#allocation3 + $0x80] sm:$0xff]
      %v6356 = vld [vmem:[#allocation3 + $0x88] sm:$0xff]
      %v6357 = vld [vmem:[#allocation3 + $0x90] sm:$0xff]
      %v6358 = vld [vmem:[#allocation3 + $0x98] sm:$0xff]
      %v6359 = vld [vmem:[#allocation3 + $0xa0] sm:$0xff]
      %v6360 = vld [vmem:[#allocation3 + $0xa8] sm:$0xff]
      %v6361 = vld [vmem:[#allocation3 + $0xb0] sm:$0xff]
      %v6362 = vld [vmem:[#allocation3 + $0xb8] sm:$0xff]
      %v6363 = vld [vmem:[#allocation3 + $0xc0] sm:$0xff]
      %v6364 = vld [vmem:[#allocation3 + $0xc8] sm:$0xff]
      %v6365 = vld [vmem:[#allocation3 + $0xd0] sm:$0xff]
      %v6366 = vld [vmem:[#allocation3 + $0xd8] sm:$0xff]
      %v6367 = vld [vmem:[#allocation3 + $0xe0] sm:$0xff]
      %v6368 = vld [vmem:[#allocation3 + $0xe8] sm:$0xff]
      %v6369 = vld [vmem:[#allocation3 + $0xf0] sm:$0xff]
      %v6370 = vld [vmem:[#allocation3 + $0xf8] sm:$0xff]
      %v6371 = vld [vmem:[#allocation3 + $0x100] sm:$0xff]
      %v6372 = vld [vmem:[#allocation3 + $0x108] sm:$0xff]
      %v6373 = vld [vmem:[#allocation3 + $0x110] sm:$0xff]
      %v6374 = vld [vmem:[#allocation3 + $0x118] sm:$0xff]
      %v6375 = vld [vmem:[#allocation2 + $0x12] sm:$0xff]
      %v6376 = vld [vmem:[#allocation2 + $0x1a] sm:$0xff]
      %v6377 = vld [vmem:[#allocation2 + $0x22] sm:$0xff]
      %v6378 = vld [vmem:[#allocation2 + $0x2a] sm:$0xff]
      %v6379 = vld [vmem:[#allocation2 + $0x32] sm:$0xff]
      %v6380 = vld [vmem:[#allocation2 + $0x3a] sm:$0xff]
      %v6381 = vld [vmem:[#allocation2 + $0x42] sm:$0xff]
      %v6382 = vld [vmem:[#allocation2 + $0x4a] sm:$0xff]
      %v6383 = vld [vmem:[#allocation2 + $0x52] sm:$0xff]
      %v6384 = vld [vmem:[#allocation2 + $0x5a] sm:$0xff]
      %v6385 = vld [vmem:[#allocation2 + $0x62] sm:$0xff]
      %v6386 = vld [vmem:[#allocation2 + $0x6a] sm:$0xff]
      %v6387 = vld [vmem:[#allocation2 + $0x72] sm:$0xff]
      %v6388 = vld [vmem:[#allocation2 + $0x7a] sm:$0xff]
      %v6389 = vld [vmem:[#allocation2 + $0x82] sm:$0xff]
      %v6390 = vld [vmem:[#allocation2 + $0x8a] sm:$0xff]
      %v6391 = vld [vmem:[#allocation2 + $0x92] sm:$0xff]
      %v6392 = vld [vmem:[#allocation2 + $0x9a] sm:$0xff]
      %v6393 = vld [vmem:[#allocation2 + $0xa2] sm:$0xff]
      %v6394 = vld [vmem:[#allocation2 + $0xaa] sm:$0xff]
      %v6395 = vld [vmem:[#allocation2 + $0xb2] sm:$0xff]
      %v6396 = vld [vmem:[#allocation2 + $0xba] sm:$0xff]
      %v6397 = vld [vmem:[#allocation2 + $0xc2] sm:$0xff]
      %v6398 = vld [vmem:[#allocation2 + $0xca] sm:$0xff]
      %v6399 = vld [vmem:[#allocation2 + $0xd2] sm:$0xff]
      %v6400 = vld [vmem:[#allocation2 + $0xda] sm:$0xff]
      %v6401 = vld [vmem:[#allocation2 + $0xe2] sm:$0xff]
      %v6402 = vld [vmem:[#allocation2 + $0xea] sm:$0xff]
      %v6403 = vld [vmem:[#allocation2 + $0xf2] sm:$0xff]
      %v6404 = vld [vmem:[#allocation2 + $0xfa] sm:$0xff]
      %v6405 = vld [vmem:[#allocation2 + $0x102] sm:$0xff]
      %v6406 = vld [vmem:[#allocation2 + $0x10a] sm:$0xff]
      %v6407 = vld [vmem:[#allocation2 + $0x112] sm:$0xff]
      %v6408 = vld [vmem:[#allocation2 + $0x11a] sm:$0xff]
      %v6409 = vld [vmem:[#allocation2 + $0x122] sm:$0xff]
      %v6410 = vld [vmem:[#allocation2 + $0x12a] sm:$0xff]
      %s6411 = scalar_lea.vmem %s2, 384
      %v6412 = vld [vmem:[%s6411] sm:$0xff]
      %v6413 = vld [vmem:[%s6411 + $0x8] sm:$0xff]
      %v6414 = vld [vmem:[%s6411 + $0x10] sm:$0xff]
      %v6415 = vld [vmem:[%s6411 + $0x18] sm:$0xff]
      %v6416 = vld [vmem:[%s6411 + $0x20] sm:$0xff]
      %v6417 = vld [vmem:[%s6411 + $0x28] sm:$0xff]
      %v6418 = vld [vmem:[%s6411 + $0x30] sm:$0xff]
      %v6419 = vld [vmem:[%s6411 + $0x38] sm:$0xff]
      %v6420 = vld [vmem:[%s6411 + $0x40] sm:$0xff]
      %v6421 = vld [vmem:[%s6411 + $0x48] sm:$0xff]
      %v6422 = vld [vmem:[%s6411 + $0x50] sm:$0xff]
      %v6423 = vld [vmem:[%s6411 + $0x58] sm:$0xff]
      %v6424 = vld [vmem:[%s6411 + $0x60] sm:$0xff]
      %v6425 = vld [vmem:[%s6411 + $0x68] sm:$0xff]
      %v6426 = vld [vmem:[%s6411 + $0x70] sm:$0xff]
      %v6427 = vld [vmem:[%s6411 + $0x78] sm:$0xff]
      %6428 = vmatprep.subr.mxu0 0.0
      %6429 = vmatpush1.msra.mxu0 %v6412
      %6430 = vmatprep.subr.mxu0 0.0
      %6431 = vmatpush1.msra.mxu0 %v6413
      %6432 = vmatprep.subr.mxu0 0.0
      %6433 = vmatpush1.msra.mxu0 %v6414
      %6434 = vmatprep.subr.mxu0 0.0
      %6435 = vmatpush1.msra.mxu0 %v6415
      %6436 = vmatprep.subr.mxu0 0.0
      %6437 = vmatpush1.msra.mxu0 %v6416
      %6438 = vmatprep.subr.mxu0 0.0
      %6439 = vmatpush1.msra.mxu0 %v6417
      %6440 = vmatprep.subr.mxu0 0.0
      %6441 = vmatpush1.msra.mxu0 %v6418
      %6442 = vmatprep.subr.mxu0 0.0
      %6443 = vmatpush1.msra.mxu0 %v6419
      %6444 = vmatprep.subr.mxu0 0.0
      %6445 = vmatpush1.msra.mxu0 %v6420
      %6446 = vmatprep.subr.mxu0 0.0
      %6447 = vmatpush1.msra.mxu0 %v6421
      %6448 = vmatprep.subr.mxu0 0.0
      %6449 = vmatpush1.msra.mxu0 %v6422
      %6450 = vmatprep.subr.mxu0 0.0
      %6451 = vmatpush1.msra.mxu0 %v6423
      %6452 = vmatprep.subr.mxu0 0.0
      %6453 = vmatpush1.msra.mxu0 %v6424
      %6454 = vmatprep.subr.mxu0 0.0
      %6455 = vmatpush1.msra.mxu0 %v6425
      %6456 = vmatprep.subr.mxu0 0.0
      %6457 = vmatpush1.msra.mxu0 %v6426
      %6458 = vmatprep.subr.mxu0 0.0
      %6459 = vmatpush1.msra.mxu0 %v6427
      %6460 = vmatprep.subr.mxu0 0.0
      %6461 = vmatpush1.msra.mxu0 0.0
      %6462 = vmatprep.subr.mxu0 0.0
      %6463 = vmatpush1.msra.mxu0 0.0
      %6464 = vmatprep.subr.mxu0 0.0
      %6465 = vmatpush1.msra.mxu0 0.0
      %6466 = vmatprep.subr.mxu0 0.0
      %6467 = vmatpush1.msra.mxu0 0.0
      %6468 = vmatprep.subr.mxu0 0.0
      %6469 = vmatpush1.msra.mxu0 0.0
      %6470 = vmatprep.subr.mxu0 0.0
      %6471 = vmatpush1.msra.mxu0 0.0
      %6472 = vmatprep.subr.mxu0 0.0
      %6473 = vmatpush1.msra.mxu0 0.0
      %6474 = vmatprep.subr.mxu0 0.0
      %6475 = vmatpush1.msra.mxu0 0.0
      %6476 = vmatprep.subr.mxu0 0.0
      %6477 = vmatpush1.msra.mxu0 0.0
      %6478 = vmatprep.subr.mxu0 0.0
      %6479 = vmatpush1.msra.mxu0 0.0
      %6480 = vmatprep.subr.mxu0 0.0
      %6481 = vmatpush1.msra.mxu0 0.0
      %6482 = vmatprep.subr.mxu0 0.0
      %6483 = vmatpush1.msra.mxu0 0.0
      %6484 = vmatprep.subr.mxu0 0.0
      %6485 = vmatpush1.msra.mxu0 0.0
      %6486 = vmatprep.subr.mxu0 0.0
      %6487 = vmatpush1.msra.mxu0 0.0
      %6488 = vmatprep.subr.mxu0 0.0
      %6489 = vmatpush1.msra.mxu0 0.0
      %6490 = vmatprep.subr.mxu0 0.0
      %6491 = vmatpush1.msra.mxu0 0.0
      %6492 = vmatprep.mubr.f32.mxu0 0.0
      %6493 = vmatmul.mubr.f32.gmra.mrb[0].mxu0 %v6375
      %v6494 = vpop.f32.mrb[0].mxu0
      %v6495 = vadd.f32 0.0, %v6494
      %v6496 = vpop.f32.mrb[0].mxu0
      %6497 = vmatprep.mubr.f32.mxu0 0.0
      %6498 = vmatmul.mubr.f32.gmra.mrb[0].mxu0 %v6376
      %v6499 = vpop.f32.mrb[0].mxu0
      %v6500 = vadd.f32 0.0, %v6499
      %v6501 = vpop.f32.mrb[0].mxu0
      %6502 = vmatprep.mubr.f32.mxu0 0.0
      %6503 = vmatmul.mubr.f32.gmra.mrb[0].mxu0 %v6377
      %v6504 = vpop.f32.mrb[0].mxu0
      %v6505 = vadd.f32 0.0, %v6504
      %v6506 = vpop.f32.mrb[0].mxu0
      %6507 = vmatprep.mubr.f32.mxu0 0.0
      %6508 = vmatmul.mubr.f32.gmra.mrb[0].mxu0 %v6378
      %v6509 = vpop.f32.mrb[0].mxu0
      %v6510 = vadd.f32 0.0, %v6509
      %v6511 = vpop.f32.mrb[0].mxu0
      %6512 = vmatprep.mubr.f32.mxu0 0.0
      %6513 = vmatmul.mubr.f32.gmra.mrb[0].mxu0 %v6379
      %v6514 = vpop.f32.mrb[0].mxu0
      %v6515 = vadd.f32 0.0, %v6514
      %v6516 = vpop.f32.mrb[0].mxu0
      %6517 = vmatprep.mubr.f32.mxu0 0.0
      %6518 = vmatmul.mubr.f32.gmra.mrb[0].mxu0 %v6380
      %v6519 = vpop.f32.mrb[0].mxu0
      %v6520 = vadd.f32 0.0, %v6519
      %v6521 = vpop.f32.mrb[0].mxu0
      %6522 = vmatprep.mubr.f32.mxu0 0.0
      %6523 = vmatmul.mubr.f32.gmra.mrb[0].mxu0 %v6381
      %v6524 = vpop.f32.mrb[0].mxu0
      %v6525 = vadd.f32 0.0, %v6524
      %v6526 = vpop.f32.mrb[0].mxu0
      %6527 = vmatprep.mubr.f32.mxu0 0.0
      %6528 = vmatmul.mubr.f32.gmra.mrb[0].mxu0 %v6382
      %v6529 = vpop.f32.mrb[0].mxu0
      %v6530 = vadd.f32 0.0, %v6529
      %v6531 = vpop.f32.mrb[0].mxu0
      %6532 = vmatprep.mubr.f32.mxu0 0.0
      %6533 = vmatmul.mubr.f32.gmra.mrb[0].mxu0 %v6383
      %v6534 = vpop.f32.mrb[0].mxu0
      %v6535 = vadd.f32 0.0, %v6534
      %v6536 = vpop.f32.mrb[0].mxu0
      %6537 = vmatprep.mubr.f32.mxu0 0.0
      %6538 = vmatmul.mubr.f32.gmra.mrb[0].mxu0 %v6384
      %v6539 = vpop.f32.mrb[0].mxu0
      %v6540 = vadd.f32 0.0, %v6539
      %v6541 = vpop.f32.mrb[0].mxu0
      %6542 = vmatprep.mubr.f32.mxu0 0.0
      %6543 = vmatmul.mubr.f32.gmra.mrb[0].mxu0 %v6385
      %v6544 = vpop.f32.mrb[0].mxu0
      %v6545 = vadd.f32 0.0, %v6544
      %v6546 = vpop.f32.mrb[0].mxu0
      %6547 = vmatprep.mubr.f32.mxu0 0.0
      %6548 = vmatmul.mubr.f32.gmra.mrb[0].mxu0 %v6386
      %v6549 = vpop.f32.mrb[0].mxu0
      %v6550 = vadd.f32 0.0, %v6549
      %v6551 = vpop.f32.mrb[0].mxu0
      %6552 = vmatprep.mubr.f32.mxu0 0.0
      %6553 = vmatmul.mubr.f32.gmra.mrb[0].mxu0 %v6387
      %v6554 = vpop.f32.mrb[0].mxu0
      %v6555 = vadd.f32 0.0, %v6554
      %v6556 = vpop.f32.mrb[0].mxu0
      %6557 = vmatprep.mubr.f32.mxu0 0.0
      %6558 = vmatmul.mubr.f32.gmra.mrb[0].mxu0 %v6388
      %v6559 = vpop.f32.mrb[0].mxu0
      %v6560 = vadd.f32 0.0, %v6559
      %v6561 = vpop.f32.mrb[0].mxu0
      %6562 = vmatprep.mubr.f32.mxu0 0.0
      %6563 = vmatmul.mubr.f32.gmra.mrb[0].mxu0 %v6389
      %v6564 = vpop.f32.mrb[0].mxu0
      %v6565 = vadd.f32 0.0, %v6564
      %v6566 = vpop.f32.mrb[0].mxu0
      %6567 = vmatprep.mubr.f32.mxu0 0.0
      %6568 = vmatmul.mubr.f32.gmra.mrb[0].mxu0 %v6390
      %v6569 = vpop.f32.mrb[0].mxu0
      %v6570 = vadd.f32 0.0, %v6569
      %v6571 = vpop.f32.mrb[0].mxu0
      %6572 = vmatprep.mubr.f32.mxu0 0.0
      %6573 = vmatmul.mubr.f32.gmra.mrb[0].mxu0 %v6391
      %v6574 = vpop.f32.mrb[0].mxu0
      %v6575 = vadd.f32 0.0, %v6574
      %v6576 = vpop.f32.mrb[0].mxu0
      %6577 = vmatprep.mubr.f32.mxu0 0.0
      %6578 = vmatmul.mubr.f32.gmra.mrb[0].mxu0 %v6392
      %v6579 = vpop.f32.mrb[0].mxu0
      %v6580 = vadd.f32 0.0, %v6579
      %v6581 = vpop.f32.mrb[0].mxu0
      %6582 = vmatprep.mubr.f32.mxu0 0.0
      %6583 = vmatmul.mubr.f32.gmra.mrb[0].mxu0 %v6393
      %v6584 = vpop.f32.mrb[0].mxu0
      %v6585 = vadd.f32 0.0, %v6584
      %v6586 = vpop.f32.mrb[0].mxu0
      %6587 = vmatprep.mubr.f32.mxu0 0.0
      %6588 = vmatmul.mubr.f32.gmra.mrb[0].mxu0 %v6394
      %v6589 = vpop.f32.mrb[0].mxu0
      %v6590 = vadd.f32 0.0, %v6589
      %v6591 = vpop.f32.mrb[0].mxu0
      %6592 = vmatprep.mubr.f32.mxu0 0.0
      %6593 = vmatmul.mubr.f32.gmra.mrb[0].mxu0 %v6395
      %v6594 = vpop.f32.mrb[0].mxu0
      %v6595 = vadd.f32 0.0, %v6594
      %v6596 = vpop.f32.mrb[0].mxu0
      %6597 = vmatprep.mubr.f32.mxu0 0.0
      %6598 = vmatmul.mubr.f32.gmra.mrb[0].mxu0 %v6396
      %v6599 = vpop.f32.mrb[0].mxu0
      %v6600 = vadd.f32 0.0, %v6599
      %v6601 = vpop.f32.mrb[0].mxu0
      %6602 = vmatprep.mubr.f32.mxu0 0.0
      %6603 = vmatmul.mubr.f32.gmra.mrb[0].mxu0 %v6397
      %v6604 = vpop.f32.mrb[0].mxu0
      %v6605 = vadd.f32 0.0, %v6604
      %v6606 = vpop.f32.mrb[0].mxu0
      %6607 = vmatprep.mubr.f32.mxu0 0.0
      %6608 = vmatmul.mubr.f32.gmra.mrb[0].mxu0 %v6398
      %v6609 = vpop.f32.mrb[0].mxu0
      %v6610 = vadd.f32 0.0, %v6609
      %v6611 = vpop.f32.mrb[0].mxu0
      %6612 = vmatprep.mubr.f32.mxu0 0.0
      %6613 = vmatmul.mubr.f32.gmra.mrb[0].mxu0 %v6399
      %v6614 = vpop.f32.mrb[0].mxu0
      %v6615 = vadd.f32 0.0, %v6614
      %v6616 = vpop.f32.mrb[0].mxu0
      %6617 = vmatprep.mubr.f32.mxu0 0.0
      %6618 = vmatmul.mubr.f32.gmra.mrb[0].mxu0 %v6400
      %v6619 = vpop.f32.mrb[0].mxu0
      %v6620 = vadd.f32 0.0, %v6619
      %v6621 = vpop.f32.mrb[0].mxu0
      %6622 = vmatprep.mubr.f32.mxu0 0.0
      %6623 = vmatmul.mubr.f32.gmra.mrb[0].mxu0 %v6401
      %v6624 = vpop.f32.mrb[0].mxu0
      %v6625 = vadd.f32 0.0, %v6624
      %v6626 = vpop.f32.mrb[0].mxu0
      %6627 = vmatprep.mubr.f32.mxu0 0.0
      %6628 = vmatmul.mubr.f32.gmra.mrb[0].mxu0 %v6402
      %v6629 = vpop.f32.mrb[0].mxu0
      %v6630 = vadd.f32 0.0, %v6629
      %v6631 = vpop.f32.mrb[0].mxu0
      %6632 = vmatprep.mubr.f32.mxu0 0.0
      %6633 = vmatmul.mubr.f32.gmra.mrb[0].mxu0 %v6403
      %v6634 = vpop.f32.mrb[0].mxu0
      %v6635 = vadd.f32 0.0, %v6634
      %v6636 = vpop.f32.mrb[0].mxu0
      %6637 = vmatprep.mubr.f32.mxu0 0.0
      %6638 = vmatmul.mubr.f32.gmra.mrb[0].mxu0 %v6404
      %v6639 = vpop.f32.mrb[0].mxu0
      %v6640 = vadd.f32 0.0, %v6639
      %v6641 = vpop.f32.mrb[0].mxu0
      %6642 = vmatprep.mubr.f32.mxu0 0.0
      %6643 = vmatmul.mubr.f32.gmra.mrb[0].mxu0 %v6405
      %v6644 = vpop.f32.mrb[0].mxu0
      %v6645 = vadd.f32 0.0, %v6644
      %v6646 = vpop.f32.mrb[0].mxu0
      %6647 = vmatprep.mubr.f32.mxu0 0.0
      %6648 = vmatmul.mubr.f32.gmra.mrb[0].mxu0 %v6406
      %v6649 = vpop.f32.mrb[0].mxu0
      %v6650 = vadd.f32 0.0, %v6649
      %v6651 = vpop.f32.mrb[0].mxu0
      %6652 = vmatprep.mubr.f32.mxu0 0.0
      %6653 = vmatmul.mubr.f32.gmra.mrb[0].mxu0 %v6407
      %v6654 = vpop.f32.mrb[0].mxu0
      %v6655 = vadd.f32 0.0, %v6654
      %v6656 = vpop.f32.mrb[0].mxu0
      %6657 = vmatprep.mubr.f32.mxu0 0.0
      %6658 = vmatmul.mubr.f32.gmra.mrb[0].mxu0 %v6408
      %v6659 = vpop.f32.mrb[0].mxu0
      %v6660 = vadd.f32 0.0, %v6659
      %v6661 = vpop.f32.mrb[0].mxu0
      %6662 = vmatprep.mubr.f32.mxu0 0.0
      %6663 = vmatmul.mubr.f32.gmra.mrb[0].mxu0 %v6409
      %v6664 = vpop.f32.mrb[0].mxu0
      %v6665 = vadd.f32 0.0, %v6664
      %v6666 = vpop.f32.mrb[0].mxu0
      %6667 = vmatprep.mubr.f32.mxu0 0.0
      %6668 = vmatmul.mubr.f32.gmra.mrb[0].mxu0 %v6410
      %v6669 = vpop.f32.mrb[0].mxu0
      %v6670 = vadd.f32 0.0, %v6669
      %v6671 = vpop.f32.mrb[0].mxu0
      %6672 = vdwg.mxu0
      %v6673 = vadd.f32 %v6339, %v6495
      %v6674 = vadd.f32 %v6340, %v6500
      %v6675 = vadd.f32 %v6341, %v6505
      %v6676 = vadd.f32 %v6342, %v6510
      %v6677 = vadd.f32 %v6343, %v6515
      %v6678 = vadd.f32 %v6344, %v6520
      %v6679 = vadd.f32 %v6345, %v6525
      %v6680 = vadd.f32 %v6346, %v6530
      %v6681 = vadd.f32 %v6347, %v6535
      %v6682 = vadd.f32 %v6348, %v6540
      %v6683 = vadd.f32 %v6349, %v6545
      %v6684 = vadd.f32 %v6350, %v6550
      %v6685 = vadd.f32 %v6351, %v6555
      %v6686 = vadd.f32 %v6352, %v6560
      %v6687 = vadd.f32 %v6353, %v6565
      %v6688 = vadd.f32 %v6354, %v6570
      %v6689 = vadd.f32 %v6355, %v6575
      %v6690 = vadd.f32 %v6356, %v6580
      %v6691 = vadd.f32 %v6357, %v6585
      %v6692 = vadd.f32 %v6358, %v6590
      %v6693 = vadd.f32 %v6359, %v6595
      %v6694 = vadd.f32 %v6360, %v6600
      %v6695 = vadd.f32 %v6361, %v6605
      %v6696 = vadd.f32 %v6362, %v6610
      %v6697 = vadd.f32 %v6363, %v6615
      %v6698 = vadd.f32 %v6364, %v6620
      %v6699 = vadd.f32 %v6365, %v6625
      %v6700 = vadd.f32 %v6366, %v6630
      %v6701 = vadd.f32 %v6367, %v6635
      %v6702 = vadd.f32 %v6368, %v6640
      %v6703 = vadd.f32 %v6369, %v6645
      %v6704 = vadd.f32 %v6370, %v6650
      %v6705 = vadd.f32 %v6371, %v6655
      %v6706 = vadd.f32 %v6372, %v6660
      %v6707 = vadd.f32 %v6373, %v6665
      %v6708 = vadd.f32 %v6374, %v6670
      %6709 = vst [vmem:[#allocation3] sm:$0xff] %v6673
      %6710 = vst [vmem:[#allocation3 + $0x8] sm:$0xff] %v6674
      %6711 = vst [vmem:[#allocation3 + $0x10] sm:$0xff] %v6675
      %6712 = vst [vmem:[#allocation3 + $0x18] sm:$0xff] %v6676
      %6713 = vst [vmem:[#allocation3 + $0x20] sm:$0xff] %v6677
      %6714 = vst [vmem:[#allocation3 + $0x28] sm:$0xff] %v6678
      %6715 = vst [vmem:[#allocation3 + $0x30] sm:$0xff] %v6679
      %6716 = vst [vmem:[#allocation3 + $0x38] sm:$0xff] %v6680
      %6717 = vst [vmem:[#allocation3 + $0x40] sm:$0xff] %v6681
      %6718 = vst [vmem:[#allocation3 + $0x48] sm:$0xff] %v6682
      %6719 = vst [vmem:[#allocation3 + $0x50] sm:$0xff] %v6683
      %6720 = vst [vmem:[#allocation3 + $0x58] sm:$0xff] %v6684
      %6721 = vst [vmem:[#allocation3 + $0x60] sm:$0xff] %v6685
      %6722 = vst [vmem:[#allocation3 + $0x68] sm:$0xff] %v6686
      %6723 = vst [vmem:[#allocation3 + $0x70] sm:$0xff] %v6687
      %6724 = vst [vmem:[#allocation3 + $0x78] sm:$0xff] %v6688
      %6725 = vst [vmem:[#allocation3 + $0x80] sm:$0xff] %v6689
      %6726 = vst [vmem:[#allocation3 + $0x88] sm:$0xff] %v6690
      %6727 = vst [vmem:[#allocation3 + $0x90] sm:$0xff] %v6691
      %6728 = vst [vmem:[#allocation3 + $0x98] sm:$0xff] %v6692
      %6729 = vst [vmem:[#allocation3 + $0xa0] sm:$0xff] %v6693
      %6730 = vst [vmem:[#allocation3 + $0xa8] sm:$0xff] %v6694
      %6731 = vst [vmem:[#allocation3 + $0xb0] sm:$0xff] %v6695
      %6732 = vst [vmem:[#allocation3 + $0xb8] sm:$0xff] %v6696
      %6733 = vst [vmem:[#allocation3 + $0xc0] sm:$0xff] %v6697
      %6734 = vst [vmem:[#allocation3 + $0xc8] sm:$0xff] %v6698
      %6735 = vst [vmem:[#allocation3 + $0xd0] sm:$0xff] %v6699
      %6736 = vst [vmem:[#allocation3 + $0xd8] sm:$0xff] %v6700
      %6737 = vst [vmem:[#allocation3 + $0xe0] sm:$0xff] %v6701
      %6738 = vst [vmem:[#allocation3 + $0xe8] sm:$0xff] %v6702
      %6739 = vst [vmem:[#allocation3 + $0xf0] sm:$0xff] %v6703
      %6740 = vst [vmem:[#allocation3 + $0xf8] sm:$0xff] %v6704
      %6741 = vst [vmem:[#allocation3 + $0x100] sm:$0xff] %v6705
      %6742 = vst [vmem:[#allocation3 + $0x108] sm:$0xff] %v6706
      %6743 = vst [vmem:[#allocation3 + $0x110] sm:$0xff] %v6707
      %6744 = vst [vmem:[#allocation3 + $0x118] sm:$0xff] %v6708
      %v6745 = vld [vmem:[#allocation3] sm:$0xff]
      %v6746 = vld [vmem:[#allocation3 + $0x8] sm:$0xff]
      %v6747 = vld [vmem:[#allocation3 + $0x10] sm:$0xff]
      %v6748 = vld [vmem:[#allocation3 + $0x18] sm:$0xff]
      %v6749 = vld [vmem:[#allocation3 + $0x20] sm:$0xff]
      %v6750 = vld [vmem:[#allocation3 + $0x28] sm:$0xff]
      %v6751 = vld [vmem:[#allocation3 + $0x30] sm:$0xff]
      %v6752 = vld [vmem:[#allocation3 + $0x38] sm:$0xff]
      %v6753 = vld [vmem:[#allocation3 + $0x40] sm:$0xff]
      %v6754 = vld [vmem:[#allocation3 + $0x48] sm:$0xff]
      %v6755 = vld [vmem:[#allocation3 + $0x50] sm:$0xff]
      %v6756 = vld [vmem:[#allocation3 + $0x58] sm:$0xff]
      %v6757 = vld [vmem:[#allocation3 + $0x60] sm:$0xff]
      %v6758 = vld [vmem:[#allocation3 + $0x68] sm:$0xff]
      %v6759 = vld [vmem:[#allocation3 + $0x70] sm:$0xff]
      %v6760 = vld [vmem:[#allocation3 + $0x78] sm:$0xff]
      %v6761 = vld [vmem:[#allocation3 + $0x80] sm:$0xff]
      %v6762 = vld [vmem:[#allocation3 + $0x88] sm:$0xff]
      %v6763 = vld [vmem:[#allocation3 + $0x90] sm:$0xff]
      %v6764 = vld [vmem:[#allocation3 + $0x98] sm:$0xff]
      %v6765 = vld [vmem:[#allocation3 + $0xa0] sm:$0xff]
      %v6766 = vld [vmem:[#allocation3 + $0xa8] sm:$0xff]
      %v6767 = vld [vmem:[#allocation3 + $0xb0] sm:$0xff]
      %v6768 = vld [vmem:[#allocation3 + $0xb8] sm:$0xff]
      %v6769 = vld [vmem:[#allocation3 + $0xc0] sm:$0xff]
      %v6770 = vld [vmem:[#allocation3 + $0xc8] sm:$0xff]
      %v6771 = vld [vmem:[#allocation3 + $0xd0] sm:$0xff]
      %v6772 = vld [vmem:[#allocation3 + $0xd8] sm:$0xff]
      %v6773 = vld [vmem:[#allocation3 + $0xe0] sm:$0xff]
      %v6774 = vld [vmem:[#allocation3 + $0xe8] sm:$0xff]
      %v6775 = vld [vmem:[#allocation3 + $0xf0] sm:$0xff]
      %v6776 = vld [vmem:[#allocation3 + $0xf8] sm:$0xff]
      %v6777 = vld [vmem:[#allocation3 + $0x100] sm:$0xff]
      %v6778 = vld [vmem:[#allocation3 + $0x108] sm:$0xff]
      %v6779 = vld [vmem:[#allocation3 + $0x110] sm:$0xff]
      %v6780 = vld [vmem:[#allocation3 + $0x118] sm:$0xff]
      %v6781 = vld [vmem:[#allocation2 + $0x13] sm:$0xff]
      %v6782 = vld [vmem:[#allocation2 + $0x1b] sm:$0xff]
      %v6783 = vld [vmem:[#allocation2 + $0x23] sm:$0xff]
      %v6784 = vld [vmem:[#allocation2 + $0x2b] sm:$0xff]
      %v6785 = vld [vmem:[#allocation2 + $0x33] sm:$0xff]
      %v6786 = vld [vmem:[#allocation2 + $0x3b] sm:$0xff]
      %v6787 = vld [vmem:[#allocation2 + $0x43] sm:$0xff]
      %v6788 = vld [vmem:[#allocation2 + $0x4b] sm:$0xff]
      %v6789 = vld [vmem:[#allocation2 + $0x53] sm:$0xff]
      %v6790 = vld [vmem:[#allocation2 + $0x5b] sm:$0xff]
      %v6791 = vld [vmem:[#allocation2 + $0x63] sm:$0xff]
      %v6792 = vld [vmem:[#allocation2 + $0x6b] sm:$0xff]
      %v6793 = vld [vmem:[#allocation2 + $0x73] sm:$0xff]
      %v6794 = vld [vmem:[#allocation2 + $0x7b] sm:$0xff]
      %v6795 = vld [vmem:[#allocation2 + $0x83] sm:$0xff]
      %v6796 = vld [vmem:[#allocation2 + $0x8b] sm:$0xff]
      %v6797 = vld [vmem:[#allocation2 + $0x93] sm:$0xff]
      %v6798 = vld [vmem:[#allocation2 + $0x9b] sm:$0xff]
      %v6799 = vld [vmem:[#allocation2 + $0xa3] sm:$0xff]
      %v6800 = vld [vmem:[#allocation2 + $0xab] sm:$0xff]
      %v6801 = vld [vmem:[#allocation2 + $0xb3] sm:$0xff]
      %v6802 = vld [vmem:[#allocation2 + $0xbb] sm:$0xff]
      %v6803 = vld [vmem:[#allocation2 + $0xc3] sm:$0xff]
      %v6804 = vld [vmem:[#allocation2 + $0xcb] sm:$0xff]
      %v6805 = vld [vmem:[#allocation2 + $0xd3] sm:$0xff]
      %v6806 = vld [vmem:[#allocation2 + $0xdb] sm:$0xff]
      %v6807 = vld [vmem:[#allocation2 + $0xe3] sm:$0xff]
      %v6808 = vld [vmem:[#allocation2 + $0xeb] sm:$0xff]
      %v6809 = vld [vmem:[#allocation2 + $0xf3] sm:$0xff]
      %v6810 = vld [vmem:[#allocation2 + $0xfb] sm:$0xff]
      %v6811 = vld [vmem:[#allocation2 + $0x103] sm:$0xff]
      %v6812 = vld [vmem:[#allocation2 + $0x10b] sm:$0xff]
      %v6813 = vld [vmem:[#allocation2 + $0x113] sm:$0xff]
      %v6814 = vld [vmem:[#allocation2 + $0x11b] sm:$0xff]
      %v6815 = vld [vmem:[#allocation2 + $0x123] sm:$0xff]
      %v6816 = vld [vmem:[#allocation2 + $0x12b] sm:$0xff]
      %s6817 = scalar_lea.vmem %s2, 512
      %v6818 = vld [vmem:[%s6817] sm:$0xff]
      %v6819 = vld [vmem:[%s6817 + $0x8] sm:$0xff]
      %v6820 = vld [vmem:[%s6817 + $0x10] sm:$0xff]
      %v6821 = vld [vmem:[%s6817 + $0x18] sm:$0xff]
      %v6822 = vld [vmem:[%s6817 + $0x20] sm:$0xff]
      %v6823 = vld [vmem:[%s6817 + $0x28] sm:$0xff]
      %v6824 = vld [vmem:[%s6817 + $0x30] sm:$0xff]
      %v6825 = vld [vmem:[%s6817 + $0x38] sm:$0xff]
      %v6826 = vld [vmem:[%s6817 + $0x40] sm:$0xff]
      %v6827 = vld [vmem:[%s6817 + $0x48] sm:$0xff]
      %v6828 = vld [vmem:[%s6817 + $0x50] sm:$0xff]
      %v6829 = vld [vmem:[%s6817 + $0x58] sm:$0xff]
      %v6830 = vld [vmem:[%s6817 + $0x60] sm:$0xff]
      %v6831 = vld [vmem:[%s6817 + $0x68] sm:$0xff]
      %v6832 = vld [vmem:[%s6817 + $0x70] sm:$0xff]
      %v6833 = vld [vmem:[%s6817 + $0x78] sm:$0xff]
      %6834 = vmatprep.subr.mxu0 0.0
      %6835 = vmatpush1.msra.mxu0 %v6818
      %6836 = vmatprep.subr.mxu0 0.0
      %6837 = vmatpush1.msra.mxu0 %v6819
      %6838 = vmatprep.subr.mxu0 0.0
      %6839 = vmatpush1.msra.mxu0 %v6820
      %6840 = vmatprep.subr.mxu0 0.0
      %6841 = vmatpush1.msra.mxu0 %v6821
      %6842 = vmatprep.subr.mxu0 0.0
      %6843 = vmatpush1.msra.mxu0 %v6822
      %6844 = vmatprep.subr.mxu0 0.0
      %6845 = vmatpush1.msra.mxu0 %v6823
      %6846 = vmatprep.subr.mxu0 0.0
      %6847 = vmatpush1.msra.mxu0 %v6824
      %6848 = vmatprep.subr.mxu0 0.0
      %6849 = vmatpush1.msra.mxu0 %v6825
      %6850 = vmatprep.subr.mxu0 0.0
      %6851 = vmatpush1.msra.mxu0 %v6826
      %6852 = vmatprep.subr.mxu0 0.0
      %6853 = vmatpush1.msra.mxu0 %v6827
      %6854 = vmatprep.subr.mxu0 0.0
      %6855 = vmatpush1.msra.mxu0 %v6828
      %6856 = vmatprep.subr.mxu0 0.0
      %6857 = vmatpush1.msra.mxu0 %v6829
      %6858 = vmatprep.subr.mxu0 0.0
      %6859 = vmatpush1.msra.mxu0 %v6830
      %6860 = vmatprep.subr.mxu0 0.0
      %6861 = vmatpush1.msra.mxu0 %v6831
      %6862 = vmatprep.subr.mxu0 0.0
      %6863 = vmatpush1.msra.mxu0 %v6832
      %6864 = vmatprep.subr.mxu0 0.0
      %6865 = vmatpush1.msra.mxu0 %v6833
      %6866 = vmatprep.subr.mxu0 0.0
      %6867 = vmatpush1.msra.mxu0 0.0
      %6868 = vmatprep.subr.mxu0 0.0
      %6869 = vmatpush1.msra.mxu0 0.0
      %6870 = vmatprep.subr.mxu0 0.0
      %6871 = vmatpush1.msra.mxu0 0.0
      %6872 = vmatprep.subr.mxu0 0.0
      %6873 = vmatpush1.msra.mxu0 0.0
      %6874 = vmatprep.subr.mxu0 0.0
      %6875 = vmatpush1.msra.mxu0 0.0
      %6876 = vmatprep.subr.mxu0 0.0
      %6877 = vmatpush1.msra.mxu0 0.0
      %6878 = vmatprep.subr.mxu0 0.0
      %6879 = vmatpush1.msra.mxu0 0.0
      %6880 = vmatprep.subr.mxu0 0.0
      %6881 = vmatpush1.msra.mxu0 0.0
      %6882 = vmatprep.subr.mxu0 0.0
      %6883 = vmatpush1.msra.mxu0 0.0
      %6884 = vmatprep.subr.mxu0 0.0
      %6885 = vmatpush1.msra.mxu0 0.0
      %6886 = vmatprep.subr.mxu0 0.0
      %6887 = vmatpush1.msra.mxu0 0.0
      %6888 = vmatprep.subr.mxu0 0.0
      %6889 = vmatpush1.msra.mxu0 0.0
      %6890 = vmatprep.subr.mxu0 0.0
      %6891 = vmatpush1.msra.mxu0 0.0
      %6892 = vmatprep.subr.mxu0 0.0
      %6893 = vmatpush1.msra.mxu0 0.0
      %6894 = vmatprep.subr.mxu0 0.0
      %6895 = vmatpush1.msra.mxu0 0.0
      %6896 = vmatprep.subr.mxu0 0.0
      %6897 = vmatpush1.msra.mxu0 0.0
      %6898 = vmatprep.mubr.f32.mxu0 0.0
      %6899 = vmatmul.mubr.f32.gmra.mrb[0].mxu0 %v6781
      %v6900 = vpop.f32.mrb[0].mxu0
      %v6901 = vadd.f32 0.0, %v6900
      %v6902 = vpop.f32.mrb[0].mxu0
      %6903 = vmatprep.mubr.f32.mxu0 0.0
      %6904 = vmatmul.mubr.f32.gmra.mrb[0].mxu0 %v6782
      %v6905 = vpop.f32.mrb[0].mxu0
      %v6906 = vadd.f32 0.0, %v6905
      %v6907 = vpop.f32.mrb[0].mxu0
      %6908 = vmatprep.mubr.f32.mxu0 0.0
      %6909 = vmatmul.mubr.f32.gmra.mrb[0].mxu0 %v6783
      %v6910 = vpop.f32.mrb[0].mxu0
      %v6911 = vadd.f32 0.0, %v6910
      %v6912 = vpop.f32.mrb[0].mxu0
      %6913 = vmatprep.mubr.f32.mxu0 0.0
      %6914 = vmatmul.mubr.f32.gmra.mrb[0].mxu0 %v6784
      %v6915 = vpop.f32.mrb[0].mxu0
      %v6916 = vadd.f32 0.0, %v6915
      %v6917 = vpop.f32.mrb[0].mxu0
      %6918 = vmatprep.mubr.f32.mxu0 0.0
      %6919 = vmatmul.mubr.f32.gmra.mrb[0].mxu0 %v6785
      %v6920 = vpop.f32.mrb[0].mxu0
      %v6921 = vadd.f32 0.0, %v6920
      %v6922 = vpop.f32.mrb[0].mxu0
      %6923 = vmatprep.mubr.f32.mxu0 0.0
      %6924 = vmatmul.mubr.f32.gmra.mrb[0].mxu0 %v6786
      %v6925 = vpop.f32.mrb[0].mxu0
      %v6926 = vadd.f32 0.0, %v6925
      %v6927 = vpop.f32.mrb[0].mxu0
      %6928 = vmatprep.mubr.f32.mxu0 0.0
      %6929 = vmatmul.mubr.f32.gmra.mrb[0].mxu0 %v6787
      %v6930 = vpop.f32.mrb[0].mxu0
      %v6931 = vadd.f32 0.0, %v6930
      %v6932 = vpop.f32.mrb[0].mxu0
      %6933 = vmatprep.mubr.f32.mxu0 0.0
      %6934 = vmatmul.mubr.f32.gmra.mrb[0].mxu0 %v6788
      %v6935 = vpop.f32.mrb[0].mxu0
      %v6936 = vadd.f32 0.0, %v6935
      %v6937 = vpop.f32.mrb[0].mxu0
      %6938 = vmatprep.mubr.f32.mxu0 0.0
      %6939 = vmatmul.mubr.f32.gmra.mrb[0].mxu0 %v6789
      %v6940 = vpop.f32.mrb[0].mxu0
      %v6941 = vadd.f32 0.0, %v6940
      %v6942 = vpop.f32.mrb[0].mxu0
      %6943 = vmatprep.mubr.f32.mxu0 0.0
      %6944 = vmatmul.mubr.f32.gmra.mrb[0].mxu0 %v6790
      %v6945 = vpop.f32.mrb[0].mxu0
      %v6946 = vadd.f32 0.0, %v6945
      %v6947 = vpop.f32.mrb[0].mxu0
      %6948 = vmatprep.mubr.f32.mxu0 0.0
      %6949 = vmatmul.mubr.f32.gmra.mrb[0].mxu0 %v6791
      %v6950 = vpop.f32.mrb[0].mxu0
      %v6951 = vadd.f32 0.0, %v6950
      %v6952 = vpop.f32.mrb[0].mxu0
      %6953 = vmatprep.mubr.f32.mxu0 0.0
      %6954 = vmatmul.mubr.f32.gmra.mrb[0].mxu0 %v6792
      %v6955 = vpop.f32.mrb[0].mxu0
      %v6956 = vadd.f32 0.0, %v6955
      %v6957 = vpop.f32.mrb[0].mxu0
      %6958 = vmatprep.mubr.f32.mxu0 0.0
      %6959 = vmatmul.mubr.f32.gmra.mrb[0].mxu0 %v6793
      %v6960 = vpop.f32.mrb[0].mxu0
      %v6961 = vadd.f32 0.0, %v6960
      %v6962 = vpop.f32.mrb[0].mxu0
      %6963 = vmatprep.mubr.f32.mxu0 0.0
      %6964 = vmatmul.mubr.f32.gmra.mrb[0].mxu0 %v6794
      %v6965 = vpop.f32.mrb[0].mxu0
      %v6966 = vadd.f32 0.0, %v6965
      %v6967 = vpop.f32.mrb[0].mxu0
      %6968 = vmatprep.mubr.f32.mxu0 0.0
      %6969 = vmatmul.mubr.f32.gmra.mrb[0].mxu0 %v6795
      %v6970 = vpop.f32.mrb[0].mxu0
      %v6971 = vadd.f32 0.0, %v6970
      %v6972 = vpop.f32.mrb[0].mxu0
      %6973 = vmatprep.mubr.f32.mxu0 0.0
      %6974 = vmatmul.mubr.f32.gmra.mrb[0].mxu0 %v6796
      %v6975 = vpop.f32.mrb[0].mxu0
      %v6976 = vadd.f32 0.0, %v6975
      %v6977 = vpop.f32.mrb[0].mxu0
      %6978 = vmatprep.mubr.f32.mxu0 0.0
      %6979 = vmatmul.mubr.f32.gmra.mrb[0].mxu0 %v6797
      %v6980 = vpop.f32.mrb[0].mxu0
      %v6981 = vadd.f32 0.0, %v6980
      %v6982 = vpop.f32.mrb[0].mxu0
      %6983 = vmatprep.mubr.f32.mxu0 0.0
      %6984 = vmatmul.mubr.f32.gmra.mrb[0].mxu0 %v6798
      %v6985 = vpop.f32.mrb[0].mxu0
      %v6986 = vadd.f32 0.0, %v6985
      %v6987 = vpop.f32.mrb[0].mxu0
      %6988 = vmatprep.mubr.f32.mxu0 0.0
      %6989 = vmatmul.mubr.f32.gmra.mrb[0].mxu0 %v6799
      %v6990 = vpop.f32.mrb[0].mxu0
      %v6991 = vadd.f32 0.0, %v6990
      %v6992 = vpop.f32.mrb[0].mxu0
      %6993 = vmatprep.mubr.f32.mxu0 0.0
      %6994 = vmatmul.mubr.f32.gmra.mrb[0].mxu0 %v6800
      %v6995 = vpop.f32.mrb[0].mxu0
      %v6996 = vadd.f32 0.0, %v6995
      %v6997 = vpop.f32.mrb[0].mxu0
      %6998 = vmatprep.mubr.f32.mxu0 0.0
      %6999 = vmatmul.mubr.f32.gmra.mrb[0].mxu0 %v6801
      %v7000 = vpop.f32.mrb[0].mxu0
      %v7001 = vadd.f32 0.0, %v7000
      %v7002 = vpop.f32.mrb[0].mxu0
      %7003 = vmatprep.mubr.f32.mxu0 0.0
      %7004 = vmatmul.mubr.f32.gmra.mrb[0].mxu0 %v6802
      %v7005 = vpop.f32.mrb[0].mxu0
      %v7006 = vadd.f32 0.0, %v7005
      %v7007 = vpop.f32.mrb[0].mxu0
      %7008 = vmatprep.mubr.f32.mxu0 0.0
      %7009 = vmatmul.mubr.f32.gmra.mrb[0].mxu0 %v6803
      %v7010 = vpop.f32.mrb[0].mxu0
      %v7011 = vadd.f32 0.0, %v7010
      %v7012 = vpop.f32.mrb[0].mxu0
      %7013 = vmatprep.mubr.f32.mxu0 0.0
      %7014 = vmatmul.mubr.f32.gmra.mrb[0].mxu0 %v6804
      %v7015 = vpop.f32.mrb[0].mxu0
      %v7016 = vadd.f32 0.0, %v7015
      %v7017 = vpop.f32.mrb[0].mxu0
      %7018 = vmatprep.mubr.f32.mxu0 0.0
      %7019 = vmatmul.mubr.f32.gmra.mrb[0].mxu0 %v6805
      %v7020 = vpop.f32.mrb[0].mxu0
      %v7021 = vadd.f32 0.0, %v7020
      %v7022 = vpop.f32.mrb[0].mxu0
      %7023 = vmatprep.mubr.f32.mxu0 0.0
      %7024 = vmatmul.mubr.f32.gmra.mrb[0].mxu0 %v6806
      %v7025 = vpop.f32.mrb[0].mxu0
      %v7026 = vadd.f32 0.0, %v7025
      %v7027 = vpop.f32.mrb[0].mxu0
      %7028 = vmatprep.mubr.f32.mxu0 0.0
      %7029 = vmatmul.mubr.f32.gmra.mrb[0].mxu0 %v6807
      %v7030 = vpop.f32.mrb[0].mxu0
      %v7031 = vadd.f32 0.0, %v7030
      %v7032 = vpop.f32.mrb[0].mxu0
      %7033 = vmatprep.mubr.f32.mxu0 0.0
      %7034 = vmatmul.mubr.f32.gmra.mrb[0].mxu0 %v6808
      %v7035 = vpop.f32.mrb[0].mxu0
      %v7036 = vadd.f32 0.0, %v7035
      %v7037 = vpop.f32.mrb[0].mxu0
      %7038 = vmatprep.mubr.f32.mxu0 0.0
      %7039 = vmatmul.mubr.f32.gmra.mrb[0].mxu0 %v6809
      %v7040 = vpop.f32.mrb[0].mxu0
      %v7041 = vadd.f32 0.0, %v7040
      %v7042 = vpop.f32.mrb[0].mxu0
      %7043 = vmatprep.mubr.f32.mxu0 0.0
      %7044 = vmatmul.mubr.f32.gmra.mrb[0].mxu0 %v6810
      %v7045 = vpop.f32.mrb[0].mxu0
      %v7046 = vadd.f32 0.0, %v7045
      %v7047 = vpop.f32.mrb[0].mxu0
      %7048 = vmatprep.mubr.f32.mxu0 0.0
      %7049 = vmatmul.mubr.f32.gmra.mrb[0].mxu0 %v6811
      %v7050 = vpop.f32.mrb[0].mxu0
      %v7051 = vadd.f32 0.0, %v7050
      %v7052 = vpop.f32.mrb[0].mxu0
      %7053 = vmatprep.mubr.f32.mxu0 0.0
      %7054 = vmatmul.mubr.f32.gmra.mrb[0].mxu0 %v6812
      %v7055 = vpop.f32.mrb[0].mxu0
      %v7056 = vadd.f32 0.0, %v7055
      %v7057 = vpop.f32.mrb[0].mxu0
      %7058 = vmatprep.mubr.f32.mxu0 0.0
      %7059 = vmatmul.mubr.f32.gmra.mrb[0].mxu0 %v6813
      %v7060 = vpop.f32.mrb[0].mxu0
      %v7061 = vadd.f32 0.0, %v7060
      %v7062 = vpop.f32.mrb[0].mxu0
      %7063 = vmatprep.mubr.f32.mxu0 0.0
      %7064 = vmatmul.mubr.f32.gmra.mrb[0].mxu0 %v6814
      %v7065 = vpop.f32.mrb[0].mxu0
      %v7066 = vadd.f32 0.0, %v7065
      %v7067 = vpop.f32.mrb[0].mxu0
      %7068 = vmatprep.mubr.f32.mxu0 0.0
      %7069 = vmatmul.mubr.f32.gmra.mrb[0].mxu0 %v6815
      %v7070 = vpop.f32.mrb[0].mxu0
      %v7071 = vadd.f32 0.0, %v7070
      %v7072 = vpop.f32.mrb[0].mxu0
      %7073 = vmatprep.mubr.f32.mxu0 0.0
      %7074 = vmatmul.mubr.f32.gmra.mrb[0].mxu0 %v6816
      %v7075 = vpop.f32.mrb[0].mxu0
      %v7076 = vadd.f32 0.0, %v7075
      %v7077 = vpop.f32.mrb[0].mxu0
      %7078 = vdwg.mxu0
      %v7079 = vadd.f32 %v6745, %v6901
      %v7080 = vadd.f32 %v6746, %v6906
      %v7081 = vadd.f32 %v6747, %v6911
      %v7082 = vadd.f32 %v6748, %v6916
      %v7083 = vadd.f32 %v6749, %v6921
      %v7084 = vadd.f32 %v6750, %v6926
      %v7085 = vadd.f32 %v6751, %v6931
      %v7086 = vadd.f32 %v6752, %v6936
      %v7087 = vadd.f32 %v6753, %v6941
      %v7088 = vadd.f32 %v6754, %v6946
      %v7089 = vadd.f32 %v6755, %v6951
      %v7090 = vadd.f32 %v6756, %v6956
      %v7091 = vadd.f32 %v6757, %v6961
      %v7092 = vadd.f32 %v6758, %v6966
      %v7093 = vadd.f32 %v6759, %v6971
      %v7094 = vadd.f32 %v6760, %v6976
      %v7095 = vadd.f32 %v6761, %v6981
      %v7096 = vadd.f32 %v6762, %v6986
      %v7097 = vadd.f32 %v6763, %v6991
      %v7098 = vadd.f32 %v6764, %v6996
      %v7099 = vadd.f32 %v6765, %v7001
      %v7100 = vadd.f32 %v6766, %v7006
      %v7101 = vadd.f32 %v6767, %v7011
      %v7102 = vadd.f32 %v6768, %v7016
      %v7103 = vadd.f32 %v6769, %v7021
      %v7104 = vadd.f32 %v6770, %v7026
      %v7105 = vadd.f32 %v6771, %v7031
      %v7106 = vadd.f32 %v6772, %v7036
      %v7107 = vadd.f32 %v6773, %v7041
      %v7108 = vadd.f32 %v6774, %v7046
      %v7109 = vadd.f32 %v6775, %v7051
      %v7110 = vadd.f32 %v6776, %v7056
      %v7111 = vadd.f32 %v6777, %v7061
      %v7112 = vadd.f32 %v6778, %v7066
      %v7113 = vadd.f32 %v6779, %v7071
      %v7114 = vadd.f32 %v6780, %v7076
      %7115 = vst [vmem:[#allocation3] sm:$0xff] %v7079
      %7116 = vst [vmem:[#allocation3 + $0x8] sm:$0xff] %v7080
      %7117 = vst [vmem:[#allocation3 + $0x10] sm:$0xff] %v7081
      %7118 = vst [vmem:[#allocation3 + $0x18] sm:$0xff] %v7082
      %7119 = vst [vmem:[#allocation3 + $0x20] sm:$0xff] %v7083
      %7120 = vst [vmem:[#allocation3 + $0x28] sm:$0xff] %v7084
      %7121 = vst [vmem:[#allocation3 + $0x30] sm:$0xff] %v7085
      %7122 = vst [vmem:[#allocation3 + $0x38] sm:$0xff] %v7086
      %7123 = vst [vmem:[#allocation3 + $0x40] sm:$0xff] %v7087
      %7124 = vst [vmem:[#allocation3 + $0x48] sm:$0xff] %v7088
      %7125 = vst [vmem:[#allocation3 + $0x50] sm:$0xff] %v7089
      %7126 = vst [vmem:[#allocation3 + $0x58] sm:$0xff] %v7090
      %7127 = vst [vmem:[#allocation3 + $0x60] sm:$0xff] %v7091
      %7128 = vst [vmem:[#allocation3 + $0x68] sm:$0xff] %v7092
      %7129 = vst [vmem:[#allocation3 + $0x70] sm:$0xff] %v7093
      %7130 = vst [vmem:[#allocation3 + $0x78] sm:$0xff] %v7094
      %7131 = vst [vmem:[#allocation3 + $0x80] sm:$0xff] %v7095
      %7132 = vst [vmem:[#allocation3 + $0x88] sm:$0xff] %v7096
      %7133 = vst [vmem:[#allocation3 + $0x90] sm:$0xff] %v7097
      %7134 = vst [vmem:[#allocation3 + $0x98] sm:$0xff] %v7098
      %7135 = vst [vmem:[#allocation3 + $0xa0] sm:$0xff] %v7099
      %7136 = vst [vmem:[#allocation3 + $0xa8] sm:$0xff] %v7100
      %7137 = vst [vmem:[#allocation3 + $0xb0] sm:$0xff] %v7101
      %7138 = vst [vmem:[#allocation3 + $0xb8] sm:$0xff] %v7102
      %7139 = vst [vmem:[#allocation3 + $0xc0] sm:$0xff] %v7103
      %7140 = vst [vmem:[#allocation3 + $0xc8] sm:$0xff] %v7104
      %7141 = vst [vmem:[#allocation3 + $0xd0] sm:$0xff] %v7105
      %7142 = vst [vmem:[#allocation3 + $0xd8] sm:$0xff] %v7106
      %7143 = vst [vmem:[#allocation3 + $0xe0] sm:$0xff] %v7107
      %7144 = vst [vmem:[#allocation3 + $0xe8] sm:$0xff] %v7108
      %7145 = vst [vmem:[#allocation3 + $0xf0] sm:$0xff] %v7109
      %7146 = vst [vmem:[#allocation3 + $0xf8] sm:$0xff] %v7110
      %7147 = vst [vmem:[#allocation3 + $0x100] sm:$0xff] %v7111
      %7148 = vst [vmem:[#allocation3 + $0x108] sm:$0xff] %v7112
      %7149 = vst [vmem:[#allocation3 + $0x110] sm:$0xff] %v7113
      %7150 = vst [vmem:[#allocation3 + $0x118] sm:$0xff] %v7114
      %v7151 = vld [vmem:[#allocation3] sm:$0xff]
      %v7152 = vld [vmem:[#allocation3 + $0x8] sm:$0xff]
      %v7153 = vld [vmem:[#allocation3 + $0x10] sm:$0xff]
      %v7154 = vld [vmem:[#allocation3 + $0x18] sm:$0xff]
      %v7155 = vld [vmem:[#allocation3 + $0x20] sm:$0xff]
      %v7156 = vld [vmem:[#allocation3 + $0x28] sm:$0xff]
      %v7157 = vld [vmem:[#allocation3 + $0x30] sm:$0xff]
      %v7158 = vld [vmem:[#allocation3 + $0x38] sm:$0xff]
      %v7159 = vld [vmem:[#allocation3 + $0x40] sm:$0xff]
      %v7160 = vld [vmem:[#allocation3 + $0x48] sm:$0xff]
      %v7161 = vld [vmem:[#allocation3 + $0x50] sm:$0xff]
      %v7162 = vld [vmem:[#allocation3 + $0x58] sm:$0xff]
      %v7163 = vld [vmem:[#allocation3 + $0x60] sm:$0xff]
      %v7164 = vld [vmem:[#allocation3 + $0x68] sm:$0xff]
      %v7165 = vld [vmem:[#allocation3 + $0x70] sm:$0xff]
      %v7166 = vld [vmem:[#allocation3 + $0x78] sm:$0xff]
      %v7167 = vld [vmem:[#allocation3 + $0x80] sm:$0xff]
      %v7168 = vld [vmem:[#allocation3 + $0x88] sm:$0xff]
      %v7169 = vld [vmem:[#allocation3 + $0x90] sm:$0xff]
      %v7170 = vld [vmem:[#allocation3 + $0x98] sm:$0xff]
      %v7171 = vld [vmem:[#allocation3 + $0xa0] sm:$0xff]
      %v7172 = vld [vmem:[#allocation3 + $0xa8] sm:$0xff]
      %v7173 = vld [vmem:[#allocation3 + $0xb0] sm:$0xff]
      %v7174 = vld [vmem:[#allocation3 + $0xb8] sm:$0xff]
      %v7175 = vld [vmem:[#allocation3 + $0xc0] sm:$0xff]
      %v7176 = vld [vmem:[#allocation3 + $0xc8] sm:$0xff]
      %v7177 = vld [vmem:[#allocation3 + $0xd0] sm:$0xff]
      %v7178 = vld [vmem:[#allocation3 + $0xd8] sm:$0xff]
      %v7179 = vld [vmem:[#allocation3 + $0xe0] sm:$0xff]
      %v7180 = vld [vmem:[#allocation3 + $0xe8] sm:$0xff]
      %v7181 = vld [vmem:[#allocation3 + $0xf0] sm:$0xff]
      %v7182 = vld [vmem:[#allocation3 + $0xf8] sm:$0xff]
      %v7183 = vld [vmem:[#allocation3 + $0x100] sm:$0xff]
      %v7184 = vld [vmem:[#allocation3 + $0x108] sm:$0xff]
      %v7185 = vld [vmem:[#allocation3 + $0x110] sm:$0xff]
      %v7186 = vld [vmem:[#allocation3 + $0x118] sm:$0xff]
      %v7187 = vld [vmem:[#allocation2 + $0x14] sm:$0xff]
      %v7188 = vld [vmem:[#allocation2 + $0x1c] sm:$0xff]
      %v7189 = vld [vmem:[#allocation2 + $0x24] sm:$0xff]
      %v7190 = vld [vmem:[#allocation2 + $0x2c] sm:$0xff]
      %v7191 = vld [vmem:[#allocation2 + $0x34] sm:$0xff]
      %v7192 = vld [vmem:[#allocation2 + $0x3c] sm:$0xff]
      %v7193 = vld [vmem:[#allocation2 + $0x44] sm:$0xff]
      %v7194 = vld [vmem:[#allocation2 + $0x4c] sm:$0xff]
      %v7195 = vld [vmem:[#allocation2 + $0x54] sm:$0xff]
      %v7196 = vld [vmem:[#allocation2 + $0x5c] sm:$0xff]
      %v7197 = vld [vmem:[#allocation2 + $0x64] sm:$0xff]
      %v7198 = vld [vmem:[#allocation2 + $0x6c] sm:$0xff]
      %v7199 = vld [vmem:[#allocation2 + $0x74] sm:$0xff]
      %v7200 = vld [vmem:[#allocation2 + $0x7c] sm:$0xff]
      %v7201 = vld [vmem:[#allocation2 + $0x84] sm:$0xff]
      %v7202 = vld [vmem:[#allocation2 + $0x8c] sm:$0xff]
      %v7203 = vld [vmem:[#allocation2 + $0x94] sm:$0xff]
      %v7204 = vld [vmem:[#allocation2 + $0x9c] sm:$0xff]
      %v7205 = vld [vmem:[#allocation2 + $0xa4] sm:$0xff]
      %v7206 = vld [vmem:[#allocation2 + $0xac] sm:$0xff]
      %v7207 = vld [vmem:[#allocation2 + $0xb4] sm:$0xff]
      %v7208 = vld [vmem:[#allocation2 + $0xbc] sm:$0xff]
      %v7209 = vld [vmem:[#allocation2 + $0xc4] sm:$0xff]
      %v7210 = vld [vmem:[#allocation2 + $0xcc] sm:$0xff]
      %v7211 = vld [vmem:[#allocation2 + $0xd4] sm:$0xff]
      %v7212 = vld [vmem:[#allocation2 + $0xdc] sm:$0xff]
      %v7213 = vld [vmem:[#allocation2 + $0xe4] sm:$0xff]
      %v7214 = vld [vmem:[#allocation2 + $0xec] sm:$0xff]
      %v7215 = vld [vmem:[#allocation2 + $0xf4] sm:$0xff]
      %v7216 = vld [vmem:[#allocation2 + $0xfc] sm:$0xff]
      %v7217 = vld [vmem:[#allocation2 + $0x104] sm:$0xff]
      %v7218 = vld [vmem:[#allocation2 + $0x10c] sm:$0xff]
      %v7219 = vld [vmem:[#allocation2 + $0x114] sm:$0xff]
      %v7220 = vld [vmem:[#allocation2 + $0x11c] sm:$0xff]
      %v7221 = vld [vmem:[#allocation2 + $0x124] sm:$0xff]
      %v7222 = vld [vmem:[#allocation2 + $0x12c] sm:$0xff]
      %s7223 = scalar_lea.vmem %s2, 640
      %v7224 = vld [vmem:[%s7223] sm:$0xff]
      %v7225 = vld [vmem:[%s7223 + $0x8] sm:$0xff]
      %v7226 = vld [vmem:[%s7223 + $0x10] sm:$0xff]
      %v7227 = vld [vmem:[%s7223 + $0x18] sm:$0xff]
      %v7228 = vld [vmem:[%s7223 + $0x20] sm:$0xff]
      %v7229 = vld [vmem:[%s7223 + $0x28] sm:$0xff]
      %v7230 = vld [vmem:[%s7223 + $0x30] sm:$0xff]
      %v7231 = vld [vmem:[%s7223 + $0x38] sm:$0xff]
      %v7232 = vld [vmem:[%s7223 + $0x40] sm:$0xff]
      %v7233 = vld [vmem:[%s7223 + $0x48] sm:$0xff]
      %v7234 = vld [vmem:[%s7223 + $0x50] sm:$0xff]
      %v7235 = vld [vmem:[%s7223 + $0x58] sm:$0xff]
      %v7236 = vld [vmem:[%s7223 + $0x60] sm:$0xff]
      %v7237 = vld [vmem:[%s7223 + $0x68] sm:$0xff]
      %v7238 = vld [vmem:[%s7223 + $0x70] sm:$0xff]
      %v7239 = vld [vmem:[%s7223 + $0x78] sm:$0xff]
      %7240 = vmatprep.subr.mxu0 0.0
      %7241 = vmatpush1.msra.mxu0 %v7224
      %7242 = vmatprep.subr.mxu0 0.0
      %7243 = vmatpush1.msra.mxu0 %v7225
      %7244 = vmatprep.subr.mxu0 0.0
      %7245 = vmatpush1.msra.mxu0 %v7226
      %7246 = vmatprep.subr.mxu0 0.0
      %7247 = vmatpush1.msra.mxu0 %v7227
      %7248 = vmatprep.subr.mxu0 0.0
      %7249 = vmatpush1.msra.mxu0 %v7228
      %7250 = vmatprep.subr.mxu0 0.0
      %7251 = vmatpush1.msra.mxu0 %v7229
      %7252 = vmatprep.subr.mxu0 0.0
      %7253 = vmatpush1.msra.mxu0 %v7230
      %7254 = vmatprep.subr.mxu0 0.0
      %7255 = vmatpush1.msra.mxu0 %v7231
      %7256 = vmatprep.subr.mxu0 0.0
      %7257 = vmatpush1.msra.mxu0 %v7232
      %7258 = vmatprep.subr.mxu0 0.0
      %7259 = vmatpush1.msra.mxu0 %v7233
      %7260 = vmatprep.subr.mxu0 0.0
      %7261 = vmatpush1.msra.mxu0 %v7234
      %7262 = vmatprep.subr.mxu0 0.0
      %7263 = vmatpush1.msra.mxu0 %v7235
      %7264 = vmatprep.subr.mxu0 0.0
      %7265 = vmatpush1.msra.mxu0 %v7236
      %7266 = vmatprep.subr.mxu0 0.0
      %7267 = vmatpush1.msra.mxu0 %v7237
      %7268 = vmatprep.subr.mxu0 0.0
      %7269 = vmatpush1.msra.mxu0 %v7238
      %7270 = vmatprep.subr.mxu0 0.0
      %7271 = vmatpush1.msra.mxu0 %v7239
      %7272 = vmatprep.subr.mxu0 0.0
      %7273 = vmatpush1.msra.mxu0 0.0
      %7274 = vmatprep.subr.mxu0 0.0
      %7275 = vmatpush1.msra.mxu0 0.0
      %7276 = vmatprep.subr.mxu0 0.0
      %7277 = vmatpush1.msra.mxu0 0.0
      %7278 = vmatprep.subr.mxu0 0.0
      %7279 = vmatpush1.msra.mxu0 0.0
      %7280 = vmatprep.subr.mxu0 0.0
      %7281 = vmatpush1.msra.mxu0 0.0
      %7282 = vmatprep.subr.mxu0 0.0
      %7283 = vmatpush1.msra.mxu0 0.0
      %7284 = vmatprep.subr.mxu0 0.0
      %7285 = vmatpush1.msra.mxu0 0.0
      %7286 = vmatprep.subr.mxu0 0.0
      %7287 = vmatpush1.msra.mxu0 0.0
      %7288 = vmatprep.subr.mxu0 0.0
      %7289 = vmatpush1.msra.mxu0 0.0
      %7290 = vmatprep.subr.mxu0 0.0
      %7291 = vmatpush1.msra.mxu0 0.0
      %7292 = vmatprep.subr.mxu0 0.0
      %7293 = vmatpush1.msra.mxu0 0.0
      %7294 = vmatprep.subr.mxu0 0.0
      %7295 = vmatpush1.msra.mxu0 0.0
      %7296 = vmatprep.subr.mxu0 0.0
      %7297 = vmatpush1.msra.mxu0 0.0
      %7298 = vmatprep.subr.mxu0 0.0
      %7299 = vmatpush1.msra.mxu0 0.0
      %7300 = vmatprep.subr.mxu0 0.0
      %7301 = vmatpush1.msra.mxu0 0.0
      %7302 = vmatprep.subr.mxu0 0.0
      %7303 = vmatpush1.msra.mxu0 0.0
      %7304 = vmatprep.mubr.f32.mxu0 0.0
      %7305 = vmatmul.mubr.f32.gmra.mrb[0].mxu0 %v7187
      %v7306 = vpop.f32.mrb[0].mxu0
      %v7307 = vadd.f32 0.0, %v7306
      %v7308 = vpop.f32.mrb[0].mxu0
      %7309 = vmatprep.mubr.f32.mxu0 0.0
      %7310 = vmatmul.mubr.f32.gmra.mrb[0].mxu0 %v7188
      %v7311 = vpop.f32.mrb[0].mxu0
      %v7312 = vadd.f32 0.0, %v7311
      %v7313 = vpop.f32.mrb[0].mxu0
      %7314 = vmatprep.mubr.f32.mxu0 0.0
      %7315 = vmatmul.mubr.f32.gmra.mrb[0].mxu0 %v7189
      %v7316 = vpop.f32.mrb[0].mxu0
      %v7317 = vadd.f32 0.0, %v7316
      %v7318 = vpop.f32.mrb[0].mxu0
      %7319 = vmatprep.mubr.f32.mxu0 0.0
      %7320 = vmatmul.mubr.f32.gmra.mrb[0].mxu0 %v7190
      %v7321 = vpop.f32.mrb[0].mxu0
      %v7322 = vadd.f32 0.0, %v7321
      %v7323 = vpop.f32.mrb[0].mxu0
      %7324 = vmatprep.mubr.f32.mxu0 0.0
      %7325 = vmatmul.mubr.f32.gmra.mrb[0].mxu0 %v7191
      %v7326 = vpop.f32.mrb[0].mxu0
      %v7327 = vadd.f32 0.0, %v7326
      %v7328 = vpop.f32.mrb[0].mxu0
      %7329 = vmatprep.mubr.f32.mxu0 0.0
      %7330 = vmatmul.mubr.f32.gmra.mrb[0].mxu0 %v7192
      %v7331 = vpop.f32.mrb[0].mxu0
      %v7332 = vadd.f32 0.0, %v7331
      %v7333 = vpop.f32.mrb[0].mxu0
      %7334 = vmatprep.mubr.f32.mxu0 0.0
      %7335 = vmatmul.mubr.f32.gmra.mrb[0].mxu0 %v7193
      %v7336 = vpop.f32.mrb[0].mxu0
      %v7337 = vadd.f32 0.0, %v7336
      %v7338 = vpop.f32.mrb[0].mxu0
      %7339 = vmatprep.mubr.f32.mxu0 0.0
      %7340 = vmatmul.mubr.f32.gmra.mrb[0].mxu0 %v7194
      %v7341 = vpop.f32.mrb[0].mxu0
      %v7342 = vadd.f32 0.0, %v7341
      %v7343 = vpop.f32.mrb[0].mxu0
      %7344 = vmatprep.mubr.f32.mxu0 0.0
      %7345 = vmatmul.mubr.f32.gmra.mrb[0].mxu0 %v7195
      %v7346 = vpop.f32.mrb[0].mxu0
      %v7347 = vadd.f32 0.0, %v7346
      %v7348 = vpop.f32.mrb[0].mxu0
      %7349 = vmatprep.mubr.f32.mxu0 0.0
      %7350 = vmatmul.mubr.f32.gmra.mrb[0].mxu0 %v7196
      %v7351 = vpop.f32.mrb[0].mxu0
      %v7352 = vadd.f32 0.0, %v7351
      %v7353 = vpop.f32.mrb[0].mxu0
      %7354 = vmatprep.mubr.f32.mxu0 0.0
      %7355 = vmatmul.mubr.f32.gmra.mrb[0].mxu0 %v7197
      %v7356 = vpop.f32.mrb[0].mxu0
      %v7357 = vadd.f32 0.0, %v7356
      %v7358 = vpop.f32.mrb[0].mxu0
      %7359 = vmatprep.mubr.f32.mxu0 0.0
      %7360 = vmatmul.mubr.f32.gmra.mrb[0].mxu0 %v7198
      %v7361 = vpop.f32.mrb[0].mxu0
      %v7362 = vadd.f32 0.0, %v7361
      %v7363 = vpop.f32.mrb[0].mxu0
      %7364 = vmatprep.mubr.f32.mxu0 0.0
      %7365 = vmatmul.mubr.f32.gmra.mrb[0].mxu0 %v7199
      %v7366 = vpop.f32.mrb[0].mxu0
      %v7367 = vadd.f32 0.0, %v7366
      %v7368 = vpop.f32.mrb[0].mxu0
      %7369 = vmatprep.mubr.f32.mxu0 0.0
      %7370 = vmatmul.mubr.f32.gmra.mrb[0].mxu0 %v7200
      %v7371 = vpop.f32.mrb[0].mxu0
      %v7372 = vadd.f32 0.0, %v7371
      %v7373 = vpop.f32.mrb[0].mxu0
      %7374 = vmatprep.mubr.f32.mxu0 0.0
      %7375 = vmatmul.mubr.f32.gmra.mrb[0].mxu0 %v7201
      %v7376 = vpop.f32.mrb[0].mxu0
      %v7377 = vadd.f32 0.0, %v7376
      %v7378 = vpop.f32.mrb[0].mxu0
      %7379 = vmatprep.mubr.f32.mxu0 0.0
      %7380 = vmatmul.mubr.f32.gmra.mrb[0].mxu0 %v7202
      %v7381 = vpop.f32.mrb[0].mxu0
      %v7382 = vadd.f32 0.0, %v7381
      %v7383 = vpop.f32.mrb[0].mxu0
      %7384 = vmatprep.mubr.f32.mxu0 0.0
      %7385 = vmatmul.mubr.f32.gmra.mrb[0].mxu0 %v7203
      %v7386 = vpop.f32.mrb[0].mxu0
      %v7387 = vadd.f32 0.0, %v7386
      %v7388 = vpop.f32.mrb[0].mxu0
      %7389 = vmatprep.mubr.f32.mxu0 0.0
      %7390 = vmatmul.mubr.f32.gmra.mrb[0].mxu0 %v7204
      %v7391 = vpop.f32.mrb[0].mxu0
      %v7392 = vadd.f32 0.0, %v7391
      %v7393 = vpop.f32.mrb[0].mxu0
      %7394 = vmatprep.mubr.f32.mxu0 0.0
      %7395 = vmatmul.mubr.f32.gmra.mrb[0].mxu0 %v7205
      %v7396 = vpop.f32.mrb[0].mxu0
      %v7397 = vadd.f32 0.0, %v7396
      %v7398 = vpop.f32.mrb[0].mxu0
      %7399 = vmatprep.mubr.f32.mxu0 0.0
      %7400 = vmatmul.mubr.f32.gmra.mrb[0].mxu0 %v7206
      %v7401 = vpop.f32.mrb[0].mxu0
      %v7402 = vadd.f32 0.0, %v7401
      %v7403 = vpop.f32.mrb[0].mxu0
      %7404 = vmatprep.mubr.f32.mxu0 0.0
      %7405 = vmatmul.mubr.f32.gmra.mrb[0].mxu0 %v7207
      %v7406 = vpop.f32.mrb[0].mxu0
      %v7407 = vadd.f32 0.0, %v7406
      %v7408 = vpop.f32.mrb[0].mxu0
      %7409 = vmatprep.mubr.f32.mxu0 0.0
      %7410 = vmatmul.mubr.f32.gmra.mrb[0].mxu0 %v7208
      %v7411 = vpop.f32.mrb[0].mxu0
      %v7412 = vadd.f32 0.0, %v7411
      %v7413 = vpop.f32.mrb[0].mxu0
      %7414 = vmatprep.mubr.f32.mxu0 0.0
      %7415 = vmatmul.mubr.f32.gmra.mrb[0].mxu0 %v7209
      %v7416 = vpop.f32.mrb[0].mxu0
      %v7417 = vadd.f32 0.0, %v7416
      %v7418 = vpop.f32.mrb[0].mxu0
      %7419 = vmatprep.mubr.f32.mxu0 0.0
      %7420 = vmatmul.mubr.f32.gmra.mrb[0].mxu0 %v7210
      %v7421 = vpop.f32.mrb[0].mxu0
      %v7422 = vadd.f32 0.0, %v7421
      %v7423 = vpop.f32.mrb[0].mxu0
      %7424 = vmatprep.mubr.f32.mxu0 0.0
      %7425 = vmatmul.mubr.f32.gmra.mrb[0].mxu0 %v7211
      %v7426 = vpop.f32.mrb[0].mxu0
      %v7427 = vadd.f32 0.0, %v7426
      %v7428 = vpop.f32.mrb[0].mxu0
      %7429 = vmatprep.mubr.f32.mxu0 0.0
      %7430 = vmatmul.mubr.f32.gmra.mrb[0].mxu0 %v7212
      %v7431 = vpop.f32.mrb[0].mxu0
      %v7432 = vadd.f32 0.0, %v7431
      %v7433 = vpop.f32.mrb[0].mxu0
      %7434 = vmatprep.mubr.f32.mxu0 0.0
      %7435 = vmatmul.mubr.f32.gmra.mrb[0].mxu0 %v7213
      %v7436 = vpop.f32.mrb[0].mxu0
      %v7437 = vadd.f32 0.0, %v7436
      %v7438 = vpop.f32.mrb[0].mxu0
      %7439 = vmatprep.mubr.f32.mxu0 0.0
      %7440 = vmatmul.mubr.f32.gmra.mrb[0].mxu0 %v7214
      %v7441 = vpop.f32.mrb[0].mxu0
      %v7442 = vadd.f32 0.0, %v7441
      %v7443 = vpop.f32.mrb[0].mxu0
      %7444 = vmatprep.mubr.f32.mxu0 0.0
      %7445 = vmatmul.mubr.f32.gmra.mrb[0].mxu0 %v7215
      %v7446 = vpop.f32.mrb[0].mxu0
      %v7447 = vadd.f32 0.0, %v7446
      %v7448 = vpop.f32.mrb[0].mxu0
      %7449 = vmatprep.mubr.f32.mxu0 0.0
      %7450 = vmatmul.mubr.f32.gmra.mrb[0].mxu0 %v7216
      %v7451 = vpop.f32.mrb[0].mxu0
      %v7452 = vadd.f32 0.0, %v7451
      %v7453 = vpop.f32.mrb[0].mxu0
      %7454 = vmatprep.mubr.f32.mxu0 0.0
      %7455 = vmatmul.mubr.f32.gmra.mrb[0].mxu0 %v7217
      %v7456 = vpop.f32.mrb[0].mxu0
      %v7457 = vadd.f32 0.0, %v7456
      %v7458 = vpop.f32.mrb[0].mxu0
      %7459 = vmatprep.mubr.f32.mxu0 0.0
      %7460 = vmatmul.mubr.f32.gmra.mrb[0].mxu0 %v7218
      %v7461 = vpop.f32.mrb[0].mxu0
      %v7462 = vadd.f32 0.0, %v7461
      %v7463 = vpop.f32.mrb[0].mxu0
      %7464 = vmatprep.mubr.f32.mxu0 0.0
      %7465 = vmatmul.mubr.f32.gmra.mrb[0].mxu0 %v7219
      %v7466 = vpop.f32.mrb[0].mxu0
      %v7467 = vadd.f32 0.0, %v7466
      %v7468 = vpop.f32.mrb[0].mxu0
      %7469 = vmatprep.mubr.f32.mxu0 0.0
      %7470 = vmatmul.mubr.f32.gmra.mrb[0].mxu0 %v7220
      %v7471 = vpop.f32.mrb[0].mxu0
      %v7472 = vadd.f32 0.0, %v7471
      %v7473 = vpop.f32.mrb[0].mxu0
      %7474 = vmatprep.mubr.f32.mxu0 0.0
      %7475 = vmatmul.mubr.f32.gmra.mrb[0].mxu0 %v7221
      %v7476 = vpop.f32.mrb[0].mxu0
      %v7477 = vadd.f32 0.0, %v7476
      %v7478 = vpop.f32.mrb[0].mxu0
      %7479 = vmatprep.mubr.f32.mxu0 0.0
      %7480 = vmatmul.mubr.f32.gmra.mrb[0].mxu0 %v7222
      %v7481 = vpop.f32.mrb[0].mxu0
      %v7482 = vadd.f32 0.0, %v7481
      %v7483 = vpop.f32.mrb[0].mxu0
      %7484 = vdwg.mxu0
      %v7485 = vadd.f32 %v7151, %v7307
      %v7486 = vadd.f32 %v7152, %v7312
      %v7487 = vadd.f32 %v7153, %v7317
      %v7488 = vadd.f32 %v7154, %v7322
      %v7489 = vadd.f32 %v7155, %v7327
      %v7490 = vadd.f32 %v7156, %v7332
      %v7491 = vadd.f32 %v7157, %v7337
      %v7492 = vadd.f32 %v7158, %v7342
      %v7493 = vadd.f32 %v7159, %v7347
      %v7494 = vadd.f32 %v7160, %v7352
      %v7495 = vadd.f32 %v7161, %v7357
      %v7496 = vadd.f32 %v7162, %v7362
      %v7497 = vadd.f32 %v7163, %v7367
      %v7498 = vadd.f32 %v7164, %v7372
      %v7499 = vadd.f32 %v7165, %v7377
      %v7500 = vadd.f32 %v7166, %v7382
      %v7501 = vadd.f32 %v7167, %v7387
      %v7502 = vadd.f32 %v7168, %v7392
      %v7503 = vadd.f32 %v7169, %v7397
      %v7504 = vadd.f32 %v7170, %v7402
      %v7505 = vadd.f32 %v7171, %v7407
      %v7506 = vadd.f32 %v7172, %v7412
      %v7507 = vadd.f32 %v7173, %v7417
      %v7508 = vadd.f32 %v7174, %v7422
      %v7509 = vadd.f32 %v7175, %v7427
      %v7510 = vadd.f32 %v7176, %v7432
      %v7511 = vadd.f32 %v7177, %v7437
      %v7512 = vadd.f32 %v7178, %v7442
      %v7513 = vadd.f32 %v7179, %v7447
      %v7514 = vadd.f32 %v7180, %v7452
      %v7515 = vadd.f32 %v7181, %v7457
      %v7516 = vadd.f32 %v7182, %v7462
      %v7517 = vadd.f32 %v7183, %v7467
      %v7518 = vadd.f32 %v7184, %v7472
      %v7519 = vadd.f32 %v7185, %v7477
      %v7520 = vadd.f32 %v7186, %v7482
      %7521 = vst [vmem:[#allocation3] sm:$0xff] %v7485
      %7522 = vst [vmem:[#allocation3 + $0x8] sm:$0xff] %v7486
      %7523 = vst [vmem:[#allocation3 + $0x10] sm:$0xff] %v7487
      %7524 = vst [vmem:[#allocation3 + $0x18] sm:$0xff] %v7488
      %7525 = vst [vmem:[#allocation3 + $0x20] sm:$0xff] %v7489
      %7526 = vst [vmem:[#allocation3 + $0x28] sm:$0xff] %v7490
      %7527 = vst [vmem:[#allocation3 + $0x30] sm:$0xff] %v7491
      %7528 = vst [vmem:[#allocation3 + $0x38] sm:$0xff] %v7492
      %7529 = vst [vmem:[#allocation3 + $0x40] sm:$0xff] %v7493
      %7530 = vst [vmem:[#allocation3 + $0x48] sm:$0xff] %v7494
      %7531 = vst [vmem:[#allocation3 + $0x50] sm:$0xff] %v7495
      %7532 = vst [vmem:[#allocation3 + $0x58] sm:$0xff] %v7496
      %7533 = vst [vmem:[#allocation3 + $0x60] sm:$0xff] %v7497
      %7534 = vst [vmem:[#allocation3 + $0x68] sm:$0xff] %v7498
      %7535 = vst [vmem:[#allocation3 + $0x70] sm:$0xff] %v7499
      %7536 = vst [vmem:[#allocation3 + $0x78] sm:$0xff] %v7500
      %7537 = vst [vmem:[#allocation3 + $0x80] sm:$0xff] %v7501
      %7538 = vst [vmem:[#allocation3 + $0x88] sm:$0xff] %v7502
      %7539 = vst [vmem:[#allocation3 + $0x90] sm:$0xff] %v7503
      %7540 = vst [vmem:[#allocation3 + $0x98] sm:$0xff] %v7504
      %7541 = vst [vmem:[#allocation3 + $0xa0] sm:$0xff] %v7505
      %7542 = vst [vmem:[#allocation3 + $0xa8] sm:$0xff] %v7506
      %7543 = vst [vmem:[#allocation3 + $0xb0] sm:$0xff] %v7507
      %7544 = vst [vmem:[#allocation3 + $0xb8] sm:$0xff] %v7508
      %7545 = vst [vmem:[#allocation3 + $0xc0] sm:$0xff] %v7509
      %7546 = vst [vmem:[#allocation3 + $0xc8] sm:$0xff] %v7510
      %7547 = vst [vmem:[#allocation3 + $0xd0] sm:$0xff] %v7511
      %7548 = vst [vmem:[#allocation3 + $0xd8] sm:$0xff] %v7512
      %7549 = vst [vmem:[#allocation3 + $0xe0] sm:$0xff] %v7513
      %7550 = vst [vmem:[#allocation3 + $0xe8] sm:$0xff] %v7514
      %7551 = vst [vmem:[#allocation3 + $0xf0] sm:$0xff] %v7515
      %7552 = vst [vmem:[#allocation3 + $0xf8] sm:$0xff] %v7516
      %7553 = vst [vmem:[#allocation3 + $0x100] sm:$0xff] %v7517
      %7554 = vst [vmem:[#allocation3 + $0x108] sm:$0xff] %v7518
      %7555 = vst [vmem:[#allocation3 + $0x110] sm:$0xff] %v7519
      %7556 = vst [vmem:[#allocation3 + $0x118] sm:$0xff] %v7520
      %v7557 = vld [vmem:[#allocation3] sm:$0xff]
      %v7558 = vld [vmem:[#allocation3 + $0x8] sm:$0xff]
      %v7559 = vld [vmem:[#allocation3 + $0x10] sm:$0xff]
      %v7560 = vld [vmem:[#allocation3 + $0x18] sm:$0xff]
      %v7561 = vld [vmem:[#allocation3 + $0x20] sm:$0xff]
      %v7562 = vld [vmem:[#allocation3 + $0x28] sm:$0xff]
      %v7563 = vld [vmem:[#allocation3 + $0x30] sm:$0xff]
      %v7564 = vld [vmem:[#allocation3 + $0x38] sm:$0xff]
      %v7565 = vld [vmem:[#allocation3 + $0x40] sm:$0xff]
      %v7566 = vld [vmem:[#allocation3 + $0x48] sm:$0xff]
      %v7567 = vld [vmem:[#allocation3 + $0x50] sm:$0xff]
      %v7568 = vld [vmem:[#allocation3 + $0x58] sm:$0xff]
      %v7569 = vld [vmem:[#allocation3 + $0x60] sm:$0xff]
      %v7570 = vld [vmem:[#allocation3 + $0x68] sm:$0xff]
      %v7571 = vld [vmem:[#allocation3 + $0x70] sm:$0xff]
      %v7572 = vld [vmem:[#allocation3 + $0x78] sm:$0xff]
      %v7573 = vld [vmem:[#allocation3 + $0x80] sm:$0xff]
      %v7574 = vld [vmem:[#allocation3 + $0x88] sm:$0xff]
      %v7575 = vld [vmem:[#allocation3 + $0x90] sm:$0xff]
      %v7576 = vld [vmem:[#allocation3 + $0x98] sm:$0xff]
      %v7577 = vld [vmem:[#allocation3 + $0xa0] sm:$0xff]
      %v7578 = vld [vmem:[#allocation3 + $0xa8] sm:$0xff]
      %v7579 = vld [vmem:[#allocation3 + $0xb0] sm:$0xff]
      %v7580 = vld [vmem:[#allocation3 + $0xb8] sm:$0xff]
      %v7581 = vld [vmem:[#allocation3 + $0xc0] sm:$0xff]
      %v7582 = vld [vmem:[#allocation3 + $0xc8] sm:$0xff]
      %v7583 = vld [vmem:[#allocation3 + $0xd0] sm:$0xff]
      %v7584 = vld [vmem:[#allocation3 + $0xd8] sm:$0xff]
      %v7585 = vld [vmem:[#allocation3 + $0xe0] sm:$0xff]
      %v7586 = vld [vmem:[#allocation3 + $0xe8] sm:$0xff]
      %v7587 = vld [vmem:[#allocation3 + $0xf0] sm:$0xff]
      %v7588 = vld [vmem:[#allocation3 + $0xf8] sm:$0xff]
      %v7589 = vld [vmem:[#allocation3 + $0x100] sm:$0xff]
      %v7590 = vld [vmem:[#allocation3 + $0x108] sm:$0xff]
      %v7591 = vld [vmem:[#allocation3 + $0x110] sm:$0xff]
      %v7592 = vld [vmem:[#allocation3 + $0x118] sm:$0xff]
      %v7593 = vld [vmem:[#allocation2 + $0x24] sm:$0xff]
      %v7594 = vld [vmem:[#allocation2 + $0x2c] sm:$0xff]
      %v7595 = vld [vmem:[#allocation2 + $0x34] sm:$0xff]
      %v7596 = vld [vmem:[#allocation2 + $0x3c] sm:$0xff]
      %v7597 = vld [vmem:[#allocation2 + $0x44] sm:$0xff]
      %v7598 = vld [vmem:[#allocation2 + $0x4c] sm:$0xff]
      %v7599 = vld [vmem:[#allocation2 + $0x54] sm:$0xff]
      %v7600 = vld [vmem:[#allocation2 + $0x5c] sm:$0xff]
      %v7601 = vld [vmem:[#allocation2 + $0x64] sm:$0xff]
      %v7602 = vld [vmem:[#allocation2 + $0x6c] sm:$0xff]
      %v7603 = vld [vmem:[#allocation2 + $0x74] sm:$0xff]
      %v7604 = vld [vmem:[#allocation2 + $0x7c] sm:$0xff]
      %v7605 = vld [vmem:[#allocation2 + $0x84] sm:$0xff]
      %v7606 = vld [vmem:[#allocation2 + $0x8c] sm:$0xff]
      %v7607 = vld [vmem:[#allocation2 + $0x94] sm:$0xff]
      %v7608 = vld [vmem:[#allocation2 + $0x9c] sm:$0xff]
      %v7609 = vld [vmem:[#allocation2 + $0xa4] sm:$0xff]
      %v7610 = vld [vmem:[#allocation2 + $0xac] sm:$0xff]
      %v7611 = vld [vmem:[#allocation2 + $0xb4] sm:$0xff]
      %v7612 = vld [vmem:[#allocation2 + $0xbc] sm:$0xff]
      %v7613 = vld [vmem:[#allocation2 + $0xc4] sm:$0xff]
      %v7614 = vld [vmem:[#allocation2 + $0xcc] sm:$0xff]
      %v7615 = vld [vmem:[#allocation2 + $0xd4] sm:$0xff]
      %v7616 = vld [vmem:[#allocation2 + $0xdc] sm:$0xff]
      %v7617 = vld [vmem:[#allocation2 + $0xe4] sm:$0xff]
      %v7618 = vld [vmem:[#allocation2 + $0xec] sm:$0xff]
      %v7619 = vld [vmem:[#allocation2 + $0xf4] sm:$0xff]
      %v7620 = vld [vmem:[#allocation2 + $0xfc] sm:$0xff]
      %v7621 = vld [vmem:[#allocation2 + $0x104] sm:$0xff]
      %v7622 = vld [vmem:[#allocation2 + $0x10c] sm:$0xff]
      %v7623 = vld [vmem:[#allocation2 + $0x114] sm:$0xff]
      %v7624 = vld [vmem:[#allocation2 + $0x11c] sm:$0xff]
      %v7625 = vld [vmem:[#allocation2 + $0x124] sm:$0xff]
      %v7626 = vld [vmem:[#allocation2 + $0x12c] sm:$0xff]
      %v7627 = vld [vmem:[#allocation2 + $0x134] sm:$0xff]
      %v7628 = vld [vmem:[#allocation2 + $0x13c] sm:$0xff]
      %s7629 = scalar_lea.vmem %s2, 768
      %v7630 = vld [vmem:[%s7629] sm:$0xff]
      %v7631 = vld [vmem:[%s7629 + $0x8] sm:$0xff]
      %v7632 = vld [vmem:[%s7629 + $0x10] sm:$0xff]
      %v7633 = vld [vmem:[%s7629 + $0x18] sm:$0xff]
      %v7634 = vld [vmem:[%s7629 + $0x20] sm:$0xff]
      %v7635 = vld [vmem:[%s7629 + $0x28] sm:$0xff]
      %v7636 = vld [vmem:[%s7629 + $0x30] sm:$0xff]
      %v7637 = vld [vmem:[%s7629 + $0x38] sm:$0xff]
      %v7638 = vld [vmem:[%s7629 + $0x40] sm:$0xff]
      %v7639 = vld [vmem:[%s7629 + $0x48] sm:$0xff]
      %v7640 = vld [vmem:[%s7629 + $0x50] sm:$0xff]
      %v7641 = vld [vmem:[%s7629 + $0x58] sm:$0xff]
      %v7642 = vld [vmem:[%s7629 + $0x60] sm:$0xff]
      %v7643 = vld [vmem:[%s7629 + $0x68] sm:$0xff]
      %v7644 = vld [vmem:[%s7629 + $0x70] sm:$0xff]
      %v7645 = vld [vmem:[%s7629 + $0x78] sm:$0xff]
      %7646 = vmatprep.subr.mxu0 0.0
      %7647 = vmatpush1.msra.mxu0 %v7630
      %7648 = vmatprep.subr.mxu0 0.0
      %7649 = vmatpush1.msra.mxu0 %v7631
      %7650 = vmatprep.subr.mxu0 0.0
      %7651 = vmatpush1.msra.mxu0 %v7632
      %7652 = vmatprep.subr.mxu0 0.0
      %7653 = vmatpush1.msra.mxu0 %v7633
      %7654 = vmatprep.subr.mxu0 0.0
      %7655 = vmatpush1.msra.mxu0 %v7634
      %7656 = vmatprep.subr.mxu0 0.0
      %7657 = vmatpush1.msra.mxu0 %v7635
      %7658 = vmatprep.subr.mxu0 0.0
      %7659 = vmatpush1.msra.mxu0 %v7636
      %7660 = vmatprep.subr.mxu0 0.0
      %7661 = vmatpush1.msra.mxu0 %v7637
      %7662 = vmatprep.subr.mxu0 0.0
      %7663 = vmatpush1.msra.mxu0 %v7638
      %7664 = vmatprep.subr.mxu0 0.0
      %7665 = vmatpush1.msra.mxu0 %v7639
      %7666 = vmatprep.subr.mxu0 0.0
      %7667 = vmatpush1.msra.mxu0 %v7640
      %7668 = vmatprep.subr.mxu0 0.0
      %7669 = vmatpush1.msra.mxu0 %v7641
      %7670 = vmatprep.subr.mxu0 0.0
      %7671 = vmatpush1.msra.mxu0 %v7642
      %7672 = vmatprep.subr.mxu0 0.0
      %7673 = vmatpush1.msra.mxu0 %v7643
      %7674 = vmatprep.subr.mxu0 0.0
      %7675 = vmatpush1.msra.mxu0 %v7644
      %7676 = vmatprep.subr.mxu0 0.0
      %7677 = vmatpush1.msra.mxu0 %v7645
      %7678 = vmatprep.subr.mxu0 0.0
      %7679 = vmatpush1.msra.mxu0 0.0
      %7680 = vmatprep.subr.mxu0 0.0
      %7681 = vmatpush1.msra.mxu0 0.0
      %7682 = vmatprep.subr.mxu0 0.0
      %7683 = vmatpush1.msra.mxu0 0.0
      %7684 = vmatprep.subr.mxu0 0.0
      %7685 = vmatpush1.msra.mxu0 0.0
      %7686 = vmatprep.subr.mxu0 0.0
      %7687 = vmatpush1.msra.mxu0 0.0
      %7688 = vmatprep.subr.mxu0 0.0
      %7689 = vmatpush1.msra.mxu0 0.0
      %7690 = vmatprep.subr.mxu0 0.0
      %7691 = vmatpush1.msra.mxu0 0.0
      %7692 = vmatprep.subr.mxu0 0.0
      %7693 = vmatpush1.msra.mxu0 0.0
      %7694 = vmatprep.subr.mxu0 0.0
      %7695 = vmatpush1.msra.mxu0 0.0
      %7696 = vmatprep.subr.mxu0 0.0
      %7697 = vmatpush1.msra.mxu0 0.0
      %7698 = vmatprep.subr.mxu0 0.0
      %7699 = vmatpush1.msra.mxu0 0.0
      %7700 = vmatprep.subr.mxu0 0.0
      %7701 = vmatpush1.msra.mxu0 0.0
      %7702 = vmatprep.subr.mxu0 0.0
      %7703 = vmatpush1.msra.mxu0 0.0
      %7704 = vmatprep.subr.mxu0 0.0
      %7705 = vmatpush1.msra.mxu0 0.0
      %7706 = vmatprep.subr.mxu0 0.0
      %7707 = vmatpush1.msra.mxu0 0.0
      %7708 = vmatprep.subr.mxu0 0.0
      %7709 = vmatpush1.msra.mxu0 0.0
      %7710 = vmatprep.mubr.f32.mxu0 0.0
      %7711 = vmatmul.mubr.f32.gmra.mrb[0].mxu0 %v7593
      %v7712 = vpop.f32.mrb[0].mxu0
      %v7713 = vadd.f32 0.0, %v7712
      %v7714 = vpop.f32.mrb[0].mxu0
      %7715 = vmatprep.mubr.f32.mxu0 0.0
      %7716 = vmatmul.mubr.f32.gmra.mrb[0].mxu0 %v7594
      %v7717 = vpop.f32.mrb[0].mxu0
      %v7718 = vadd.f32 0.0, %v7717
      %v7719 = vpop.f32.mrb[0].mxu0
      %7720 = vmatprep.mubr.f32.mxu0 0.0
      %7721 = vmatmul.mubr.f32.gmra.mrb[0].mxu0 %v7595
      %v7722 = vpop.f32.mrb[0].mxu0
      %v7723 = vadd.f32 0.0, %v7722
      %v7724 = vpop.f32.mrb[0].mxu0
      %7725 = vmatprep.mubr.f32.mxu0 0.0
      %7726 = vmatmul.mubr.f32.gmra.mrb[0].mxu0 %v7596
      %v7727 = vpop.f32.mrb[0].mxu0
      %v7728 = vadd.f32 0.0, %v7727
      %v7729 = vpop.f32.mrb[0].mxu0
      %7730 = vmatprep.mubr.f32.mxu0 0.0
      %7731 = vmatmul.mubr.f32.gmra.mrb[0].mxu0 %v7597
      %v7732 = vpop.f32.mrb[0].mxu0
      %v7733 = vadd.f32 0.0, %v7732
      %v7734 = vpop.f32.mrb[0].mxu0
      %7735 = vmatprep.mubr.f32.mxu0 0.0
      %7736 = vmatmul.mubr.f32.gmra.mrb[0].mxu0 %v7598
      %v7737 = vpop.f32.mrb[0].mxu0
      %v7738 = vadd.f32 0.0, %v7737
      %v7739 = vpop.f32.mrb[0].mxu0
      %7740 = vmatprep.mubr.f32.mxu0 0.0
      %7741 = vmatmul.mubr.f32.gmra.mrb[0].mxu0 %v7599
      %v7742 = vpop.f32.mrb[0].mxu0
      %v7743 = vadd.f32 0.0, %v7742
      %v7744 = vpop.f32.mrb[0].mxu0
      %7745 = vmatprep.mubr.f32.mxu0 0.0
      %7746 = vmatmul.mubr.f32.gmra.mrb[0].mxu0 %v7600
      %v7747 = vpop.f32.mrb[0].mxu0
      %v7748 = vadd.f32 0.0, %v7747
      %v7749 = vpop.f32.mrb[0].mxu0
      %7750 = vmatprep.mubr.f32.mxu0 0.0
      %7751 = vmatmul.mubr.f32.gmra.mrb[0].mxu0 %v7601
      %v7752 = vpop.f32.mrb[0].mxu0
      %v7753 = vadd.f32 0.0, %v7752
      %v7754 = vpop.f32.mrb[0].mxu0
      %7755 = vmatprep.mubr.f32.mxu0 0.0
      %7756 = vmatmul.mubr.f32.gmra.mrb[0].mxu0 %v7602
      %v7757 = vpop.f32.mrb[0].mxu0
      %v7758 = vadd.f32 0.0, %v7757
      %v7759 = vpop.f32.mrb[0].mxu0
      %7760 = vmatprep.mubr.f32.mxu0 0.0
      %7761 = vmatmul.mubr.f32.gmra.mrb[0].mxu0 %v7603
      %v7762 = vpop.f32.mrb[0].mxu0
      %v7763 = vadd.f32 0.0, %v7762
      %v7764 = vpop.f32.mrb[0].mxu0
      %7765 = vmatprep.mubr.f32.mxu0 0.0
      %7766 = vmatmul.mubr.f32.gmra.mrb[0].mxu0 %v7604
      %v7767 = vpop.f32.mrb[0].mxu0
      %v7768 = vadd.f32 0.0, %v7767
      %v7769 = vpop.f32.mrb[0].mxu0
      %7770 = vmatprep.mubr.f32.mxu0 0.0
      %7771 = vmatmul.mubr.f32.gmra.mrb[0].mxu0 %v7605
      %v7772 = vpop.f32.mrb[0].mxu0
      %v7773 = vadd.f32 0.0, %v7772
      %v7774 = vpop.f32.mrb[0].mxu0
      %7775 = vmatprep.mubr.f32.mxu0 0.0
      %7776 = vmatmul.mubr.f32.gmra.mrb[0].mxu0 %v7606
      %v7777 = vpop.f32.mrb[0].mxu0
      %v7778 = vadd.f32 0.0, %v7777
      %v7779 = vpop.f32.mrb[0].mxu0
      %7780 = vmatprep.mubr.f32.mxu0 0.0
      %7781 = vmatmul.mubr.f32.gmra.mrb[0].mxu0 %v7607
      %v7782 = vpop.f32.mrb[0].mxu0
      %v7783 = vadd.f32 0.0, %v7782
      %v7784 = vpop.f32.mrb[0].mxu0
      %7785 = vmatprep.mubr.f32.mxu0 0.0
      %7786 = vmatmul.mubr.f32.gmra.mrb[0].mxu0 %v7608
      %v7787 = vpop.f32.mrb[0].mxu0
      %v7788 = vadd.f32 0.0, %v7787
      %v7789 = vpop.f32.mrb[0].mxu0
      %7790 = vmatprep.mubr.f32.mxu0 0.0
      %7791 = vmatmul.mubr.f32.gmra.mrb[0].mxu0 %v7609
      %v7792 = vpop.f32.mrb[0].mxu0
      %v7793 = vadd.f32 0.0, %v7792
      %v7794 = vpop.f32.mrb[0].mxu0
      %7795 = vmatprep.mubr.f32.mxu0 0.0
      %7796 = vmatmul.mubr.f32.gmra.mrb[0].mxu0 %v7610
      %v7797 = vpop.f32.mrb[0].mxu0
      %v7798 = vadd.f32 0.0, %v7797
      %v7799 = vpop.f32.mrb[0].mxu0
      %7800 = vmatprep.mubr.f32.mxu0 0.0
      %7801 = vmatmul.mubr.f32.gmra.mrb[0].mxu0 %v7611
      %v7802 = vpop.f32.mrb[0].mxu0
      %v7803 = vadd.f32 0.0, %v7802
      %v7804 = vpop.f32.mrb[0].mxu0
      %7805 = vmatprep.mubr.f32.mxu0 0.0
      %7806 = vmatmul.mubr.f32.gmra.mrb[0].mxu0 %v7612
      %v7807 = vpop.f32.mrb[0].mxu0
      %v7808 = vadd.f32 0.0, %v7807
      %v7809 = vpop.f32.mrb[0].mxu0
      %7810 = vmatprep.mubr.f32.mxu0 0.0
      %7811 = vmatmul.mubr.f32.gmra.mrb[0].mxu0 %v7613
      %v7812 = vpop.f32.mrb[0].mxu0
      %v7813 = vadd.f32 0.0, %v7812
      %v7814 = vpop.f32.mrb[0].mxu0
      %7815 = vmatprep.mubr.f32.mxu0 0.0
      %7816 = vmatmul.mubr.f32.gmra.mrb[0].mxu0 %v7614
      %v7817 = vpop.f32.mrb[0].mxu0
      %v7818 = vadd.f32 0.0, %v7817
      %v7819 = vpop.f32.mrb[0].mxu0
      %7820 = vmatprep.mubr.f32.mxu0 0.0
      %7821 = vmatmul.mubr.f32.gmra.mrb[0].mxu0 %v7615
      %v7822 = vpop.f32.mrb[0].mxu0
      %v7823 = vadd.f32 0.0, %v7822
      %v7824 = vpop.f32.mrb[0].mxu0
      %7825 = vmatprep.mubr.f32.mxu0 0.0
      %7826 = vmatmul.mubr.f32.gmra.mrb[0].mxu0 %v7616
      %v7827 = vpop.f32.mrb[0].mxu0
      %v7828 = vadd.f32 0.0, %v7827
      %v7829 = vpop.f32.mrb[0].mxu0
      %7830 = vmatprep.mubr.f32.mxu0 0.0
      %7831 = vmatmul.mubr.f32.gmra.mrb[0].mxu0 %v7617
      %v7832 = vpop.f32.mrb[0].mxu0
      %v7833 = vadd.f32 0.0, %v7832
      %v7834 = vpop.f32.mrb[0].mxu0
      %7835 = vmatprep.mubr.f32.mxu0 0.0
      %7836 = vmatmul.mubr.f32.gmra.mrb[0].mxu0 %v7618
      %v7837 = vpop.f32.mrb[0].mxu0
      %v7838 = vadd.f32 0.0, %v7837
      %v7839 = vpop.f32.mrb[0].mxu0
      %7840 = vmatprep.mubr.f32.mxu0 0.0
      %7841 = vmatmul.mubr.f32.gmra.mrb[0].mxu0 %v7619
      %v7842 = vpop.f32.mrb[0].mxu0
      %v7843 = vadd.f32 0.0, %v7842
      %v7844 = vpop.f32.mrb[0].mxu0
      %7845 = vmatprep.mubr.f32.mxu0 0.0
      %7846 = vmatmul.mubr.f32.gmra.mrb[0].mxu0 %v7620
      %v7847 = vpop.f32.mrb[0].mxu0
      %v7848 = vadd.f32 0.0, %v7847
      %v7849 = vpop.f32.mrb[0].mxu0
      %7850 = vmatprep.mubr.f32.mxu0 0.0
      %7851 = vmatmul.mubr.f32.gmra.mrb[0].mxu0 %v7621
      %v7852 = vpop.f32.mrb[0].mxu0
      %v7853 = vadd.f32 0.0, %v7852
      %v7854 = vpop.f32.mrb[0].mxu0
      %7855 = vmatprep.mubr.f32.mxu0 0.0
      %7856 = vmatmul.mubr.f32.gmra.mrb[0].mxu0 %v7622
      %v7857 = vpop.f32.mrb[0].mxu0
      %v7858 = vadd.f32 0.0, %v7857
      %v7859 = vpop.f32.mrb[0].mxu0
      %7860 = vmatprep.mubr.f32.mxu0 0.0
      %7861 = vmatmul.mubr.f32.gmra.mrb[0].mxu0 %v7623
      %v7862 = vpop.f32.mrb[0].mxu0
      %v7863 = vadd.f32 0.0, %v7862
      %v7864 = vpop.f32.mrb[0].mxu0
      %7865 = vmatprep.mubr.f32.mxu0 0.0
      %7866 = vmatmul.mubr.f32.gmra.mrb[0].mxu0 %v7624
      %v7867 = vpop.f32.mrb[0].mxu0
      %v7868 = vadd.f32 0.0, %v7867
      %v7869 = vpop.f32.mrb[0].mxu0
      %7870 = vmatprep.mubr.f32.mxu0 0.0
      %7871 = vmatmul.mubr.f32.gmra.mrb[0].mxu0 %v7625
      %v7872 = vpop.f32.mrb[0].mxu0
      %v7873 = vadd.f32 0.0, %v7872
      %v7874 = vpop.f32.mrb[0].mxu0
      %7875 = vmatprep.mubr.f32.mxu0 0.0
      %7876 = vmatmul.mubr.f32.gmra.mrb[0].mxu0 %v7626
      %v7877 = vpop.f32.mrb[0].mxu0
      %v7878 = vadd.f32 0.0, %v7877
      %v7879 = vpop.f32.mrb[0].mxu0
      %7880 = vmatprep.mubr.f32.mxu0 0.0
      %7881 = vmatmul.mubr.f32.gmra.mrb[0].mxu0 %v7627
      %v7882 = vpop.f32.mrb[0].mxu0
      %v7883 = vadd.f32 0.0, %v7882
      %v7884 = vpop.f32.mrb[0].mxu0
      %7885 = vmatprep.mubr.f32.mxu0 0.0
      %7886 = vmatmul.mubr.f32.gmra.mrb[0].mxu0 %v7628
      %v7887 = vpop.f32.mrb[0].mxu0
      %v7888 = vadd.f32 0.0, %v7887
      %v7889 = vpop.f32.mrb[0].mxu0
      %7890 = vdwg.mxu0
      %v7891 = vadd.f32 %v7557, %v7713
      %v7892 = vadd.f32 %v7558, %v7718
      %v7893 = vadd.f32 %v7559, %v7723
      %v7894 = vadd.f32 %v7560, %v7728
      %v7895 = vadd.f32 %v7561, %v7733
      %v7896 = vadd.f32 %v7562, %v7738
      %v7897 = vadd.f32 %v7563, %v7743
      %v7898 = vadd.f32 %v7564, %v7748
      %v7899 = vadd.f32 %v7565, %v7753
      %v7900 = vadd.f32 %v7566, %v7758
      %v7901 = vadd.f32 %v7567, %v7763
      %v7902 = vadd.f32 %v7568, %v7768
      %v7903 = vadd.f32 %v7569, %v7773
      %v7904 = vadd.f32 %v7570, %v7778
      %v7905 = vadd.f32 %v7571, %v7783
      %v7906 = vadd.f32 %v7572, %v7788
      %v7907 = vadd.f32 %v7573, %v7793
      %v7908 = vadd.f32 %v7574, %v7798
      %v7909 = vadd.f32 %v7575, %v7803
      %v7910 = vadd.f32 %v7576, %v7808
      %v7911 = vadd.f32 %v7577, %v7813
      %v7912 = vadd.f32 %v7578, %v7818
      %v7913 = vadd.f32 %v7579, %v7823
      %v7914 = vadd.f32 %v7580, %v7828
      %v7915 = vadd.f32 %v7581, %v7833
      %v7916 = vadd.f32 %v7582, %v7838
      %v7917 = vadd.f32 %v7583, %v7843
      %v7918 = vadd.f32 %v7584, %v7848
      %v7919 = vadd.f32 %v7585, %v7853
      %v7920 = vadd.f32 %v7586, %v7858
      %v7921 = vadd.f32 %v7587, %v7863
      %v7922 = vadd.f32 %v7588, %v7868
      %v7923 = vadd.f32 %v7589, %v7873
      %v7924 = vadd.f32 %v7590, %v7878
      %v7925 = vadd.f32 %v7591, %v7883
      %v7926 = vadd.f32 %v7592, %v7888
      %7927 = vst [vmem:[#allocation3] sm:$0xff] %v7891
      %7928 = vst [vmem:[#allocation3 + $0x8] sm:$0xff] %v7892
      %7929 = vst [vmem:[#allocation3 + $0x10] sm:$0xff] %v7893
      %7930 = vst [vmem:[#allocation3 + $0x18] sm:$0xff] %v7894
      %7931 = vst [vmem:[#allocation3 + $0x20] sm:$0xff] %v7895
      %7932 = vst [vmem:[#allocation3 + $0x28] sm:$0xff] %v7896
      %7933 = vst [vmem:[#allocation3 + $0x30] sm:$0xff] %v7897
      %7934 = vst [vmem:[#allocation3 + $0x38] sm:$0xff] %v7898
      %7935 = vst [vmem:[#allocation3 + $0x40] sm:$0xff] %v7899
      %7936 = vst [vmem:[#allocation3 + $0x48] sm:$0xff] %v7900
      %7937 = vst [vmem:[#allocation3 + $0x50] sm:$0xff] %v7901
      %7938 = vst [vmem:[#allocation3 + $0x58] sm:$0xff] %v7902
      %7939 = vst [vmem:[#allocation3 + $0x60] sm:$0xff] %v7903
      %7940 = vst [vmem:[#allocation3 + $0x68] sm:$0xff] %v7904
      %7941 = vst [vmem:[#allocation3 + $0x70] sm:$0xff] %v7905
      %7942 = vst [vmem:[#allocation3 + $0x78] sm:$0xff] %v7906
      %7943 = vst [vmem:[#allocation3 + $0x80] sm:$0xff] %v7907
      %7944 = vst [vmem:[#allocation3 + $0x88] sm:$0xff] %v7908
      %7945 = vst [vmem:[#allocation3 + $0x90] sm:$0xff] %v7909
      %7946 = vst [vmem:[#allocation3 + $0x98] sm:$0xff] %v7910
      %7947 = vst [vmem:[#allocation3 + $0xa0] sm:$0xff] %v7911
      %7948 = vst [vmem:[#allocation3 + $0xa8] sm:$0xff] %v7912
      %7949 = vst [vmem:[#allocation3 + $0xb0] sm:$0xff] %v7913
      %7950 = vst [vmem:[#allocation3 + $0xb8] sm:$0xff] %v7914
      %7951 = vst [vmem:[#allocation3 + $0xc0] sm:$0xff] %v7915
      %7952 = vst [vmem:[#allocation3 + $0xc8] sm:$0xff] %v7916
      %7953 = vst [vmem:[#allocation3 + $0xd0] sm:$0xff] %v7917
      %7954 = vst [vmem:[#allocation3 + $0xd8] sm:$0xff] %v7918
      %7955 = vst [vmem:[#allocation3 + $0xe0] sm:$0xff] %v7919
      %7956 = vst [vmem:[#allocation3 + $0xe8] sm:$0xff] %v7920
      %7957 = vst [vmem:[#allocation3 + $0xf0] sm:$0xff] %v7921
      %7958 = vst [vmem:[#allocation3 + $0xf8] sm:$0xff] %v7922
      %7959 = vst [vmem:[#allocation3 + $0x100] sm:$0xff] %v7923
      %7960 = vst [vmem:[#allocation3 + $0x108] sm:$0xff] %v7924
      %7961 = vst [vmem:[#allocation3 + $0x110] sm:$0xff] %v7925
      %7962 = vst [vmem:[#allocation3 + $0x118] sm:$0xff] %v7926
      %v7963 = vld [vmem:[#allocation3] sm:$0xff]
      %v7964 = vld [vmem:[#allocation3 + $0x8] sm:$0xff]
      %v7965 = vld [vmem:[#allocation3 + $0x10] sm:$0xff]
      %v7966 = vld [vmem:[#allocation3 + $0x18] sm:$0xff]
      %v7967 = vld [vmem:[#allocation3 + $0x20] sm:$0xff]
      %v7968 = vld [vmem:[#allocation3 + $0x28] sm:$0xff]
      %v7969 = vld [vmem:[#allocation3 + $0x30] sm:$0xff]
      %v7970 = vld [vmem:[#allocation3 + $0x38] sm:$0xff]
      %v7971 = vld [vmem:[#allocation3 + $0x40] sm:$0xff]
      %v7972 = vld [vmem:[#allocation3 + $0x48] sm:$0xff]
      %v7973 = vld [vmem:[#allocation3 + $0x50] sm:$0xff]
      %v7974 = vld [vmem:[#allocation3 + $0x58] sm:$0xff]
      %v7975 = vld [vmem:[#allocation3 + $0x60] sm:$0xff]
      %v7976 = vld [vmem:[#allocation3 + $0x68] sm:$0xff]
      %v7977 = vld [vmem:[#allocation3 + $0x70] sm:$0xff]
      %v7978 = vld [vmem:[#allocation3 + $0x78] sm:$0xff]
      %v7979 = vld [vmem:[#allocation3 + $0x80] sm:$0xff]
      %v7980 = vld [vmem:[#allocation3 + $0x88] sm:$0xff]
      %v7981 = vld [vmem:[#allocation3 + $0x90] sm:$0xff]
      %v7982 = vld [vmem:[#allocation3 + $0x98] sm:$0xff]
      %v7983 = vld [vmem:[#allocation3 + $0xa0] sm:$0xff]
      %v7984 = vld [vmem:[#allocation3 + $0xa8] sm:$0xff]
      %v7985 = vld [vmem:[#allocation3 + $0xb0] sm:$0xff]
      %v7986 = vld [vmem:[#allocation3 + $0xb8] sm:$0xff]
      %v7987 = vld [vmem:[#allocation3 + $0xc0] sm:$0xff]
      %v7988 = vld [vmem:[#allocation3 + $0xc8] sm:$0xff]
      %v7989 = vld [vmem:[#allocation3 + $0xd0] sm:$0xff]
      %v7990 = vld [vmem:[#allocation3 + $0xd8] sm:$0xff]
      %v7991 = vld [vmem:[#allocation3 + $0xe0] sm:$0xff]
      %v7992 = vld [vmem:[#allocation3 + $0xe8] sm:$0xff]
      %v7993 = vld [vmem:[#allocation3 + $0xf0] sm:$0xff]
      %v7994 = vld [vmem:[#allocation3 + $0xf8] sm:$0xff]
      %v7995 = vld [vmem:[#allocation3 + $0x100] sm:$0xff]
      %v7996 = vld [vmem:[#allocation3 + $0x108] sm:$0xff]
      %v7997 = vld [vmem:[#allocation3 + $0x110] sm:$0xff]
      %v7998 = vld [vmem:[#allocation3 + $0x118] sm:$0xff]
      %v7999 = vld [vmem:[#allocation2 + $0x25] sm:$0xff]
      %v8000 = vld [vmem:[#allocation2 + $0x2d] sm:$0xff]
      %v8001 = vld [vmem:[#allocation2 + $0x35] sm:$0xff]
      %v8002 = vld [vmem:[#allocation2 + $0x3d] sm:$0xff]
      %v8003 = vld [vmem:[#allocation2 + $0x45] sm:$0xff]
      %v8004 = vld [vmem:[#allocation2 + $0x4d] sm:$0xff]
      %v8005 = vld [vmem:[#allocation2 + $0x55] sm:$0xff]
      %v8006 = vld [vmem:[#allocation2 + $0x5d] sm:$0xff]
      %v8007 = vld [vmem:[#allocation2 + $0x65] sm:$0xff]
      %v8008 = vld [vmem:[#allocation2 + $0x6d] sm:$0xff]
      %v8009 = vld [vmem:[#allocation2 + $0x75] sm:$0xff]
      %v8010 = vld [vmem:[#allocation2 + $0x7d] sm:$0xff]
      %v8011 = vld [vmem:[#allocation2 + $0x85] sm:$0xff]
      %v8012 = vld [vmem:[#allocation2 + $0x8d] sm:$0xff]
      %v8013 = vld [vmem:[#allocation2 + $0x95] sm:$0xff]
      %v8014 = vld [vmem:[#allocation2 + $0x9d] sm:$0xff]
      %v8015 = vld [vmem:[#allocation2 + $0xa5] sm:$0xff]
      %v8016 = vld [vmem:[#allocation2 + $0xad] sm:$0xff]
      %v8017 = vld [vmem:[#allocation2 + $0xb5] sm:$0xff]
      %v8018 = vld [vmem:[#allocation2 + $0xbd] sm:$0xff]
      %v8019 = vld [vmem:[#allocation2 + $0xc5] sm:$0xff]
      %v8020 = vld [vmem:[#allocation2 + $0xcd] sm:$0xff]
      %v8021 = vld [vmem:[#allocation2 + $0xd5] sm:$0xff]
      %v8022 = vld [vmem:[#allocation2 + $0xdd] sm:$0xff]
      %v8023 = vld [vmem:[#allocation2 + $0xe5] sm:$0xff]
      %v8024 = vld [vmem:[#allocation2 + $0xed] sm:$0xff]
      %v8025 = vld [vmem:[#allocation2 + $0xf5] sm:$0xff]
      %v8026 = vld [vmem:[#allocation2 + $0xfd] sm:$0xff]
      %v8027 = vld [vmem:[#allocation2 + $0x105] sm:$0xff]
      %v8028 = vld [vmem:[#allocation2 + $0x10d] sm:$0xff]
      %v8029 = vld [vmem:[#allocation2 + $0x115] sm:$0xff]
      %v8030 = vld [vmem:[#allocation2 + $0x11d] sm:$0xff]
      %v8031 = vld [vmem:[#allocation2 + $0x125] sm:$0xff]
      %v8032 = vld [vmem:[#allocation2 + $0x12d] sm:$0xff]
      %v8033 = vld [vmem:[#allocation2 + $0x135] sm:$0xff]
      %v8034 = vld [vmem:[#allocation2 + $0x13d] sm:$0xff]
      %s8035 = scalar_lea.vmem %s2, 896
      %v8036 = vld [vmem:[%s8035] sm:$0xff]
      %v8037 = vld [vmem:[%s8035 + $0x8] sm:$0xff]
      %v8038 = vld [vmem:[%s8035 + $0x10] sm:$0xff]
      %v8039 = vld [vmem:[%s8035 + $0x18] sm:$0xff]
      %v8040 = vld [vmem:[%s8035 + $0x20] sm:$0xff]
      %v8041 = vld [vmem:[%s8035 + $0x28] sm:$0xff]
      %v8042 = vld [vmem:[%s8035 + $0x30] sm:$0xff]
      %v8043 = vld [vmem:[%s8035 + $0x38] sm:$0xff]
      %v8044 = vld [vmem:[%s8035 + $0x40] sm:$0xff]
      %v8045 = vld [vmem:[%s8035 + $0x48] sm:$0xff]
      %v8046 = vld [vmem:[%s8035 + $0x50] sm:$0xff]
      %v8047 = vld [vmem:[%s8035 + $0x58] sm:$0xff]
      %v8048 = vld [vmem:[%s8035 + $0x60] sm:$0xff]
      %v8049 = vld [vmem:[%s8035 + $0x68] sm:$0xff]
      %v8050 = vld [vmem:[%s8035 + $0x70] sm:$0xff]
      %v8051 = vld [vmem:[%s8035 + $0x78] sm:$0xff]
      %8052 = vmatprep.subr.mxu0 0.0
      %8053 = vmatpush1.msra.mxu0 %v8036
      %8054 = vmatprep.subr.mxu0 0.0
      %8055 = vmatpush1.msra.mxu0 %v8037
      %8056 = vmatprep.subr.mxu0 0.0
      %8057 = vmatpush1.msra.mxu0 %v8038
      %8058 = vmatprep.subr.mxu0 0.0
      %8059 = vmatpush1.msra.mxu0 %v8039
      %8060 = vmatprep.subr.mxu0 0.0
      %8061 = vmatpush1.msra.mxu0 %v8040
      %8062 = vmatprep.subr.mxu0 0.0
      %8063 = vmatpush1.msra.mxu0 %v8041
      %8064 = vmatprep.subr.mxu0 0.0
      %8065 = vmatpush1.msra.mxu0 %v8042
      %8066 = vmatprep.subr.mxu0 0.0
      %8067 = vmatpush1.msra.mxu0 %v8043
      %8068 = vmatprep.subr.mxu0 0.0
      %8069 = vmatpush1.msra.mxu0 %v8044
      %8070 = vmatprep.subr.mxu0 0.0
      %8071 = vmatpush1.msra.mxu0 %v8045
      %8072 = vmatprep.subr.mxu0 0.0
      %8073 = vmatpush1.msra.mxu0 %v8046
      %8074 = vmatprep.subr.mxu0 0.0
      %8075 = vmatpush1.msra.mxu0 %v8047
      %8076 = vmatprep.subr.mxu0 0.0
      %8077 = vmatpush1.msra.mxu0 %v8048
      %8078 = vmatprep.subr.mxu0 0.0
      %8079 = vmatpush1.msra.mxu0 %v8049
      %8080 = vmatprep.subr.mxu0 0.0
      %8081 = vmatpush1.msra.mxu0 %v8050
      %8082 = vmatprep.subr.mxu0 0.0
      %8083 = vmatpush1.msra.mxu0 %v8051
      %8084 = vmatprep.subr.mxu0 0.0
      %8085 = vmatpush1.msra.mxu0 0.0
      %8086 = vmatprep.subr.mxu0 0.0
      %8087 = vmatpush1.msra.mxu0 0.0
      %8088 = vmatprep.subr.mxu0 0.0
      %8089 = vmatpush1.msra.mxu0 0.0
      %8090 = vmatprep.subr.mxu0 0.0
      %8091 = vmatpush1.msra.mxu0 0.0
      %8092 = vmatprep.subr.mxu0 0.0
      %8093 = vmatpush1.msra.mxu0 0.0
      %8094 = vmatprep.subr.mxu0 0.0
      %8095 = vmatpush1.msra.mxu0 0.0
      %8096 = vmatprep.subr.mxu0 0.0
      %8097 = vmatpush1.msra.mxu0 0.0
      %8098 = vmatprep.subr.mxu0 0.0
      %8099 = vmatpush1.msra.mxu0 0.0
      %8100 = vmatprep.subr.mxu0 0.0
      %8101 = vmatpush1.msra.mxu0 0.0
      %8102 = vmatprep.subr.mxu0 0.0
      %8103 = vmatpush1.msra.mxu0 0.0
      %8104 = vmatprep.subr.mxu0 0.0
      %8105 = vmatpush1.msra.mxu0 0.0
      %8106 = vmatprep.subr.mxu0 0.0
      %8107 = vmatpush1.msra.mxu0 0.0
      %8108 = vmatprep.subr.mxu0 0.0
      %8109 = vmatpush1.msra.mxu0 0.0
      %8110 = vmatprep.subr.mxu0 0.0
      %8111 = vmatpush1.msra.mxu0 0.0
      %8112 = vmatprep.subr.mxu0 0.0
      %8113 = vmatpush1.msra.mxu0 0.0
      %8114 = vmatprep.subr.mxu0 0.0
      %8115 = vmatpush1.msra.mxu0 0.0
      %8116 = vmatprep.mubr.f32.mxu0 0.0
      %8117 = vmatmul.mubr.f32.gmra.mrb[0].mxu0 %v7999
      %v8118 = vpop.f32.mrb[0].mxu0
      %v8119 = vadd.f32 0.0, %v8118
      %v8120 = vpop.f32.mrb[0].mxu0
      %8121 = vmatprep.mubr.f32.mxu0 0.0
      %8122 = vmatmul.mubr.f32.gmra.mrb[0].mxu0 %v8000
      %v8123 = vpop.f32.mrb[0].mxu0
      %v8124 = vadd.f32 0.0, %v8123
      %v8125 = vpop.f32.mrb[0].mxu0
      %8126 = vmatprep.mubr.f32.mxu0 0.0
      %8127 = vmatmul.mubr.f32.gmra.mrb[0].mxu0 %v8001
      %v8128 = vpop.f32.mrb[0].mxu0
      %v8129 = vadd.f32 0.0, %v8128
      %v8130 = vpop.f32.mrb[0].mxu0
      %8131 = vmatprep.mubr.f32.mxu0 0.0
      %8132 = vmatmul.mubr.f32.gmra.mrb[0].mxu0 %v8002
      %v8133 = vpop.f32.mrb[0].mxu0
      %v8134 = vadd.f32 0.0, %v8133
      %v8135 = vpop.f32.mrb[0].mxu0
      %8136 = vmatprep.mubr.f32.mxu0 0.0
      %8137 = vmatmul.mubr.f32.gmra.mrb[0].mxu0 %v8003
      %v8138 = vpop.f32.mrb[0].mxu0
      %v8139 = vadd.f32 0.0, %v8138
      %v8140 = vpop.f32.mrb[0].mxu0
      %8141 = vmatprep.mubr.f32.mxu0 0.0
      %8142 = vmatmul.mubr.f32.gmra.mrb[0].mxu0 %v8004
      %v8143 = vpop.f32.mrb[0].mxu0
      %v8144 = vadd.f32 0.0, %v8143
      %v8145 = vpop.f32.mrb[0].mxu0
      %8146 = vmatprep.mubr.f32.mxu0 0.0
      %8147 = vmatmul.mubr.f32.gmra.mrb[0].mxu0 %v8005
      %v8148 = vpop.f32.mrb[0].mxu0
      %v8149 = vadd.f32 0.0, %v8148
      %v8150 = vpop.f32.mrb[0].mxu0
      %8151 = vmatprep.mubr.f32.mxu0 0.0
      %8152 = vmatmul.mubr.f32.gmra.mrb[0].mxu0 %v8006
      %v8153 = vpop.f32.mrb[0].mxu0
      %v8154 = vadd.f32 0.0, %v8153
      %v8155 = vpop.f32.mrb[0].mxu0
      %8156 = vmatprep.mubr.f32.mxu0 0.0
      %8157 = vmatmul.mubr.f32.gmra.mrb[0].mxu0 %v8007
      %v8158 = vpop.f32.mrb[0].mxu0
      %v8159 = vadd.f32 0.0, %v8158
      %v8160 = vpop.f32.mrb[0].mxu0
      %8161 = vmatprep.mubr.f32.mxu0 0.0
      %8162 = vmatmul.mubr.f32.gmra.mrb[0].mxu0 %v8008
      %v8163 = vpop.f32.mrb[0].mxu0
      %v8164 = vadd.f32 0.0, %v8163
      %v8165 = vpop.f32.mrb[0].mxu0
      %8166 = vmatprep.mubr.f32.mxu0 0.0
      %8167 = vmatmul.mubr.f32.gmra.mrb[0].mxu0 %v8009
      %v8168 = vpop.f32.mrb[0].mxu0
      %v8169 = vadd.f32 0.0, %v8168
      %v8170 = vpop.f32.mrb[0].mxu0
      %8171 = vmatprep.mubr.f32.mxu0 0.0
      %8172 = vmatmul.mubr.f32.gmra.mrb[0].mxu0 %v8010
      %v8173 = vpop.f32.mrb[0].mxu0
      %v8174 = vadd.f32 0.0, %v8173
      %v8175 = vpop.f32.mrb[0].mxu0
      %8176 = vmatprep.mubr.f32.mxu0 0.0
      %8177 = vmatmul.mubr.f32.gmra.mrb[0].mxu0 %v8011
      %v8178 = vpop.f32.mrb[0].mxu0
      %v8179 = vadd.f32 0.0, %v8178
      %v8180 = vpop.f32.mrb[0].mxu0
      %8181 = vmatprep.mubr.f32.mxu0 0.0
      %8182 = vmatmul.mubr.f32.gmra.mrb[0].mxu0 %v8012
      %v8183 = vpop.f32.mrb[0].mxu0
      %v8184 = vadd.f32 0.0, %v8183
      %v8185 = vpop.f32.mrb[0].mxu0
      %8186 = vmatprep.mubr.f32.mxu0 0.0
      %8187 = vmatmul.mubr.f32.gmra.mrb[0].mxu0 %v8013
      %v8188 = vpop.f32.mrb[0].mxu0
      %v8189 = vadd.f32 0.0, %v8188
      %v8190 = vpop.f32.mrb[0].mxu0
      %8191 = vmatprep.mubr.f32.mxu0 0.0
      %8192 = vmatmul.mubr.f32.gmra.mrb[0].mxu0 %v8014
      %v8193 = vpop.f32.mrb[0].mxu0
      %v8194 = vadd.f32 0.0, %v8193
      %v8195 = vpop.f32.mrb[0].mxu0
      %8196 = vmatprep.mubr.f32.mxu0 0.0
      %8197 = vmatmul.mubr.f32.gmra.mrb[0].mxu0 %v8015
      %v8198 = vpop.f32.mrb[0].mxu0
      %v8199 = vadd.f32 0.0, %v8198
      %v8200 = vpop.f32.mrb[0].mxu0
      %8201 = vmatprep.mubr.f32.mxu0 0.0
      %8202 = vmatmul.mubr.f32.gmra.mrb[0].mxu0 %v8016
      %v8203 = vpop.f32.mrb[0].mxu0
      %v8204 = vadd.f32 0.0, %v8203
      %v8205 = vpop.f32.mrb[0].mxu0
      %8206 = vmatprep.mubr.f32.mxu0 0.0
      %8207 = vmatmul.mubr.f32.gmra.mrb[0].mxu0 %v8017
      %v8208 = vpop.f32.mrb[0].mxu0
      %v8209 = vadd.f32 0.0, %v8208
      %v8210 = vpop.f32.mrb[0].mxu0
      %8211 = vmatprep.mubr.f32.mxu0 0.0
      %8212 = vmatmul.mubr.f32.gmra.mrb[0].mxu0 %v8018
      %v8213 = vpop.f32.mrb[0].mxu0
      %v8214 = vadd.f32 0.0, %v8213
      %v8215 = vpop.f32.mrb[0].mxu0
      %8216 = vmatprep.mubr.f32.mxu0 0.0
      %8217 = vmatmul.mubr.f32.gmra.mrb[0].mxu0 %v8019
      %v8218 = vpop.f32.mrb[0].mxu0
      %v8219 = vadd.f32 0.0, %v8218
      %v8220 = vpop.f32.mrb[0].mxu0
      %8221 = vmatprep.mubr.f32.mxu0 0.0
      %8222 = vmatmul.mubr.f32.gmra.mrb[0].mxu0 %v8020
      %v8223 = vpop.f32.mrb[0].mxu0
      %v8224 = vadd.f32 0.0, %v8223
      %v8225 = vpop.f32.mrb[0].mxu0
      %8226 = vmatprep.mubr.f32.mxu0 0.0
      %8227 = vmatmul.mubr.f32.gmra.mrb[0].mxu0 %v8021
      %v8228 = vpop.f32.mrb[0].mxu0
      %v8229 = vadd.f32 0.0, %v8228
      %v8230 = vpop.f32.mrb[0].mxu0
      %8231 = vmatprep.mubr.f32.mxu0 0.0
      %8232 = vmatmul.mubr.f32.gmra.mrb[0].mxu0 %v8022
      %v8233 = vpop.f32.mrb[0].mxu0
      %v8234 = vadd.f32 0.0, %v8233
      %v8235 = vpop.f32.mrb[0].mxu0
      %8236 = vmatprep.mubr.f32.mxu0 0.0
      %8237 = vmatmul.mubr.f32.gmra.mrb[0].mxu0 %v8023
      %v8238 = vpop.f32.mrb[0].mxu0
      %v8239 = vadd.f32 0.0, %v8238
      %v8240 = vpop.f32.mrb[0].mxu0
      %8241 = vmatprep.mubr.f32.mxu0 0.0
      %8242 = vmatmul.mubr.f32.gmra.mrb[0].mxu0 %v8024
      %v8243 = vpop.f32.mrb[0].mxu0
      %v8244 = vadd.f32 0.0, %v8243
      %v8245 = vpop.f32.mrb[0].mxu0
      %8246 = vmatprep.mubr.f32.mxu0 0.0
      %8247 = vmatmul.mubr.f32.gmra.mrb[0].mxu0 %v8025
      %v8248 = vpop.f32.mrb[0].mxu0
      %v8249 = vadd.f32 0.0, %v8248
      %v8250 = vpop.f32.mrb[0].mxu0
      %8251 = vmatprep.mubr.f32.mxu0 0.0
      %8252 = vmatmul.mubr.f32.gmra.mrb[0].mxu0 %v8026
      %v8253 = vpop.f32.mrb[0].mxu0
      %v8254 = vadd.f32 0.0, %v8253
      %v8255 = vpop.f32.mrb[0].mxu0
      %8256 = vmatprep.mubr.f32.mxu0 0.0
      %8257 = vmatmul.mubr.f32.gmra.mrb[0].mxu0 %v8027
      %v8258 = vpop.f32.mrb[0].mxu0
      %v8259 = vadd.f32 0.0, %v8258
      %v8260 = vpop.f32.mrb[0].mxu0
      %8261 = vmatprep.mubr.f32.mxu0 0.0
      %8262 = vmatmul.mubr.f32.gmra.mrb[0].mxu0 %v8028
      %v8263 = vpop.f32.mrb[0].mxu0
      %v8264 = vadd.f32 0.0, %v8263
      %v8265 = vpop.f32.mrb[0].mxu0
      %8266 = vmatprep.mubr.f32.mxu0 0.0
      %8267 = vmatmul.mubr.f32.gmra.mrb[0].mxu0 %v8029
      %v8268 = vpop.f32.mrb[0].mxu0
      %v8269 = vadd.f32 0.0, %v8268
      %v8270 = vpop.f32.mrb[0].mxu0
      %8271 = vmatprep.mubr.f32.mxu0 0.0
      %8272 = vmatmul.mubr.f32.gmra.mrb[0].mxu0 %v8030
      %v8273 = vpop.f32.mrb[0].mxu0
      %v8274 = vadd.f32 0.0, %v8273
      %v8275 = vpop.f32.mrb[0].mxu0
      %8276 = vmatprep.mubr.f32.mxu0 0.0
      %8277 = vmatmul.mubr.f32.gmra.mrb[0].mxu0 %v8031
      %v8278 = vpop.f32.mrb[0].mxu0
      %v8279 = vadd.f32 0.0, %v8278
      %v8280 = vpop.f32.mrb[0].mxu0
      %8281 = vmatprep.mubr.f32.mxu0 0.0
      %8282 = vmatmul.mubr.f32.gmra.mrb[0].mxu0 %v8032
      %v8283 = vpop.f32.mrb[0].mxu0
      %v8284 = vadd.f32 0.0, %v8283
      %v8285 = vpop.f32.mrb[0].mxu0
      %8286 = vmatprep.mubr.f32.mxu0 0.0
      %8287 = vmatmul.mubr.f32.gmra.mrb[0].mxu0 %v8033
      %v8288 = vpop.f32.mrb[0].mxu0
      %v8289 = vadd.f32 0.0, %v8288
      %v8290 = vpop.f32.mrb[0].mxu0
      %8291 = vmatprep.mubr.f32.mxu0 0.0
      %8292 = vmatmul.mubr.f32.gmra.mrb[0].mxu0 %v8034
      %v8293 = vpop.f32.mrb[0].mxu0
      %v8294 = vadd.f32 0.0, %v8293
      %v8295 = vpop.f32.mrb[0].mxu0
      %8296 = vdwg.mxu0
      %v8297 = vadd.f32 %v7963, %v8119
      %v8298 = vadd.f32 %v7964, %v8124
      %v8299 = vadd.f32 %v7965, %v8129
      %v8300 = vadd.f32 %v7966, %v8134
      %v8301 = vadd.f32 %v7967, %v8139
      %v8302 = vadd.f32 %v7968, %v8144
      %v8303 = vadd.f32 %v7969, %v8149
      %v8304 = vadd.f32 %v7970, %v8154
      %v8305 = vadd.f32 %v7971, %v8159
      %v8306 = vadd.f32 %v7972, %v8164
      %v8307 = vadd.f32 %v7973, %v8169
      %v8308 = vadd.f32 %v7974, %v8174
      %v8309 = vadd.f32 %v7975, %v8179
      %v8310 = vadd.f32 %v7976, %v8184
      %v8311 = vadd.f32 %v7977, %v8189
      %v8312 = vadd.f32 %v7978, %v8194
      %v8313 = vadd.f32 %v7979, %v8199
      %v8314 = vadd.f32 %v7980, %v8204
      %v8315 = vadd.f32 %v7981, %v8209
      %v8316 = vadd.f32 %v7982, %v8214
      %v8317 = vadd.f32 %v7983, %v8219
      %v8318 = vadd.f32 %v7984, %v8224
      %v8319 = vadd.f32 %v7985, %v8229
      %v8320 = vadd.f32 %v7986, %v8234
      %v8321 = vadd.f32 %v7987, %v8239
      %v8322 = vadd.f32 %v7988, %v8244
      %v8323 = vadd.f32 %v7989, %v8249
      %v8324 = vadd.f32 %v7990, %v8254
      %v8325 = vadd.f32 %v7991, %v8259
      %v8326 = vadd.f32 %v7992, %v8264
      %v8327 = vadd.f32 %v7993, %v8269
      %v8328 = vadd.f32 %v7994, %v8274
      %v8329 = vadd.f32 %v7995, %v8279
      %v8330 = vadd.f32 %v7996, %v8284
      %v8331 = vadd.f32 %v7997, %v8289
      %v8332 = vadd.f32 %v7998, %v8294
      %8333 = vst [vmem:[#allocation3] sm:$0xff] %v8297
      %8334 = vst [vmem:[#allocation3 + $0x8] sm:$0xff] %v8298
      %8335 = vst [vmem:[#allocation3 + $0x10] sm:$0xff] %v8299
      %8336 = vst [vmem:[#allocation3 + $0x18] sm:$0xff] %v8300
      %8337 = vst [vmem:[#allocation3 + $0x20] sm:$0xff] %v8301
      %8338 = vst [vmem:[#allocation3 + $0x28] sm:$0xff] %v8302
      %8339 = vst [vmem:[#allocation3 + $0x30] sm:$0xff] %v8303
      %8340 = vst [vmem:[#allocation3 + $0x38] sm:$0xff] %v8304
      %8341 = vst [vmem:[#allocation3 + $0x40] sm:$0xff] %v8305
      %8342 = vst [vmem:[#allocation3 + $0x48] sm:$0xff] %v8306
      %8343 = vst [vmem:[#allocation3 + $0x50] sm:$0xff] %v8307
      %8344 = vst [vmem:[#allocation3 + $0x58] sm:$0xff] %v8308
      %8345 = vst [vmem:[#allocation3 + $0x60] sm:$0xff] %v8309
      %8346 = vst [vmem:[#allocation3 + $0x68] sm:$0xff] %v8310
      %8347 = vst [vmem:[#allocation3 + $0x70] sm:$0xff] %v8311
      %8348 = vst [vmem:[#allocation3 + $0x78] sm:$0xff] %v8312
      %8349 = vst [vmem:[#allocation3 + $0x80] sm:$0xff] %v8313
      %8350 = vst [vmem:[#allocation3 + $0x88] sm:$0xff] %v8314
      %8351 = vst [vmem:[#allocation3 + $0x90] sm:$0xff] %v8315
      %8352 = vst [vmem:[#allocation3 + $0x98] sm:$0xff] %v8316
      %8353 = vst [vmem:[#allocation3 + $0xa0] sm:$0xff] %v8317
      %8354 = vst [vmem:[#allocation3 + $0xa8] sm:$0xff] %v8318
      %8355 = vst [vmem:[#allocation3 + $0xb0] sm:$0xff] %v8319
      %8356 = vst [vmem:[#allocation3 + $0xb8] sm:$0xff] %v8320
      %8357 = vst [vmem:[#allocation3 + $0xc0] sm:$0xff] %v8321
      %8358 = vst [vmem:[#allocation3 + $0xc8] sm:$0xff] %v8322
      %8359 = vst [vmem:[#allocation3 + $0xd0] sm:$0xff] %v8323
      %8360 = vst [vmem:[#allocation3 + $0xd8] sm:$0xff] %v8324
      %8361 = vst [vmem:[#allocation3 + $0xe0] sm:$0xff] %v8325
      %8362 = vst [vmem:[#allocation3 + $0xe8] sm:$0xff] %v8326
      %8363 = vst [vmem:[#allocation3 + $0xf0] sm:$0xff] %v8327
      %8364 = vst [vmem:[#allocation3 + $0xf8] sm:$0xff] %v8328
      %8365 = vst [vmem:[#allocation3 + $0x100] sm:$0xff] %v8329
      %8366 = vst [vmem:[#allocation3 + $0x108] sm:$0xff] %v8330
      %8367 = vst [vmem:[#allocation3 + $0x110] sm:$0xff] %v8331
      %8368 = vst [vmem:[#allocation3 + $0x118] sm:$0xff] %v8332
      %v8369 = vld [vmem:[#allocation3] sm:$0xff]
      %v8370 = vld [vmem:[#allocation3 + $0x8] sm:$0xff]
      %v8371 = vld [vmem:[#allocation3 + $0x10] sm:$0xff]
      %v8372 = vld [vmem:[#allocation3 + $0x18] sm:$0xff]
      %v8373 = vld [vmem:[#allocation3 + $0x20] sm:$0xff]
      %v8374 = vld [vmem:[#allocation3 + $0x28] sm:$0xff]
      %v8375 = vld [vmem:[#allocation3 + $0x30] sm:$0xff]
      %v8376 = vld [vmem:[#allocation3 + $0x38] sm:$0xff]
      %v8377 = vld [vmem:[#allocation3 + $0x40] sm:$0xff]
      %v8378 = vld [vmem:[#allocation3 + $0x48] sm:$0xff]
      %v8379 = vld [vmem:[#allocation3 + $0x50] sm:$0xff]
      %v8380 = vld [vmem:[#allocation3 + $0x58] sm:$0xff]
      %v8381 = vld [vmem:[#allocation3 + $0x60] sm:$0xff]
      %v8382 = vld [vmem:[#allocation3 + $0x68] sm:$0xff]
      %v8383 = vld [vmem:[#allocation3 + $0x70] sm:$0xff]
      %v8384 = vld [vmem:[#allocation3 + $0x78] sm:$0xff]
      %v8385 = vld [vmem:[#allocation3 + $0x80] sm:$0xff]
      %v8386 = vld [vmem:[#allocation3 + $0x88] sm:$0xff]
      %v8387 = vld [vmem:[#allocation3 + $0x90] sm:$0xff]
      %v8388 = vld [vmem:[#allocation3 + $0x98] sm:$0xff]
      %v8389 = vld [vmem:[#allocation3 + $0xa0] sm:$0xff]
      %v8390 = vld [vmem:[#allocation3 + $0xa8] sm:$0xff]
      %v8391 = vld [vmem:[#allocation3 + $0xb0] sm:$0xff]
      %v8392 = vld [vmem:[#allocation3 + $0xb8] sm:$0xff]
      %v8393 = vld [vmem:[#allocation3 + $0xc0] sm:$0xff]
      %v8394 = vld [vmem:[#allocation3 + $0xc8] sm:$0xff]
      %v8395 = vld [vmem:[#allocation3 + $0xd0] sm:$0xff]
      %v8396 = vld [vmem:[#allocation3 + $0xd8] sm:$0xff]
      %v8397 = vld [vmem:[#allocation3 + $0xe0] sm:$0xff]
      %v8398 = vld [vmem:[#allocation3 + $0xe8] sm:$0xff]
      %v8399 = vld [vmem:[#allocation3 + $0xf0] sm:$0xff]
      %v8400 = vld [vmem:[#allocation3 + $0xf8] sm:$0xff]
      %v8401 = vld [vmem:[#allocation3 + $0x100] sm:$0xff]
      %v8402 = vld [vmem:[#allocation3 + $0x108] sm:$0xff]
      %v8403 = vld [vmem:[#allocation3 + $0x110] sm:$0xff]
      %v8404 = vld [vmem:[#allocation3 + $0x118] sm:$0xff]
      %v8405 = vld [vmem:[#allocation2 + $0x26] sm:$0xff]
      %v8406 = vld [vmem:[#allocation2 + $0x2e] sm:$0xff]
      %v8407 = vld [vmem:[#allocation2 + $0x36] sm:$0xff]
      %v8408 = vld [vmem:[#allocation2 + $0x3e] sm:$0xff]
      %v8409 = vld [vmem:[#allocation2 + $0x46] sm:$0xff]
      %v8410 = vld [vmem:[#allocation2 + $0x4e] sm:$0xff]
      %v8411 = vld [vmem:[#allocation2 + $0x56] sm:$0xff]
      %v8412 = vld [vmem:[#allocation2 + $0x5e] sm:$0xff]
      %v8413 = vld [vmem:[#allocation2 + $0x66] sm:$0xff]
      %v8414 = vld [vmem:[#allocation2 + $0x6e] sm:$0xff]
      %v8415 = vld [vmem:[#allocation2 + $0x76] sm:$0xff]
      %v8416 = vld [vmem:[#allocation2 + $0x7e] sm:$0xff]
      %v8417 = vld [vmem:[#allocation2 + $0x86] sm:$0xff]
      %v8418 = vld [vmem:[#allocation2 + $0x8e] sm:$0xff]
      %v8419 = vld [vmem:[#allocation2 + $0x96] sm:$0xff]
      %v8420 = vld [vmem:[#allocation2 + $0x9e] sm:$0xff]
      %v8421 = vld [vmem:[#allocation2 + $0xa6] sm:$0xff]
      %v8422 = vld [vmem:[#allocation2 + $0xae] sm:$0xff]
      %v8423 = vld [vmem:[#allocation2 + $0xb6] sm:$0xff]
      %v8424 = vld [vmem:[#allocation2 + $0xbe] sm:$0xff]
      %v8425 = vld [vmem:[#allocation2 + $0xc6] sm:$0xff]
      %v8426 = vld [vmem:[#allocation2 + $0xce] sm:$0xff]
      %v8427 = vld [vmem:[#allocation2 + $0xd6] sm:$0xff]
      %v8428 = vld [vmem:[#allocation2 + $0xde] sm:$0xff]
      %v8429 = vld [vmem:[#allocation2 + $0xe6] sm:$0xff]
      %v8430 = vld [vmem:[#allocation2 + $0xee] sm:$0xff]
      %v8431 = vld [vmem:[#allocation2 + $0xf6] sm:$0xff]
      %v8432 = vld [vmem:[#allocation2 + $0xfe] sm:$0xff]
      %v8433 = vld [vmem:[#allocation2 + $0x106] sm:$0xff]
      %v8434 = vld [vmem:[#allocation2 + $0x10e] sm:$0xff]
      %v8435 = vld [vmem:[#allocation2 + $0x116] sm:$0xff]
      %v8436 = vld [vmem:[#allocation2 + $0x11e] sm:$0xff]
      %v8437 = vld [vmem:[#allocation2 + $0x126] sm:$0xff]
      %v8438 = vld [vmem:[#allocation2 + $0x12e] sm:$0xff]
      %v8439 = vld [vmem:[#allocation2 + $0x136] sm:$0xff]
      %v8440 = vld [vmem:[#allocation2 + $0x13e] sm:$0xff]
      %s8441 = scalar_lea.vmem %s2, 1024
      %v8442 = vld [vmem:[%s8441] sm:$0xff]
      %v8443 = vld [vmem:[%s8441 + $0x8] sm:$0xff]
      %v8444 = vld [vmem:[%s8441 + $0x10] sm:$0xff]
      %v8445 = vld [vmem:[%s8441 + $0x18] sm:$0xff]
      %v8446 = vld [vmem:[%s8441 + $0x20] sm:$0xff]
      %v8447 = vld [vmem:[%s8441 + $0x28] sm:$0xff]
      %v8448 = vld [vmem:[%s8441 + $0x30] sm:$0xff]
      %v8449 = vld [vmem:[%s8441 + $0x38] sm:$0xff]
      %v8450 = vld [vmem:[%s8441 + $0x40] sm:$0xff]
      %v8451 = vld [vmem:[%s8441 + $0x48] sm:$0xff]
      %v8452 = vld [vmem:[%s8441 + $0x50] sm:$0xff]
      %v8453 = vld [vmem:[%s8441 + $0x58] sm:$0xff]
      %v8454 = vld [vmem:[%s8441 + $0x60] sm:$0xff]
      %v8455 = vld [vmem:[%s8441 + $0x68] sm:$0xff]
      %v8456 = vld [vmem:[%s8441 + $0x70] sm:$0xff]
      %v8457 = vld [vmem:[%s8441 + $0x78] sm:$0xff]
      %8458 = vmatprep.subr.mxu0 0.0
      %8459 = vmatpush1.msra.mxu0 %v8442
      %8460 = vmatprep.subr.mxu0 0.0
      %8461 = vmatpush1.msra.mxu0 %v8443
      %8462 = vmatprep.subr.mxu0 0.0
      %8463 = vmatpush1.msra.mxu0 %v8444
      %8464 = vmatprep.subr.mxu0 0.0
      %8465 = vmatpush1.msra.mxu0 %v8445
      %8466 = vmatprep.subr.mxu0 0.0
      %8467 = vmatpush1.msra.mxu0 %v8446
      %8468 = vmatprep.subr.mxu0 0.0
      %8469 = vmatpush1.msra.mxu0 %v8447
      %8470 = vmatprep.subr.mxu0 0.0
      %8471 = vmatpush1.msra.mxu0 %v8448
      %8472 = vmatprep.subr.mxu0 0.0
      %8473 = vmatpush1.msra.mxu0 %v8449
      %8474 = vmatprep.subr.mxu0 0.0
      %8475 = vmatpush1.msra.mxu0 %v8450
      %8476 = vmatprep.subr.mxu0 0.0
      %8477 = vmatpush1.msra.mxu0 %v8451
      %8478 = vmatprep.subr.mxu0 0.0
      %8479 = vmatpush1.msra.mxu0 %v8452
      %8480 = vmatprep.subr.mxu0 0.0
      %8481 = vmatpush1.msra.mxu0 %v8453
      %8482 = vmatprep.subr.mxu0 0.0
      %8483 = vmatpush1.msra.mxu0 %v8454
      %8484 = vmatprep.subr.mxu0 0.0
      %8485 = vmatpush1.msra.mxu0 %v8455
      %8486 = vmatprep.subr.mxu0 0.0
      %8487 = vmatpush1.msra.mxu0 %v8456
      %8488 = vmatprep.subr.mxu0 0.0
      %8489 = vmatpush1.msra.mxu0 %v8457
      %8490 = vmatprep.subr.mxu0 0.0
      %8491 = vmatpush1.msra.mxu0 0.0
      %8492 = vmatprep.subr.mxu0 0.0
      %8493 = vmatpush1.msra.mxu0 0.0
      %8494 = vmatprep.subr.mxu0 0.0
      %8495 = vmatpush1.msra.mxu0 0.0
      %8496 = vmatprep.subr.mxu0 0.0
      %8497 = vmatpush1.msra.mxu0 0.0
      %8498 = vmatprep.subr.mxu0 0.0
      %8499 = vmatpush1.msra.mxu0 0.0
      %8500 = vmatprep.subr.mxu0 0.0
      %8501 = vmatpush1.msra.mxu0 0.0
      %8502 = vmatprep.subr.mxu0 0.0
      %8503 = vmatpush1.msra.mxu0 0.0
      %8504 = vmatprep.subr.mxu0 0.0
      %8505 = vmatpush1.msra.mxu0 0.0
      %8506 = vmatprep.subr.mxu0 0.0
      %8507 = vmatpush1.msra.mxu0 0.0
      %8508 = vmatprep.subr.mxu0 0.0
      %8509 = vmatpush1.msra.mxu0 0.0
      %8510 = vmatprep.subr.mxu0 0.0
      %8511 = vmatpush1.msra.mxu0 0.0
      %8512 = vmatprep.subr.mxu0 0.0
      %8513 = vmatpush1.msra.mxu0 0.0
      %8514 = vmatprep.subr.mxu0 0.0
      %8515 = vmatpush1.msra.mxu0 0.0
      %8516 = vmatprep.subr.mxu0 0.0
      %8517 = vmatpush1.msra.mxu0 0.0
      %8518 = vmatprep.subr.mxu0 0.0
      %8519 = vmatpush1.msra.mxu0 0.0
      %8520 = vmatprep.subr.mxu0 0.0
      %8521 = vmatpush1.msra.mxu0 0.0
      %8522 = vmatprep.mubr.f32.mxu0 0.0
      %8523 = vmatmul.mubr.f32.gmra.mrb[0].mxu0 %v8405
      %v8524 = vpop.f32.mrb[0].mxu0
      %v8525 = vadd.f32 0.0, %v8524
      %v8526 = vpop.f32.mrb[0].mxu0
      %8527 = vmatprep.mubr.f32.mxu0 0.0
      %8528 = vmatmul.mubr.f32.gmra.mrb[0].mxu0 %v8406
      %v8529 = vpop.f32.mrb[0].mxu0
      %v8530 = vadd.f32 0.0, %v8529
      %v8531 = vpop.f32.mrb[0].mxu0
      %8532 = vmatprep.mubr.f32.mxu0 0.0
      %8533 = vmatmul.mubr.f32.gmra.mrb[0].mxu0 %v8407
      %v8534 = vpop.f32.mrb[0].mxu0
      %v8535 = vadd.f32 0.0, %v8534
      %v8536 = vpop.f32.mrb[0].mxu0
      %8537 = vmatprep.mubr.f32.mxu0 0.0
      %8538 = vmatmul.mubr.f32.gmra.mrb[0].mxu0 %v8408
      %v8539 = vpop.f32.mrb[0].mxu0
      %v8540 = vadd.f32 0.0, %v8539
      %v8541 = vpop.f32.mrb[0].mxu0
      %8542 = vmatprep.mubr.f32.mxu0 0.0
      %8543 = vmatmul.mubr.f32.gmra.mrb[0].mxu0 %v8409
      %v8544 = vpop.f32.mrb[0].mxu0
      %v8545 = vadd.f32 0.0, %v8544
      %v8546 = vpop.f32.mrb[0].mxu0
      %8547 = vmatprep.mubr.f32.mxu0 0.0
      %8548 = vmatmul.mubr.f32.gmra.mrb[0].mxu0 %v8410
      %v8549 = vpop.f32.mrb[0].mxu0
      %v8550 = vadd.f32 0.0, %v8549
      %v8551 = vpop.f32.mrb[0].mxu0
      %8552 = vmatprep.mubr.f32.mxu0 0.0
      %8553 = vmatmul.mubr.f32.gmra.mrb[0].mxu0 %v8411
      %v8554 = vpop.f32.mrb[0].mxu0
      %v8555 = vadd.f32 0.0, %v8554
      %v8556 = vpop.f32.mrb[0].mxu0
      %8557 = vmatprep.mubr.f32.mxu0 0.0
      %8558 = vmatmul.mubr.f32.gmra.mrb[0].mxu0 %v8412
      %v8559 = vpop.f32.mrb[0].mxu0
      %v8560 = vadd.f32 0.0, %v8559
      %v8561 = vpop.f32.mrb[0].mxu0
      %8562 = vmatprep.mubr.f32.mxu0 0.0
      %8563 = vmatmul.mubr.f32.gmra.mrb[0].mxu0 %v8413
      %v8564 = vpop.f32.mrb[0].mxu0
      %v8565 = vadd.f32 0.0, %v8564
      %v8566 = vpop.f32.mrb[0].mxu0
      %8567 = vmatprep.mubr.f32.mxu0 0.0
      %8568 = vmatmul.mubr.f32.gmra.mrb[0].mxu0 %v8414
      %v8569 = vpop.f32.mrb[0].mxu0
      %v8570 = vadd.f32 0.0, %v8569
      %v8571 = vpop.f32.mrb[0].mxu0
      %8572 = vmatprep.mubr.f32.mxu0 0.0
      %8573 = vmatmul.mubr.f32.gmra.mrb[0].mxu0 %v8415
      %v8574 = vpop.f32.mrb[0].mxu0
      %v8575 = vadd.f32 0.0, %v8574
      %v8576 = vpop.f32.mrb[0].mxu0
      %8577 = vmatprep.mubr.f32.mxu0 0.0
      %8578 = vmatmul.mubr.f32.gmra.mrb[0].mxu0 %v8416
      %v8579 = vpop.f32.mrb[0].mxu0
      %v8580 = vadd.f32 0.0, %v8579
      %v8581 = vpop.f32.mrb[0].mxu0
      %8582 = vmatprep.mubr.f32.mxu0 0.0
      %8583 = vmatmul.mubr.f32.gmra.mrb[0].mxu0 %v8417
      %v8584 = vpop.f32.mrb[0].mxu0
      %v8585 = vadd.f32 0.0, %v8584
      %v8586 = vpop.f32.mrb[0].mxu0
      %8587 = vmatprep.mubr.f32.mxu0 0.0
      %8588 = vmatmul.mubr.f32.gmra.mrb[0].mxu0 %v8418
      %v8589 = vpop.f32.mrb[0].mxu0
      %v8590 = vadd.f32 0.0, %v8589
      %v8591 = vpop.f32.mrb[0].mxu0
      %8592 = vmatprep.mubr.f32.mxu0 0.0
      %8593 = vmatmul.mubr.f32.gmra.mrb[0].mxu0 %v8419
      %v8594 = vpop.f32.mrb[0].mxu0
      %v8595 = vadd.f32 0.0, %v8594
      %v8596 = vpop.f32.mrb[0].mxu0
      %8597 = vmatprep.mubr.f32.mxu0 0.0
      %8598 = vmatmul.mubr.f32.gmra.mrb[0].mxu0 %v8420
      %v8599 = vpop.f32.mrb[0].mxu0
      %v8600 = vadd.f32 0.0, %v8599
      %v8601 = vpop.f32.mrb[0].mxu0
      %8602 = vmatprep.mubr.f32.mxu0 0.0
      %8603 = vmatmul.mubr.f32.gmra.mrb[0].mxu0 %v8421
      %v8604 = vpop.f32.mrb[0].mxu0
      %v8605 = vadd.f32 0.0, %v8604
      %v8606 = vpop.f32.mrb[0].mxu0
      %8607 = vmatprep.mubr.f32.mxu0 0.0
      %8608 = vmatmul.mubr.f32.gmra.mrb[0].mxu0 %v8422
      %v8609 = vpop.f32.mrb[0].mxu0
      %v8610 = vadd.f32 0.0, %v8609
      %v8611 = vpop.f32.mrb[0].mxu0
      %8612 = vmatprep.mubr.f32.mxu0 0.0
      %8613 = vmatmul.mubr.f32.gmra.mrb[0].mxu0 %v8423
      %v8614 = vpop.f32.mrb[0].mxu0
      %v8615 = vadd.f32 0.0, %v8614
      %v8616 = vpop.f32.mrb[0].mxu0
      %8617 = vmatprep.mubr.f32.mxu0 0.0
      %8618 = vmatmul.mubr.f32.gmra.mrb[0].mxu0 %v8424
      %v8619 = vpop.f32.mrb[0].mxu0
      %v8620 = vadd.f32 0.0, %v8619
      %v8621 = vpop.f32.mrb[0].mxu0
      %8622 = vmatprep.mubr.f32.mxu0 0.0
      %8623 = vmatmul.mubr.f32.gmra.mrb[0].mxu0 %v8425
      %v8624 = vpop.f32.mrb[0].mxu0
      %v8625 = vadd.f32 0.0, %v8624
      %v8626 = vpop.f32.mrb[0].mxu0
      %8627 = vmatprep.mubr.f32.mxu0 0.0
      %8628 = vmatmul.mubr.f32.gmra.mrb[0].mxu0 %v8426
      %v8629 = vpop.f32.mrb[0].mxu0
      %v8630 = vadd.f32 0.0, %v8629
      %v8631 = vpop.f32.mrb[0].mxu0
      %8632 = vmatprep.mubr.f32.mxu0 0.0
      %8633 = vmatmul.mubr.f32.gmra.mrb[0].mxu0 %v8427
      %v8634 = vpop.f32.mrb[0].mxu0
      %v8635 = vadd.f32 0.0, %v8634
      %v8636 = vpop.f32.mrb[0].mxu0
      %8637 = vmatprep.mubr.f32.mxu0 0.0
      %8638 = vmatmul.mubr.f32.gmra.mrb[0].mxu0 %v8428
      %v8639 = vpop.f32.mrb[0].mxu0
      %v8640 = vadd.f32 0.0, %v8639
      %v8641 = vpop.f32.mrb[0].mxu0
      %8642 = vmatprep.mubr.f32.mxu0 0.0
      %8643 = vmatmul.mubr.f32.gmra.mrb[0].mxu0 %v8429
      %v8644 = vpop.f32.mrb[0].mxu0
      %v8645 = vadd.f32 0.0, %v8644
      %v8646 = vpop.f32.mrb[0].mxu0
      %8647 = vmatprep.mubr.f32.mxu0 0.0
      %8648 = vmatmul.mubr.f32.gmra.mrb[0].mxu0 %v8430
      %v8649 = vpop.f32.mrb[0].mxu0
      %v8650 = vadd.f32 0.0, %v8649
      %v8651 = vpop.f32.mrb[0].mxu0
      %8652 = vmatprep.mubr.f32.mxu0 0.0
      %8653 = vmatmul.mubr.f32.gmra.mrb[0].mxu0 %v8431
      %v8654 = vpop.f32.mrb[0].mxu0
      %v8655 = vadd.f32 0.0, %v8654
      %v8656 = vpop.f32.mrb[0].mxu0
      %8657 = vmatprep.mubr.f32.mxu0 0.0
      %8658 = vmatmul.mubr.f32.gmra.mrb[0].mxu0 %v8432
      %v8659 = vpop.f32.mrb[0].mxu0
      %v8660 = vadd.f32 0.0, %v8659
      %v8661 = vpop.f32.mrb[0].mxu0
      %8662 = vmatprep.mubr.f32.mxu0 0.0
      %8663 = vmatmul.mubr.f32.gmra.mrb[0].mxu0 %v8433
      %v8664 = vpop.f32.mrb[0].mxu0
      %v8665 = vadd.f32 0.0, %v8664
      %v8666 = vpop.f32.mrb[0].mxu0
      %8667 = vmatprep.mubr.f32.mxu0 0.0
      %8668 = vmatmul.mubr.f32.gmra.mrb[0].mxu0 %v8434
      %v8669 = vpop.f32.mrb[0].mxu0
      %v8670 = vadd.f32 0.0, %v8669
      %v8671 = vpop.f32.mrb[0].mxu0
      %8672 = vmatprep.mubr.f32.mxu0 0.0
      %8673 = vmatmul.mubr.f32.gmra.mrb[0].mxu0 %v8435
      %v8674 = vpop.f32.mrb[0].mxu0
      %v8675 = vadd.f32 0.0, %v8674
      %v8676 = vpop.f32.mrb[0].mxu0
      %8677 = vmatprep.mubr.f32.mxu0 0.0
      %8678 = vmatmul.mubr.f32.gmra.mrb[0].mxu0 %v8436
      %v8679 = vpop.f32.mrb[0].mxu0
      %v8680 = vadd.f32 0.0, %v8679
      %v8681 = vpop.f32.mrb[0].mxu0
      %8682 = vmatprep.mubr.f32.mxu0 0.0
      %8683 = vmatmul.mubr.f32.gmra.mrb[0].mxu0 %v8437
      %v8684 = vpop.f32.mrb[0].mxu0
      %v8685 = vadd.f32 0.0, %v8684
      %v8686 = vpop.f32.mrb[0].mxu0
      %8687 = vmatprep.mubr.f32.mxu0 0.0
      %8688 = vmatmul.mubr.f32.gmra.mrb[0].mxu0 %v8438
      %v8689 = vpop.f32.mrb[0].mxu0
      %v8690 = vadd.f32 0.0, %v8689
      %v8691 = vpop.f32.mrb[0].mxu0
      %8692 = vmatprep.mubr.f32.mxu0 0.0
      %8693 = vmatmul.mubr.f32.gmra.mrb[0].mxu0 %v8439
      %v8694 = vpop.f32.mrb[0].mxu0
      %v8695 = vadd.f32 0.0, %v8694
      %v8696 = vpop.f32.mrb[0].mxu0
      %8697 = vmatprep.mubr.f32.mxu0 0.0
      %8698 = vmatmul.mubr.f32.gmra.mrb[0].mxu0 %v8440
      %v8699 = vpop.f32.mrb[0].mxu0
      %v8700 = vadd.f32 0.0, %v8699
      %v8701 = vpop.f32.mrb[0].mxu0
      %8702 = vdwg.mxu0
      %v8703 = vadd.f32 %v8369, %v8525
      %v8704 = vadd.f32 %v8370, %v8530
      %v8705 = vadd.f32 %v8371, %v8535
      %v8706 = vadd.f32 %v8372, %v8540
      %v8707 = vadd.f32 %v8373, %v8545
      %v8708 = vadd.f32 %v8374, %v8550
      %v8709 = vadd.f32 %v8375, %v8555
      %v8710 = vadd.f32 %v8376, %v8560
      %v8711 = vadd.f32 %v8377, %v8565
      %v8712 = vadd.f32 %v8378, %v8570
      %v8713 = vadd.f32 %v8379, %v8575
      %v8714 = vadd.f32 %v8380, %v8580
      %v8715 = vadd.f32 %v8381, %v8585
      %v8716 = vadd.f32 %v8382, %v8590
      %v8717 = vadd.f32 %v8383, %v8595
      %v8718 = vadd.f32 %v8384, %v8600
      %v8719 = vadd.f32 %v8385, %v8605
      %v8720 = vadd.f32 %v8386, %v8610
      %v8721 = vadd.f32 %v8387, %v8615
      %v8722 = vadd.f32 %v8388, %v8620
      %v8723 = vadd.f32 %v8389, %v8625
      %v8724 = vadd.f32 %v8390, %v8630
      %v8725 = vadd.f32 %v8391, %v8635
      %v8726 = vadd.f32 %v8392, %v8640
      %v8727 = vadd.f32 %v8393, %v8645
      %v8728 = vadd.f32 %v8394, %v8650
      %v8729 = vadd.f32 %v8395, %v8655
      %v8730 = vadd.f32 %v8396, %v8660
      %v8731 = vadd.f32 %v8397, %v8665
      %v8732 = vadd.f32 %v8398, %v8670
      %v8733 = vadd.f32 %v8399, %v8675
      %v8734 = vadd.f32 %v8400, %v8680
      %v8735 = vadd.f32 %v8401, %v8685
      %v8736 = vadd.f32 %v8402, %v8690
      %v8737 = vadd.f32 %v8403, %v8695
      %v8738 = vadd.f32 %v8404, %v8700
      %8739 = vst [vmem:[#allocation3] sm:$0xff] %v8703
      %8740 = vst [vmem:[#allocation3 + $0x8] sm:$0xff] %v8704
      %8741 = vst [vmem:[#allocation3 + $0x10] sm:$0xff] %v8705
      %8742 = vst [vmem:[#allocation3 + $0x18] sm:$0xff] %v8706
      %8743 = vst [vmem:[#allocation3 + $0x20] sm:$0xff] %v8707
      %8744 = vst [vmem:[#allocation3 + $0x28] sm:$0xff] %v8708
      %8745 = vst [vmem:[#allocation3 + $0x30] sm:$0xff] %v8709
      %8746 = vst [vmem:[#allocation3 + $0x38] sm:$0xff] %v8710
      %8747 = vst [vmem:[#allocation3 + $0x40] sm:$0xff] %v8711
      %8748 = vst [vmem:[#allocation3 + $0x48] sm:$0xff] %v8712
      %8749 = vst [vmem:[#allocation3 + $0x50] sm:$0xff] %v8713
      %8750 = vst [vmem:[#allocation3 + $0x58] sm:$0xff] %v8714
      %8751 = vst [vmem:[#allocation3 + $0x60] sm:$0xff] %v8715
      %8752 = vst [vmem:[#allocation3 + $0x68] sm:$0xff] %v8716
      %8753 = vst [vmem:[#allocation3 + $0x70] sm:$0xff] %v8717
      %8754 = vst [vmem:[#allocation3 + $0x78] sm:$0xff] %v8718
      %8755 = vst [vmem:[#allocation3 + $0x80] sm:$0xff] %v8719
      %8756 = vst [vmem:[#allocation3 + $0x88] sm:$0xff] %v8720
      %8757 = vst [vmem:[#allocation3 + $0x90] sm:$0xff] %v8721
      %8758 = vst [vmem:[#allocation3 + $0x98] sm:$0xff] %v8722
      %8759 = vst [vmem:[#allocation3 + $0xa0] sm:$0xff] %v8723
      %8760 = vst [vmem:[#allocation3 + $0xa8] sm:$0xff] %v8724
      %8761 = vst [vmem:[#allocation3 + $0xb0] sm:$0xff] %v8725
      %8762 = vst [vmem:[#allocation3 + $0xb8] sm:$0xff] %v8726
      %8763 = vst [vmem:[#allocation3 + $0xc0] sm:$0xff] %v8727
      %8764 = vst [vmem:[#allocation3 + $0xc8] sm:$0xff] %v8728
      %8765 = vst [vmem:[#allocation3 + $0xd0] sm:$0xff] %v8729
      %8766 = vst [vmem:[#allocation3 + $0xd8] sm:$0xff] %v8730
      %8767 = vst [vmem:[#allocation3 + $0xe0] sm:$0xff] %v8731
      %8768 = vst [vmem:[#allocation3 + $0xe8] sm:$0xff] %v8732
      %8769 = vst [vmem:[#allocation3 + $0xf0] sm:$0xff] %v8733
      %8770 = vst [vmem:[#allocation3 + $0xf8] sm:$0xff] %v8734
      %8771 = vst [vmem:[#allocation3 + $0x100] sm:$0xff] %v8735
      %8772 = vst [vmem:[#allocation3 + $0x108] sm:$0xff] %v8736
      %8773 = vst [vmem:[#allocation3 + $0x110] sm:$0xff] %v8737
      %8774 = vst [vmem:[#allocation3 + $0x118] sm:$0xff] %v8738
      %v8775 = vld [vmem:[#allocation3] sm:$0xff]
      %v8776 = vld [vmem:[#allocation3 + $0x8] sm:$0xff]
      %v8777 = vld [vmem:[#allocation3 + $0x10] sm:$0xff]
      %v8778 = vld [vmem:[#allocation3 + $0x18] sm:$0xff]
      %v8779 = vld [vmem:[#allocation3 + $0x20] sm:$0xff]
      %v8780 = vld [vmem:[#allocation3 + $0x28] sm:$0xff]
      %v8781 = vld [vmem:[#allocation3 + $0x30] sm:$0xff]
      %v8782 = vld [vmem:[#allocation3 + $0x38] sm:$0xff]
      %v8783 = vld [vmem:[#allocation3 + $0x40] sm:$0xff]
      %v8784 = vld [vmem:[#allocation3 + $0x48] sm:$0xff]
      %v8785 = vld [vmem:[#allocation3 + $0x50] sm:$0xff]
      %v8786 = vld [vmem:[#allocation3 + $0x58] sm:$0xff]
      %v8787 = vld [vmem:[#allocation3 + $0x60] sm:$0xff]
      %v8788 = vld [vmem:[#allocation3 + $0x68] sm:$0xff]
      %v8789 = vld [vmem:[#allocation3 + $0x70] sm:$0xff]
      %v8790 = vld [vmem:[#allocation3 + $0x78] sm:$0xff]
      %v8791 = vld [vmem:[#allocation3 + $0x80] sm:$0xff]
      %v8792 = vld [vmem:[#allocation3 + $0x88] sm:$0xff]
      %v8793 = vld [vmem:[#allocation3 + $0x90] sm:$0xff]
      %v8794 = vld [vmem:[#allocation3 + $0x98] sm:$0xff]
      %v8795 = vld [vmem:[#allocation3 + $0xa0] sm:$0xff]
      %v8796 = vld [vmem:[#allocation3 + $0xa8] sm:$0xff]
      %v8797 = vld [vmem:[#allocation3 + $0xb0] sm:$0xff]
      %v8798 = vld [vmem:[#allocation3 + $0xb8] sm:$0xff]
      %v8799 = vld [vmem:[#allocation3 + $0xc0] sm:$0xff]
      %v8800 = vld [vmem:[#allocation3 + $0xc8] sm:$0xff]
      %v8801 = vld [vmem:[#allocation3 + $0xd0] sm:$0xff]
      %v8802 = vld [vmem:[#allocation3 + $0xd8] sm:$0xff]
      %v8803 = vld [vmem:[#allocation3 + $0xe0] sm:$0xff]
      %v8804 = vld [vmem:[#allocation3 + $0xe8] sm:$0xff]
      %v8805 = vld [vmem:[#allocation3 + $0xf0] sm:$0xff]
      %v8806 = vld [vmem:[#allocation3 + $0xf8] sm:$0xff]
      %v8807 = vld [vmem:[#allocation3 + $0x100] sm:$0xff]
      %v8808 = vld [vmem:[#allocation3 + $0x108] sm:$0xff]
      %v8809 = vld [vmem:[#allocation3 + $0x110] sm:$0xff]
      %v8810 = vld [vmem:[#allocation3 + $0x118] sm:$0xff]
      %v8811 = vsel %vm4694, %v8775, 0.0
      %v8812 = vsel %vm4695, %v8776, 0.0
      %v8813 = vsel %vm4696, %v8777, 0.0
      %v8814 = vsel %vm4697, %v8778, 0.0
      %v8815 = vsel %vm4698, %v8779, 0.0
      %v8816 = vsel %vm4699, %v8780, 0.0
      %v8817 = vsel %vm4700, %v8781, 0.0
      %v8818 = vsel %vm4701, %v8782, 0.0
      %v8819 = vsel %vm4702, %v8783, 0.0
      %v8820 = vsel %vm4703, %v8784, 0.0
      %v8821 = vsel %vm4704, %v8785, 0.0
      %v8822 = vsel %vm4705, %v8786, 0.0
      %v8823 = vsel %vm4706, %v8787, 0.0
      %v8824 = vsel %vm4707, %v8788, 0.0
      %v8825 = vsel %vm4708, %v8789, 0.0
      %v8826 = vsel %vm4709, %v8790, 0.0
      %v8827 = vsel %vm4710, %v8791, 0.0
      %v8828 = vsel %vm4711, %v8792, 0.0
      %v8829 = vsel %vm4712, %v8793, 0.0
      %v8830 = vsel %vm4713, %v8794, 0.0
      %v8831 = vsel %vm4714, %v8795, 0.0
      %v8832 = vsel %vm4715, %v8796, 0.0
      %v8833 = vsel %vm4716, %v8797, 0.0
      %v8834 = vsel %vm4717, %v8798, 0.0
      %v8835 = vsel %vm4718, %v8799, 0.0
      %v8836 = vsel %vm4719, %v8800, 0.0
      %v8837 = vsel %vm4720, %v8801, 0.0
      %v8838 = vsel %vm4721, %v8802, 0.0
      %v8839 = vsel %vm4722, %v8803, 0.0
      %v8840 = vsel %vm4723, %v8804, 0.0
      %v8841 = vsel %vm4724, %v8805, 0.0
      %v8842 = vsel %vm4725, %v8806, 0.0
      %v8843 = vsel %vm4726, %v8807, 0.0
      %v8844 = vsel %vm4727, %v8808, 0.0
      %v8845 = vsel %vm4728, %v8809, 0.0
      %v8846 = vsel %vm4729, %v8810, 0.0
      %v8847 = vadd.f32 %v8811, %v8812
      %v8848 = vadd.f32 %v8847, %v8813
      %v8849 = vadd.f32 %v8848, %v8814
      %v8850 = vadd.f32 %v8849, %v8815
      %v8851 = vadd.f32 %v8850, %v8816
      %v8852 = vadd.f32 %v8851, %v8817
      %v8853 = vadd.f32 %v8852, %v8818
      %v8854 = vadd.f32 %v8853, %v8819
      %v8855 = vadd.f32 %v8854, %v8820
      %v8856 = vadd.f32 %v8855, %v8821
      %v8857 = vadd.f32 %v8856, %v8822
      %v8858 = vadd.f32 %v8857, %v8823
      %v8859 = vadd.f32 %v8858, %v8824
      %v8860 = vadd.f32 %v8859, %v8825
      %v8861 = vadd.f32 %v8860, %v8826
      %v8862 = vadd.f32 %v8861, %v8827
      %v8863 = vadd.f32 %v8862, %v8828
      %v8864 = vadd.f32 %v8863, %v8829
      %v8865 = vadd.f32 %v8864, %v8830
      %v8866 = vadd.f32 %v8865, %v8831
      %v8867 = vadd.f32 %v8866, %v8832
      %v8868 = vadd.f32 %v8867, %v8833
      %v8869 = vadd.f32 %v8868, %v8834
      %v8870 = vadd.f32 %v8869, %v8835
      %v8871 = vadd.f32 %v8870, %v8836
      %v8872 = vadd.f32 %v8871, %v8837
      %v8873 = vadd.f32 %v8872, %v8838
      %v8874 = vadd.f32 %v8873, %v8839
      %v8875 = vadd.f32 %v8874, %v8840
      %v8876 = vadd.f32 %v8875, %v8841
      %v8877 = vadd.f32 %v8876, %v8842
      %v8878 = vadd.f32 %v8877, %v8843
      %v8879 = vadd.f32 %v8878, %v8844
      %v8880 = vadd.f32 %v8879, %v8845
      %v8881 = vadd.f32 %v8880, %v8846
      %v8882 = vrot.slane %v8881, 4
      %v8883 = vadd.f32 %v8881, %v8882
      %v8884 = vrot.slane %v8883, 2
      %v8885 = vadd.f32 %v8883, %v8884
      %v8886 = vrot.slane %v8885, 1
      %v8887 = vadd.f32 %v8885, %v8886
      %v8888 = vmul.f32 %v8811, %v8811
      %v8889 = vmul.f32 %v8812, %v8812
      %v8890 = vmul.f32 %v8813, %v8813
      %v8891 = vmul.f32 %v8814, %v8814
      %v8892 = vmul.f32 %v8815, %v8815
      %v8893 = vmul.f32 %v8816, %v8816
      %v8894 = vmul.f32 %v8817, %v8817
      %v8895 = vmul.f32 %v8818, %v8818
      %v8896 = vmul.f32 %v8819, %v8819
      %v8897 = vmul.f32 %v8820, %v8820
      %v8898 = vmul.f32 %v8821, %v8821
      %v8899 = vmul.f32 %v8822, %v8822
      %v8900 = vmul.f32 %v8823, %v8823
      %v8901 = vmul.f32 %v8824, %v8824
      %v8902 = vmul.f32 %v8825, %v8825
      %v8903 = vmul.f32 %v8826, %v8826
      %v8904 = vmul.f32 %v8827, %v8827
      %v8905 = vmul.f32 %v8828, %v8828
      %v8906 = vmul.f32 %v8829, %v8829
      %v8907 = vmul.f32 %v8830, %v8830
      %v8908 = vmul.f32 %v8831, %v8831
      %v8909 = vmul.f32 %v8832, %v8832
      %v8910 = vmul.f32 %v8833, %v8833
      %v8911 = vmul.f32 %v8834, %v8834
      %v8912 = vmul.f32 %v8835, %v8835
      %v8913 = vmul.f32 %v8836, %v8836
      %v8914 = vmul.f32 %v8837, %v8837
      %v8915 = vmul.f32 %v8838, %v8838
      %v8916 = vmul.f32 %v8839, %v8839
      %v8917 = vmul.f32 %v8840, %v8840
      %v8918 = vmul.f32 %v8841, %v8841
      %v8919 = vmul.f32 %v8842, %v8842
      %v8920 = vmul.f32 %v8843, %v8843
      %v8921 = vmul.f32 %v8844, %v8844
      %v8922 = vmul.f32 %v8845, %v8845
      %v8923 = vmul.f32 %v8846, %v8846
      %v8924 = vadd.f32 %v8888, %v8889
      %v8925 = vadd.f32 %v8924, %v8890
      %v8926 = vadd.f32 %v8925, %v8891
      %v8927 = vadd.f32 %v8926, %v8892
      %v8928 = vadd.f32 %v8927, %v8893
      %v8929 = vadd.f32 %v8928, %v8894
      %v8930 = vadd.f32 %v8929, %v8895
      %v8931 = vadd.f32 %v8930, %v8896
      %v8932 = vadd.f32 %v8931, %v8897
      %v8933 = vadd.f32 %v8932, %v8898
      %v8934 = vadd.f32 %v8933, %v8899
      %v8935 = vadd.f32 %v8934, %v8900
      %v8936 = vadd.f32 %v8935, %v8901
      %v8937 = vadd.f32 %v8936, %v8902
      %v8938 = vadd.f32 %v8937, %v8903
      %v8939 = vadd.f32 %v8938, %v8904
      %v8940 = vadd.f32 %v8939, %v8905
      %v8941 = vadd.f32 %v8940, %v8906
      %v8942 = vadd.f32 %v8941, %v8907
      %v8943 = vadd.f32 %v8942, %v8908
      %v8944 = vadd.f32 %v8943, %v8909
      %v8945 = vadd.f32 %v8944, %v8910
      %v8946 = vadd.f32 %v8945, %v8911
      %v8947 = vadd.f32 %v8946, %v8912
      %v8948 = vadd.f32 %v8947, %v8913
      %v8949 = vadd.f32 %v8948, %v8914
      %v8950 = vadd.f32 %v8949, %v8915
      %v8951 = vadd.f32 %v8950, %v8916
      %v8952 = vadd.f32 %v8951, %v8917
      %v8953 = vadd.f32 %v8952, %v8918
      %v8954 = vadd.f32 %v8953, %v8919
      %v8955 = vadd.f32 %v8954, %v8920
      %v8956 = vadd.f32 %v8955, %v8921
      %v8957 = vadd.f32 %v8956, %v8922
      %v8958 = vadd.f32 %v8957, %v8923
      %v8959 = vrot.slane %v8958, 4
      %v8960 = vadd.f32 %v8958, %v8959
      %v8961 = vrot.slane %v8960, 2
      %v8962 = vadd.f32 %v8960, %v8961
      %v8963 = vrot.slane %v8962, 1
      %v8964 = vadd.f32 %v8962, %v8963
      %v8965 = vmul.f32 %v8887, 0.00390625
      %v8966 = vadd.f32 %v8965, %v242
      %v8967 = vmul.f32 %v8964, 0.00390625
      %v8968 = vmul.f32 %v8965, %v8965
      %v8969 = vsub.f32 %v8967, %v8968
      %v8970 = vadd.f32 %v8969, 1e-05
      %v8971 = vrsqrt.pop %v8970
      %v8972 = vmul.f32 %v243, %v8971
      %v8973 = vsub.f32 %v242, %v8966
      %v8974 = vmul.f32 %v8973, %v8972
      %v8975 = vadd.f32 %v8974, %v244
      %v8976 = vlaneseq
      %v8977 = vshrl.u32 %v8976, 7
      %v8978 = vsub.s32 0, %v8977
      %v8979 = vrot.slane %v8972, %v8978
      %v8980 = vmul.f32 %v8775, %v8979
      %v8981 = vmul.f32 %v8776, %v8979
      %v8982 = vmul.f32 %v8777, %v8979
      %v8983 = vmul.f32 %v8778, %v8979
      %v8984 = vmul.f32 %v8779, %v8979
      %v8985 = vmul.f32 %v8780, %v8979
      %v8986 = vmul.f32 %v8781, %v8979
      %v8987 = vmul.f32 %v8782, %v8979
      %v8988 = vmul.f32 %v8783, %v8979
      %v8989 = vmul.f32 %v8784, %v8979
      %v8990 = vmul.f32 %v8785, %v8979
      %v8991 = vmul.f32 %v8786, %v8979
      %v8992 = vmul.f32 %v8787, %v8979
      %v8993 = vmul.f32 %v8788, %v8979
      %v8994 = vmul.f32 %v8789, %v8979
      %v8995 = vmul.f32 %v8790, %v8979
      %v8996 = vmul.f32 %v8791, %v8979
      %v8997 = vmul.f32 %v8792, %v8979
      %v8998 = vmul.f32 %v8793, %v8979
      %v8999 = vmul.f32 %v8794, %v8979
      %v9000 = vmul.f32 %v8795, %v8979
      %v9001 = vmul.f32 %v8796, %v8979
      %v9002 = vmul.f32 %v8797, %v8979
      %v9003 = vmul.f32 %v8798, %v8979
      %v9004 = vmul.f32 %v8799, %v8979
      %v9005 = vmul.f32 %v8800, %v8979
      %v9006 = vmul.f32 %v8801, %v8979
      %v9007 = vmul.f32 %v8802, %v8979
      %v9008 = vmul.f32 %v8803, %v8979
      %v9009 = vmul.f32 %v8804, %v8979
      %v9010 = vmul.f32 %v8805, %v8979
      %v9011 = vmul.f32 %v8806, %v8979
      %v9012 = vmul.f32 %v8807, %v8979
      %v9013 = vmul.f32 %v8808, %v8979
      %v9014 = vmul.f32 %v8809, %v8979
      %v9015 = vmul.f32 %v8810, %v8979
      %v9016 = vlaneseq
      %v9017 = vshrl.u32 %v9016, 7
      %v9018 = vsub.s32 0, %v9017
      %v9019 = vrot.slane %v8975, %v9018
      %v9020 = vadd.f32 %v8980, %v9019
      %v9021 = vadd.f32 %v8981, %v9019
      %v9022 = vadd.f32 %v8982, %v9019
      %v9023 = vadd.f32 %v8983, %v9019
      %v9024 = vadd.f32 %v8984, %v9019
      %v9025 = vadd.f32 %v8985, %v9019
      %v9026 = vadd.f32 %v8986, %v9019
      %v9027 = vadd.f32 %v8987, %v9019
      %v9028 = vadd.f32 %v8988, %v9019
      %v9029 = vadd.f32 %v8989, %v9019
      %v9030 = vadd.f32 %v8990, %v9019
      %v9031 = vadd.f32 %v8991, %v9019
      %v9032 = vadd.f32 %v8992, %v9019
      %v9033 = vadd.f32 %v8993, %v9019
      %v9034 = vadd.f32 %v8994, %v9019
      %v9035 = vadd.f32 %v8995, %v9019
      %v9036 = vadd.f32 %v8996, %v9019
      %v9037 = vadd.f32 %v8997, %v9019
      %v9038 = vadd.f32 %v8998, %v9019
      %v9039 = vadd.f32 %v8999, %v9019
      %v9040 = vadd.f32 %v9000, %v9019
      %v9041 = vadd.f32 %v9001, %v9019
      %v9042 = vadd.f32 %v9002, %v9019
      %v9043 = vadd.f32 %v9003, %v9019
      %v9044 = vadd.f32 %v9004, %v9019
      %v9045 = vadd.f32 %v9005, %v9019
      %v9046 = vadd.f32 %v9006, %v9019
      %v9047 = vadd.f32 %v9007, %v9019
      %v9048 = vadd.f32 %v9008, %v9019
      %v9049 = vadd.f32 %v9009, %v9019
      %v9050 = vadd.f32 %v9010, %v9019
      %v9051 = vadd.f32 %v9011, %v9019
      %v9052 = vadd.f32 %v9012, %v9019
      %v9053 = vadd.f32 %v9013, %v9019
      %v9054 = vadd.f32 %v9014, %v9019
      %v9055 = vadd.f32 %v9015, %v9019
      %9056 = vst [vmem:[#allocation3] sm:$0xff] %v9020
      %9057 = vst [vmem:[#allocation3 + $0x8] sm:$0xff] %v9021
      %9058 = vst [vmem:[#allocation3 + $0x10] sm:$0xff] %v9022
      %9059 = vst [vmem:[#allocation3 + $0x18] sm:$0xff] %v9023
      %9060 = vst [vmem:[#allocation3 + $0x20] sm:$0xff] %v9024
      %9061 = vst [vmem:[#allocation3 + $0x28] sm:$0xff] %v9025
      %9062 = vst [vmem:[#allocation3 + $0x30] sm:$0xff] %v9026
      %9063 = vst [vmem:[#allocation3 + $0x38] sm:$0xff] %v9027
      %9064 = vst [vmem:[#allocation3 + $0x40] sm:$0xff] %v9028
      %9065 = vst [vmem:[#allocation3 + $0x48] sm:$0xff] %v9029
      %9066 = vst [vmem:[#allocation3 + $0x50] sm:$0xff] %v9030
      %9067 = vst [vmem:[#allocation3 + $0x58] sm:$0xff] %v9031
      %9068 = vst [vmem:[#allocation3 + $0x60] sm:$0xff] %v9032
      %9069 = vst [vmem:[#allocation3 + $0x68] sm:$0xff] %v9033
      %9070 = vst [vmem:[#allocation3 + $0x70] sm:$0xff] %v9034
      %9071 = vst [vmem:[#allocation3 + $0x78] sm:$0xff] %v9035
      %9072 = vst [vmem:[#allocation3 + $0x80] sm:$0xff] %v9036
      %9073 = vst [vmem:[#allocation3 + $0x88] sm:$0xff] %v9037
      %9074 = vst [vmem:[#allocation3 + $0x90] sm:$0xff] %v9038
      %9075 = vst [vmem:[#allocation3 + $0x98] sm:$0xff] %v9039
      %9076 = vst [vmem:[#allocation3 + $0xa0] sm:$0xff] %v9040
      %9077 = vst [vmem:[#allocation3 + $0xa8] sm:$0xff] %v9041
      %9078 = vst [vmem:[#allocation3 + $0xb0] sm:$0xff] %v9042
      %9079 = vst [vmem:[#allocation3 + $0xb8] sm:$0xff] %v9043
      %9080 = vst [vmem:[#allocation3 + $0xc0] sm:$0xff] %v9044
      %9081 = vst [vmem:[#allocation3 + $0xc8] sm:$0xff] %v9045
      %9082 = vst [vmem:[#allocation3 + $0xd0] sm:$0xff] %v9046
      %9083 = vst [vmem:[#allocation3 + $0xd8] sm:$0xff] %v9047
      %9084 = vst [vmem:[#allocation3 + $0xe0] sm:$0xff] %v9048
      %9085 = vst [vmem:[#allocation3 + $0xe8] sm:$0xff] %v9049
      %9086 = vst [vmem:[#allocation3 + $0xf0] sm:$0xff] %v9050
      %9087 = vst [vmem:[#allocation3 + $0xf8] sm:$0xff] %v9051
      %9088 = vst [vmem:[#allocation3 + $0x100] sm:$0xff] %v9052
      %9089 = vst [vmem:[#allocation3 + $0x108] sm:$0xff] %v9053
      %9090 = vst [vmem:[#allocation3 + $0x110] sm:$0xff] %v9054
      %9091 = vst [vmem:[#allocation3 + $0x118] sm:$0xff] %v9055
      loop: start=0, step=1, limit=16
      $region51: #{residual_block.1} parent=35 // loop_pre_header
        _
      $region52: #{residual_block.1} parent=35 // loop_header
        %s9093 = sphi 0, %s9097
        %p9094 = scmp.ge.s32.totalorder %s9093, 16
      $region53: #{residual_block.1} parent=35 // loop_header_branch
        %9096 = sbr.rel (%p9094) target = $region57
      $region54: #{residual_block.1} parent=35 // loop_body
        %s9098 = smul.u32 %s9093, 18
        %s9099 = scalar_lea.vmem [#allocation3], %s9098
        %v9100 = vld [vmem:[%s9099] sm:$0xff]
        %v9101 = vld [vmem:[%s9099 + $0x8] sm:$0xff]
        %s9102 = smul.u32 %s9093, 16
        %s9103 = scalar_lea.vmem %s192, %s9102
        %v9104 = vld [vmem:[%s9103] sm:$0xff]
        %v9105 = vld [vmem:[%s9103 + $0x8] sm:$0xff]
        %v9106 = vadd.f32 %v9100, %v9104
        %v9107 = vadd.f32 %v9101, %v9105
        %s9108 = scalar_lea.vmem %s197, %s9102
        %9109 = vst [vmem:[%s9108] sm:$0xff] %v9106
        %9110 = vst [vmem:[%s9108 + $0x8] sm:$0xff] %v9107
      $region55: #{residual_block.1} parent=35 // loop_footer
        %s9097 = sadd.s32 1, %s9093
      $region56: #{residual_block.1} parent=35 // loop_footer_branch
        %9092 = sbr.rel target = $region52
      $region57: #{residual_block.1} parent=35 // loop_exit
        _
      %p9111 = scmp.lt.s32.totalorder %s15, 1
      %s9112 = scalar_select %p9111, %s15, 1
      %s9113 = smul.addr %s9112, 32
      %s9114 = smul.addr %s9113, 8
      %s9115 = scalar_lea.vmem %s4, %s9114
      // Predicated region
      $region58: #{residual_block.1} parent=35 // pred_check
        %p9116 = pneg %p122
      $region59: #{residual_block.1} parent=35 // pred_check_branch
        %9118 = sbr.rel (%p9116) target = $region61
      $region60: #{residual_block.1} parent=35 // pred_region
        _
      $region61: #{residual_block.1} parent=35 // pred_fallthru
        _
    $region36: #{residual_block.1} parent=5 // pred_fallthru
      _
    %p9119 = scmp.le.s32.totalorder 2, %s10
    // Predicated region
    $region62: #{residual_block.1} parent=5 // pred_check
      %p9120 = pneg %p9119
    $region63: #{residual_block.1} parent=5 // pred_check_branch
      %9122 = sbr.rel (%p9120) target = $region65
    $region64: #{residual_block.1} parent=5 // pred_region
      %s9123 = ssub.s32 %s10, 2
      // Predicated region
      $region66: #{residual_block.1} parent=64 // pred_check
        %p9124 = pneg %p128
      $region67: #{residual_block.1} parent=64 // pred_check_branch
        %9126 = sbr.rel (%p9124) target = $region69
      $region68: #{residual_block.1} parent=64 // pred_region
        %p9127 = scmp.lt.s32.totalorder %s16, 1
        %s9128 = scalar_select %p9127, %s16, 1
        %s9129 = smul.addr %s9128, 32
        %s9130 = smul.addr %s9129, 8
        %s9131 = scalar_lea.vmem %s4, %s9130
      $region69: #{residual_block.1} parent=64 // pred_fallthru
        _
    $region65: #{residual_block.1} parent=5 // pred_fallthru
      _
  $region6: #{residual_block.1} parent=0 // loop_footer
    %s14 = sadd.s32 1, %s10
  $region7: #{residual_block.1} parent=0 // loop_footer_branch
    %9 = sbr.rel target = $region3
  $region8: #{residual_block.1} parent=0 // loop_exit
    _

</llo_original>
